<compile_context>
chip_gen: v6e
topology: v6e:2x2x1
jax: 0.10.0
libtpu: 0.0.40
codegen_flags: <defaults>
</compile_context>

<pallas_src>
import functools

import jax
import jax.numpy as jnp
from jax.experimental import pallas as pl
from jax.experimental.pallas import tpu as pltpu

LRELU_SLOPE = 0.01        # nn.LeakyReLU default negative_slope
IN_EPS = 1e-5             # nn.InstanceNorm3d default eps

# P-tile sizing: keep the double-buffered bf16 patch blocks (2 * Kp * TP * 2B)
# well inside the scoped-VMEM budget of every generation (binding constraint is
# v7x's 64 MiB physical VMEM).
# TODO(synk): derive the budget per generation via pltpu.get_tpu_info() instead
# of a fixed conservative constant.
_PATCH_VMEM_BUDGET = 6 * 1024 * 1024
_TP_CAP = 2048
_VMEM_LIMIT = 32 * 1024 * 1024


def _apply_act(y, act):
    if act == "lrelu":
        return jnp.where(y >= 0.0, y, LRELU_SLOPE * y)
    if act == "sigmoid":
        return jax.nn.sigmoid(y)
    return y


def _round_up(x, m):
    return (x + m - 1) // m * m


def _choose_tp(p_total, k_pad):
    """Largest multiple of 128 dividing P, capped by the patch-VMEM budget."""
    if p_total % 128 != 0:
        # TODO(synk): pad P to a multiple of 128 (with masked stats) instead of
        # falling back to a single whole-P block for ragged spatial sizes.
        return p_total
    cap = (_PATCH_VMEM_BUDGET // (4 * k_pad)) // 128 * 128
    cap = max(128, min(cap, _TP_CAP, p_total))
    t = cap
    while t >= 128:
        if p_total % t == 0:
            return t
        t -= 128
    return p_total


# ----------------------------------------------------------------------------
# Pallas kernels
# ----------------------------------------------------------------------------
def _conv_gemm_kernel(*refs, has_bias, do_norm, act):
    """GEMM tile: y = W @ patches (+ bias) [+ InstanceNorm] + activation.

    do_norm=True is only used when the block spans a sample's full P.
    W (Cout, Kp) bf16, patches (1, Kp, TP) bf16, bias (Cout, 1) f32,
    out (1, Cout, TP) f32 (lane-dense over the spatial axis).
    """
    if has_bias:
        w_ref, p_ref, b_ref, o_ref = refs
    else:
        w_ref, p_ref, o_ref = refs
    y = jnp.dot(w_ref[...], p_ref[0], preferred_element_type=jnp.float32)
    if has_bias:
        y = y + b_ref[...]
    if do_norm:
        mean = jnp.mean(y, axis=1, keepdims=True)
        var = jnp.mean(jnp.square(y - mean), axis=1, keepdims=True)
        y = (y - mean) * jax.lax.rsqrt(var + IN_EPS)
    o_ref[0] = _apply_act(y, act).astype(o_ref.dtype)


def _conv_gemm_stats_kernel(*refs, has_bias, n_p, inv_p):
    """P-tiled GEMM that streams per-(sample, channel) InstanceNorm stats."""
    if has_bias:
        w_ref, p_ref, b_ref = refs[:3]
        y_ref, mean_ref, rstd_ref, sum_sc, sq_sc = refs[3:]
    else:
        w_ref, p_ref = refs[:2]
        y_ref, mean_ref, rstd_ref, sum_sc, sq_sc = refs[2:]
    pj = pl.program_id(1)

    @pl.when(pj == 0)
    def _():
        sum_sc[...] = jnp.zeros_like(sum_sc)
        sq_sc[...] = jnp.zeros_like(sq_sc)

    y = jnp.dot(w_ref[...], p_ref[0], preferred_element_type=jnp.float32)
    if has_bias:
        y = y + b_ref[...]
    y_ref[0] = y
    sum_sc[...] += jnp.sum(y, axis=1, keepdims=True)
    sq_sc[...] += jnp.sum(y * y, axis=1, keepdims=True)

    @pl.when(pj == n_p - 1)
    def _():
        mean = sum_sc[...] * inv_p
        var = jnp.maximum(sq_sc[...] * inv_p - mean * mean, 0.0)
        mean_ref[0] = mean
        rstd_ref[0] = jax.lax.rsqrt(var + IN_EPS)


def _norm_act_kernel(y_ref, mean_ref, rstd_ref, o_ref, *, act):
    """Second pass of the tiled path: normalize + activation per tile."""
    y = (y_ref[0] - mean_ref[0]) * rstd_ref[0]
    o_ref[0] = _apply_act(y, act).astype(o_ref.dtype)


# ----------------------------------------------------------------------------
# Conv3d(3x3x3, pad=1) + optional InstanceNorm3d + activation, as Pallas GEMMs
# ----------------------------------------------------------------------------
def conv3d_block(x, w, b=None, *, stride=1, do_norm=True, act="lrelu"):
    """x: (N, Cin, D, H, W) f32, w: (Cout, Cin, 3, 3, 3), b: (Cout,) or None."""
    N, Cin, D, H, W = x.shape
    Cout = w.shape[0]
    Do = (D - 1) // stride + 1
    Ho = (H - 1) // stride + 1
    Wo = (W - 1) // stride + 1
    P = Do * Ho * Wo
    K = 27 * Cin
    Kp = _round_up(K, 16)

    # im2col (wrapper glue), transposed layout (N, Kp, P); stored bf16 to halve
    # the dominant HBM stream.
    # TODO(synk): build the 27 taps from a halo'd VMEM tile inside the kernel
    # to eliminate the HBM im2col materialization entirely.
    xp = jnp.pad(x, ((0, 0), (0, 0), (1, 1), (1, 1), (1, 1)))
    cols = []
    for kd in range(3):
        for kh in range(3):
            for kw in range(3):
                cols.append(xp[:, :,
                               kd:kd + stride * (Do - 1) + 1:stride,
                               kh:kh + stride * (Ho - 1) + 1:stride,
                               kw:kw + stride * (Wo - 1) + 1:stride])
    pat = jnp.stack(cols, axis=1).reshape(N, K, P)      # K order = (tap, cin)
    if Kp > K:
        pat = jnp.pad(pat, ((0, 0), (0, Kp - K), (0, 0)))
    pat = pat.astype(jnp.bfloat16)

    wmat = jnp.transpose(w, (0, 2, 3, 4, 1)).reshape(Cout, K)   # matches pat K order
    if Kp > K:
        wmat = jnp.pad(wmat, ((0, 0), (0, Kp - K)))
    wmat = wmat.astype(jnp.bfloat16)

    has_bias = b is not None
    args = [wmat, pat]
    if has_bias:
        args.append(b.reshape(Cout, 1).astype(jnp.float32))

    TP = _choose_tp(P, Kp)
    n_p = P // TP

    cost = pl.CostEstimate(
        flops=2 * N * Cout * Kp * P,
        transcendentals=(N * Cout * P) if act == "sigmoid" else 0,
        bytes_accessed=2 * N * Kp * P + 2 * Cout * Kp + 4 * N * Cout * P,
    )

    # --- Path A: whole P fits one block per sample -> fully fused kernel. ---
    if n_p == 1:
        in_specs = [pl.BlockSpec((Cout, Kp), lambda n: (0, 0)),
                    pl.BlockSpec((1, Kp, P), lambda n: (n, 0, 0))]
        if has_bias:
            in_specs.append(pl.BlockSpec((Cout, 1), lambda n: (0, 0)))
        y = pl.pallas_call(
            functools.partial(_conv_gemm_kernel, has_bias=has_bias,
                              do_norm=do_norm, act=act),
            out_shape=jax.ShapeDtypeStruct((N, Cout, P), jnp.float32),
            grid=(N,),
            in_specs=in_specs,
            out_specs=pl.BlockSpec((1, Cout, P), lambda n: (n, 0, 0)),
            compiler_params=pltpu.CompilerParams(
                dimension_semantics=("parallel",),
                vmem_limit_bytes=_VMEM_LIMIT),
            cost_estimate=cost,
        )(*args)
        return y.reshape(N, Cout, Do, Ho, Wo)

    # --- Path B: P tiled. ---
    in_specs = [pl.BlockSpec((Cout, Kp), lambda n, p: (0, 0)),
                pl.BlockSpec((1, Kp, TP), lambda n, p: (n, 0, p))]
    if has_bias:
        in_specs.append(pl.BlockSpec((Cout, 1), lambda n, p: (0, 0)))

    if not do_norm:
        # No norm needed (pred layer): apply activation directly per tile.
        y = pl.pallas_call(
            functools.partial(_conv_gemm_kernel, has_bias=has_bias,
                              do_norm=False, act=act),
            out_shape=jax.ShapeDtypeStruct((N, Cout, P), jnp.float32),
            grid=(N, n_p),
            in_specs=in_specs,
            out_specs=pl.BlockSpec((1, Cout, TP), lambda n, p: (n, 0, p)),
            compiler_params=pltpu.CompilerParams(
                dimension_semantics=("parallel", "parallel"),
                vmem_limit_bytes=_VMEM_LIMIT),
            cost_estimate=cost,
        )(*args)
        return y.reshape(N, Cout, Do, Ho, Wo)

    # Pass 1: GEMM + streamed sum / sum-of-squares across the (arbitrary) P axis.
    y, mean, rstd = pl.pallas_call(
        functools.partial(_conv_gemm_stats_kernel, has_bias=has_bias,
                          n_p=n_p, inv_p=1.0 / P),
        out_shape=(jax.ShapeDtypeStruct((N, Cout, P), jnp.float32),
                   jax.ShapeDtypeStruct((N, Cout, 1), jnp.float32),
                   jax.ShapeDtypeStruct((N, Cout, 1), jnp.float32)),
        grid=(N, n_p),
        in_specs=in_specs,
        out_specs=(pl.BlockSpec((1, Cout, TP), lambda n, p: (n, 0, p)),
                   pl.BlockSpec((1, Cout, 1), lambda n, p: (n, 0, 0)),
                   pl.BlockSpec((1, Cout, 1), lambda n, p: (n, 0, 0))),
        scratch_shapes=[pltpu.VMEM((Cout, 1), jnp.float32),
                        pltpu.VMEM((Cout, 1), jnp.float32)],
        compiler_params=pltpu.CompilerParams(
            dimension_semantics=("parallel", "arbitrary"),
            vmem_limit_bytes=_VMEM_LIMIT),
        cost_estimate=cost,
    )(*args)

    # Pass 2: elementwise normalize + activation, fully parallel over tiles.
    out = pl.pallas_call(
        functools.partial(_norm_act_kernel, act=act),
        out_shape=jax.ShapeDtypeStruct((N, Cout, P), jnp.float32),
        grid=(N, n_p),
        in_specs=[pl.BlockSpec((1, Cout, TP), lambda n, p: (n, 0, p)),
                  pl.BlockSpec((1, Cout, 1), lambda n, p: (n, 0, 0)),
                  pl.BlockSpec((1, Cout, 1), lambda n, p: (n, 0, 0))],
        out_specs=pl.BlockSpec((1, Cout, TP), lambda n, p: (n, 0, p)),
        compiler_params=pltpu.CompilerParams(
            dimension_semantics=("parallel", "parallel"),
            vmem_limit_bytes=_VMEM_LIMIT),
    )(y, mean, rstd)
    return out.reshape(N, Cout, Do, Ho, Wo)


# ----------------------------------------------------------------------------
# Trilinear 2x upsampling (nn.Upsample(scale_factor=2, mode='trilinear',
# align_corners=False)), separable per axis on channels-major activations.
# ----------------------------------------------------------------------------
def _upsample_matrix(L):
    Lout = 2 * L
    i = jnp.arange(Lout, dtype=jnp.float32)
    src = jnp.maximum(0.5 * (i + 0.5) - 0.5, 0.0)       # align_corners=False
    i0 = jnp.clip(jnp.floor(src).astype(jnp.int32), 0, L - 1)
    i1 = jnp.minimum(i0 + 1, L - 1)
    lam = src - i0.astype(jnp.float32)
    return ((1.0 - lam)[:, None] * jax.nn.one_hot(i0, L, dtype=jnp.float32)
            + lam[:, None] * jax.nn.one_hot(i1, L, dtype=jnp.float32))


# TODO(synk): fold the fixed align_corners=False trilinear weights into the
# following conv's im2col (one fused pallas_call) instead of materializing the
# 8x larger tensor via XLA einsums.
def trilinear_upsample2x(x):
    N, C, D, H, W = x.shape
    Md, Mh, Mw = _upsample_matrix(D), _upsample_matrix(H), _upsample_matrix(W)
    y = jnp.einsum("xd,ncdhw->ncxhw", Md, x)
    y = jnp.einsum("yh,ncxhw->ncxyw", Mh, y)
    y = jnp.einsum("zw,ncxyw->ncxyz", Mw, y)
    return y


# ----------------------------------------------------------------------------
# Parameters (deterministic synthetic init; shapes follow the PyTorch module)
# ----------------------------------------------------------------------------
def init_params(key, in_channels=1, n_classes=2, F=4):
    kit = iter(jax.random.split(key, 24))

    def conv_w(cout, cin):
        k = next(kit)
        return (jax.random.normal(k, (cout, cin, 3, 3, 3), jnp.float32)
                * (1.0 / jnp.sqrt(float(cin * 27))))

    p = {}
    p["conv_w"] = conv_w(F, in_channels)                          # self.conv
    p["conv_b"] = 0.01 * jax.random.normal(next(kit), (F,), jnp.float32)
    p["conv1_0_w"] = conv_w(F, F)                                  # self.conv1
    p["conv1_1_w"] = conv_w(F, F)
    p["max2_w"] = conv_w(2 * F, F)                                 # self.max_cov2
    p["cov2_0_w"] = conv_w(2 * F, 2 * F)                           # self.cov2
    p["cov2_1_w"] = conv_w(2 * F, 2 * F)
    p["max3_w"] = conv_w(4 * F, 2 * F)                             # self.max_cov3
    p["cov3_0_w"] = conv_w(4 * F, 4 * F)                           # self.cov3
    p["cov3_1_w"] = conv_w(4 * F, 4 * F)
    p["up2_w"] = conv_w(2 * F, 4 * F)                              # self.up_cov2
    p["de2_0_w"] = conv_w(2 * F, 4 * F)                            # self.de_cov2
    p["de2_1_w"] = conv_w(2 * F, 2 * F)
    p["up1_w"] = conv_w(F, 2 * F)                                  # self.up_cov1
    p["de1_0_w"] = conv_w(F, 2 * F)                                # self.de_cov1
    p["de1_1_w"] = conv_w(F, F)
    p["pred_w"] = conv_w(n_classes, F)                             # self.pred
    p["pred_b"] = 0.01 * jax.random.normal(next(kit), (n_classes,), jnp.float32)
    return p


# ----------------------------------------------------------------------------
# Forward pass (matches UNet3D_orig.forward; activations stay NCDHW)
# ----------------------------------------------------------------------------
def unet3d_forward(x_ncdhw, p):
    x = x_ncdhw.astype(jnp.float32)

    # x = lrelu(insnorm(conv(x)))
    x = conv3d_block(x, p["conv_w"], p["conv_b"])
    # x_cov1 = conv1(x)
    h = conv3d_block(x, p["conv1_0_w"])
    x_cov1 = conv3d_block(h, p["conv1_1_w"])
    # x_cov2 = cov2(max_cov2(x_cov1))
    h = conv3d_block(x_cov1, p["max2_w"], stride=2)
    h = conv3d_block(h, p["cov2_0_w"])
    x_cov2 = conv3d_block(h, p["cov2_1_w"])
    # x_cov3 = cov3(max_cov3(x_cov2))
    h = conv3d_block(x_cov2, p["max3_w"], stride=2)
    h = conv3d_block(h, p["cov3_0_w"])
    x_cov3 = conv3d_block(h, p["cov3_1_w"])
    # x = up_cov2(x_cov3); cat; de_cov2
    u = trilinear_upsample2x(x_cov3)
    u = conv3d_block(u, p["up2_w"])
    # TODO(synk): avoid materializing the concat by two split-K dots in-kernel.
    h = jnp.concatenate([u, x_cov2], axis=1)          # torch.cat(dim=1)
    h = conv3d_block(h, p["de2_0_w"])
    h = conv3d_block(h, p["de2_1_w"])
    # x = up_cov1(x); cat; de_cov1
    u = trilinear_upsample2x(h)
    u = conv3d_block(u, p["up1_w"])
    h = jnp.concatenate([u, x_cov1], axis=1)
    h = conv3d_block(h, p["de1_0_w"])
    h = conv3d_block(h, p["de1_1_w"])
    # out = sigmoid(pred(x))
    out = conv3d_block(h, p["pred_w"], p["pred_b"], do_norm=False, act="sigmoid")
    return out                                        # already NCDHW


if __name__ == "__main__":
    N, IN_CH, N_CLASSES, F, S = 2, 1, 2, 4, 16
    key = jax.random.PRNGKey(0)
    kx, kp = jax.random.split(key)
    x = jax.random.normal(kx, (N, IN_CH, S, S, S), jnp.float32)
    params = init_params(kp, in_channels=IN_CH, n_classes=N_CLASSES, F=F)

    fwd = jax.jit(lambda inp: unet3d_forward(inp, params))
    out = jax.block_until_ready(fwd(x))

    assert out.shape == (N, N_CLASSES, S, S, S), out.shape
    assert bool(jnp.all(jnp.isfinite(out)))
    assert bool(jnp.all((out >= 0.0) & (out <= 1.0)))  # sigmoid range
    print("KERNEL_OK")
</pallas_src>

<mosaic_0001>
module attributes {stable_mosaic.version = 11 : i64} {
  func.func @_conv_gemm_stats_kernel(%arg0: i32, %arg1: i32, %arg2: memref<4x32xbf16, #tpu.memory_space<vmem>>, %arg3: memref<1x32x2048xbf16, #tpu.memory_space<vmem>>, %arg4: memref<4x1xf32, #tpu.memory_space<vmem>>, %arg5: memref<1x4x2048xf32, #tpu.memory_space<vmem>>, %arg6: memref<1x4x1xf32, #tpu.memory_space<vmem>>, %arg7: memref<1x4x1xf32, #tpu.memory_space<vmem>>, %arg8: memref<4x1xf32, #tpu.memory_space<vmem>>, %arg9: memref<4x1xf32, #tpu.memory_space<vmem>>) attributes {dimension_semantics = [#tpu.dimension_semantics<parallel>, #tpu.dimension_semantics<arbitrary>], iteration_bounds = array<i64: 2, 2>, scalar_prefetch = 0 : i64, scratch_operands = 2 : i64, tpu.core_type = #tpu.core_type<tc>, window_params = [{pipeline_mode = #tpu.pipeline_mode<synchronous>, transform_indices = @transform_0, window_bounds = array<i64: 4, 32>}, {transform_indices = @transform_1, window_bounds = array<i64: 1, 32, 2048>}, {pipeline_mode = #tpu.pipeline_mode<synchronous>, transform_indices = @transform_2, window_bounds = array<i64: 4, 1>}, {transform_indices = @transform_3, window_bounds = array<i64: 1, 4, 2048>}, {transform_indices = @transform_4, window_bounds = array<i64: 1, 4, 1>}, {transform_indices = @transform_5, window_bounds = array<i64: 1, 4, 1>}]} {
    %c0_i32 = arith.constant 0 : i32
    %0 = arith.cmpi eq, %arg1, %c0_i32 : i32
    %1 = arith.extui %0 : i1 to i32
    %c0_i32_0 = arith.constant 0 : i32
    %2 = arith.cmpi ne, %1, %c0_i32_0 : i32
    scf.if %2 {
      %cst_21 = arith.constant 0.000000e+00 : f32
      %27 = vector.broadcast %cst_21 : f32 to vector<4x1xf32>
      %c0_22 = arith.constant 0 : index
      %c0_23 = arith.constant 0 : index
      %28 = vector.load %arg8[%c0_22, %c0_23] : memref<4x1xf32, #tpu.memory_space<vmem>>, vector<4x1xf32>
      tpu.vector_store %arg8[%c0_22, %c0_23], %27 {strides = array<i32>} : memref<4x1xf32, #tpu.memory_space<vmem>>, vector<4x1xf32>,
      %cst_24 = arith.constant 0.000000e+00 : f32
      %29 = vector.broadcast %cst_24 : f32 to vector<4x1xf32>
      %c0_25 = arith.constant 0 : index
      %c0_26 = arith.constant 0 : index
      %30 = vector.load %arg9[%c0_25, %c0_26] : memref<4x1xf32, #tpu.memory_space<vmem>>, vector<4x1xf32>
      tpu.vector_store %arg9[%c0_25, %c0_26], %29 {strides = array<i32>} : memref<4x1xf32, #tpu.memory_space<vmem>>, vector<4x1xf32>,
    } else {
    }
    %c0 = arith.constant 0 : index
    %c0_1 = arith.constant 0 : index
    %3 = vector.load %arg2[%c0, %c0_1] : memref<4x32xbf16, #tpu.memory_space<vmem>>, vector<4x32xbf16>
    %c0_2 = arith.constant 0 : index
    %c0_3 = arith.constant 0 : index
    %c0_4 = arith.constant 0 : index
    %4 = vector.load %arg3[%c0_2, %c0_3, %c0_4] : memref<1x32x2048xbf16, #tpu.memory_space<vmem>>, vector<1x32x2048xbf16>
    %5 = vector.shape_cast %4 : vector<1x32x2048xbf16> to vector<32x2048xbf16>
    %cst = arith.constant dense<0.000000e+00> : vector<4x2048xf32>
    %6 = tpu.matmul %3, %5, %cst {dimension_numbers = #tpu.dot_dimension_numbers<[1], [0], [0], [1], [0, 0, 1, 1], [], []>} : vector<4x32xbf16>, vector<32x2048xbf16>, vector<4x2048xf32> -> vector<4x2048xf32>
    %c0_5 = arith.constant 0 : index
    %c0_6 = arith.constant 0 : index
    %7 = vector.load %arg4[%c0_5, %c0_6] : memref<4x1xf32, #tpu.memory_space<vmem>>, vector<4x1xf32>
    %8 = vector.broadcast %7 : vector<4x1xf32> to vector<4x2048xf32>
    %9 = arith.addf %6, %8 : vector<4x2048xf32>
    %c0_7 = arith.constant 0 : index
    %c0_8 = arith.constant 0 : index
    %c0_9 = arith.constant 0 : index
    %10 = vector.load %arg5[%c0_7, %c0_8, %c0_9] : memref<1x4x2048xf32, #tpu.memory_space<vmem>>, vector<1x4x2048xf32>
    %11 = vector.shape_cast %10 : vector<1x4x2048xf32> to vector<4x2048xf32>
    %12 = vector.shape_cast %9 : vector<4x2048xf32> to vector<1x4x2048xf32>
    tpu.vector_store %arg5[%c0_7, %c0_8, %c0_9], %12 {strides = array<i32>} : memref<1x4x2048xf32, #tpu.memory_space<vmem>>, vector<1x4x2048xf32>,
    %c0_10 = arith.constant 0 : index
    %c0_11 = arith.constant 0 : index
    %13 = vector.load %arg8[%c0_10, %c0_11] : memref<4x1xf32, #tpu.memory_space<vmem>>, vector<4x1xf32>
    %cst_12 = arith.constant dense<0.000000e+00> : vector<4xf32>
    %14 = vector.multi_reduction <add>, %9, %cst_12 [1] : vector<4x2048xf32> to vector<4xf32>
    %15 = vector.shape_cast %14 : vector<4xf32> to vector<4x1xf32>
    %16 = arith.addf %13, %15 : vector<4x1xf32>
    %c0_13 = arith.constant 0 : index
    %c0_14 = arith.constant 0 : index
    %17 = vector.load %arg8[%c0_13, %c0_14] : memref<4x1xf32, #tpu.memory_space<vmem>>, vector<4x1xf32>
    tpu.vector_store %arg8[%c0_13, %c0_14], %16 {strides = array<i32>} : memref<4x1xf32, #tpu.memory_space<vmem>>, vector<4x1xf32>,
    %c0_15 = arith.constant 0 : index
    %c0_16 = arith.constant 0 : index
    %18 = vector.load %arg9[%c0_15, %c0_16] : memref<4x1xf32, #tpu.memory_space<vmem>>, vector<4x1xf32>
    %19 = arith.mulf %9, %9 : vector<4x2048xf32>
    %cst_17 = arith.constant dense<0.000000e+00> : vector<4xf32>
    %20 = vector.multi_reduction <add>, %19, %cst_17 [1] : vector<4x2048xf32> to vector<4xf32>
    %21 = vector.shape_cast %20 : vector<4xf32> to vector<4x1xf32>
    %22 = arith.addf %18, %21 : vector<4x1xf32>
    %c0_18 = arith.constant 0 : index
    %c0_19 = arith.constant 0 : index
    %23 = vector.load %arg9[%c0_18, %c0_19] : memref<4x1xf32, #tpu.memory_space<vmem>>, vector<4x1xf32>
    tpu.vector_store %arg9[%c0_18, %c0_19], %22 {strides = array<i32>} : memref<4x1xf32, #tpu.memory_space<vmem>>, vector<4x1xf32>,
    %c1_i32 = arith.constant 1 : i32
    %24 = arith.cmpi eq, %arg1, %c1_i32 : i32
    %25 = arith.extui %24 : i1 to i32
    %c0_i32_20 = arith.constant 0 : i32
    %26 = arith.cmpi ne, %25, %c0_i32_20 : i32
    scf.if %26 {
      %c0_21 = arith.constant 0 : index
      %c0_22 = arith.constant 0 : index
      %27 = vector.load %arg8[%c0_21, %c0_22] : memref<4x1xf32, #tpu.memory_space<vmem>>, vector<4x1xf32>
      %cst_23 = arith.constant 2.44140625E-4 : f32
      %28 = vector.broadcast %cst_23 : f32 to vector<4x1xf32>
      %29 = arith.mulf %27, %28 : vector<4x1xf32>
      %c0_24 = arith.constant 0 : index
      %c0_25 = arith.constant 0 : index
      %30 = vector.load %arg9[%c0_24, %c0_25] : memref<4x1xf32, #tpu.memory_space<vmem>>, vector<4x1xf32>
      %cst_26 = arith.constant 2.44140625E-4 : f32
      %31 = vector.broadcast %cst_26 : f32 to vector<4x1xf32>
      %32 = arith.mulf %30, %31 : vector<4x1xf32>
      %33 = arith.mulf %29, %29 : vector<4x1xf32>
      %34 = arith.subf %32, %33 : vector<4x1xf32>
      %cst_27 = arith.constant 0.000000e+00 : f32
      %35 = vector.broadcast %cst_27 : f32 to vector<4x1xf32>
      %36 = arith.maximumf %34, %35 : vector<4x1xf32>
      %c0_28 = arith.constant 0 : index
      %c0_29 = arith.constant 0 : index
      %c0_30 = arith.constant 0 : index
      %37 = vector.load %arg6[%c0_28, %c0_29, %c0_30] : memref<1x4x1xf32, #tpu.memory_space<vmem>>, vector<1x4x1xf32>
      %38 = vector.shape_cast %37 : vector<1x4x1xf32> to vector<4x1xf32>
      %39 = vector.shape_cast %29 : vector<4x1xf32> to vector<1x4x1xf32>
      tpu.vector_store %arg6[%c0_28, %c0_29, %c0_30], %39 {strides = array<i32>} : memref<1x4x1xf32, #tpu.memory_space<vmem>>, vector<1x4x1xf32>,
      %cst_31 = arith.constant 9.99999974E-6 : f32
      %40 = vector.broadcast %cst_31 : f32 to vector<4x1xf32>
      %41 = arith.addf %36, %40 : vector<4x1xf32>
      %42 = math.rsqrt %41 : vector<4x1xf32>
      %c0_32 = arith.constant 0 : index
      %c0_33 = arith.constant 0 : index
      %c0_34 = arith.constant 0 : index
      %43 = vector.load %arg7[%c0_32, %c0_33, %c0_34] : memref<1x4x1xf32, #tpu.memory_space<vmem>>, vector<1x4x1xf32>
      %44 = vector.shape_cast %43 : vector<1x4x1xf32> to vector<4x1xf32>
      %45 = vector.shape_cast %42 : vector<4x1xf32> to vector<1x4x1xf32>
      tpu.vector_store %arg7[%c0_32, %c0_33, %c0_34], %45 {strides = array<i32>} : memref<1x4x1xf32, #tpu.memory_space<vmem>>, vector<1x4x1xf32>,
    } else {
    }
    return
  }
  func.func @transform_0(%arg0: i32, %arg1: i32) -> (i32, i32) {
    %c0_i32 = arith.constant 0 : i32
    %c0_i32_0 = arith.constant 0 : i32
    %c0_i32_1 = arith.constant 0 : i32
    return %c0_i32, %c0_i32_0 : i32, i32
  }
  func.func @transform_1(%arg0: i32, %arg1: i32) -> (i32, i32, i32) {
    %c0_i32 = arith.constant 0 : i32
    %c0_i32_0 = arith.constant 0 : i32
    return %arg0, %c0_i32, %arg1 : i32, i32, i32
  }
  func.func @transform_2(%arg0: i32, %arg1: i32) -> (i32, i32) {
    %c0_i32 = arith.constant 0 : i32
    %c0_i32_0 = arith.constant 0 : i32
    %c0_i32_1 = arith.constant 0 : i32
    return %c0_i32, %c0_i32_0 : i32, i32
  }
  func.func @transform_3(%arg0: i32, %arg1: i32) -> (i32, i32, i32) {
    %c0_i32 = arith.constant 0 : i32
    %c0_i32_0 = arith.constant 0 : i32
    return %arg0, %c0_i32, %arg1 : i32, i32, i32
  }
  func.func @transform_4(%arg0: i32, %arg1: i32) -> (i32, i32, i32) {
    %c0_i32 = arith.constant 0 : i32
    %c0_i32_0 = arith.constant 0 : i32
    %c0_i32_1 = arith.constant 0 : i32
    return %arg0, %c0_i32, %c0_i32_0 : i32, i32, i32
  }
  func.func @transform_5(%arg0: i32, %arg1: i32) -> (i32, i32, i32) {
    %c0_i32 = arith.constant 0 : i32
    %c0_i32_0 = arith.constant 0 : i32
    %c0_i32_1 = arith.constant 0 : i32
    return %arg0, %c0_i32, %c0_i32_0 : i32, i32, i32
  }
}

module attributes {stable_mosaic.version = 11 : i64} {
  func.func @_norm_act_kernel(%arg0: i32, %arg1: i32, %arg2: memref<1x4x2048xf32, #tpu.memory_space<vmem>>, %arg3: memref<1x4x1xf32, #tpu.memory_space<vmem>>, %arg4: memref<1x4x1xf32, #tpu.memory_space<vmem>>, %arg5: memref<1x4x2048xf32, #tpu.memory_space<vmem>>) attributes {dimension_semantics = [#tpu.dimension_semantics<parallel>, #tpu.dimension_semantics<parallel>], iteration_bounds = array<i64: 2, 2>, scalar_prefetch = 0 : i64, scratch_operands = 0 : i64, tpu.core_type = #tpu.core_type<tc>, window_params = [{transform_indices = @transform_0, window_bounds = array<i64: 1, 4, 2048>}, {transform_indices = @transform_1, window_bounds = array<i64: 1, 4, 1>}, {transform_indices = @transform_2, window_bounds = array<i64: 1, 4, 1>}, {transform_indices = @transform_3, window_bounds = array<i64: 1, 4, 2048>}]} {
    %c0 = arith.constant 0 : index
    %c0_0 = arith.constant 0 : index
    %c0_1 = arith.constant 0 : index
    %0 = vector.load %arg2[%c0, %c0_0, %c0_1] : memref<1x4x2048xf32, #tpu.memory_space<vmem>>, vector<1x4x2048xf32>
    %1 = vector.shape_cast %0 : vector<1x4x2048xf32> to vector<4x2048xf32>
    %c0_2 = arith.constant 0 : index
    %c0_3 = arith.constant 0 : index
    %c0_4 = arith.constant 0 : index
    %2 = vector.load %arg3[%c0_2, %c0_3, %c0_4] : memref<1x4x1xf32, #tpu.memory_space<vmem>>, vector<1x4x1xf32>
    %3 = vector.shape_cast %2 : vector<1x4x1xf32> to vector<4x1xf32>
    %4 = vector.broadcast %3 : vector<4x1xf32> to vector<4x2048xf32>
    %5 = arith.subf %1, %4 : vector<4x2048xf32>
    %c0_5 = arith.constant 0 : index
    %c0_6 = arith.constant 0 : index
    %c0_7 = arith.constant 0 : index
    %6 = vector.load %arg4[%c0_5, %c0_6, %c0_7] : memref<1x4x1xf32, #tpu.memory_space<vmem>>, vector<1x4x1xf32>
    %7 = vector.shape_cast %6 : vector<1x4x1xf32> to vector<4x1xf32>
    %8 = vector.broadcast %7 : vector<4x1xf32> to vector<4x2048xf32>
    %9 = arith.mulf %5, %8 : vector<4x2048xf32>
    %cst = arith.constant 0.000000e+00 : f32
    %10 = vector.broadcast %cst : f32 to vector<4x2048xf32>
    %11 = arith.cmpf oge, %9, %10 : vector<4x2048xf32>
    %cst_8 = arith.constant 0.00999999977 : f32
    %12 = vector.broadcast %cst_8 : f32 to vector<4x2048xf32>
    %13 = arith.mulf %12, %9 : vector<4x2048xf32>
    %14 = arith.select %11, %9, %13 : vector<4x2048xi1>, vector<4x2048xf32>
    %c0_9 = arith.constant 0 : index
    %c0_10 = arith.constant 0 : index
    %c0_11 = arith.constant 0 : index
    %15 = vector.load %arg5[%c0_9, %c0_10, %c0_11] : memref<1x4x2048xf32, #tpu.memory_space<vmem>>, vector<1x4x2048xf32>
    %16 = vector.shape_cast %15 : vector<1x4x2048xf32> to vector<4x2048xf32>
    %17 = vector.shape_cast %14 : vector<4x2048xf32> to vector<1x4x2048xf32>
    tpu.vector_store %arg5[%c0_9, %c0_10, %c0_11], %17 {strides = array<i32>} : memref<1x4x2048xf32, #tpu.memory_space<vmem>>, vector<1x4x2048xf32>,
    return
  }
  func.func @transform_0(%arg0: i32, %arg1: i32) -> (i32, i32, i32) {
    %c0_i32 = arith.constant 0 : i32
    %c0_i32_0 = arith.constant 0 : i32
    return %arg0, %c0_i32, %arg1 : i32, i32, i32
  }
  func.func @transform_1(%arg0: i32, %arg1: i32) -> (i32, i32, i32) {
    %c0_i32 = arith.constant 0 : i32
    %c0_i32_0 = arith.constant 0 : i32
    %c0_i32_1 = arith.constant 0 : i32
    return %arg0, %c0_i32, %c0_i32_0 : i32, i32, i32
  }
  func.func @transform_2(%arg0: i32, %arg1: i32) -> (i32, i32, i32) {
    %c0_i32 = arith.constant 0 : i32
    %c0_i32_0 = arith.constant 0 : i32
    %c0_i32_1 = arith.constant 0 : i32
    return %arg0, %c0_i32, %c0_i32_0 : i32, i32, i32
  }
  func.func @transform_3(%arg0: i32, %arg1: i32) -> (i32, i32, i32) {
    %c0_i32 = arith.constant 0 : i32
    %c0_i32_0 = arith.constant 0 : i32
    return %arg0, %c0_i32, %arg1 : i32, i32, i32
  }
}

module attributes {stable_mosaic.version = 11 : i64} {
  func.func @_conv_gemm_stats_kernel(%arg0: i32, %arg1: i32, %arg2: memref<4x112xbf16, #tpu.memory_space<vmem>>, %arg3: memref<1x112x2048xbf16, #tpu.memory_space<vmem>>, %arg4: memref<1x4x2048xf32, #tpu.memory_space<vmem>>, %arg5: memref<1x4x1xf32, #tpu.memory_space<vmem>>, %arg6: memref<1x4x1xf32, #tpu.memory_space<vmem>>, %arg7: memref<4x1xf32, #tpu.memory_space<vmem>>, %arg8: memref<4x1xf32, #tpu.memory_space<vmem>>) attributes {dimension_semantics = [#tpu.dimension_semantics<parallel>, #tpu.dimension_semantics<arbitrary>], iteration_bounds = array<i64: 2, 2>, scalar_prefetch = 0 : i64, scratch_operands = 2 : i64, tpu.core_type = #tpu.core_type<tc>, window_params = [{pipeline_mode = #tpu.pipeline_mode<synchronous>, transform_indices = @transform_0, window_bounds = array<i64: 4, 112>}, {transform_indices = @transform_1, window_bounds = array<i64: 1, 112, 2048>}, {transform_indices = @transform_2, window_bounds = array<i64: 1, 4, 2048>}, {transform_indices = @transform_3, window_bounds = array<i64: 1, 4, 1>}, {transform_indices = @transform_4, window_bounds = array<i64: 1, 4, 1>}]} {
    %c0_i32 = arith.constant 0 : i32
    %0 = arith.cmpi eq, %arg1, %c0_i32 : i32
    %1 = arith.extui %0 : i1 to i32
    %c0_i32_0 = arith.constant 0 : i32
    %2 = arith.cmpi ne, %1, %c0_i32_0 : i32
    scf.if %2 {
      %cst_19 = arith.constant 0.000000e+00 : f32
      %24 = vector.broadcast %cst_19 : f32 to vector<4x1xf32>
      %c0_20 = arith.constant 0 : index
      %c0_21 = arith.constant 0 : index
      %25 = vector.load %arg7[%c0_20, %c0_21] : memref<4x1xf32, #tpu.memory_space<vmem>>, vector<4x1xf32>
      tpu.vector_store %arg7[%c0_20, %c0_21], %24 {strides = array<i32>} : memref<4x1xf32, #tpu.memory_space<vmem>>, vector<4x1xf32>,
      %cst_22 = arith.constant 0.000000e+00 : f32
      %26 = vector.broadcast %cst_22 : f32 to vector<4x1xf32>
      %c0_23 = arith.constant 0 : index
      %c0_24 = arith.constant 0 : index
      %27 = vector.load %arg8[%c0_23, %c0_24] : memref<4x1xf32, #tpu.memory_space<vmem>>, vector<4x1xf32>
      tpu.vector_store %arg8[%c0_23, %c0_24], %26 {strides = array<i32>} : memref<4x1xf32, #tpu.memory_space<vmem>>, vector<4x1xf32>,
    } else {
    }
    %c0 = arith.constant 0 : index
    %c0_1 = arith.constant 0 : index
    %3 = vector.load %arg2[%c0, %c0_1] : memref<4x112xbf16, #tpu.memory_space<vmem>>, vector<4x112xbf16>
    %c0_2 = arith.constant 0 : index
    %c0_3 = arith.constant 0 : index
    %c0_4 = arith.constant 0 : index
    %4 = vector.load %arg3[%c0_2, %c0_3, %c0_4] : memref<1x112x2048xbf16, #tpu.memory_space<vmem>>, vector<1x112x2048xbf16>
    %5 = vector.shape_cast %4 : vector<1x112x2048xbf16> to vector<112x2048xbf16>
    %cst = arith.constant dense<0.000000e+00> : vector<4x2048xf32>
    %6 = tpu.matmul %3, %5, %cst {dimension_numbers = #tpu.dot_dimension_numbers<[1], [0], [0], [1], [0, 0, 1, 1], [], []>} : vector<4x112xbf16>, vector<112x2048xbf16>, vector<4x2048xf32> -> vector<4x2048xf32>
    %c0_5 = arith.constant 0 : index
    %c0_6 = arith.constant 0 : index
    %c0_7 = arith.constant 0 : index
    %7 = vector.load %arg4[%c0_5, %c0_6, %c0_7] : memref<1x4x2048xf32, #tpu.memory_space<vmem>>, vector<1x4x2048xf32>
    %8 = vector.shape_cast %7 : vector<1x4x2048xf32> to vector<4x2048xf32>
    %9 = vector.shape_cast %6 : vector<4x2048xf32> to vector<1x4x2048xf32>
    tpu.vector_store %arg4[%c0_5, %c0_6, %c0_7], %9 {strides = array<i32>} : memref<1x4x2048xf32, #tpu.memory_space<vmem>>, vector<1x4x2048xf32>,
    %c0_8 = arith.constant 0 : index
    %c0_9 = arith.constant 0 : index
    %10 = vector.load %arg7[%c0_8, %c0_9] : memref<4x1xf32, #tpu.memory_space<vmem>>, vector<4x1xf32>
    %cst_10 = arith.constant dense<0.000000e+00> : vector<4xf32>
    %11 = vector.multi_reduction <add>, %6, %cst_10 [1] : vector<4x2048xf32> to vector<4xf32>
    %12 = vector.shape_cast %11 : vector<4xf32> to vector<4x1xf32>
    %13 = arith.addf %10, %12 : vector<4x1xf32>
    %c0_11 = arith.constant 0 : index
    %c0_12 = arith.constant 0 : index
    %14 = vector.load %arg7[%c0_11, %c0_12] : memref<4x1xf32, #tpu.memory_space<vmem>>, vector<4x1xf32>
    tpu.vector_store %arg7[%c0_11, %c0_12], %13 {strides = array<i32>} : memref<4x1xf32, #tpu.memory_space<vmem>>, vector<4x1xf32>,
    %c0_13 = arith.constant 0 : index
    %c0_14 = arith.constant 0 : index
    %15 = vector.load %arg8[%c0_13, %c0_14] : memref<4x1xf32, #tpu.memory_space<vmem>>, vector<4x1xf32>
    %16 = arith.mulf %6, %6 : vector<4x2048xf32>
    %cst_15 = arith.constant dense<0.000000e+00> : vector<4xf32>
    %17 = vector.multi_reduction <add>, %16, %cst_15 [1] : vector<4x2048xf32> to vector<4xf32>
    %18 = vector.shape_cast %17 : vector<4xf32> to vector<4x1xf32>
    %19 = arith.addf %15, %18 : vector<4x1xf32>
    %c0_16 = arith.constant 0 : index
    %c0_17 = arith.constant 0 : index
    %20 = vector.load %arg8[%c0_16, %c0_17] : memref<4x1xf32, #tpu.memory_space<vmem>>, vector<4x1xf32>
    tpu.vector_store %arg8[%c0_16, %c0_17], %19 {strides = array<i32>} : memref<4x1xf32, #tpu.memory_space<vmem>>, vector<4x1xf32>,
    %c1_i32 = arith.constant 1 : i32
    %21 = arith.cmpi eq, %arg1, %c1_i32 : i32
    %22 = arith.extui %21 : i1 to i32
    %c0_i32_18 = arith.constant 0 : i32
    %23 = arith.cmpi ne, %22, %c0_i32_18 : i32
    scf.if %23 {
      %c0_19 = arith.constant 0 : index
      %c0_20 = arith.constant 0 : index
      %24 = vector.load %arg7[%c0_19, %c0_20] : memref<4x1xf32, #tpu.memory_space<vmem>>, vector<4x1xf32>
      %cst_21 = arith.constant 2.44140625E-4 : f32
      %25 = vector.broadcast %cst_21 : f32 to vector<4x1xf32>
      %26 = arith.mulf %24, %25 : vector<4x1xf32>
      %c0_22 = arith.constant 0 : index
      %c0_23 = arith.constant 0 : index
      %27 = vector.load %arg8[%c0_22, %c0_23] : memref<4x1xf32, #tpu.memory_space<vmem>>, vector<4x1xf32>
      %cst_24 = arith.constant 2.44140625E-4 : f32
      %28 = vector.broadcast %cst_24 : f32 to vector<4x1xf32>
      %29 = arith.mulf %27, %28 : vector<4x1xf32>
      %30 = arith.mulf %26, %26 : vector<4x1xf32>
      %31 = arith.subf %29, %30 : vector<4x1xf32>
      %cst_25 = arith.constant 0.000000e+00 : f32
      %32 = vector.broadcast %cst_25 : f32 to vector<4x1xf32>
      %33 = arith.maximumf %31, %32 : vector<4x1xf32>
      %c0_26 = arith.constant 0 : index
      %c0_27 = arith.constant 0 : index
      %c0_28 = arith.constant 0 : index
      %34 = vector.load %arg5[%c0_26, %c0_27, %c0_28] : memref<1x4x1xf32, #tpu.memory_space<vmem>>, vector<1x4x1xf32>
      %35 = vector.shape_cast %34 : vector<1x4x1xf32> to vector<4x1xf32>
      %36 = vector.shape_cast %26 : vector<4x1xf32> to vector<1x4x1xf32>
      tpu.vector_store %arg5[%c0_26, %c0_27, %c0_28], %36 {strides = array<i32>} : memref<1x4x1xf32, #tpu.memory_space<vmem>>, vector<1x4x1xf32>,
      %cst_29 = arith.constant 9.99999974E-6 : f32
      %37 = vector.broadcast %cst_29 : f32 to vector<4x1xf32>
      %38 = arith.addf %33, %37 : vector<4x1xf32>
      %39 = math.rsqrt %38 : vector<4x1xf32>
      %c0_30 = arith.constant 0 : index
      %c0_31 = arith.constant 0 : index
      %c0_32 = arith.constant 0 : index
      %40 = vector.load %arg6[%c0_30, %c0_31, %c0_32] : memref<1x4x1xf32, #tpu.memory_space<vmem>>, vector<1x4x1xf32>
      %41 = vector.shape_cast %40 : vector<1x4x1xf32> to vector<4x1xf32>
      %42 = vector.shape_cast %39 : vector<4x1xf32> to vector<1x4x1xf32>
      tpu.vector_store %arg6[%c0_30, %c0_31, %c0_32], %42 {strides = array<i32>} : memref<1x4x1xf32, #tpu.memory_space<vmem>>, vector<1x4x1xf32>,
    } else {
    }
    return
  }
  func.func @transform_0(%arg0: i32, %arg1: i32) -> (i32, i32) {
    %c0_i32 = arith.constant 0 : i32
    %c0_i32_0 = arith.constant 0 : i32
    %c0_i32_1 = arith.constant 0 : i32
    return %c0_i32, %c0_i32_0 : i32, i32
  }
  func.func @transform_1(%arg0: i32, %arg1: i32) -> (i32, i32, i32) {
    %c0_i32 = arith.constant 0 : i32
    %c0_i32_0 = arith.constant 0 : i32
    return %arg0, %c0_i32, %arg1 : i32, i32, i32
  }
  func.func @transform_2(%arg0: i32, %arg1: i32) -> (i32, i32, i32) {
    %c0_i32 = arith.constant 0 : i32
    %c0_i32_0 = arith.constant 0 : i32
    return %arg0, %c0_i32, %arg1 : i32, i32, i32
  }
  func.func @transform_3(%arg0: i32, %arg1: i32) -> (i32, i32, i32) {
    %c0_i32 = arith.constant 0 : i32
    %c0_i32_0 = arith.constant 0 : i32
    %c0_i32_1 = arith.constant 0 : i32
    return %arg0, %c0_i32, %c0_i32_0 : i32, i32, i32
  }
  func.func @transform_4(%arg0: i32, %arg1: i32) -> (i32, i32, i32) {
    %c0_i32 = arith.constant 0 : i32
    %c0_i32_0 = arith.constant 0 : i32
    %c0_i32_1 = arith.constant 0 : i32
    return %arg0, %c0_i32, %c0_i32_0 : i32, i32, i32
  }
}

module attributes {stable_mosaic.version = 11 : i64} {
  func.func @_conv_gemm_kernel(%arg0: i32, %arg1: memref<8x112xbf16, #tpu.memory_space<vmem>>, %arg2: memref<1x112x512xbf16, #tpu.memory_space<vmem>>, %arg3: memref<1x8x512xf32, #tpu.memory_space<vmem>>) attributes {dimension_semantics = [#tpu.dimension_semantics<parallel>], iteration_bounds = array<i64: 2>, scalar_prefetch = 0 : i64, scratch_operands = 0 : i64, tpu.core_type = #tpu.core_type<tc>, window_params = [{pipeline_mode = #tpu.pipeline_mode<synchronous>, transform_indices = @transform_0, window_bounds = array<i64: 8, 112>}, {transform_indices = @transform_1, window_bounds = array<i64: 1, 112, 512>}, {transform_indices = @transform_2, window_bounds = array<i64: 1, 8, 512>}]} {
    %c0 = arith.constant 0 : index
    %c0_0 = arith.constant 0 : index
    %0 = vector.load %arg1[%c0, %c0_0] : memref<8x112xbf16, #tpu.memory_space<vmem>>, vector<8x112xbf16>
    %c0_1 = arith.constant 0 : index
    %c0_2 = arith.constant 0 : index
    %c0_3 = arith.constant 0 : index
    %1 = vector.load %arg2[%c0_1, %c0_2, %c0_3] : memref<1x112x512xbf16, #tpu.memory_space<vmem>>, vector<1x112x512xbf16>
    %2 = vector.shape_cast %1 : vector<1x112x512xbf16> to vector<112x512xbf16>
    %cst = arith.constant dense<0.000000e+00> : vector<8x512xf32>
    %3 = tpu.matmul %0, %2, %cst {dimension_numbers = #tpu.dot_dimension_numbers<[1], [0], [0], [1], [0, 0, 1, 1], [], []>} : vector<8x112xbf16>, vector<112x512xbf16>, vector<8x512xf32> -> vector<8x512xf32>
    %cst_4 = arith.constant dense<0.000000e+00> : vector<8xf32>
    %4 = vector.multi_reduction <add>, %3, %cst_4 [1] : vector<8x512xf32> to vector<8xf32>
    %5 = vector.shape_cast %4 : vector<8xf32> to vector<8x1xf32>
    %cst_5 = arith.constant 5.120000e+02 : f32
    %6 = vector.broadcast %cst_5 : f32 to vector<8x1xf32>
    %7 = arith.divf %5, %6 : vector<8x1xf32>
    %8 = vector.broadcast %7 : vector<8x1xf32> to vector<8x512xf32>
    %9 = arith.subf %3, %8 : vector<8x512xf32>
    %10 = arith.mulf %9, %9 : vector<8x512xf32>
    %cst_6 = arith.constant dense<0.000000e+00> : vector<8xf32>
    %11 = vector.multi_reduction <add>, %10, %cst_6 [1] : vector<8x512xf32> to vector<8xf32>
    %12 = vector.shape_cast %11 : vector<8xf32> to vector<8x1xf32>
    %cst_7 = arith.constant 5.120000e+02 : f32
    %13 = vector.broadcast %cst_7 : f32 to vector<8x1xf32>
    %14 = arith.divf %12, %13 : vector<8x1xf32>
    %15 = vector.broadcast %7 : vector<8x1xf32> to vector<8x512xf32>
    %16 = arith.subf %3, %15 : vector<8x512xf32>
    %cst_8 = arith.constant 9.99999974E-6 : f32
    %17 = vector.broadcast %cst_8 : f32 to vector<8x1xf32>
    %18 = arith.addf %14, %17 : vector<8x1xf32>
    %19 = math.rsqrt %18 : vector<8x1xf32>
    %20 = vector.broadcast %19 : vector<8x1xf32> to vector<8x512xf32>
    %21 = arith.mulf %16, %20 : vector<8x512xf32>
    %cst_9 = arith.constant 0.000000e+00 : f32
    %22 = vector.broadcast %cst_9 : f32 to vector<8x512xf32>
    %23 = arith.cmpf oge, %21, %22 : vector<8x512xf32>
    %cst_10 = arith.constant 0.00999999977 : f32
    %24 = vector.broadcast %cst_10 : f32 to vector<8x512xf32>
    %25 = arith.mulf %24, %21 : vector<8x512xf32>
    %26 = arith.select %23, %21, %25 : vector<8x512xi1>, vector<8x512xf32>
    %c0_11 = arith.constant 0 : index
    %c0_12 = arith.constant 0 : index
    %c0_13 = arith.constant 0 : index
    %27 = vector.load %arg3[%c0_11, %c0_12, %c0_13] : memref<1x8x512xf32, #tpu.memory_space<vmem>>, vector<1x8x512xf32>
    %28 = vector.shape_cast %27 : vector<1x8x512xf32> to vector<8x512xf32>
    %29 = vector.shape_cast %26 : vector<8x512xf32> to vector<1x8x512xf32>
    tpu.vector_store %arg3[%c0_11, %c0_12, %c0_13], %29 {strides = array<i32>} : memref<1x8x512xf32, #tpu.memory_space<vmem>>, vector<1x8x512xf32>,
    return
  }
  func.func @transform_0(%arg0: i32) -> (i32, i32) {
    %c0_i32 = arith.constant 0 : i32
    %c0_i32_0 = arith.constant 0 : i32
    %c0_i32_1 = arith.constant 0 : i32
    return %c0_i32, %c0_i32_0 : i32, i32
  }
  func.func @transform_1(%arg0: i32) -> (i32, i32, i32) {
    %c0_i32 = arith.constant 0 : i32
    %c0_i32_0 = arith.constant 0 : i32
    %c0_i32_1 = arith.constant 0 : i32
    return %arg0, %c0_i32, %c0_i32_0 : i32, i32, i32
  }
  func.func @transform_2(%arg0: i32) -> (i32, i32, i32) {
    %c0_i32 = arith.constant 0 : i32
    %c0_i32_0 = arith.constant 0 : i32
    %c0_i32_1 = arith.constant 0 : i32
    return %arg0, %c0_i32, %c0_i32_0 : i32, i32, i32
  }
}

module attributes {stable_mosaic.version = 11 : i64} {
  func.func @_conv_gemm_kernel(%arg0: i32, %arg1: memref<8x224xbf16, #tpu.memory_space<vmem>>, %arg2: memref<1x224x512xbf16, #tpu.memory_space<vmem>>, %arg3: memref<1x8x512xf32, #tpu.memory_space<vmem>>) attributes {dimension_semantics = [#tpu.dimension_semantics<parallel>], iteration_bounds = array<i64: 2>, scalar_prefetch = 0 : i64, scratch_operands = 0 : i64, tpu.core_type = #tpu.core_type<tc>, window_params = [{pipeline_mode = #tpu.pipeline_mode<synchronous>, transform_indices = @transform_0, window_bounds = array<i64: 8, 224>}, {transform_indices = @transform_1, window_bounds = array<i64: 1, 224, 512>}, {transform_indices = @transform_2, window_bounds = array<i64: 1, 8, 512>}]} {
    %c0 = arith.constant 0 : index
    %c0_0 = arith.constant 0 : index
    %0 = vector.load %arg1[%c0, %c0_0] : memref<8x224xbf16, #tpu.memory_space<vmem>>, vector<8x224xbf16>
    %c0_1 = arith.constant 0 : index
    %c0_2 = arith.constant 0 : index
    %c0_3 = arith.constant 0 : index
    %1 = vector.load %arg2[%c0_1, %c0_2, %c0_3] : memref<1x224x512xbf16, #tpu.memory_space<vmem>>, vector<1x224x512xbf16>
    %2 = vector.shape_cast %1 : vector<1x224x512xbf16> to vector<224x512xbf16>
    %cst = arith.constant dense<0.000000e+00> : vector<8x512xf32>
    %3 = tpu.matmul %0, %2, %cst {dimension_numbers = #tpu.dot_dimension_numbers<[1], [0], [0], [1], [0, 0, 1, 1], [], []>} : vector<8x224xbf16>, vector<224x512xbf16>, vector<8x512xf32> -> vector<8x512xf32>
    %cst_4 = arith.constant dense<0.000000e+00> : vector<8xf32>
    %4 = vector.multi_reduction <add>, %3, %cst_4 [1] : vector<8x512xf32> to vector<8xf32>
    %5 = vector.shape_cast %4 : vector<8xf32> to vector<8x1xf32>
    %cst_5 = arith.constant 5.120000e+02 : f32
    %6 = vector.broadcast %cst_5 : f32 to vector<8x1xf32>
    %7 = arith.divf %5, %6 : vector<8x1xf32>
    %8 = vector.broadcast %7 : vector<8x1xf32> to vector<8x512xf32>
    %9 = arith.subf %3, %8 : vector<8x512xf32>
    %10 = arith.mulf %9, %9 : vector<8x512xf32>
    %cst_6 = arith.constant dense<0.000000e+00> : vector<8xf32>
    %11 = vector.multi_reduction <add>, %10, %cst_6 [1] : vector<8x512xf32> to vector<8xf32>
    %12 = vector.shape_cast %11 : vector<8xf32> to vector<8x1xf32>
    %cst_7 = arith.constant 5.120000e+02 : f32
    %13 = vector.broadcast %cst_7 : f32 to vector<8x1xf32>
    %14 = arith.divf %12, %13 : vector<8x1xf32>
    %15 = vector.broadcast %7 : vector<8x1xf32> to vector<8x512xf32>
    %16 = arith.subf %3, %15 : vector<8x512xf32>
    %cst_8 = arith.constant 9.99999974E-6 : f32
    %17 = vector.broadcast %cst_8 : f32 to vector<8x1xf32>
    %18 = arith.addf %14, %17 : vector<8x1xf32>
    %19 = math.rsqrt %18 : vector<8x1xf32>
    %20 = vector.broadcast %19 : vector<8x1xf32> to vector<8x512xf32>
    %21 = arith.mulf %16, %20 : vector<8x512xf32>
    %cst_9 = arith.constant 0.000000e+00 : f32
    %22 = vector.broadcast %cst_9 : f32 to vector<8x512xf32>
    %23 = arith.cmpf oge, %21, %22 : vector<8x512xf32>
    %cst_10 = arith.constant 0.00999999977 : f32
    %24 = vector.broadcast %cst_10 : f32 to vector<8x512xf32>
    %25 = arith.mulf %24, %21 : vector<8x512xf32>
    %26 = arith.select %23, %21, %25 : vector<8x512xi1>, vector<8x512xf32>
    %c0_11 = arith.constant 0 : index
    %c0_12 = arith.constant 0 : index
    %c0_13 = arith.constant 0 : index
    %27 = vector.load %arg3[%c0_11, %c0_12, %c0_13] : memref<1x8x512xf32, #tpu.memory_space<vmem>>, vector<1x8x512xf32>
    %28 = vector.shape_cast %27 : vector<1x8x512xf32> to vector<8x512xf32>
    %29 = vector.shape_cast %26 : vector<8x512xf32> to vector<1x8x512xf32>
    tpu.vector_store %arg3[%c0_11, %c0_12, %c0_13], %29 {strides = array<i32>} : memref<1x8x512xf32, #tpu.memory_space<vmem>>, vector<1x8x512xf32>,
    return
  }
  func.func @transform_0(%arg0: i32) -> (i32, i32) {
    %c0_i32 = arith.constant 0 : i32
    %c0_i32_0 = arith.constant 0 : i32
    %c0_i32_1 = arith.constant 0 : i32
    return %c0_i32, %c0_i32_0 : i32, i32
  }
  func.func @transform_1(%arg0: i32) -> (i32, i32, i32) {
    %c0_i32 = arith.constant 0 : i32
    %c0_i32_0 = arith.constant 0 : i32
    %c0_i32_1 = arith.constant 0 : i32
    return %arg0, %c0_i32, %c0_i32_0 : i32, i32, i32
  }
  func.func @transform_2(%arg0: i32) -> (i32, i32, i32) {
    %c0_i32 = arith.constant 0 : i32
    %c0_i32_0 = arith.constant 0 : i32
    %c0_i32_1 = arith.constant 0 : i32
    return %arg0, %c0_i32, %c0_i32_0 : i32, i32, i32
  }
}

module attributes {stable_mosaic.version = 11 : i64} {
  func.func @_conv_gemm_kernel(%arg0: i32, %arg1: memref<16x224xbf16, #tpu.memory_space<vmem>>, %arg2: memref<1x224x64xbf16, #tpu.memory_space<vmem>>, %arg3: memref<1x16x64xf32, #tpu.memory_space<vmem>>) attributes {dimension_semantics = [#tpu.dimension_semantics<parallel>], iteration_bounds = array<i64: 2>, scalar_prefetch = 0 : i64, scratch_operands = 0 : i64, tpu.core_type = #tpu.core_type<tc>, window_params = [{pipeline_mode = #tpu.pipeline_mode<synchronous>, transform_indices = @transform_0, window_bounds = array<i64: 16, 224>}, {transform_indices = @transform_1, window_bounds = array<i64: 1, 224, 64>}, {transform_indices = @transform_2, window_bounds = array<i64: 1, 16, 64>}]} {
    %c0 = arith.constant 0 : index
    %c0_0 = arith.constant 0 : index
    %0 = vector.load %arg1[%c0, %c0_0] : memref<16x224xbf16, #tpu.memory_space<vmem>>, vector<16x224xbf16>
    %c0_1 = arith.constant 0 : index
    %c0_2 = arith.constant 0 : index
    %c0_3 = arith.constant 0 : index
    %1 = vector.load %arg2[%c0_1, %c0_2, %c0_3] : memref<1x224x64xbf16, #tpu.memory_space<vmem>>, vector<1x224x64xbf16>
    %2 = vector.shape_cast %1 : vector<1x224x64xbf16> to vector<224x64xbf16>
    %cst = arith.constant dense<0.000000e+00> : vector<16x64xf32>
    %3 = tpu.matmul %0, %2, %cst {dimension_numbers = #tpu.dot_dimension_numbers<[1], [0], [0], [1], [0, 0, 1, 1], [], []>} : vector<16x224xbf16>, vector<224x64xbf16>, vector<16x64xf32> -> vector<16x64xf32>
    %cst_4 = arith.constant dense<0.000000e+00> : vector<16xf32>
    %4 = vector.multi_reduction <add>, %3, %cst_4 [1] : vector<16x64xf32> to vector<16xf32>
    %5 = vector.shape_cast %4 : vector<16xf32> to vector<16x1xf32>
    %cst_5 = arith.constant 6.400000e+01 : f32
    %6 = vector.broadcast %cst_5 : f32 to vector<16x1xf32>
    %7 = arith.divf %5, %6 : vector<16x1xf32>
    %8 = vector.broadcast %7 : vector<16x1xf32> to vector<16x64xf32>
    %9 = arith.subf %3, %8 : vector<16x64xf32>
    %10 = arith.mulf %9, %9 : vector<16x64xf32>
    %cst_6 = arith.constant dense<0.000000e+00> : vector<16xf32>
    %11 = vector.multi_reduction <add>, %10, %cst_6 [1] : vector<16x64xf32> to vector<16xf32>
    %12 = vector.shape_cast %11 : vector<16xf32> to vector<16x1xf32>
    %cst_7 = arith.constant 6.400000e+01 : f32
    %13 = vector.broadcast %cst_7 : f32 to vector<16x1xf32>
    %14 = arith.divf %12, %13 : vector<16x1xf32>
    %15 = vector.broadcast %7 : vector<16x1xf32> to vector<16x64xf32>
    %16 = arith.subf %3, %15 : vector<16x64xf32>
    %cst_8 = arith.constant 9.99999974E-6 : f32
    %17 = vector.broadcast %cst_8 : f32 to vector<16x1xf32>
    %18 = arith.addf %14, %17 : vector<16x1xf32>
    %19 = math.rsqrt %18 : vector<16x1xf32>
    %20 = vector.broadcast %19 : vector<16x1xf32> to vector<16x64xf32>
    %21 = arith.mulf %16, %20 : vector<16x64xf32>
    %cst_9 = arith.constant 0.000000e+00 : f32
    %22 = vector.broadcast %cst_9 : f32 to vector<16x64xf32>
    %23 = arith.cmpf oge, %21, %22 : vector<16x64xf32>
    %cst_10 = arith.constant 0.00999999977 : f32
    %24 = vector.broadcast %cst_10 : f32 to vector<16x64xf32>
    %25 = arith.mulf %24, %21 : vector<16x64xf32>
    %26 = arith.select %23, %21, %25 : vector<16x64xi1>, vector<16x64xf32>
    %c0_11 = arith.constant 0 : index
    %c0_12 = arith.constant 0 : index
    %c0_13 = arith.constant 0 : index
    %27 = vector.load %arg3[%c0_11, %c0_12, %c0_13] : memref<1x16x64xf32, #tpu.memory_space<vmem>>, vector<1x16x64xf32>
    %28 = vector.shape_cast %27 : vector<1x16x64xf32> to vector<16x64xf32>
    %29 = vector.shape_cast %26 : vector<16x64xf32> to vector<1x16x64xf32>
    tpu.vector_store %arg3[%c0_11, %c0_12, %c0_13], %29 {strides = array<i32>} : memref<1x16x64xf32, #tpu.memory_space<vmem>>, vector<1x16x64xf32>,
    return
  }
  func.func @transform_0(%arg0: i32) -> (i32, i32) {
    %c0_i32 = arith.constant 0 : i32
    %c0_i32_0 = arith.constant 0 : i32
    %c0_i32_1 = arith.constant 0 : i32
    return %c0_i32, %c0_i32_0 : i32, i32
  }
  func.func @transform_1(%arg0: i32) -> (i32, i32, i32) {
    %c0_i32 = arith.constant 0 : i32
    %c0_i32_0 = arith.constant 0 : i32
    %c0_i32_1 = arith.constant 0 : i32
    return %arg0, %c0_i32, %c0_i32_0 : i32, i32, i32
  }
  func.func @transform_2(%arg0: i32) -> (i32, i32, i32) {
    %c0_i32 = arith.constant 0 : i32
    %c0_i32_0 = arith.constant 0 : i32
    %c0_i32_1 = arith.constant 0 : i32
    return %arg0, %c0_i32, %c0_i32_0 : i32, i32, i32
  }
}

module attributes {stable_mosaic.version = 11 : i64} {
  func.func @_conv_gemm_kernel(%arg0: i32, %arg1: memref<16x432xbf16, #tpu.memory_space<vmem>>, %arg2: memref<1x432x64xbf16, #tpu.memory_space<vmem>>, %arg3: memref<1x16x64xf32, #tpu.memory_space<vmem>>) attributes {dimension_semantics = [#tpu.dimension_semantics<parallel>], iteration_bounds = array<i64: 2>, scalar_prefetch = 0 : i64, scratch_operands = 0 : i64, tpu.core_type = #tpu.core_type<tc>, window_params = [{pipeline_mode = #tpu.pipeline_mode<synchronous>, transform_indices = @transform_0, window_bounds = array<i64: 16, 432>}, {transform_indices = @transform_1, window_bounds = array<i64: 1, 432, 64>}, {transform_indices = @transform_2, window_bounds = array<i64: 1, 16, 64>}]} {
    %c0 = arith.constant 0 : index
    %c0_0 = arith.constant 0 : index
    %0 = vector.load %arg1[%c0, %c0_0] : memref<16x432xbf16, #tpu.memory_space<vmem>>, vector<16x432xbf16>
    %c0_1 = arith.constant 0 : index
    %c0_2 = arith.constant 0 : index
    %c0_3 = arith.constant 0 : index
    %1 = vector.load %arg2[%c0_1, %c0_2, %c0_3] : memref<1x432x64xbf16, #tpu.memory_space<vmem>>, vector<1x432x64xbf16>
    %2 = vector.shape_cast %1 : vector<1x432x64xbf16> to vector<432x64xbf16>
    %cst = arith.constant dense<0.000000e+00> : vector<16x64xf32>
    %3 = tpu.matmul %0, %2, %cst {dimension_numbers = #tpu.dot_dimension_numbers<[1], [0], [0], [1], [0, 0, 1, 1], [], []>} : vector<16x432xbf16>, vector<432x64xbf16>, vector<16x64xf32> -> vector<16x64xf32>
    %cst_4 = arith.constant dense<0.000000e+00> : vector<16xf32>
    %4 = vector.multi_reduction <add>, %3, %cst_4 [1] : vector<16x64xf32> to vector<16xf32>
    %5 = vector.shape_cast %4 : vector<16xf32> to vector<16x1xf32>
    %cst_5 = arith.constant 6.400000e+01 : f32
    %6 = vector.broadcast %cst_5 : f32 to vector<16x1xf32>
    %7 = arith.divf %5, %6 : vector<16x1xf32>
    %8 = vector.broadcast %7 : vector<16x1xf32> to vector<16x64xf32>
    %9 = arith.subf %3, %8 : vector<16x64xf32>
    %10 = arith.mulf %9, %9 : vector<16x64xf32>
    %cst_6 = arith.constant dense<0.000000e+00> : vector<16xf32>
    %11 = vector.multi_reduction <add>, %10, %cst_6 [1] : vector<16x64xf32> to vector<16xf32>
    %12 = vector.shape_cast %11 : vector<16xf32> to vector<16x1xf32>
    %cst_7 = arith.constant 6.400000e+01 : f32
    %13 = vector.broadcast %cst_7 : f32 to vector<16x1xf32>
    %14 = arith.divf %12, %13 : vector<16x1xf32>
    %15 = vector.broadcast %7 : vector<16x1xf32> to vector<16x64xf32>
    %16 = arith.subf %3, %15 : vector<16x64xf32>
    %cst_8 = arith.constant 9.99999974E-6 : f32
    %17 = vector.broadcast %cst_8 : f32 to vector<16x1xf32>
    %18 = arith.addf %14, %17 : vector<16x1xf32>
    %19 = math.rsqrt %18 : vector<16x1xf32>
    %20 = vector.broadcast %19 : vector<16x1xf32> to vector<16x64xf32>
    %21 = arith.mulf %16, %20 : vector<16x64xf32>
    %cst_9 = arith.constant 0.000000e+00 : f32
    %22 = vector.broadcast %cst_9 : f32 to vector<16x64xf32>
    %23 = arith.cmpf oge, %21, %22 : vector<16x64xf32>
    %cst_10 = arith.constant 0.00999999977 : f32
    %24 = vector.broadcast %cst_10 : f32 to vector<16x64xf32>
    %25 = arith.mulf %24, %21 : vector<16x64xf32>
    %26 = arith.select %23, %21, %25 : vector<16x64xi1>, vector<16x64xf32>
    %c0_11 = arith.constant 0 : index
    %c0_12 = arith.constant 0 : index
    %c0_13 = arith.constant 0 : index
    %27 = vector.load %arg3[%c0_11, %c0_12, %c0_13] : memref<1x16x64xf32, #tpu.memory_space<vmem>>, vector<1x16x64xf32>
    %28 = vector.shape_cast %27 : vector<1x16x64xf32> to vector<16x64xf32>
    %29 = vector.shape_cast %26 : vector<16x64xf32> to vector<1x16x64xf32>
    tpu.vector_store %arg3[%c0_11, %c0_12, %c0_13], %29 {strides = array<i32>} : memref<1x16x64xf32, #tpu.memory_space<vmem>>, vector<1x16x64xf32>,
    return
  }
  func.func @transform_0(%arg0: i32) -> (i32, i32) {
    %c0_i32 = arith.constant 0 : i32
    %c0_i32_0 = arith.constant 0 : i32
    %c0_i32_1 = arith.constant 0 : i32
    return %c0_i32, %c0_i32_0 : i32, i32
  }
  func.func @transform_1(%arg0: i32) -> (i32, i32, i32) {
    %c0_i32 = arith.constant 0 : i32
    %c0_i32_0 = arith.constant 0 : i32
    %c0_i32_1 = arith.constant 0 : i32
    return %arg0, %c0_i32, %c0_i32_0 : i32, i32, i32
  }
  func.func @transform_2(%arg0: i32) -> (i32, i32, i32) {
    %c0_i32 = arith.constant 0 : i32
    %c0_i32_0 = arith.constant 0 : i32
    %c0_i32_1 = arith.constant 0 : i32
    return %arg0, %c0_i32, %c0_i32_0 : i32, i32, i32
  }
}

module attributes {stable_mosaic.version = 11 : i64} {
  func.func @_conv_gemm_kernel(%arg0: i32, %arg1: memref<8x432xbf16, #tpu.memory_space<vmem>>, %arg2: memref<1x432x512xbf16, #tpu.memory_space<vmem>>, %arg3: memref<1x8x512xf32, #tpu.memory_space<vmem>>) attributes {dimension_semantics = [#tpu.dimension_semantics<parallel>], iteration_bounds = array<i64: 2>, scalar_prefetch = 0 : i64, scratch_operands = 0 : i64, tpu.core_type = #tpu.core_type<tc>, window_params = [{pipeline_mode = #tpu.pipeline_mode<synchronous>, transform_indices = @transform_0, window_bounds = array<i64: 8, 432>}, {transform_indices = @transform_1, window_bounds = array<i64: 1, 432, 512>}, {transform_indices = @transform_2, window_bounds = array<i64: 1, 8, 512>}]} {
    %c0 = arith.constant 0 : index
    %c0_0 = arith.constant 0 : index
    %0 = vector.load %arg1[%c0, %c0_0] : memref<8x432xbf16, #tpu.memory_space<vmem>>, vector<8x432xbf16>
    %c0_1 = arith.constant 0 : index
    %c0_2 = arith.constant 0 : index
    %c0_3 = arith.constant 0 : index
    %1 = vector.load %arg2[%c0_1, %c0_2, %c0_3] : memref<1x432x512xbf16, #tpu.memory_space<vmem>>, vector<1x432x512xbf16>
    %2 = vector.shape_cast %1 : vector<1x432x512xbf16> to vector<432x512xbf16>
    %cst = arith.constant dense<0.000000e+00> : vector<8x512xf32>
    %3 = tpu.matmul %0, %2, %cst {dimension_numbers = #tpu.dot_dimension_numbers<[1], [0], [0], [1], [0, 0, 1, 1], [], []>} : vector<8x432xbf16>, vector<432x512xbf16>, vector<8x512xf32> -> vector<8x512xf32>
    %cst_4 = arith.constant dense<0.000000e+00> : vector<8xf32>
    %4 = vector.multi_reduction <add>, %3, %cst_4 [1] : vector<8x512xf32> to vector<8xf32>
    %5 = vector.shape_cast %4 : vector<8xf32> to vector<8x1xf32>
    %cst_5 = arith.constant 5.120000e+02 : f32
    %6 = vector.broadcast %cst_5 : f32 to vector<8x1xf32>
    %7 = arith.divf %5, %6 : vector<8x1xf32>
    %8 = vector.broadcast %7 : vector<8x1xf32> to vector<8x512xf32>
    %9 = arith.subf %3, %8 : vector<8x512xf32>
    %10 = arith.mulf %9, %9 : vector<8x512xf32>
    %cst_6 = arith.constant dense<0.000000e+00> : vector<8xf32>
    %11 = vector.multi_reduction <add>, %10, %cst_6 [1] : vector<8x512xf32> to vector<8xf32>
    %12 = vector.shape_cast %11 : vector<8xf32> to vector<8x1xf32>
    %cst_7 = arith.constant 5.120000e+02 : f32
    %13 = vector.broadcast %cst_7 : f32 to vector<8x1xf32>
    %14 = arith.divf %12, %13 : vector<8x1xf32>
    %15 = vector.broadcast %7 : vector<8x1xf32> to vector<8x512xf32>
    %16 = arith.subf %3, %15 : vector<8x512xf32>
    %cst_8 = arith.constant 9.99999974E-6 : f32
    %17 = vector.broadcast %cst_8 : f32 to vector<8x1xf32>
    %18 = arith.addf %14, %17 : vector<8x1xf32>
    %19 = math.rsqrt %18 : vector<8x1xf32>
    %20 = vector.broadcast %19 : vector<8x1xf32> to vector<8x512xf32>
    %21 = arith.mulf %16, %20 : vector<8x512xf32>
    %cst_9 = arith.constant 0.000000e+00 : f32
    %22 = vector.broadcast %cst_9 : f32 to vector<8x512xf32>
    %23 = arith.cmpf oge, %21, %22 : vector<8x512xf32>
    %cst_10 = arith.constant 0.00999999977 : f32
    %24 = vector.broadcast %cst_10 : f32 to vector<8x512xf32>
    %25 = arith.mulf %24, %21 : vector<8x512xf32>
    %26 = arith.select %23, %21, %25 : vector<8x512xi1>, vector<8x512xf32>
    %c0_11 = arith.constant 0 : index
    %c0_12 = arith.constant 0 : index
    %c0_13 = arith.constant 0 : index
    %27 = vector.load %arg3[%c0_11, %c0_12, %c0_13] : memref<1x8x512xf32, #tpu.memory_space<vmem>>, vector<1x8x512xf32>
    %28 = vector.shape_cast %27 : vector<1x8x512xf32> to vector<8x512xf32>
    %29 = vector.shape_cast %26 : vector<8x512xf32> to vector<1x8x512xf32>
    tpu.vector_store %arg3[%c0_11, %c0_12, %c0_13], %29 {strides = array<i32>} : memref<1x8x512xf32, #tpu.memory_space<vmem>>, vector<1x8x512xf32>,
    return
  }
  func.func @transform_0(%arg0: i32) -> (i32, i32) {
    %c0_i32 = arith.constant 0 : i32
    %c0_i32_0 = arith.constant 0 : i32
    %c0_i32_1 = arith.constant 0 : i32
    return %c0_i32, %c0_i32_0 : i32, i32
  }
  func.func @transform_1(%arg0: i32) -> (i32, i32, i32) {
    %c0_i32 = arith.constant 0 : i32
    %c0_i32_0 = arith.constant 0 : i32
    %c0_i32_1 = arith.constant 0 : i32
    return %arg0, %c0_i32, %c0_i32_0 : i32, i32, i32
  }
  func.func @transform_2(%arg0: i32) -> (i32, i32, i32) {
    %c0_i32 = arith.constant 0 : i32
    %c0_i32_0 = arith.constant 0 : i32
    %c0_i32_1 = arith.constant 0 : i32
    return %arg0, %c0_i32, %c0_i32_0 : i32, i32, i32
  }
}

module attributes {stable_mosaic.version = 11 : i64} {
  func.func @_conv_gemm_stats_kernel(%arg0: i32, %arg1: i32, %arg2: memref<4x224xbf16, #tpu.memory_space<vmem>>, %arg3: memref<1x224x2048xbf16, #tpu.memory_space<vmem>>, %arg4: memref<1x4x2048xf32, #tpu.memory_space<vmem>>, %arg5: memref<1x4x1xf32, #tpu.memory_space<vmem>>, %arg6: memref<1x4x1xf32, #tpu.memory_space<vmem>>, %arg7: memref<4x1xf32, #tpu.memory_space<vmem>>, %arg8: memref<4x1xf32, #tpu.memory_space<vmem>>) attributes {dimension_semantics = [#tpu.dimension_semantics<parallel>, #tpu.dimension_semantics<arbitrary>], iteration_bounds = array<i64: 2, 2>, scalar_prefetch = 0 : i64, scratch_operands = 2 : i64, tpu.core_type = #tpu.core_type<tc>, window_params = [{pipeline_mode = #tpu.pipeline_mode<synchronous>, transform_indices = @transform_0, window_bounds = array<i64: 4, 224>}, {transform_indices = @transform_1, window_bounds = array<i64: 1, 224, 2048>}, {transform_indices = @transform_2, window_bounds = array<i64: 1, 4, 2048>}, {transform_indices = @transform_3, window_bounds = array<i64: 1, 4, 1>}, {transform_indices = @transform_4, window_bounds = array<i64: 1, 4, 1>}]} {
    %c0_i32 = arith.constant 0 : i32
    %0 = arith.cmpi eq, %arg1, %c0_i32 : i32
    %1 = arith.extui %0 : i1 to i32
    %c0_i32_0 = arith.constant 0 : i32
    %2 = arith.cmpi ne, %1, %c0_i32_0 : i32
    scf.if %2 {
      %cst_19 = arith.constant 0.000000e+00 : f32
      %24 = vector.broadcast %cst_19 : f32 to vector<4x1xf32>
      %c0_20 = arith.constant 0 : index
      %c0_21 = arith.constant 0 : index
      %25 = vector.load %arg7[%c0_20, %c0_21] : memref<4x1xf32, #tpu.memory_space<vmem>>, vector<4x1xf32>
      tpu.vector_store %arg7[%c0_20, %c0_21], %24 {strides = array<i32>} : memref<4x1xf32, #tpu.memory_space<vmem>>, vector<4x1xf32>,
      %cst_22 = arith.constant 0.000000e+00 : f32
      %26 = vector.broadcast %cst_22 : f32 to vector<4x1xf32>
      %c0_23 = arith.constant 0 : index
      %c0_24 = arith.constant 0 : index
      %27 = vector.load %arg8[%c0_23, %c0_24] : memref<4x1xf32, #tpu.memory_space<vmem>>, vector<4x1xf32>
      tpu.vector_store %arg8[%c0_23, %c0_24], %26 {strides = array<i32>} : memref<4x1xf32, #tpu.memory_space<vmem>>, vector<4x1xf32>,
    } else {
    }
    %c0 = arith.constant 0 : index
    %c0_1 = arith.constant 0 : index
    %3 = vector.load %arg2[%c0, %c0_1] : memref<4x224xbf16, #tpu.memory_space<vmem>>, vector<4x224xbf16>
    %c0_2 = arith.constant 0 : index
    %c0_3 = arith.constant 0 : index
    %c0_4 = arith.constant 0 : index
    %4 = vector.load %arg3[%c0_2, %c0_3, %c0_4] : memref<1x224x2048xbf16, #tpu.memory_space<vmem>>, vector<1x224x2048xbf16>
    %5 = vector.shape_cast %4 : vector<1x224x2048xbf16> to vector<224x2048xbf16>
    %cst = arith.constant dense<0.000000e+00> : vector<4x2048xf32>
    %6 = tpu.matmul %3, %5, %cst {dimension_numbers = #tpu.dot_dimension_numbers<[1], [0], [0], [1], [0, 0, 1, 1], [], []>} : vector<4x224xbf16>, vector<224x2048xbf16>, vector<4x2048xf32> -> vector<4x2048xf32>
    %c0_5 = arith.constant 0 : index
    %c0_6 = arith.constant 0 : index
    %c0_7 = arith.constant 0 : index
    %7 = vector.load %arg4[%c0_5, %c0_6, %c0_7] : memref<1x4x2048xf32, #tpu.memory_space<vmem>>, vector<1x4x2048xf32>
    %8 = vector.shape_cast %7 : vector<1x4x2048xf32> to vector<4x2048xf32>
    %9 = vector.shape_cast %6 : vector<4x2048xf32> to vector<1x4x2048xf32>
    tpu.vector_store %arg4[%c0_5, %c0_6, %c0_7], %9 {strides = array<i32>} : memref<1x4x2048xf32, #tpu.memory_space<vmem>>, vector<1x4x2048xf32>,
    %c0_8 = arith.constant 0 : index
    %c0_9 = arith.constant 0 : index
    %10 = vector.load %arg7[%c0_8, %c0_9] : memref<4x1xf32, #tpu.memory_space<vmem>>, vector<4x1xf32>
    %cst_10 = arith.constant dense<0.000000e+00> : vector<4xf32>
    %11 = vector.multi_reduction <add>, %6, %cst_10 [1] : vector<4x2048xf32> to vector<4xf32>
    %12 = vector.shape_cast %11 : vector<4xf32> to vector<4x1xf32>
    %13 = arith.addf %10, %12 : vector<4x1xf32>
    %c0_11 = arith.constant 0 : index
    %c0_12 = arith.constant 0 : index
    %14 = vector.load %arg7[%c0_11, %c0_12] : memref<4x1xf32, #tpu.memory_space<vmem>>, vector<4x1xf32>
    tpu.vector_store %arg7[%c0_11, %c0_12], %13 {strides = array<i32>} : memref<4x1xf32, #tpu.memory_space<vmem>>, vector<4x1xf32>,
    %c0_13 = arith.constant 0 : index
    %c0_14 = arith.constant 0 : index
    %15 = vector.load %arg8[%c0_13, %c0_14] : memref<4x1xf32, #tpu.memory_space<vmem>>, vector<4x1xf32>
    %16 = arith.mulf %6, %6 : vector<4x2048xf32>
    %cst_15 = arith.constant dense<0.000000e+00> : vector<4xf32>
    %17 = vector.multi_reduction <add>, %16, %cst_15 [1] : vector<4x2048xf32> to vector<4xf32>
    %18 = vector.shape_cast %17 : vector<4xf32> to vector<4x1xf32>
    %19 = arith.addf %15, %18 : vector<4x1xf32>
    %c0_16 = arith.constant 0 : index
    %c0_17 = arith.constant 0 : index
    %20 = vector.load %arg8[%c0_16, %c0_17] : memref<4x1xf32, #tpu.memory_space<vmem>>, vector<4x1xf32>
    tpu.vector_store %arg8[%c0_16, %c0_17], %19 {strides = array<i32>} : memref<4x1xf32, #tpu.memory_space<vmem>>, vector<4x1xf32>,
    %c1_i32 = arith.constant 1 : i32
    %21 = arith.cmpi eq, %arg1, %c1_i32 : i32
    %22 = arith.extui %21 : i1 to i32
    %c0_i32_18 = arith.constant 0 : i32
    %23 = arith.cmpi ne, %22, %c0_i32_18 : i32
    scf.if %23 {
      %c0_19 = arith.constant 0 : index
      %c0_20 = arith.constant 0 : index
      %24 = vector.load %arg7[%c0_19, %c0_20] : memref<4x1xf32, #tpu.memory_space<vmem>>, vector<4x1xf32>
      %cst_21 = arith.constant 2.44140625E-4 : f32
      %25 = vector.broadcast %cst_21 : f32 to vector<4x1xf32>
      %26 = arith.mulf %24, %25 : vector<4x1xf32>
      %c0_22 = arith.constant 0 : index
      %c0_23 = arith.constant 0 : index
      %27 = vector.load %arg8[%c0_22, %c0_23] : memref<4x1xf32, #tpu.memory_space<vmem>>, vector<4x1xf32>
      %cst_24 = arith.constant 2.44140625E-4 : f32
      %28 = vector.broadcast %cst_24 : f32 to vector<4x1xf32>
      %29 = arith.mulf %27, %28 : vector<4x1xf32>
      %30 = arith.mulf %26, %26 : vector<4x1xf32>
      %31 = arith.subf %29, %30 : vector<4x1xf32>
      %cst_25 = arith.constant 0.000000e+00 : f32
      %32 = vector.broadcast %cst_25 : f32 to vector<4x1xf32>
      %33 = arith.maximumf %31, %32 : vector<4x1xf32>
      %c0_26 = arith.constant 0 : index
      %c0_27 = arith.constant 0 : index
      %c0_28 = arith.constant 0 : index
      %34 = vector.load %arg5[%c0_26, %c0_27, %c0_28] : memref<1x4x1xf32, #tpu.memory_space<vmem>>, vector<1x4x1xf32>
      %35 = vector.shape_cast %34 : vector<1x4x1xf32> to vector<4x1xf32>
      %36 = vector.shape_cast %26 : vector<4x1xf32> to vector<1x4x1xf32>
      tpu.vector_store %arg5[%c0_26, %c0_27, %c0_28], %36 {strides = array<i32>} : memref<1x4x1xf32, #tpu.memory_space<vmem>>, vector<1x4x1xf32>,
      %cst_29 = arith.constant 9.99999974E-6 : f32
      %37 = vector.broadcast %cst_29 : f32 to vector<4x1xf32>
      %38 = arith.addf %33, %37 : vector<4x1xf32>
      %39 = math.rsqrt %38 : vector<4x1xf32>
      %c0_30 = arith.constant 0 : index
      %c0_31 = arith.constant 0 : index
      %c0_32 = arith.constant 0 : index
      %40 = vector.load %arg6[%c0_30, %c0_31, %c0_32] : memref<1x4x1xf32, #tpu.memory_space<vmem>>, vector<1x4x1xf32>
      %41 = vector.shape_cast %40 : vector<1x4x1xf32> to vector<4x1xf32>
      %42 = vector.shape_cast %39 : vector<4x1xf32> to vector<1x4x1xf32>
      tpu.vector_store %arg6[%c0_30, %c0_31, %c0_32], %42 {strides = array<i32>} : memref<1x4x1xf32, #tpu.memory_space<vmem>>, vector<1x4x1xf32>,
    } else {
    }
    return
  }
  func.func @transform_0(%arg0: i32, %arg1: i32) -> (i32, i32) {
    %c0_i32 = arith.constant 0 : i32
    %c0_i32_0 = arith.constant 0 : i32
    %c0_i32_1 = arith.constant 0 : i32
    return %c0_i32, %c0_i32_0 : i32, i32
  }
  func.func @transform_1(%arg0: i32, %arg1: i32) -> (i32, i32, i32) {
    %c0_i32 = arith.constant 0 : i32
    %c0_i32_0 = arith.constant 0 : i32
    return %arg0, %c0_i32, %arg1 : i32, i32, i32
  }
  func.func @transform_2(%arg0: i32, %arg1: i32) -> (i32, i32, i32) {
    %c0_i32 = arith.constant 0 : i32
    %c0_i32_0 = arith.constant 0 : i32
    return %arg0, %c0_i32, %arg1 : i32, i32, i32
  }
  func.func @transform_3(%arg0: i32, %arg1: i32) -> (i32, i32, i32) {
    %c0_i32 = arith.constant 0 : i32
    %c0_i32_0 = arith.constant 0 : i32
    %c0_i32_1 = arith.constant 0 : i32
    return %arg0, %c0_i32, %c0_i32_0 : i32, i32, i32
  }
  func.func @transform_4(%arg0: i32, %arg1: i32) -> (i32, i32, i32) {
    %c0_i32 = arith.constant 0 : i32
    %c0_i32_0 = arith.constant 0 : i32
    %c0_i32_1 = arith.constant 0 : i32
    return %arg0, %c0_i32, %c0_i32_0 : i32, i32, i32
  }
}

module attributes {stable_mosaic.version = 11 : i64} {
  func.func @_conv_gemm_kernel(%arg0: i32, %arg1: i32, %arg2: memref<2x112xbf16, #tpu.memory_space<vmem>>, %arg3: memref<1x112x2048xbf16, #tpu.memory_space<vmem>>, %arg4: memref<2x1xf32, #tpu.memory_space<vmem>>, %arg5: memref<1x2x2048xf32, #tpu.memory_space<vmem>>) attributes {dimension_semantics = [#tpu.dimension_semantics<parallel>, #tpu.dimension_semantics<parallel>], iteration_bounds = array<i64: 2, 2>, scalar_prefetch = 0 : i64, scratch_operands = 0 : i64, tpu.core_type = #tpu.core_type<tc>, window_params = [{pipeline_mode = #tpu.pipeline_mode<synchronous>, transform_indices = @transform_0, window_bounds = array<i64: 2, 112>}, {transform_indices = @transform_1, window_bounds = array<i64: 1, 112, 2048>}, {pipeline_mode = #tpu.pipeline_mode<synchronous>, transform_indices = @transform_2, window_bounds = array<i64: 2, 1>}, {transform_indices = @transform_3, window_bounds = array<i64: 1, 2, 2048>}]} {
    %c0 = arith.constant 0 : index
    %c0_0 = arith.constant 0 : index
    %0 = vector.load %arg2[%c0, %c0_0] : memref<2x112xbf16, #tpu.memory_space<vmem>>, vector<2x112xbf16>
    %c0_1 = arith.constant 0 : index
    %c0_2 = arith.constant 0 : index
    %c0_3 = arith.constant 0 : index
    %1 = vector.load %arg3[%c0_1, %c0_2, %c0_3] : memref<1x112x2048xbf16, #tpu.memory_space<vmem>>, vector<1x112x2048xbf16>
    %2 = vector.shape_cast %1 : vector<1x112x2048xbf16> to vector<112x2048xbf16>
    %cst = arith.constant dense<0.000000e+00> : vector<2x2048xf32>
    %3 = tpu.matmul %0, %2, %cst {dimension_numbers = #tpu.dot_dimension_numbers<[1], [0], [0], [1], [0, 0, 1, 1], [], []>} : vector<2x112xbf16>, vector<112x2048xbf16>, vector<2x2048xf32> -> vector<2x2048xf32>
    %c0_4 = arith.constant 0 : index
    %c0_5 = arith.constant 0 : index
    %4 = vector.load %arg4[%c0_4, %c0_5] : memref<2x1xf32, #tpu.memory_space<vmem>>, vector<2x1xf32>
    %5 = vector.broadcast %4 : vector<2x1xf32> to vector<2x2048xf32>
    %6 = arith.addf %3, %5 : vector<2x2048xf32>
    %7 = arith.negf %6 : vector<2x2048xf32>
    %8 = math.exp %7 : vector<2x2048xf32>
    %cst_6 = arith.constant 1.000000e+00 : f32
    %9 = vector.broadcast %cst_6 : f32 to vector<2x2048xf32>
    %10 = arith.addf %9, %8 : vector<2x2048xf32>
    %11 = arith.divf %9, %10 : vector<2x2048xf32>
    %c0_7 = arith.constant 0 : index
    %c0_8 = arith.constant 0 : index
    %c0_9 = arith.constant 0 : index
    %12 = vector.load %arg5[%c0_7, %c0_8, %c0_9] : memref<1x2x2048xf32, #tpu.memory_space<vmem>>, vector<1x2x2048xf32>
    %13 = vector.shape_cast %12 : vector<1x2x2048xf32> to vector<2x2048xf32>
    %14 = vector.shape_cast %11 : vector<2x2048xf32> to vector<1x2x2048xf32>
    tpu.vector_store %arg5[%c0_7, %c0_8, %c0_9], %14 {strides = array<i32>} : memref<1x2x2048xf32, #tpu.memory_space<vmem>>, vector<1x2x2048xf32>,
    return
  }
  func.func @transform_0(%arg0: i32, %arg1: i32) -> (i32, i32) {
    %c0_i32 = arith.constant 0 : i32
    %c0_i32_0 = arith.constant 0 : i32
    %c0_i32_1 = arith.constant 0 : i32
    return %c0_i32, %c0_i32_0 : i32, i32
  }
  func.func @transform_1(%arg0: i32, %arg1: i32) -> (i32, i32, i32) {
    %c0_i32 = arith.constant 0 : i32
    %c0_i32_0 = arith.constant 0 : i32
    return %arg0, %c0_i32, %arg1 : i32, i32, i32
  }
  func.func @transform_2(%arg0: i32, %arg1: i32) -> (i32, i32) {
    %c0_i32 = arith.constant 0 : i32
    %c0_i32_0 = arith.constant 0 : i32
    %c0_i32_1 = arith.constant 0 : i32
    return %c0_i32, %c0_i32_0 : i32, i32
  }
  func.func @transform_3(%arg0: i32, %arg1: i32) -> (i32, i32, i32) {
    %c0_i32 = arith.constant 0 : i32
    %c0_i32_0 = arith.constant 0 : i32
    return %arg0, %c0_i32, %arg1 : i32, i32, i32
  }
}

</mosaic_0001>

<llo_original>
// kernel: _lambda_.23
$region0: #{_lambda_.23}
  #allocation0 [shape = 'u32[]', space=smem, size = 0x4, offset = 0x4, fixed_abs, tag = 'smem constant byte address 0x4 - core index']
  #allocation1 [shape = 'u32[144,128]{1,0:T(1,128)}', space=vmem, size = 0x12000, scoped, tag = 'internal scratch']
  %s0 = inlined_call_operand.vmem [shape: f32[2,4,4096], index: 0, kind: input, shape index: {}]
  %s1 = inlined_call_operand.vmem [shape: f32[2,4,1], index: 1, kind: input, shape index: {}]
  %s2 = inlined_call_operand.vmem [shape: f32[2,4,1], index: 2, kind: input, shape index: {}]
  %s3 = inlined_call_operand.vmem [shape: f32[2,4,4096], index: 3, kind: output, shape index: {}]
  %s4 = sld [smem:[#allocation0]]
  $region45: #{_lambda_.23} parent=0
    _
  %s6 = ssub.s32 1, %s4
  %s7 = scalar_select 0, %s6, %s4
  loop: start=0, step=1, limit=6
  $region2: #{_lambda_.23} parent=0 // loop_pre_header
    _
  $region3: #{_lambda_.23} parent=0 // loop_header
    %s9 = sphi 0, %s13
    %p10 = scmp.ge.s32.totalorder %s9, 6
    %s16 = sphi 0, %s28
    %s17 = sphi 0, %s24
    %s18 = sphi 0, %s16
    %s19 = sphi 0, %s17
    %s20 = sphi 0, %s18
    %s21 = sphi 0, %s19
    %s33 = sphi 0, %s35
    %s36 = sphi 0, %s33
    %s37 = sphi 0, %s36
    %s53 = sphi 0, %s37
    %s59 = sphi 0, %s61
    %s62 = sphi 0, %s59
    %s63 = sphi 0, %s62
    %s79 = sphi 0, %s63
    %s85 = sphi 0, %s87
    %s88 = sphi 0, %s85
    %s89 = sphi 0, %s88
    %s105 = sphi 0, %s89
    %s113 = sphi 0, %s115
    %s116 = sphi 0, %s113
    %s117 = sphi 0, %s116
    %s133 = sphi 0, %s117
  $region4: #{_lambda_.23} parent=0 // loop_header_branch
    %12 = sbr.rel (%p10) target = $region8
  $region5: #{_lambda_.23} parent=0 // loop_body
    %s14 = ssub.s32 %s9, 1
    %s15 = ssub.s32 %s9, 2
    %s22 = sadd.s32 1, %s17
    %p23 = scmp.ge.s32.totalorder %s22, 2
    %s24 = scalar_select %p23, 0, %s22
    %s25 = sadd.s32 1, %s16
    %s26 = scalar_select %p23, %s25, %s16
    %p27 = scmp.ge.s32.totalorder %s26, 2
    %s28 = scalar_select %p27, 0, %s26
    %s29 = ssub.s32 %s16, %s28
    %s30 = ssub.s32 %s17, %s24
    %s31 = sor.u32 %s29, %s30
    %p32 = scmp.eq.s32.totalorder %s31, 0
    %s34 = sadd.s32 %s33, 1
    %s35 = scalar_select %p32, %s33, %s34
    %p38 = pneg %p32
    %p39 = scmp.eq.s32.totalorder %s9, 3
    %p40 = por %p38, %p39
    %p41 = scmp.ne.s32.totalorder %s33, %s36
    %p42 = scmp.eq.s32.totalorder %s9, 0
    %p43 = por %p41, %p42
    %p44 = scmp.ne.s32.totalorder %s33, %s36
    %p45 = scmp.eq.s32.totalorder %s14, 3
    %p46 = por %p44, %p45
    %p47 = scmp.ne.s32.totalorder %s36, %s37
    %p48 = scmp.eq.s32.totalorder %s14, 0
    %p49 = por %p47, %p48
    %p50 = scmp.ne.s32.totalorder %s36, %s37
    %p51 = scmp.eq.s32.totalorder %s15, 3
    %p52 = por %p50, %p51
    %p54 = scmp.ne.s32.totalorder %s37, %s53
    %p55 = scmp.eq.s32.totalorder %s15, 0
    %p56 = por %p54, %p55
    %s57 = ssub.s32 %s16, %s28
    %p58 = scmp.eq.s32.totalorder %s57, 0
    %s60 = sadd.s32 %s59, 1
    %s61 = scalar_select %p58, %s59, %s60
    %p64 = pneg %p58
    %p65 = scmp.eq.s32.totalorder %s9, 3
    %p66 = por %p64, %p65
    %p67 = scmp.ne.s32.totalorder %s59, %s62
    %p68 = scmp.eq.s32.totalorder %s9, 0
    %p69 = por %p67, %p68
    %p70 = scmp.ne.s32.totalorder %s59, %s62
    %p71 = scmp.eq.s32.totalorder %s14, 3
    %p72 = por %p70, %p71
    %p73 = scmp.ne.s32.totalorder %s62, %s63
    %p74 = scmp.eq.s32.totalorder %s14, 0
    %p75 = por %p73, %p74
    %p76 = scmp.ne.s32.totalorder %s62, %s63
    %p77 = scmp.eq.s32.totalorder %s15, 3
    %p78 = por %p76, %p77
    %p80 = scmp.ne.s32.totalorder %s63, %s79
    %p81 = scmp.eq.s32.totalorder %s15, 0
    %p82 = por %p80, %p81
    %s83 = ssub.s32 %s16, %s28
    %p84 = scmp.eq.s32.totalorder %s83, 0
    %s86 = sadd.s32 %s85, 1
    %s87 = scalar_select %p84, %s85, %s86
    %p90 = pneg %p84
    %p91 = scmp.eq.s32.totalorder %s9, 3
    %p92 = por %p90, %p91
    %p93 = scmp.ne.s32.totalorder %s85, %s88
    %p94 = scmp.eq.s32.totalorder %s9, 0
    %p95 = por %p93, %p94
    %p96 = scmp.ne.s32.totalorder %s85, %s88
    %p97 = scmp.eq.s32.totalorder %s14, 3
    %p98 = por %p96, %p97
    %p99 = scmp.ne.s32.totalorder %s88, %s89
    %p100 = scmp.eq.s32.totalorder %s14, 0
    %p101 = por %p99, %p100
    %p102 = scmp.ne.s32.totalorder %s88, %s89
    %p103 = scmp.eq.s32.totalorder %s15, 3
    %p104 = por %p102, %p103
    %p106 = scmp.ne.s32.totalorder %s89, %s105
    %p107 = scmp.eq.s32.totalorder %s15, 0
    %p108 = por %p106, %p107
    %s109 = ssub.s32 %s16, %s28
    %s110 = ssub.s32 %s17, %s24
    %s111 = sor.u32 %s109, %s110
    %p112 = scmp.eq.s32.totalorder %s111, 0
    %s114 = sadd.s32 %s113, 1
    %s115 = scalar_select %p112, %s113, %s114
    %p118 = pneg %p112
    %p119 = scmp.eq.s32.totalorder %s9, 3
    %p120 = por %p118, %p119
    %p121 = scmp.ne.s32.totalorder %s113, %s116
    %p122 = scmp.eq.s32.totalorder %s9, 0
    %p123 = por %p121, %p122
    %p124 = scmp.ne.s32.totalorder %s113, %s116
    %p125 = scmp.eq.s32.totalorder %s14, 3
    %p126 = por %p124, %p125
    %p127 = scmp.ne.s32.totalorder %s116, %s117
    %p128 = scmp.eq.s32.totalorder %s14, 0
    %p129 = por %p127, %p128
    %p130 = scmp.ne.s32.totalorder %s116, %s117
    %p131 = scmp.eq.s32.totalorder %s15, 3
    %p132 = por %p130, %p131
    %p134 = scmp.ne.s32.totalorder %s117, %s133
    %p135 = scmp.eq.s32.totalorder %s15, 0
    %p136 = por %p134, %p135
    %p137 = scmp.le.s32.totalorder 1, %s9
    %p138 = scmp.lt.s32.totalorder %s9, 5
    %p139 = pnand %p137, %p138
    %p140 = pneg %p139
    // Predicated region
    $region9: #{_lambda_.23} parent=5 // pred_check
      _
    $region10: #{_lambda_.23} parent=5 // pred_check_branch
      %142 = sbr.rel (%p139) target = $region12
    $region11: #{_lambda_.23} parent=5 // pred_region
      %s143 = ssub.s32 %s9, 1
    $region12: #{_lambda_.23} parent=5 // pred_fallthru
      _
    %p144 = scmp.lt.s32.totalorder %s9, 4
    // Predicated region
    $region13: #{_lambda_.23} parent=5 // pred_check
      %p145 = pneg %p144
    $region14: #{_lambda_.23} parent=5 // pred_check_branch
      %147 = sbr.rel (%p145) target = $region16
    $region15: #{_lambda_.23} parent=5 // pred_region
      // Predicated region
      $region17: #{_lambda_.23} parent=15 // pred_check
        %p148 = pneg %p43
      $region18: #{_lambda_.23} parent=15 // pred_check_branch
        %150 = sbr.rel (%p148) target = $region20
      $region19: #{_lambda_.23} parent=15 // pred_region
        %s151 = smul.u32 16, %s17
        %p152 = scmp.lt.s32.totalorder %s16, 1
        %s153 = scalar_select %p152, %s16, 1
        %p154 = scmp.lt.s32.totalorder %s151, 31
        %s155 = scalar_select %p154, %s151, 31
        %s156 = smul.addr %s153, 32
        %s157 = sadd.s32 %s155, %s156
        %s158 = smul.addr %s157, 4
        %s159 = scalar_lea.vmem %s0, %s158
        %s160 = smul.u32 16, %s17
      $region20: #{_lambda_.23} parent=15 // pred_fallthru
        _
      // Predicated region
      $region21: #{_lambda_.23} parent=15 // pred_check
        %p161 = pneg %p69
      $region22: #{_lambda_.23} parent=15 // pred_check_branch
        %163 = sbr.rel (%p161) target = $region24
      $region23: #{_lambda_.23} parent=15 // pred_region
        %p164 = scmp.lt.s32.totalorder %s16, 1
        %s165 = scalar_select %p164, %s16, 1
        %s166 = smul.addr %s165, 4
        %s167 = scalar_lea.vmem %s1, %s166
      $region24: #{_lambda_.23} parent=15 // pred_fallthru
        _
      // Predicated region
      $region25: #{_lambda_.23} parent=15 // pred_check
        %p168 = pneg %p95
      $region26: #{_lambda_.23} parent=15 // pred_check_branch
        %170 = sbr.rel (%p168) target = $region28
      $region27: #{_lambda_.23} parent=15 // pred_region
        %p171 = scmp.lt.s32.totalorder %s16, 1
        %s172 = scalar_select %p171, %s16, 1
        %s173 = smul.addr %s172, 4
        %s174 = scalar_lea.vmem %s2, %s173
      $region28: #{_lambda_.23} parent=15 // pred_fallthru
        _
    $region16: #{_lambda_.23} parent=5 // pred_fallthru
      _
    %p175 = scmp.le.s32.totalorder 1, %s9
    %p176 = scmp.lt.s32.totalorder %s9, 5
    %p177 = pnand %p175, %p176
    %p178 = pneg %p177
    // Predicated region
    $region29: #{_lambda_.23} parent=5 // pred_check
      _
    $region30: #{_lambda_.23} parent=5 // pred_check_branch
      %180 = sbr.rel (%p177) target = $region32
    $region31: #{_lambda_.23} parent=5 // pred_region
      %s181 = ssub.s32 %s9, 1
      %s182 = smul.u32 16, %s19
      %p183 = scmp.lt.s32.totalorder %s18, 1
      %s184 = scalar_select %p183, %s18, 1
      %p185 = scmp.lt.s32.totalorder %s182, 31
      %s186 = scalar_select %p185, %s182, 31
      %s187 = smul.addr %s184, 32
      %s188 = sadd.s32 %s186, %s187
      %s189 = smul.addr %s188, 4
      %s190 = scalar_lea.vmem %s0, %s189
      %p191 = pneg %p49
      %p192 = pneg %p46
      %p193 = scmp.lt.s32.totalorder %s18, 1
      %s194 = scalar_select %p193, %s18, 1
      %s195 = smul.addr %s194, 4
      %s196 = scalar_lea.vmem %s1, %s195
      %p197 = pneg %p75
      %p198 = pneg %p72
      %p199 = scmp.lt.s32.totalorder %s18, 1
      %s200 = scalar_select %p199, %s18, 1
      %s201 = smul.addr %s200, 4
      %s202 = scalar_lea.vmem %s2, %s201
      %p203 = pneg %p101
      %p204 = pneg %p98
      %p205 = pneg %p129
      %p206 = pneg %p126
      %s207 = smul.u32 16, %s19
      %p208 = scmp.lt.s32.totalorder %s18, 1
      %s209 = scalar_select %p208, %s18, 1
      %p210 = scmp.lt.s32.totalorder %s207, 31
      %s211 = scalar_select %p210, %s207, 31
      %s212 = smul.addr %s209, 32
      %s213 = sadd.s32 %s211, %s212
      %s214 = smul.addr %s213, 4
      %s215 = scalar_lea.vmem %s3, %s214
      %s216 = smul.u32 16, %s19
      %p217 = scmp.lt.s32.totalorder %s18, 1
      %s218 = scalar_select %p217, %s18, 1
      %p219 = scmp.lt.s32.totalorder %s216, 31
      %s220 = scalar_select %p219, %s216, 31
      %s221 = smul.addr %s218, 32
      %s222 = sadd.s32 %s220, %s221
      %s223 = smul.addr %s222, 4
      %s224 = scalar_lea.vmem %s0, %s223
      %s225 = smul.u32 16, %s19
      %p226 = scmp.lt.s32.totalorder %s18, 1
      %s227 = scalar_select %p226, %s18, 1
      %s228 = smul.addr %s227, 4
      %s229 = scalar_lea.vmem %s1, %s228
      %p230 = scmp.lt.s32.totalorder %s18, 1
      %s231 = scalar_select %p230, %s18, 1
      %s232 = smul.addr %s231, 4
      %s233 = scalar_lea.vmem %s2, %s232
      %s234 = smul.u32 16, %s19
      %p235 = scmp.lt.s32.totalorder %s18, 1
      %s236 = scalar_select %p235, %s18, 1
      %p237 = scmp.lt.s32.totalorder %s234, 31
      %s238 = scalar_select %p237, %s234, 31
      %s239 = smul.addr %s236, 32
      %s240 = sadd.s32 %s238, %s239
      %s241 = smul.addr %s240, 4
      %s242 = scalar_lea.vmem %s3, %s241
      %s243 = smul.u32 16, %s19
      %v244 = vld [vmem:[%s224] sm:$0xff]
      %v245 = vld [vmem:[%s224 + $0x8] sm:$0xff]
      %v246 = vld [vmem:[%s224 + $0x10] sm:$0xff]
      %v247 = vld [vmem:[%s224 + $0x18] sm:$0xff]
      %v248 = vld [vmem:[%s224 + $0x20] sm:$0xff]
      %v249 = vld [vmem:[%s224 + $0x28] sm:$0xff]
      %v250 = vld [vmem:[%s224 + $0x30] sm:$0xff]
      %v251 = vld [vmem:[%s224 + $0x38] sm:$0xff]
      %v252 = vld [vmem:[%s229] sm:$0xf]
      %254 = vset.pattern.permute.xlu0 0
      %255 = vperm.xlu0 %254, %v252
      %v256 = vpop.permute.xlu0 %255
      %v258 = vunpack.c.l.s4 839922192
      %v259 = vunpack.c.0.s8 %v258
      %v260 = vlaneseq
      %v261 = vshrl.u32 %v260, 7
      %v262 = vsub.s32 %v259, %v261
      %v263 = vrot.slane %v256, %v262
      %v265 = vsub.f32 %v244, %v263
      %v266 = vsub.f32 %v245, %v263
      %v267 = vsub.f32 %v246, %v263
      %v268 = vsub.f32 %v247, %v263
      %v269 = vsub.f32 %v248, %v263
      %v270 = vsub.f32 %v249, %v263
      %v271 = vsub.f32 %v250, %v263
      %v272 = vsub.f32 %v251, %v263
      %v273 = vld [vmem:[%s233] sm:$0xf]
      %275 = vset.pattern.permute.xlu0 0
      %276 = vperm.xlu0 %275, %v273
      %v277 = vpop.permute.xlu0 %276
      %v279 = vunpack.c.l.s4 839922192
      %v280 = vunpack.c.0.s8 %v279
      %v281 = vlaneseq
      %v282 = vshrl.u32 %v281, 7
      %v283 = vsub.s32 %v280, %v282
      %v284 = vrot.slane %v277, %v283
      %v286 = vmul.f32 %v265, %v284
      %v287 = vmul.f32 %v266, %v284
      %v288 = vmul.f32 %v267, %v284
      %v289 = vmul.f32 %v268, %v284
      %v290 = vmul.f32 %v269, %v284
      %v291 = vmul.f32 %v270, %v284
      %v292 = vmul.f32 %v271, %v284
      %v293 = vmul.f32 %v272, %v284
      %vm294 = vcmp.ge.f32.partialorder %v286, 0.0
      %vm295 = vcmp.ge.f32.partialorder %v287, 0.0
      %vm296 = vcmp.ge.f32.partialorder %v288, 0.0
      %vm297 = vcmp.ge.f32.partialorder %v289, 0.0
      %vm298 = vcmp.ge.f32.partialorder %v290, 0.0
      %vm299 = vcmp.ge.f32.partialorder %v291, 0.0
      %vm300 = vcmp.ge.f32.partialorder %v292, 0.0
      %vm301 = vcmp.ge.f32.partialorder %v293, 0.0
      %v302 = vmul.f32 %v286, 0.01
      %v303 = vmul.f32 %v287, 0.01
      %v304 = vmul.f32 %v288, 0.01
      %v305 = vmul.f32 %v289, 0.01
      %v306 = vmul.f32 %v290, 0.01
      %v307 = vmul.f32 %v291, 0.01
      %v308 = vmul.f32 %v292, 0.01
      %v309 = vmul.f32 %v293, 0.01
      %v310 = vsel %vm294, %v286, %v302
      %v311 = vsel %vm295, %v287, %v303
      %v312 = vsel %vm296, %v288, %v304
      %v313 = vsel %vm297, %v289, %v305
      %v314 = vsel %vm298, %v290, %v306
      %v315 = vsel %vm299, %v291, %v307
      %v316 = vsel %vm300, %v292, %v308
      %v317 = vsel %vm301, %v293, %v309
      %318 = vst [vmem:[%s242] sm:$0xff] %v310
      %319 = vst [vmem:[%s242 + $0x8] sm:$0xff] %v311
      %320 = vst [vmem:[%s242 + $0x10] sm:$0xff] %v312
      %321 = vst [vmem:[%s242 + $0x18] sm:$0xff] %v313
      %322 = vst [vmem:[%s242 + $0x20] sm:$0xff] %v314
      %323 = vst [vmem:[%s242 + $0x28] sm:$0xff] %v315
      %324 = vst [vmem:[%s242 + $0x30] sm:$0xff] %v316
      %325 = vst [vmem:[%s242 + $0x38] sm:$0xff] %v317
      %s326 = smul.u32 16, %s19
      %p327 = scmp.lt.s32.totalorder %s18, 1
      %s328 = scalar_select %p327, %s18, 1
      %p329 = scmp.lt.s32.totalorder %s326, 31
      %s330 = scalar_select %p329, %s326, 31
      %s331 = smul.addr %s328, 32
      %s332 = sadd.s32 %s330, %s331
      %s333 = smul.addr %s332, 4
      %s334 = scalar_lea.vmem %s3, %s333
      // Predicated region
      $region33: #{_lambda_.23} parent=31 // pred_check
        %p335 = pneg %p126
      $region34: #{_lambda_.23} parent=31 // pred_check_branch
        %337 = sbr.rel (%p335) target = $region36
      $region35: #{_lambda_.23} parent=31 // pred_region
        %s338 = smul.u32 16, %s19
      $region36: #{_lambda_.23} parent=31 // pred_fallthru
        _
    $region32: #{_lambda_.23} parent=5 // pred_fallthru
      _
    %p339 = scmp.le.s32.totalorder 2, %s9
    // Predicated region
    $region37: #{_lambda_.23} parent=5 // pred_check
      %p340 = pneg %p339
    $region38: #{_lambda_.23} parent=5 // pred_check_branch
      %342 = sbr.rel (%p340) target = $region40
    $region39: #{_lambda_.23} parent=5 // pred_region
      %s343 = ssub.s32 %s9, 2
      // Predicated region
      $region41: #{_lambda_.23} parent=39 // pred_check
        %p344 = pneg %p132
      $region42: #{_lambda_.23} parent=39 // pred_check_branch
        %346 = sbr.rel (%p344) target = $region44
      $region43: #{_lambda_.23} parent=39 // pred_region
        %s347 = smul.u32 16, %s21
        %p348 = scmp.lt.s32.totalorder %s20, 1
        %s349 = scalar_select %p348, %s20, 1
        %p350 = scmp.lt.s32.totalorder %s347, 31
        %s351 = scalar_select %p350, %s347, 31
        %s352 = smul.addr %s349, 32
        %s353 = sadd.s32 %s351, %s352
        %s354 = smul.addr %s353, 4
        %s355 = scalar_lea.vmem %s3, %s354
      $region44: #{_lambda_.23} parent=39 // pred_fallthru
        _
    $region40: #{_lambda_.23} parent=5 // pred_fallthru
      _
  $region6: #{_lambda_.23} parent=0 // loop_footer
    %s13 = sadd.s32 1, %s9
  $region7: #{_lambda_.23} parent=0 // loop_footer_branch
    %8 = sbr.rel target = $region3
  $region8: #{_lambda_.23} parent=0 // loop_exit
    _

// kernel: _lambda_.22
$region0: #{_lambda_.22}
  #allocation0 [shape = 'u32[]', space=smem, size = 0x4, offset = 0x4, fixed_abs, tag = 'smem constant byte address 0x4 - core index']
  #allocation1 [shape = 'u32[144,128]{1,0:T(1,128)}', space=vmem, size = 0x12000, scoped, tag = 'internal scratch']
  #allocation2 [shape = 'f32[4,1]{1,0:T(4,128)}', space=vmem, size = 0x800, scoped, tag = 'scratch operand']
  #allocation3 [shape = 'f32[4,1]{1,0:T(4,128)}', space=vmem, size = 0x800, scoped, tag = 'scratch operand']
  %s0 = inlined_call_operand.vmem [shape: bf16[4,32], index: 0, kind: input, shape index: {}]
  %s1 = inlined_call_operand.vmem [shape: bf16[2,32,4096], index: 1, kind: input, shape index: {}]
  %s2 = inlined_call_operand.vmem [shape: f32[4,1], index: 2, kind: input, shape index: {}]
  %s3 = inlined_call_operand.vmem [shape: f32[2,4,4096], index: 3, kind: output, shape index: {0}]
  %s4 = inlined_call_operand.vmem [shape: f32[2,4,1], index: 4, kind: output, shape index: {1}]
  %s5 = inlined_call_operand.vmem [shape: f32[2,4,1], index: 5, kind: output, shape index: {2}]
  %6 = xla_tuple %s3, %s4, %s5
  %s7 = sld [smem:[#allocation0]]
  $region92: #{_lambda_.22} parent=0
    _
  %s9 = ssub.s32 1, %s7
  %s10 = scalar_select 0, %s9, %s7
  $region1: #{_lambda_.22} parent=0
    #allocation4 [shape = 'u8[262144]{0}', space=vmem, size = 0x40000, scoped, tag = 'input window, operand 1']
    loop: start=0, step=1, limit=6
    $region2: #{_lambda_.22} parent=1 // loop_pre_header
      _
    $region3: #{_lambda_.22} parent=1 // loop_header
      %s12 = sphi 0, %s16
      %p13 = scmp.ge.s32.totalorder %s12, 6
      %s19 = sphi 0, %s31
      %s20 = sphi 0, %s27
      %s21 = sphi 0, %s19
      %s22 = sphi 0, %s20
      %s23 = sphi 0, %s21
      %s24 = sphi 0, %s22
      %s32 = sphi 0, %s32
      %s34 = sphi 0, %s32
      %s35 = sphi 0, %s34
      %s49 = sphi 0, %s35
      %s57 = sphi 0, %s59
      %s60 = sphi 0, %s57
      %s61 = sphi 0, %s60
      %s77 = sphi 0, %s61
      %s81 = sphi 0, %s81
      %s83 = sphi 0, %s81
      %s84 = sphi 0, %s83
      %s98 = sphi 0, %s84
      %s106 = sphi 0, %s108
      %s109 = sphi 0, %s106
      %s110 = sphi 0, %s109
      %s126 = sphi 0, %s110
      %s132 = sphi 0, %s134
      %s135 = sphi 0, %s132
      %s136 = sphi 0, %s135
      %s152 = sphi 0, %s136
      %s158 = sphi 0, %s160
      %s161 = sphi 0, %s158
      %s162 = sphi 0, %s161
      %s178 = sphi 0, %s162
    $region4: #{_lambda_.22} parent=1 // loop_header_branch
      %15 = sbr.rel (%p13) target = $region8
    $region5: #{_lambda_.22} parent=1 // loop_body
      %s17 = ssub.s32 %s12, 1
      %s18 = ssub.s32 %s12, 2
      %s25 = sadd.s32 1, %s20
      %p26 = scmp.ge.s32.totalorder %s25, 2
      %s27 = scalar_select %p26, 0, %s25
      %s28 = sadd.s32 1, %s19
      %s29 = scalar_select %p26, %s28, %s19
      %p30 = scmp.ge.s32.totalorder %s29, 2
      %s31 = scalar_select %p30, 0, %s29
      %s33 = sadd.s32 %s32, 1
      %p36 = scmp.eq.s32.totalorder %s12, 3
      %p37 = scmp.ne.s32.totalorder %s32, %s34
      %p38 = scmp.eq.s32.totalorder %s12, 0
      %p39 = por %p37, %p38
      %p40 = scmp.ne.s32.totalorder %s32, %s34
      %p41 = scmp.eq.s32.totalorder %s17, 3
      %p42 = por %p40, %p41
      %p43 = scmp.ne.s32.totalorder %s34, %s35
      %p44 = scmp.eq.s32.totalorder %s17, 0
      %p45 = por %p43, %p44
      %p46 = scmp.ne.s32.totalorder %s34, %s35
      %p47 = scmp.eq.s32.totalorder %s18, 3
      %p48 = por %p46, %p47
      %p50 = scmp.ne.s32.totalorder %s35, %s49
      %p51 = scmp.eq.s32.totalorder %s18, 0
      %p52 = por %p50, %p51
      %s53 = ssub.s32 %s19, %s31
      %s54 = ssub.s32 %s20, %s27
      %s55 = sor.u32 %s53, %s54
      %p56 = scmp.eq.s32.totalorder %s55, 0
      %s58 = sadd.s32 %s57, 1
      %s59 = scalar_select %p56, %s57, %s58
      %p62 = pneg %p56
      %p63 = scmp.eq.s32.totalorder %s12, 3
      %p64 = por %p62, %p63
      %p65 = scmp.ne.s32.totalorder %s57, %s60
      %p66 = scmp.eq.s32.totalorder %s12, 0
      %p67 = por %p65, %p66
      %p68 = scmp.ne.s32.totalorder %s57, %s60
      %p69 = scmp.eq.s32.totalorder %s17, 3
      %p70 = por %p68, %p69
      %p71 = scmp.ne.s32.totalorder %s60, %s61
      %p72 = scmp.eq.s32.totalorder %s17, 0
      %p73 = por %p71, %p72
      %p74 = scmp.ne.s32.totalorder %s60, %s61
      %p75 = scmp.eq.s32.totalorder %s18, 3
      %p76 = por %p74, %p75
      %p78 = scmp.ne.s32.totalorder %s61, %s77
      %p79 = scmp.eq.s32.totalorder %s18, 0
      %p80 = por %p78, %p79
      %s82 = sadd.s32 %s81, 1
      %p85 = scmp.eq.s32.totalorder %s12, 3
      %p86 = scmp.ne.s32.totalorder %s81, %s83
      %p87 = scmp.eq.s32.totalorder %s12, 0
      %p88 = por %p86, %p87
      %p89 = scmp.ne.s32.totalorder %s81, %s83
      %p90 = scmp.eq.s32.totalorder %s17, 3
      %p91 = por %p89, %p90
      %p92 = scmp.ne.s32.totalorder %s83, %s84
      %p93 = scmp.eq.s32.totalorder %s17, 0
      %p94 = por %p92, %p93
      %p95 = scmp.ne.s32.totalorder %s83, %s84
      %p96 = scmp.eq.s32.totalorder %s18, 3
      %p97 = por %p95, %p96
      %p99 = scmp.ne.s32.totalorder %s84, %s98
      %p100 = scmp.eq.s32.totalorder %s18, 0
      %p101 = por %p99, %p100
      %s102 = ssub.s32 %s19, %s31
      %s103 = ssub.s32 %s20, %s27
      %s104 = sor.u32 %s102, %s103
      %p105 = scmp.eq.s32.totalorder %s104, 0
      %s107 = sadd.s32 %s106, 1
      %s108 = scalar_select %p105, %s106, %s107
      %p111 = pneg %p105
      %p112 = scmp.eq.s32.totalorder %s12, 3
      %p113 = por %p111, %p112
      %p114 = scmp.ne.s32.totalorder %s106, %s109
      %p115 = scmp.eq.s32.totalorder %s12, 0
      %p116 = por %p114, %p115
      %p117 = scmp.ne.s32.totalorder %s106, %s109
      %p118 = scmp.eq.s32.totalorder %s17, 3
      %p119 = por %p117, %p118
      %p120 = scmp.ne.s32.totalorder %s109, %s110
      %p121 = scmp.eq.s32.totalorder %s17, 0
      %p122 = por %p120, %p121
      %p123 = scmp.ne.s32.totalorder %s109, %s110
      %p124 = scmp.eq.s32.totalorder %s18, 3
      %p125 = por %p123, %p124
      %p127 = scmp.ne.s32.totalorder %s110, %s126
      %p128 = scmp.eq.s32.totalorder %s18, 0
      %p129 = por %p127, %p128
      %s130 = ssub.s32 %s19, %s31
      %p131 = scmp.eq.s32.totalorder %s130, 0
      %s133 = sadd.s32 %s132, 1
      %s134 = scalar_select %p131, %s132, %s133
      %p137 = pneg %p131
      %p138 = scmp.eq.s32.totalorder %s12, 3
      %p139 = por %p137, %p138
      %p140 = scmp.ne.s32.totalorder %s132, %s135
      %p141 = scmp.eq.s32.totalorder %s12, 0
      %p142 = por %p140, %p141
      %p143 = scmp.ne.s32.totalorder %s132, %s135
      %p144 = scmp.eq.s32.totalorder %s17, 3
      %p145 = por %p143, %p144
      %p146 = scmp.ne.s32.totalorder %s135, %s136
      %p147 = scmp.eq.s32.totalorder %s17, 0
      %p148 = por %p146, %p147
      %p149 = scmp.ne.s32.totalorder %s135, %s136
      %p150 = scmp.eq.s32.totalorder %s18, 3
      %p151 = por %p149, %p150
      %p153 = scmp.ne.s32.totalorder %s136, %s152
      %p154 = scmp.eq.s32.totalorder %s18, 0
      %p155 = por %p153, %p154
      %s156 = ssub.s32 %s19, %s31
      %p157 = scmp.eq.s32.totalorder %s156, 0
      %s159 = sadd.s32 %s158, 1
      %s160 = scalar_select %p157, %s158, %s159
      %p163 = pneg %p157
      %p164 = scmp.eq.s32.totalorder %s12, 3
      %p165 = por %p163, %p164
      %p166 = scmp.ne.s32.totalorder %s158, %s161
      %p167 = scmp.eq.s32.totalorder %s12, 0
      %p168 = por %p166, %p167
      %p169 = scmp.ne.s32.totalorder %s158, %s161
      %p170 = scmp.eq.s32.totalorder %s17, 3
      %p171 = por %p169, %p170
      %p172 = scmp.ne.s32.totalorder %s161, %s162
      %p173 = scmp.eq.s32.totalorder %s17, 0
      %p174 = por %p172, %p173
      %p175 = scmp.ne.s32.totalorder %s161, %s162
      %p176 = scmp.eq.s32.totalorder %s18, 3
      %p177 = por %p175, %p176
      %p179 = scmp.ne.s32.totalorder %s162, %s178
      %p180 = scmp.eq.s32.totalorder %s18, 0
      %p181 = por %p179, %p180
      %p182 = scmp.le.s32.totalorder 1, %s12
      %p183 = scmp.lt.s32.totalorder %s12, 5
      %p184 = pnand %p182, %p183
      %p185 = pneg %p184
      // Predicated region
      $region9: #{_lambda_.22} parent=5 // pred_check
        _
      $region10: #{_lambda_.22} parent=5 // pred_check_branch
        %187 = sbr.rel (%p184) target = $region12
      $region11: #{_lambda_.22} parent=5 // pred_region
        %s188 = ssub.s32 %s12, 1
        // Predicated region
        $region13: #{_lambda_.22} parent=11 // pred_check
          %p189 = pneg %p45
        $region14: #{_lambda_.22} parent=11 // pred_check_branch
          %191 = sbr.rel (%p189) target = $region16
        $region15: #{_lambda_.22} parent=11 // pred_region
          _
        $region16: #{_lambda_.22} parent=11 // pred_fallthru
          _
        // Predicated region
        $region17: #{_lambda_.22} parent=11 // pred_check
          %p192 = pneg %p94
        $region18: #{_lambda_.22} parent=11 // pred_check_branch
          %194 = sbr.rel (%p192) target = $region20
        $region19: #{_lambda_.22} parent=11 // pred_region
          _
        $region20: #{_lambda_.22} parent=11 // pred_fallthru
          _
      $region12: #{_lambda_.22} parent=5 // pred_fallthru
        _
      %p195 = scmp.lt.s32.totalorder %s12, 4
      // Predicated region
      $region21: #{_lambda_.22} parent=5 // pred_check
        %p196 = pneg %p195
      $region22: #{_lambda_.22} parent=5 // pred_check_branch
        %198 = sbr.rel (%p196) target = $region24
      $region23: #{_lambda_.22} parent=5 // pred_region
        // Predicated region
        $region25: #{_lambda_.22} parent=23 // pred_check
          %p199 = pneg %p67
        $region26: #{_lambda_.22} parent=23 // pred_check_branch
          %201 = sbr.rel (%p199) target = $region28
        $region27: #{_lambda_.22} parent=23 // pred_region
          %s202 = sand.u32 %s57, 1
          %s203 = sand.u32 %s57, 1
          %s204 = smul.addr %s203, 256
          %s205 = scalar_lea.vmem [#allocation4], %s204
          %s206 = smul.u32 16, %s20
          %s207 = smul.addr %s19, 128
          %s208 = sadd.s32 %s206, %s207
          %s209 = smul.addr %s208, 4
          %s210 = scalar_lea.vmem %s1, %s209
          // Predicated region
          $region29: #{_lambda_.22} parent=27 // pred_check
            _
          $region30: #{_lambda_.22} parent=27 // pred_check_branch
            %212 = sbr.rel (0) target = $region32
          $region31: #{_lambda_.22} parent=27 // pred_region
            // Predicated region
            $region33: #{_lambda_.22} parent=31 // pred_check
              _
            $region34: #{_lambda_.22} parent=31 // pred_check_branch
              %214 = sbr.rel (0) target = $region36
            $region35: #{_lambda_.22} parent=31 // pred_region
              loop: start=0, step=1, limit=1
              $region37: #{_lambda_.22} parent=35 // loop_pre_header
                _
              $region38: #{_lambda_.22} parent=35 // loop_header
                %s216 = sphi 0, %s220
                %p217 = scmp.ge.s32.totalorder %s216, 1
                %s221 = sphi %s210, %s210
                %s222 = sphi %s205, %s205
              $region39: #{_lambda_.22} parent=35 // loop_header_branch
                %219 = sbr.rel (%p217) target = $region43
              $region40: #{_lambda_.22} parent=35 // loop_body
                %v223 = vld [vmem:[%s221] sm:$0xff]
                %224 = vst [vmem:[%s222] sm:$0xff] %v223
                %v225 = vld [vmem:[%s221 + $0x8] sm:$0xff]
                %226 = vst [vmem:[%s222 + $0x8] sm:$0xff] %v225
                %v227 = vld [vmem:[%s221 + $0x10] sm:$0xff]
                %228 = vst [vmem:[%s222 + $0x10] sm:$0xff] %v227
                %v229 = vld [vmem:[%s221 + $0x18] sm:$0xff]
                %230 = vst [vmem:[%s222 + $0x18] sm:$0xff] %v229
                %v231 = vld [vmem:[%s221 + $0x20] sm:$0xff]
                %232 = vst [vmem:[%s222 + $0x20] sm:$0xff] %v231
                %v233 = vld [vmem:[%s221 + $0x28] sm:$0xff]
                %234 = vst [vmem:[%s222 + $0x28] sm:$0xff] %v233
                %v235 = vld [vmem:[%s221 + $0x30] sm:$0xff]
                %236 = vst [vmem:[%s222 + $0x30] sm:$0xff] %v235
                %v237 = vld [vmem:[%s221 + $0x38] sm:$0xff]
                %238 = vst [vmem:[%s222 + $0x38] sm:$0xff] %v237
                %v239 = vld [vmem:[%s221 + $0x80] sm:$0xff]
                %240 = vst [vmem:[%s222 + $0x40] sm:$0xff] %v239
                %v241 = vld [vmem:[%s221 + $0x88] sm:$0xff]
                %242 = vst [vmem:[%s222 + $0x48] sm:$0xff] %v241
                %v243 = vld [vmem:[%s221 + $0x90] sm:$0xff]
                %244 = vst [vmem:[%s222 + $0x50] sm:$0xff] %v243
                %v245 = vld [vmem:[%s221 + $0x98] sm:$0xff]
                %246 = vst [vmem:[%s222 + $0x58] sm:$0xff] %v245
                %v247 = vld [vmem:[%s221 + $0xa0] sm:$0xff]
                %248 = vst [vmem:[%s222 + $0x60] sm:$0xff] %v247
                %v249 = vld [vmem:[%s221 + $0xa8] sm:$0xff]
                %250 = vst [vmem:[%s222 + $0x68] sm:$0xff] %v249
                %v251 = vld [vmem:[%s221 + $0xb0] sm:$0xff]
                %252 = vst [vmem:[%s222 + $0x70] sm:$0xff] %v251
                %v253 = vld [vmem:[%s221 + $0xb8] sm:$0xff]
                %254 = vst [vmem:[%s222 + $0x78] sm:$0xff] %v253
                %v255 = vld [vmem:[%s221 + $0x100] sm:$0xff]
                %256 = vst [vmem:[%s222 + $0x80] sm:$0xff] %v255
                %v257 = vld [vmem:[%s221 + $0x108] sm:$0xff]
                %258 = vst [vmem:[%s222 + $0x88] sm:$0xff] %v257
                %v259 = vld [vmem:[%s221 + $0x110] sm:$0xff]
                %260 = vst [vmem:[%s222 + $0x90] sm:$0xff] %v259
                %v261 = vld [vmem:[%s221 + $0x118] sm:$0xff]
                %262 = vst [vmem:[%s222 + $0x98] sm:$0xff] %v261
                %v263 = vld [vmem:[%s221 + $0x120] sm:$0xff]
                %264 = vst [vmem:[%s222 + $0xa0] sm:$0xff] %v263
                %v265 = vld [vmem:[%s221 + $0x128] sm:$0xff]
                %266 = vst [vmem:[%s222 + $0xa8] sm:$0xff] %v265
                %v267 = vld [vmem:[%s221 + $0x130] sm:$0xff]
                %268 = vst [vmem:[%s222 + $0xb0] sm:$0xff] %v267
                %v269 = vld [vmem:[%s221 + $0x138] sm:$0xff]
                %270 = vst [vmem:[%s222 + $0xb8] sm:$0xff] %v269
                %v271 = vld [vmem:[%s221 + $0x180] sm:$0xff]
                %272 = vst [vmem:[%s222 + $0xc0] sm:$0xff] %v271
                %v273 = vld [vmem:[%s221 + $0x188] sm:$0xff]
                %274 = vst [vmem:[%s222 + $0xc8] sm:$0xff] %v273
                %v275 = vld [vmem:[%s221 + $0x190] sm:$0xff]
                %276 = vst [vmem:[%s222 + $0xd0] sm:$0xff] %v275
                %v277 = vld [vmem:[%s221 + $0x198] sm:$0xff]
                %278 = vst [vmem:[%s222 + $0xd8] sm:$0xff] %v277
                %v279 = vld [vmem:[%s221 + $0x1a0] sm:$0xff]
                %280 = vst [vmem:[%s222 + $0xe0] sm:$0xff] %v279
                %v281 = vld [vmem:[%s221 + $0x1a8] sm:$0xff]
                %282 = vst [vmem:[%s222 + $0xe8] sm:$0xff] %v281
                %v283 = vld [vmem:[%s221 + $0x1b0] sm:$0xff]
                %284 = vst [vmem:[%s222 + $0xf0] sm:$0xff] %v283
                %v285 = vld [vmem:[%s221 + $0x1b8] sm:$0xff]
                %286 = vst [vmem:[%s222 + $0xf8] sm:$0xff] %v285
              $region41: #{_lambda_.22} parent=35 // loop_footer
                %s220 = sadd.s32 1, %s216
              $region42: #{_lambda_.22} parent=35 // loop_footer_branch
                %215 = sbr.rel target = $region38
              $region43: #{_lambda_.22} parent=35 // loop_exit
                _
            $region36: #{_lambda_.22} parent=31 // pred_fallthru
              _
            // Predicated region
            $region44: #{_lambda_.22} parent=31 // pred_check
              _
            $region45: #{_lambda_.22} parent=31 // pred_check_branch
              %288 = sbr.rel target = $region47
            $region46: #{_lambda_.22} parent=31 // pred_region
              _
            $region47: #{_lambda_.22} parent=31 // pred_fallthru
              _
          $region32: #{_lambda_.22} parent=27 // pred_fallthru
            _
          %289 = vnop
        $region28: #{_lambda_.22} parent=23 // pred_fallthru
          _
      $region24: #{_lambda_.22} parent=5 // pred_fallthru
        _
      %p290 = scmp.le.s32.totalorder 1, %s12
      %p291 = scmp.lt.s32.totalorder %s12, 5
      %p292 = pnand %p290, %p291
      %p293 = pneg %p292
      // Predicated region
      $region48: #{_lambda_.22} parent=5 // pred_check
        _
      $region49: #{_lambda_.22} parent=5 // pred_check_branch
        %295 = sbr.rel (%p292) target = $region51
      $region50: #{_lambda_.22} parent=5 // pred_region
        %s296 = ssub.s32 %s12, 1
        %s297 = sand.u32 %s60, 1
        %s298 = sand.u32 %s60, 1
        %s299 = smul.addr %s298, 256
        %s300 = scalar_lea.vmem [#allocation4], %s299
        // Predicated region
        $region52: #{_lambda_.22} parent=50 // pred_check
          %p301 = pneg %p73
        $region53: #{_lambda_.22} parent=50 // pred_check_branch
          %303 = sbr.rel (%p301) target = $region55
        $region54: #{_lambda_.22} parent=50 // pred_region
          _
        $region55: #{_lambda_.22} parent=50 // pred_fallthru
          _
        %p304 = pneg %p45
        %p305 = pneg %p42
        %s306 = sand.u32 %s60, 1
        %s307 = sand.u32 %s60, 1
        %s308 = smul.addr %s307, 256
        %s309 = scalar_lea.vmem [#allocation4], %s308
        %p310 = pneg %p73
        %p311 = pneg %p70
        %p312 = pneg %p94
        %p313 = pneg %p91
        %p314 = pneg %p122
        %p315 = pneg %p119
        %s316 = smul.u32 16, %s22
        %p317 = scmp.lt.s32.totalorder %s21, 1
        %s318 = scalar_select %p317, %s21, 1
        %p319 = scmp.lt.s32.totalorder %s316, 31
        %s320 = scalar_select %p319, %s316, 31
        %s321 = smul.addr %s318, 32
        %s322 = sadd.s32 %s320, %s321
        %s323 = smul.addr %s322, 4
        %s324 = scalar_lea.vmem %s3, %s323
        %p325 = pneg %p148
        %p326 = pneg %p145
        %p327 = scmp.lt.s32.totalorder %s21, 1
        %s328 = scalar_select %p327, %s21, 1
        %s329 = smul.addr %s328, 4
        %s330 = scalar_lea.vmem %s4, %s329
        %p331 = pneg %p174
        %p332 = pneg %p171
        %p333 = scmp.lt.s32.totalorder %s21, 1
        %s334 = scalar_select %p333, %s21, 1
        %s335 = smul.addr %s334, 4
        %s336 = scalar_lea.vmem %s5, %s335
        %s337 = smul.u32 16, %s22
        %s338 = smul.u32 16, %s22
        %p339 = scmp.lt.s32.totalorder %s21, 1
        %s340 = scalar_select %p339, %s21, 1
        %p341 = scmp.lt.s32.totalorder %s338, 31
        %s342 = scalar_select %p341, %s338, 31
        %s343 = smul.addr %s340, 32
        %s344 = sadd.s32 %s342, %s343
        %s345 = smul.addr %s344, 4
        %s346 = scalar_lea.vmem %s3, %s345
        %s347 = smul.u32 16, %s22
        %p348 = scmp.lt.s32.totalorder %s21, 1
        %s349 = scalar_select %p348, %s21, 1
        %s350 = smul.addr %s349, 4
        %s351 = scalar_lea.vmem %s4, %s350
        %p352 = scmp.lt.s32.totalorder %s21, 1
        %s353 = scalar_select %p352, %s21, 1
        %s354 = smul.addr %s353, 4
        %s355 = scalar_lea.vmem %s5, %s354
        %p357 = scmp.eq.s32.totalorder %s22, 0
        // Predicated region
        $region56: #{_lambda_.22} parent=50 // pred_check
          %p358 = pneg %p357
        $region57: #{_lambda_.22} parent=50 // pred_check_branch
          %360 = sbr.rel (%p358) target = $region59
        $region58: #{_lambda_.22} parent=50 // pred_region
          %vm361 = vcmask 3072
          %362 = vst.msk [vmem:[#allocation2] sm:$0xf] %vm361, 0.0
          %363 = vst.msk [vmem:[#allocation3] sm:$0xf] %vm361, 0.0
        $region59: #{_lambda_.22} parent=50 // pred_fallthru
          _
        %v364 = vld [vmem:[%s0] sm:$0x3]
        %v365 = vld [vmem:[%s300] sm:$0xff]
        %v366 = vld [vmem:[%s300 + $0x8] sm:$0xff]
        %v367 = vld [vmem:[%s300 + $0x10] sm:$0xff]
        %v368 = vld [vmem:[%s300 + $0x18] sm:$0xff]
        %v369 = vld [vmem:[%s300 + $0x20] sm:$0xff]
        %v370 = vld [vmem:[%s300 + $0x28] sm:$0xff]
        %v371 = vld [vmem:[%s300 + $0x30] sm:$0xff]
        %v372 = vld [vmem:[%s300 + $0x38] sm:$0xff]
        %v373 = vld [vmem:[%s300 + $0x40] sm:$0xff]
        %v374 = vld [vmem:[%s300 + $0x48] sm:$0xff]
        %v375 = vld [vmem:[%s300 + $0x50] sm:$0xff]
        %v376 = vld [vmem:[%s300 + $0x58] sm:$0xff]
        %v377 = vld [vmem:[%s300 + $0x60] sm:$0xff]
        %v378 = vld [vmem:[%s300 + $0x68] sm:$0xff]
        %v379 = vld [vmem:[%s300 + $0x70] sm:$0xff]
        %v380 = vld [vmem:[%s300 + $0x78] sm:$0xff]
        %v381 = vld [vmem:[%s300 + $0x80] sm:$0xff]
        %v382 = vld [vmem:[%s300 + $0x88] sm:$0xff]
        %v383 = vld [vmem:[%s300 + $0x90] sm:$0xff]
        %v384 = vld [vmem:[%s300 + $0x98] sm:$0xff]
        %v385 = vld [vmem:[%s300 + $0xa0] sm:$0xff]
        %v386 = vld [vmem:[%s300 + $0xa8] sm:$0xff]
        %v387 = vld [vmem:[%s300 + $0xb0] sm:$0xff]
        %v388 = vld [vmem:[%s300 + $0xb8] sm:$0xff]
        %v389 = vld [vmem:[%s300 + $0xc0] sm:$0xff]
        %v390 = vld [vmem:[%s300 + $0xc8] sm:$0xff]
        %v391 = vld [vmem:[%s300 + $0xd0] sm:$0xff]
        %v392 = vld [vmem:[%s300 + $0xd8] sm:$0xff]
        %v393 = vld [vmem:[%s300 + $0xe0] sm:$0xff]
        %v394 = vld [vmem:[%s300 + $0xe8] sm:$0xff]
        %v395 = vld [vmem:[%s300 + $0xf0] sm:$0xff]
        %v396 = vld [vmem:[%s300 + $0xf8] sm:$0xff]
        %v397 = vld [vmem:[%s2] sm:$0xf]
        %399 = vset.pattern.permute.xlu0 0
        %400 = vperm.xlu0 %399, %v397
        %v401 = vpop.permute.xlu0 %400
        %v435 = vunpack.c.l.b16 %v365
        %v436 = vunpack.c.h.b16 %v365
        %v437 = vunpack.c.l.b16 %v366
        %v438 = vunpack.c.h.b16 %v366
        %v439 = vunpack.c.l.b16 %v367
        %v440 = vunpack.c.h.b16 %v367
        %v441 = vunpack.c.l.b16 %v368
        %v442 = vunpack.c.h.b16 %v368
        %v443 = vunpack.c.l.b16 %v369
        %v444 = vunpack.c.h.b16 %v369
        %v445 = vunpack.c.l.b16 %v370
        %v446 = vunpack.c.h.b16 %v370
        %v447 = vunpack.c.l.b16 %v371
        %v448 = vunpack.c.h.b16 %v371
        %v449 = vunpack.c.l.b16 %v372
        %v450 = vunpack.c.h.b16 %v372
        %v451 = vunpack.c.l.b16 %v373
        %v452 = vunpack.c.h.b16 %v373
        %v453 = vunpack.c.l.b16 %v374
        %v454 = vunpack.c.h.b16 %v374
        %v455 = vunpack.c.l.b16 %v375
        %v456 = vunpack.c.h.b16 %v375
        %v457 = vunpack.c.l.b16 %v376
        %v458 = vunpack.c.h.b16 %v376
        %v459 = vunpack.c.l.b16 %v377
        %v460 = vunpack.c.h.b16 %v377
        %v461 = vunpack.c.l.b16 %v378
        %v462 = vunpack.c.h.b16 %v378
        %v463 = vunpack.c.l.b16 %v379
        %v464 = vunpack.c.h.b16 %v379
        %v465 = vunpack.c.l.b16 %v380
        %v466 = vunpack.c.h.b16 %v380
        %v467 = vunpack.c.l.b16 %v381
        %v468 = vunpack.c.h.b16 %v381
        %v469 = vunpack.c.l.b16 %v382
        %v470 = vunpack.c.h.b16 %v382
        %v471 = vunpack.c.l.b16 %v383
        %v472 = vunpack.c.h.b16 %v383
        %v473 = vunpack.c.l.b16 %v384
        %v474 = vunpack.c.h.b16 %v384
        %v475 = vunpack.c.l.b16 %v385
        %v476 = vunpack.c.h.b16 %v385
        %v477 = vunpack.c.l.b16 %v386
        %v478 = vunpack.c.h.b16 %v386
        %v479 = vunpack.c.l.b16 %v387
        %v480 = vunpack.c.h.b16 %v387
        %v481 = vunpack.c.l.b16 %v388
        %v482 = vunpack.c.h.b16 %v388
        %v483 = vunpack.c.l.b16 %v389
        %v484 = vunpack.c.h.b16 %v389
        %v485 = vunpack.c.l.b16 %v390
        %v486 = vunpack.c.h.b16 %v390
        %v487 = vunpack.c.l.b16 %v391
        %v488 = vunpack.c.h.b16 %v391
        %v489 = vunpack.c.l.b16 %v392
        %v490 = vunpack.c.h.b16 %v392
        %v491 = vunpack.c.l.b16 %v393
        %v492 = vunpack.c.h.b16 %v393
        %v493 = vunpack.c.l.b16 %v394
        %v494 = vunpack.c.h.b16 %v394
        %v495 = vunpack.c.l.b16 %v395
        %v496 = vunpack.c.h.b16 %v395
        %v497 = vunpack.c.l.b16 %v396
        %v498 = vunpack.c.h.b16 %v396
        %v499 = vpack.c.b16 %v451, %v435
        %v500 = vpack.c.b16 %v452, %v436
        %v501 = vpack.c.b16 %v453, %v437
        %v502 = vpack.c.b16 %v454, %v438
        %v503 = vpack.c.b16 %v455, %v439
        %v504 = vpack.c.b16 %v456, %v440
        %v505 = vpack.c.b16 %v457, %v441
        %v506 = vpack.c.b16 %v458, %v442
        %v507 = vpack.c.b16 %v459, %v443
        %v508 = vpack.c.b16 %v460, %v444
        %v509 = vpack.c.b16 %v461, %v445
        %v510 = vpack.c.b16 %v462, %v446
        %v511 = vpack.c.b16 %v463, %v447
        %v512 = vpack.c.b16 %v464, %v448
        %v513 = vpack.c.b16 %v465, %v449
        %v514 = vpack.c.b16 %v466, %v450
        %v515 = vpack.c.b16 %v483, %v467
        %v516 = vpack.c.b16 %v484, %v468
        %v517 = vpack.c.b16 %v485, %v469
        %v518 = vpack.c.b16 %v486, %v470
        %v519 = vpack.c.b16 %v487, %v471
        %v520 = vpack.c.b16 %v488, %v472
        %v521 = vpack.c.b16 %v489, %v473
        %v522 = vpack.c.b16 %v490, %v474
        %v523 = vpack.c.b16 %v491, %v475
        %v524 = vpack.c.b16 %v492, %v476
        %v525 = vpack.c.b16 %v493, %v477
        %v526 = vpack.c.b16 %v494, %v478
        %v527 = vpack.c.b16 %v495, %v479
        %v528 = vpack.c.b16 %v496, %v480
        %v529 = vpack.c.b16 %v497, %v481
        %v530 = vpack.c.b16 %v498, %v482
        %vm563 = vcmask 261120
        %v565 = vsel %vm563, %v364, 0
        %567 = vmatprep.subr.bf16.mxu0 0
        %568 = vmatpush1.bf16.msra.mxu0 0
        %569 = vmatprep.subr.bf16.mxu0 0
        %570 = vmatpush1.bf16.msra.mxu0 0
        %571 = vmatprep.subr.bf16.mxu0 0
        %572 = vmatpush1.bf16.msra.mxu0 0
        %573 = vmatprep.subr.bf16.mxu0 0
        %574 = vmatpush1.bf16.msra.mxu0 0
        %575 = vmatprep.subr.bf16.mxu0 0
        %576 = vmatpush1.bf16.msra.mxu0 0
        %577 = vmatprep.subr.bf16.mxu0 0
        %578 = vmatpush1.bf16.msra.mxu0 0
        %579 = vmatprep.subr.bf16.mxu0 %v516
        %580 = vmatpush1.bf16.msra.mxu0 %v515
        %581 = vmatprep.subr.bf16.mxu0 %v500
        %582 = vmatpush1.bf16.msra.mxu0 %v499
        %583 = vmatprep.subr.bf16.mxu0 0
        %584 = vmatpush2.bf16.msra.mxu0 0
        %585 = vmatprep.subr.bf16.mxu0 0
        %586 = vmatpush2.bf16.msra.mxu0 0
        %587 = vmatprep.subr.bf16.mxu0 0
        %588 = vmatpush2.bf16.msra.mxu0 0
        %589 = vmatprep.subr.bf16.mxu0 0
        %590 = vmatpush2.bf16.msra.mxu0 0
        %591 = vmatprep.subr.bf16.mxu0 0
        %592 = vmatpush2.bf16.msra.mxu0 0
        %593 = vmatprep.subr.bf16.mxu0 0
        %594 = vmatpush2.bf16.msra.mxu0 0
        %595 = vmatprep.subr.bf16.mxu0 0
        %596 = vmatpush2.bf16.msra.mxu0 0
        %597 = vmatprep.subr.bf16.mxu0 0
        %598 = vmatpush2.bf16.msra.mxu0 0
        %599 = vmatprep.mubr.bf16.mxu0 0
        %600 = vmatmul.mubr.bf16.gmra.mxu0 %v565
        %v601 = vpop.f32.mrf.mxu0
        %v602 = vadd.f32 %v401, %v601
        %v603 = vpop.f32.mrf.mxu0
        %v604 = vadd.f32 %v401, %v603
        %v605 = vpop.f32.mrf.mxu0
        %v606 = vpop.f32.mrf.mxu0
        %607 = vdwg.mxu0
        %608 = vmatprep.subr.bf16.mxu0 0
        %609 = vmatpush1.bf16.msra.mxu0 0
        %610 = vmatprep.subr.bf16.mxu0 0
        %611 = vmatpush1.bf16.msra.mxu0 0
        %612 = vmatprep.subr.bf16.mxu0 0
        %613 = vmatpush1.bf16.msra.mxu0 0
        %614 = vmatprep.subr.bf16.mxu0 0
        %615 = vmatpush1.bf16.msra.mxu0 0
        %616 = vmatprep.subr.bf16.mxu0 0
        %617 = vmatpush1.bf16.msra.mxu0 0
        %618 = vmatprep.subr.bf16.mxu0 0
        %619 = vmatpush1.bf16.msra.mxu0 0
        %620 = vmatprep.subr.bf16.mxu0 %v518
        %621 = vmatpush1.bf16.msra.mxu0 %v517
        %622 = vmatprep.subr.bf16.mxu0 %v502
        %623 = vmatpush1.bf16.msra.mxu0 %v501
        %624 = vmatprep.subr.bf16.mxu0 0
        %625 = vmatpush2.bf16.msra.mxu0 0
        %626 = vmatprep.subr.bf16.mxu0 0
        %627 = vmatpush2.bf16.msra.mxu0 0
        %628 = vmatprep.subr.bf16.mxu0 0
        %629 = vmatpush2.bf16.msra.mxu0 0
        %630 = vmatprep.subr.bf16.mxu0 0
        %631 = vmatpush2.bf16.msra.mxu0 0
        %632 = vmatprep.subr.bf16.mxu0 0
        %633 = vmatpush2.bf16.msra.mxu0 0
        %634 = vmatprep.subr.bf16.mxu0 0
        %635 = vmatpush2.bf16.msra.mxu0 0
        %636 = vmatprep.subr.bf16.mxu0 0
        %637 = vmatpush2.bf16.msra.mxu0 0
        %638 = vmatprep.subr.bf16.mxu0 0
        %639 = vmatpush2.bf16.msra.mxu0 0
        %640 = vmatprep.mubr.bf16.mxu0 0
        %641 = vmatmul.mubr.bf16.gmra.mxu0 %v565
        %v642 = vpop.f32.mrf.mxu0
        %v643 = vadd.f32 %v401, %v642
        %v644 = vpop.f32.mrf.mxu0
        %v645 = vadd.f32 %v401, %v644
        %v646 = vpop.f32.mrf.mxu0
        %v647 = vpop.f32.mrf.mxu0
        %648 = vdwg.mxu0
        %649 = vmatprep.subr.bf16.mxu0 0
        %650 = vmatpush1.bf16.msra.mxu0 0
        %651 = vmatprep.subr.bf16.mxu0 0
        %652 = vmatpush1.bf16.msra.mxu0 0
        %653 = vmatprep.subr.bf16.mxu0 0
        %654 = vmatpush1.bf16.msra.mxu0 0
        %655 = vmatprep.subr.bf16.mxu0 0
        %656 = vmatpush1.bf16.msra.mxu0 0
        %657 = vmatprep.subr.bf16.mxu0 0
        %658 = vmatpush1.bf16.msra.mxu0 0
        %659 = vmatprep.subr.bf16.mxu0 0
        %660 = vmatpush1.bf16.msra.mxu0 0
        %661 = vmatprep.subr.bf16.mxu0 %v520
        %662 = vmatpush1.bf16.msra.mxu0 %v519
        %663 = vmatprep.subr.bf16.mxu0 %v504
        %664 = vmatpush1.bf16.msra.mxu0 %v503
        %665 = vmatprep.subr.bf16.mxu0 0
        %666 = vmatpush2.bf16.msra.mxu0 0
        %667 = vmatprep.subr.bf16.mxu0 0
        %668 = vmatpush2.bf16.msra.mxu0 0
        %669 = vmatprep.subr.bf16.mxu0 0
        %670 = vmatpush2.bf16.msra.mxu0 0
        %671 = vmatprep.subr.bf16.mxu0 0
        %672 = vmatpush2.bf16.msra.mxu0 0
        %673 = vmatprep.subr.bf16.mxu0 0
        %674 = vmatpush2.bf16.msra.mxu0 0
        %675 = vmatprep.subr.bf16.mxu0 0
        %676 = vmatpush2.bf16.msra.mxu0 0
        %677 = vmatprep.subr.bf16.mxu0 0
        %678 = vmatpush2.bf16.msra.mxu0 0
        %679 = vmatprep.subr.bf16.mxu0 0
        %680 = vmatpush2.bf16.msra.mxu0 0
        %681 = vmatprep.mubr.bf16.mxu0 0
        %682 = vmatmul.mubr.bf16.gmra.mxu0 %v565
        %v683 = vpop.f32.mrf.mxu0
        %v684 = vadd.f32 %v401, %v683
        %v685 = vpop.f32.mrf.mxu0
        %v686 = vadd.f32 %v401, %v685
        %v687 = vpop.f32.mrf.mxu0
        %v688 = vpop.f32.mrf.mxu0
        %689 = vdwg.mxu0
        %690 = vmatprep.subr.bf16.mxu0 0
        %691 = vmatpush1.bf16.msra.mxu0 0
        %692 = vmatprep.subr.bf16.mxu0 0
        %693 = vmatpush1.bf16.msra.mxu0 0
        %694 = vmatprep.subr.bf16.mxu0 0
        %695 = vmatpush1.bf16.msra.mxu0 0
        %696 = vmatprep.subr.bf16.mxu0 0
        %697 = vmatpush1.bf16.msra.mxu0 0
        %698 = vmatprep.subr.bf16.mxu0 0
        %699 = vmatpush1.bf16.msra.mxu0 0
        %700 = vmatprep.subr.bf16.mxu0 0
        %701 = vmatpush1.bf16.msra.mxu0 0
        %702 = vmatprep.subr.bf16.mxu0 %v522
        %703 = vmatpush1.bf16.msra.mxu0 %v521
        %704 = vmatprep.subr.bf16.mxu0 %v506
        %705 = vmatpush1.bf16.msra.mxu0 %v505
        %706 = vmatprep.subr.bf16.mxu0 0
        %707 = vmatpush2.bf16.msra.mxu0 0
        %708 = vmatprep.subr.bf16.mxu0 0
        %709 = vmatpush2.bf16.msra.mxu0 0
        %710 = vmatprep.subr.bf16.mxu0 0
        %711 = vmatpush2.bf16.msra.mxu0 0
        %712 = vmatprep.subr.bf16.mxu0 0
        %713 = vmatpush2.bf16.msra.mxu0 0
        %714 = vmatprep.subr.bf16.mxu0 0
        %715 = vmatpush2.bf16.msra.mxu0 0
        %716 = vmatprep.subr.bf16.mxu0 0
        %717 = vmatpush2.bf16.msra.mxu0 0
        %718 = vmatprep.subr.bf16.mxu0 0
        %719 = vmatpush2.bf16.msra.mxu0 0
        %720 = vmatprep.subr.bf16.mxu0 0
        %721 = vmatpush2.bf16.msra.mxu0 0
        %722 = vmatprep.mubr.bf16.mxu0 0
        %723 = vmatmul.mubr.bf16.gmra.mxu0 %v565
        %v724 = vpop.f32.mrf.mxu0
        %v725 = vadd.f32 %v401, %v724
        %v726 = vpop.f32.mrf.mxu0
        %v727 = vadd.f32 %v401, %v726
        %v728 = vpop.f32.mrf.mxu0
        %v729 = vpop.f32.mrf.mxu0
        %730 = vdwg.mxu0
        %731 = vmatprep.subr.bf16.mxu0 0
        %732 = vmatpush1.bf16.msra.mxu0 0
        %733 = vmatprep.subr.bf16.mxu0 0
        %734 = vmatpush1.bf16.msra.mxu0 0
        %735 = vmatprep.subr.bf16.mxu0 0
        %736 = vmatpush1.bf16.msra.mxu0 0
        %737 = vmatprep.subr.bf16.mxu0 0
        %738 = vmatpush1.bf16.msra.mxu0 0
        %739 = vmatprep.subr.bf16.mxu0 0
        %740 = vmatpush1.bf16.msra.mxu0 0
        %741 = vmatprep.subr.bf16.mxu0 0
        %742 = vmatpush1.bf16.msra.mxu0 0
        %743 = vmatprep.subr.bf16.mxu0 %v524
        %744 = vmatpush1.bf16.msra.mxu0 %v523
        %745 = vmatprep.subr.bf16.mxu0 %v508
        %746 = vmatpush1.bf16.msra.mxu0 %v507
        %747 = vmatprep.subr.bf16.mxu0 0
        %748 = vmatpush2.bf16.msra.mxu0 0
        %749 = vmatprep.subr.bf16.mxu0 0
        %750 = vmatpush2.bf16.msra.mxu0 0
        %751 = vmatprep.subr.bf16.mxu0 0
        %752 = vmatpush2.bf16.msra.mxu0 0
        %753 = vmatprep.subr.bf16.mxu0 0
        %754 = vmatpush2.bf16.msra.mxu0 0
        %755 = vmatprep.subr.bf16.mxu0 0
        %756 = vmatpush2.bf16.msra.mxu0 0
        %757 = vmatprep.subr.bf16.mxu0 0
        %758 = vmatpush2.bf16.msra.mxu0 0
        %759 = vmatprep.subr.bf16.mxu0 0
        %760 = vmatpush2.bf16.msra.mxu0 0
        %761 = vmatprep.subr.bf16.mxu0 0
        %762 = vmatpush2.bf16.msra.mxu0 0
        %763 = vmatprep.mubr.bf16.mxu0 0
        %764 = vmatmul.mubr.bf16.gmra.mxu0 %v565
        %v765 = vpop.f32.mrf.mxu0
        %v766 = vadd.f32 %v401, %v765
        %v767 = vpop.f32.mrf.mxu0
        %v768 = vadd.f32 %v401, %v767
        %v769 = vpop.f32.mrf.mxu0
        %v770 = vpop.f32.mrf.mxu0
        %771 = vdwg.mxu0
        %772 = vmatprep.subr.bf16.mxu0 0
        %773 = vmatpush1.bf16.msra.mxu0 0
        %774 = vmatprep.subr.bf16.mxu0 0
        %775 = vmatpush1.bf16.msra.mxu0 0
        %776 = vmatprep.subr.bf16.mxu0 0
        %777 = vmatpush1.bf16.msra.mxu0 0
        %778 = vmatprep.subr.bf16.mxu0 0
        %779 = vmatpush1.bf16.msra.mxu0 0
        %780 = vmatprep.subr.bf16.mxu0 0
        %781 = vmatpush1.bf16.msra.mxu0 0
        %782 = vmatprep.subr.bf16.mxu0 0
        %783 = vmatpush1.bf16.msra.mxu0 0
        %784 = vmatprep.subr.bf16.mxu0 %v526
        %785 = vmatpush1.bf16.msra.mxu0 %v525
        %786 = vmatprep.subr.bf16.mxu0 %v510
        %787 = vmatpush1.bf16.msra.mxu0 %v509
        %788 = vmatprep.subr.bf16.mxu0 0
        %789 = vmatpush2.bf16.msra.mxu0 0
        %790 = vmatprep.subr.bf16.mxu0 0
        %791 = vmatpush2.bf16.msra.mxu0 0
        %792 = vmatprep.subr.bf16.mxu0 0
        %793 = vmatpush2.bf16.msra.mxu0 0
        %794 = vmatprep.subr.bf16.mxu0 0
        %795 = vmatpush2.bf16.msra.mxu0 0
        %796 = vmatprep.subr.bf16.mxu0 0
        %797 = vmatpush2.bf16.msra.mxu0 0
        %798 = vmatprep.subr.bf16.mxu0 0
        %799 = vmatpush2.bf16.msra.mxu0 0
        %800 = vmatprep.subr.bf16.mxu0 0
        %801 = vmatpush2.bf16.msra.mxu0 0
        %802 = vmatprep.subr.bf16.mxu0 0
        %803 = vmatpush2.bf16.msra.mxu0 0
        %804 = vmatprep.mubr.bf16.mxu0 0
        %805 = vmatmul.mubr.bf16.gmra.mxu0 %v565
        %v806 = vpop.f32.mrf.mxu0
        %v807 = vadd.f32 %v401, %v806
        %v808 = vpop.f32.mrf.mxu0
        %v809 = vadd.f32 %v401, %v808
        %v810 = vpop.f32.mrf.mxu0
        %v811 = vpop.f32.mrf.mxu0
        %812 = vdwg.mxu0
        %813 = vmatprep.subr.bf16.mxu0 0
        %814 = vmatpush1.bf16.msra.mxu0 0
        %815 = vmatprep.subr.bf16.mxu0 0
        %816 = vmatpush1.bf16.msra.mxu0 0
        %817 = vmatprep.subr.bf16.mxu0 0
        %818 = vmatpush1.bf16.msra.mxu0 0
        %819 = vmatprep.subr.bf16.mxu0 0
        %820 = vmatpush1.bf16.msra.mxu0 0
        %821 = vmatprep.subr.bf16.mxu0 0
        %822 = vmatpush1.bf16.msra.mxu0 0
        %823 = vmatprep.subr.bf16.mxu0 0
        %824 = vmatpush1.bf16.msra.mxu0 0
        %825 = vmatprep.subr.bf16.mxu0 %v528
        %826 = vmatpush1.bf16.msra.mxu0 %v527
        %827 = vmatprep.subr.bf16.mxu0 %v512
        %828 = vmatpush1.bf16.msra.mxu0 %v511
        %829 = vmatprep.subr.bf16.mxu0 0
        %830 = vmatpush2.bf16.msra.mxu0 0
        %831 = vmatprep.subr.bf16.mxu0 0
        %832 = vmatpush2.bf16.msra.mxu0 0
        %833 = vmatprep.subr.bf16.mxu0 0
        %834 = vmatpush2.bf16.msra.mxu0 0
        %835 = vmatprep.subr.bf16.mxu0 0
        %836 = vmatpush2.bf16.msra.mxu0 0
        %837 = vmatprep.subr.bf16.mxu0 0
        %838 = vmatpush2.bf16.msra.mxu0 0
        %839 = vmatprep.subr.bf16.mxu0 0
        %840 = vmatpush2.bf16.msra.mxu0 0
        %841 = vmatprep.subr.bf16.mxu0 0
        %842 = vmatpush2.bf16.msra.mxu0 0
        %843 = vmatprep.subr.bf16.mxu0 0
        %844 = vmatpush2.bf16.msra.mxu0 0
        %845 = vmatprep.mubr.bf16.mxu0 0
        %846 = vmatmul.mubr.bf16.gmra.mxu0 %v565
        %v847 = vpop.f32.mrf.mxu0
        %v848 = vadd.f32 %v401, %v847
        %v849 = vpop.f32.mrf.mxu0
        %v850 = vadd.f32 %v401, %v849
        %v851 = vpop.f32.mrf.mxu0
        %v852 = vpop.f32.mrf.mxu0
        %853 = vdwg.mxu0
        %854 = vmatprep.subr.bf16.mxu0 0
        %855 = vmatpush1.bf16.msra.mxu0 0
        %856 = vmatprep.subr.bf16.mxu0 0
        %857 = vmatpush1.bf16.msra.mxu0 0
        %858 = vmatprep.subr.bf16.mxu0 0
        %859 = vmatpush1.bf16.msra.mxu0 0
        %860 = vmatprep.subr.bf16.mxu0 0
        %861 = vmatpush1.bf16.msra.mxu0 0
        %862 = vmatprep.subr.bf16.mxu0 0
        %863 = vmatpush1.bf16.msra.mxu0 0
        %864 = vmatprep.subr.bf16.mxu0 0
        %865 = vmatpush1.bf16.msra.mxu0 0
        %866 = vmatprep.subr.bf16.mxu0 %v530
        %867 = vmatpush1.bf16.msra.mxu0 %v529
        %868 = vmatprep.subr.bf16.mxu0 %v514
        %869 = vmatpush1.bf16.msra.mxu0 %v513
        %870 = vmatprep.subr.bf16.mxu0 0
        %871 = vmatpush2.bf16.msra.mxu0 0
        %872 = vmatprep.subr.bf16.mxu0 0
        %873 = vmatpush2.bf16.msra.mxu0 0
        %874 = vmatprep.subr.bf16.mxu0 0
        %875 = vmatpush2.bf16.msra.mxu0 0
        %876 = vmatprep.subr.bf16.mxu0 0
        %877 = vmatpush2.bf16.msra.mxu0 0
        %878 = vmatprep.subr.bf16.mxu0 0
        %879 = vmatpush2.bf16.msra.mxu0 0
        %880 = vmatprep.subr.bf16.mxu0 0
        %881 = vmatpush2.bf16.msra.mxu0 0
        %882 = vmatprep.subr.bf16.mxu0 0
        %883 = vmatpush2.bf16.msra.mxu0 0
        %884 = vmatprep.subr.bf16.mxu0 0
        %885 = vmatpush2.bf16.msra.mxu0 0
        %886 = vmatprep.mubr.bf16.mxu0 0
        %887 = vmatmul.mubr.bf16.gmra.mxu0 %v565
        %v888 = vpop.f32.mrf.mxu0
        %v889 = vadd.f32 %v401, %v888
        %v890 = vpop.f32.mrf.mxu0
        %v891 = vadd.f32 %v401, %v890
        %v892 = vpop.f32.mrf.mxu0
        %v893 = vpop.f32.mrf.mxu0
        %894 = vdwg.mxu0
        %v911 = vcombine.low %v602, %v604
        %v912 = vcombine.low %v643, %v645
        %v913 = vcombine.low %v684, %v686
        %v914 = vcombine.low %v725, %v727
        %v915 = vcombine.low %v766, %v768
        %v916 = vcombine.low %v807, %v809
        %v917 = vcombine.low %v848, %v850
        %v918 = vcombine.low %v889, %v891
        %927 = vst [vmem:[%s346] sm:$0xff] %v911
        %928 = vst [vmem:[%s346 + $0x8] sm:$0xff] %v912
        %929 = vst [vmem:[%s346 + $0x10] sm:$0xff] %v913
        %930 = vst [vmem:[%s346 + $0x18] sm:$0xff] %v914
        %931 = vst [vmem:[%s346 + $0x20] sm:$0xff] %v915
        %932 = vst [vmem:[%s346 + $0x28] sm:$0xff] %v916
        %933 = vst [vmem:[%s346 + $0x30] sm:$0xff] %v917
        %934 = vst [vmem:[%s346 + $0x38] sm:$0xff] %v918
        %v935 = vld [vmem:[#allocation2] sm:$0xf]
        %vm936 = vcmask 1043456
        %v937 = vsel %vm936, %v602, 0.0
        %v938 = vsel %vm936, %v604, 0.0
        %v939 = vadd.f32 %v937, %v938
        %v940 = vsel %vm936, %v643, 0.0
        %v941 = vadd.f32 %v939, %v940
        %v942 = vsel %vm936, %v645, 0.0
        %v943 = vadd.f32 %v941, %v942
        %v944 = vsel %vm936, %v684, 0.0
        %v945 = vadd.f32 %v943, %v944
        %v946 = vsel %vm936, %v686, 0.0
        %v947 = vadd.f32 %v945, %v946
        %v948 = vsel %vm936, %v725, 0.0
        %v949 = vadd.f32 %v947, %v948
        %v950 = vsel %vm936, %v727, 0.0
        %v951 = vadd.f32 %v949, %v950
        %v952 = vsel %vm936, %v766, 0.0
        %v953 = vadd.f32 %v951, %v952
        %v954 = vsel %vm936, %v768, 0.0
        %v955 = vadd.f32 %v953, %v954
        %v956 = vsel %vm936, %v807, 0.0
        %v957 = vadd.f32 %v955, %v956
        %v958 = vsel %vm936, %v809, 0.0
        %v959 = vadd.f32 %v957, %v958
        %v960 = vsel %vm936, %v848, 0.0
        %v961 = vadd.f32 %v959, %v960
        %v962 = vsel %vm936, %v850, 0.0
        %v963 = vadd.f32 %v961, %v962
        %v964 = vsel %vm936, %v889, 0.0
        %v965 = vadd.f32 %v963, %v964
        %v966 = vsel %vm936, %v891, 0.0
        %v967 = vadd.f32 %v965, %v966
        %968 = vadd.xlane.f32.xlu0 %v967
        %v969 = vpop.xlane.xlu0 %968
        %v970 = vadd.f32 %v935, %v969
        %vm971 = vcmask 3072
        %972 = vst.msk [vmem:[#allocation2] sm:$0xf] %vm971, %v970
        %v973 = vld [vmem:[#allocation3] sm:$0xf]
        %v974 = vmul.f32 %v602, %v602
        %v975 = vmul.f32 %v604, %v604
        %v976 = vmul.f32 %v643, %v643
        %v977 = vmul.f32 %v645, %v645
        %v978 = vmul.f32 %v684, %v684
        %v979 = vmul.f32 %v686, %v686
        %v980 = vmul.f32 %v725, %v725
        %v981 = vmul.f32 %v727, %v727
        %v982 = vmul.f32 %v766, %v766
        %v983 = vmul.f32 %v768, %v768
        %v984 = vmul.f32 %v807, %v807
        %v985 = vmul.f32 %v809, %v809
        %v986 = vmul.f32 %v848, %v848
        %v987 = vmul.f32 %v850, %v850
        %v988 = vmul.f32 %v889, %v889
        %v989 = vmul.f32 %v891, %v891
        %v990 = vsel %vm936, %v974, 0.0
        %v991 = vsel %vm936, %v975, 0.0
        %v992 = vadd.f32 %v990, %v991
        %v993 = vsel %vm936, %v976, 0.0
        %v994 = vadd.f32 %v992, %v993
        %v995 = vsel %vm936, %v977, 0.0
        %v996 = vadd.f32 %v994, %v995
        %v997 = vsel %vm936, %v978, 0.0
        %v998 = vadd.f32 %v996, %v997
        %v999 = vsel %vm936, %v979, 0.0
        %v1000 = vadd.f32 %v998, %v999
        %v1001 = vsel %vm936, %v980, 0.0
        %v1002 = vadd.f32 %v1000, %v1001
        %v1003 = vsel %vm936, %v981, 0.0
        %v1004 = vadd.f32 %v1002, %v1003
        %v1005 = vsel %vm936, %v982, 0.0
        %v1006 = vadd.f32 %v1004, %v1005
        %v1007 = vsel %vm936, %v983, 0.0
        %v1008 = vadd.f32 %v1006, %v1007
        %v1009 = vsel %vm936, %v984, 0.0
        %v1010 = vadd.f32 %v1008, %v1009
        %v1011 = vsel %vm936, %v985, 0.0
        %v1012 = vadd.f32 %v1010, %v1011
        %v1013 = vsel %vm936, %v986, 0.0
        %v1014 = vadd.f32 %v1012, %v1013
        %v1015 = vsel %vm936, %v987, 0.0
        %v1016 = vadd.f32 %v1014, %v1015
        %v1017 = vsel %vm936, %v988, 0.0
        %v1018 = vadd.f32 %v1016, %v1017
        %v1019 = vsel %vm936, %v989, 0.0
        %v1020 = vadd.f32 %v1018, %v1019
        %1021 = vadd.xlane.f32.xlu0 %v1020
        %v1022 = vpop.xlane.xlu0 %1021
        %v1023 = vadd.f32 %v973, %v1022
        %1024 = vst.msk [vmem:[#allocation3] sm:$0xf] %vm971, %v1023
        %p1025 = scmp.eq.s32.totalorder %s22, 1
        // Predicated region
        $region60: #{_lambda_.22} parent=50 // pred_check
          %p1026 = pneg %p1025
        $region61: #{_lambda_.22} parent=50 // pred_check_branch
          %1028 = sbr.rel (%p1026) target = $region63
        $region62: #{_lambda_.22} parent=50 // pred_region
          %v1029 = vld [vmem:[#allocation2] sm:$0xf]
          %v1030 = vmul.f32 %v1029, 0.00024414063
          %v1031 = vld [vmem:[#allocation3] sm:$0xf]
          %v1032 = vmul.f32 %v1031, 0.00024414063
          %v1033 = vmul.f32 %v1030, %v1030
          %v1034 = vsub.f32 %v1032, %v1033
          %v1035 = vmax.f32 %v1034, 0.0
          %1036 = vst.msk [vmem:[%s351] sm:$0xf] %vm971, %v1030
          %v1037 = vadd.f32 %v1035, 1e-05
          %v1038 = vrsqrt.pop %v1037
          %1039 = vst.msk [vmem:[%s355] sm:$0xf] %vm971, %v1038
        $region63: #{_lambda_.22} parent=50 // pred_fallthru
          _
        %s1040 = smul.u32 16, %s22
        %p1041 = scmp.lt.s32.totalorder %s21, 1
        %s1042 = scalar_select %p1041, %s21, 1
        %p1043 = scmp.lt.s32.totalorder %s1040, 31
        %s1044 = scalar_select %p1043, %s1040, 31
        %s1045 = smul.addr %s1042, 32
        %s1046 = sadd.s32 %s1044, %s1045
        %s1047 = smul.addr %s1046, 4
        %s1048 = scalar_lea.vmem %s3, %s1047
        %p1049 = scmp.lt.s32.totalorder %s21, 1
        %s1050 = scalar_select %p1049, %s21, 1
        %s1051 = smul.addr %s1050, 4
        %s1052 = scalar_lea.vmem %s4, %s1051
        %p1053 = scmp.lt.s32.totalorder %s21, 1
        %s1054 = scalar_select %p1053, %s21, 1
        %s1055 = smul.addr %s1054, 4
        %s1056 = scalar_lea.vmem %s5, %s1055
        // Predicated region
        $region64: #{_lambda_.22} parent=50 // pred_check
          %p1057 = pneg %p119
        $region65: #{_lambda_.22} parent=50 // pred_check_branch
          %1059 = sbr.rel (%p1057) target = $region67
        $region66: #{_lambda_.22} parent=50 // pred_region
          %s1060 = smul.u32 16, %s22
        $region67: #{_lambda_.22} parent=50 // pred_fallthru
          _
        // Predicated region
        $region68: #{_lambda_.22} parent=50 // pred_check
          %p1061 = pneg %p145
        $region69: #{_lambda_.22} parent=50 // pred_check_branch
          %1063 = sbr.rel (%p1061) target = $region71
        $region70: #{_lambda_.22} parent=50 // pred_region
          _
        $region71: #{_lambda_.22} parent=50 // pred_fallthru
          _
        // Predicated region
        $region72: #{_lambda_.22} parent=50 // pred_check
          %p1064 = pneg %p171
        $region73: #{_lambda_.22} parent=50 // pred_check_branch
          %1066 = sbr.rel (%p1064) target = $region75
        $region74: #{_lambda_.22} parent=50 // pred_region
          _
        $region75: #{_lambda_.22} parent=50 // pred_fallthru
          _
      $region51: #{_lambda_.22} parent=5 // pred_fallthru
        _
      %p1067 = scmp.le.s32.totalorder 2, %s12
      // Predicated region
      $region76: #{_lambda_.22} parent=5 // pred_check
        %p1068 = pneg %p1067
      $region77: #{_lambda_.22} parent=5 // pred_check_branch
        %1070 = sbr.rel (%p1068) target = $region79
      $region78: #{_lambda_.22} parent=5 // pred_region
        %s1071 = ssub.s32 %s12, 2
        // Predicated region
        $region80: #{_lambda_.22} parent=78 // pred_check
          %p1072 = pneg %p125
        $region81: #{_lambda_.22} parent=78 // pred_check_branch
          %1074 = sbr.rel (%p1072) target = $region83
        $region82: #{_lambda_.22} parent=78 // pred_region
          %s1075 = smul.u32 16, %s24
          %p1076 = scmp.lt.s32.totalorder %s23, 1
          %s1077 = scalar_select %p1076, %s23, 1
          %p1078 = scmp.lt.s32.totalorder %s1075, 31
          %s1079 = scalar_select %p1078, %s1075, 31
          %s1080 = smul.addr %s1077, 32
          %s1081 = sadd.s32 %s1079, %s1080
          %s1082 = smul.addr %s1081, 4
          %s1083 = scalar_lea.vmem %s3, %s1082
        $region83: #{_lambda_.22} parent=78 // pred_fallthru
          _
        // Predicated region
        $region84: #{_lambda_.22} parent=78 // pred_check
          %p1084 = pneg %p151
        $region85: #{_lambda_.22} parent=78 // pred_check_branch
          %1086 = sbr.rel (%p1084) target = $region87
        $region86: #{_lambda_.22} parent=78 // pred_region
          %p1087 = scmp.lt.s32.totalorder %s23, 1
          %s1088 = scalar_select %p1087, %s23, 1
          %s1089 = smul.addr %s1088, 4
          %s1090 = scalar_lea.vmem %s4, %s1089
        $region87: #{_lambda_.22} parent=78 // pred_fallthru
          _
        // Predicated region
        $region88: #{_lambda_.22} parent=78 // pred_check
          %p1091 = pneg %p177
        $region89: #{_lambda_.22} parent=78 // pred_check_branch
          %1093 = sbr.rel (%p1091) target = $region91
        $region90: #{_lambda_.22} parent=78 // pred_region
          %p1094 = scmp.lt.s32.totalorder %s23, 1
          %s1095 = scalar_select %p1094, %s23, 1
          %s1096 = smul.addr %s1095, 4
          %s1097 = scalar_lea.vmem %s5, %s1096
        $region91: #{_lambda_.22} parent=78 // pred_fallthru
          _
      $region79: #{_lambda_.22} parent=5 // pred_fallthru
        _
    $region6: #{_lambda_.22} parent=1 // loop_footer
      %s16 = sadd.s32 1, %s12
    $region7: #{_lambda_.22} parent=1 // loop_footer_branch
      %11 = sbr.rel target = $region3
    $region8: #{_lambda_.22} parent=1 // loop_exit
      _

// kernel: _lambda_.24
$region0: #{_lambda_.24}
  #allocation0 [shape = 'u32[]', space=smem, size = 0x4, offset = 0x4, fixed_abs, tag = 'smem constant byte address 0x4 - core index']
  #allocation1 [shape = 'u32[144,128]{1,0:T(1,128)}', space=vmem, size = 0x12000, scoped, tag = 'internal scratch']
  #allocation2 [shape = 'f32[4,1]{1,0:T(4,128)}', space=vmem, size = 0x800, scoped, tag = 'scratch operand']
  #allocation3 [shape = 'f32[4,1]{1,0:T(4,128)}', space=vmem, size = 0x800, scoped, tag = 'scratch operand']
  %s0 = inlined_call_operand.vmem [shape: bf16[4,112], index: 0, kind: input, shape index: {}]
  %s1 = inlined_call_operand.vmem [shape: bf16[2,112,4096], index: 1, kind: input, shape index: {}]
  %s2 = inlined_call_operand.vmem [shape: f32[2,4,4096], index: 2, kind: output, shape index: {0}]
  %s3 = inlined_call_operand.vmem [shape: f32[2,4,1], index: 3, kind: output, shape index: {1}]
  %s4 = inlined_call_operand.vmem [shape: f32[2,4,1], index: 4, kind: output, shape index: {2}]
  %5 = xla_tuple %s2, %s3, %s4
  %s6 = sld [smem:[#allocation0]]
  $region88: #{_lambda_.24} parent=0
    _
  %s8 = ssub.s32 1, %s6
  %s9 = scalar_select 0, %s8, %s6
  $region1: #{_lambda_.24} parent=0
    #allocation4 [shape = 'u8[917504]{0}', space=vmem, size = 0xe0000, scoped, tag = 'input window, operand 1']
    loop: start=0, step=1, limit=6
    $region2: #{_lambda_.24} parent=1 // loop_pre_header
      _
    $region3: #{_lambda_.24} parent=1 // loop_header
      %s11 = sphi 0, %s15
      %p12 = scmp.ge.s32.totalorder %s11, 6
      %s18 = sphi 0, %s30
      %s19 = sphi 0, %s26
      %s20 = sphi 0, %s18
      %s21 = sphi 0, %s19
      %s22 = sphi 0, %s20
      %s23 = sphi 0, %s21
      %s31 = sphi 0, %s31
      %s33 = sphi 0, %s31
      %s34 = sphi 0, %s33
      %s48 = sphi 0, %s34
      %s56 = sphi 0, %s58
      %s59 = sphi 0, %s56
      %s60 = sphi 0, %s59
      %s76 = sphi 0, %s60
      %s84 = sphi 0, %s86
      %s87 = sphi 0, %s84
      %s88 = sphi 0, %s87
      %s104 = sphi 0, %s88
      %s110 = sphi 0, %s112
      %s113 = sphi 0, %s110
      %s114 = sphi 0, %s113
      %s130 = sphi 0, %s114
      %s136 = sphi 0, %s138
      %s139 = sphi 0, %s136
      %s140 = sphi 0, %s139
      %s156 = sphi 0, %s140
    $region4: #{_lambda_.24} parent=1 // loop_header_branch
      %14 = sbr.rel (%p12) target = $region8
    $region5: #{_lambda_.24} parent=1 // loop_body
      %s16 = ssub.s32 %s11, 1
      %s17 = ssub.s32 %s11, 2
      %s24 = sadd.s32 1, %s19
      %p25 = scmp.ge.s32.totalorder %s24, 2
      %s26 = scalar_select %p25, 0, %s24
      %s27 = sadd.s32 1, %s18
      %s28 = scalar_select %p25, %s27, %s18
      %p29 = scmp.ge.s32.totalorder %s28, 2
      %s30 = scalar_select %p29, 0, %s28
      %s32 = sadd.s32 %s31, 1
      %p35 = scmp.eq.s32.totalorder %s11, 3
      %p36 = scmp.ne.s32.totalorder %s31, %s33
      %p37 = scmp.eq.s32.totalorder %s11, 0
      %p38 = por %p36, %p37
      %p39 = scmp.ne.s32.totalorder %s31, %s33
      %p40 = scmp.eq.s32.totalorder %s16, 3
      %p41 = por %p39, %p40
      %p42 = scmp.ne.s32.totalorder %s33, %s34
      %p43 = scmp.eq.s32.totalorder %s16, 0
      %p44 = por %p42, %p43
      %p45 = scmp.ne.s32.totalorder %s33, %s34
      %p46 = scmp.eq.s32.totalorder %s17, 3
      %p47 = por %p45, %p46
      %p49 = scmp.ne.s32.totalorder %s34, %s48
      %p50 = scmp.eq.s32.totalorder %s17, 0
      %p51 = por %p49, %p50
      %s52 = ssub.s32 %s18, %s30
      %s53 = ssub.s32 %s19, %s26
      %s54 = sor.u32 %s52, %s53
      %p55 = scmp.eq.s32.totalorder %s54, 0
      %s57 = sadd.s32 %s56, 1
      %s58 = scalar_select %p55, %s56, %s57
      %p61 = pneg %p55
      %p62 = scmp.eq.s32.totalorder %s11, 3
      %p63 = por %p61, %p62
      %p64 = scmp.ne.s32.totalorder %s56, %s59
      %p65 = scmp.eq.s32.totalorder %s11, 0
      %p66 = por %p64, %p65
      %p67 = scmp.ne.s32.totalorder %s56, %s59
      %p68 = scmp.eq.s32.totalorder %s16, 3
      %p69 = por %p67, %p68
      %p70 = scmp.ne.s32.totalorder %s59, %s60
      %p71 = scmp.eq.s32.totalorder %s16, 0
      %p72 = por %p70, %p71
      %p73 = scmp.ne.s32.totalorder %s59, %s60
      %p74 = scmp.eq.s32.totalorder %s17, 3
      %p75 = por %p73, %p74
      %p77 = scmp.ne.s32.totalorder %s60, %s76
      %p78 = scmp.eq.s32.totalorder %s17, 0
      %p79 = por %p77, %p78
      %s80 = ssub.s32 %s18, %s30
      %s81 = ssub.s32 %s19, %s26
      %s82 = sor.u32 %s80, %s81
      %p83 = scmp.eq.s32.totalorder %s82, 0
      %s85 = sadd.s32 %s84, 1
      %s86 = scalar_select %p83, %s84, %s85
      %p89 = pneg %p83
      %p90 = scmp.eq.s32.totalorder %s11, 3
      %p91 = por %p89, %p90
      %p92 = scmp.ne.s32.totalorder %s84, %s87
      %p93 = scmp.eq.s32.totalorder %s11, 0
      %p94 = por %p92, %p93
      %p95 = scmp.ne.s32.totalorder %s84, %s87
      %p96 = scmp.eq.s32.totalorder %s16, 3
      %p97 = por %p95, %p96
      %p98 = scmp.ne.s32.totalorder %s87, %s88
      %p99 = scmp.eq.s32.totalorder %s16, 0
      %p100 = por %p98, %p99
      %p101 = scmp.ne.s32.totalorder %s87, %s88
      %p102 = scmp.eq.s32.totalorder %s17, 3
      %p103 = por %p101, %p102
      %p105 = scmp.ne.s32.totalorder %s88, %s104
      %p106 = scmp.eq.s32.totalorder %s17, 0
      %p107 = por %p105, %p106
      %s108 = ssub.s32 %s18, %s30
      %p109 = scmp.eq.s32.totalorder %s108, 0
      %s111 = sadd.s32 %s110, 1
      %s112 = scalar_select %p109, %s110, %s111
      %p115 = pneg %p109
      %p116 = scmp.eq.s32.totalorder %s11, 3
      %p117 = por %p115, %p116
      %p118 = scmp.ne.s32.totalorder %s110, %s113
      %p119 = scmp.eq.s32.totalorder %s11, 0
      %p120 = por %p118, %p119
      %p121 = scmp.ne.s32.totalorder %s110, %s113
      %p122 = scmp.eq.s32.totalorder %s16, 3
      %p123 = por %p121, %p122
      %p124 = scmp.ne.s32.totalorder %s113, %s114
      %p125 = scmp.eq.s32.totalorder %s16, 0
      %p126 = por %p124, %p125
      %p127 = scmp.ne.s32.totalorder %s113, %s114
      %p128 = scmp.eq.s32.totalorder %s17, 3
      %p129 = por %p127, %p128
      %p131 = scmp.ne.s32.totalorder %s114, %s130
      %p132 = scmp.eq.s32.totalorder %s17, 0
      %p133 = por %p131, %p132
      %s134 = ssub.s32 %s18, %s30
      %p135 = scmp.eq.s32.totalorder %s134, 0
      %s137 = sadd.s32 %s136, 1
      %s138 = scalar_select %p135, %s136, %s137
      %p141 = pneg %p135
      %p142 = scmp.eq.s32.totalorder %s11, 3
      %p143 = por %p141, %p142
      %p144 = scmp.ne.s32.totalorder %s136, %s139
      %p145 = scmp.eq.s32.totalorder %s11, 0
      %p146 = por %p144, %p145
      %p147 = scmp.ne.s32.totalorder %s136, %s139
      %p148 = scmp.eq.s32.totalorder %s16, 3
      %p149 = por %p147, %p148
      %p150 = scmp.ne.s32.totalorder %s139, %s140
      %p151 = scmp.eq.s32.totalorder %s16, 0
      %p152 = por %p150, %p151
      %p153 = scmp.ne.s32.totalorder %s139, %s140
      %p154 = scmp.eq.s32.totalorder %s17, 3
      %p155 = por %p153, %p154
      %p157 = scmp.ne.s32.totalorder %s140, %s156
      %p158 = scmp.eq.s32.totalorder %s17, 0
      %p159 = por %p157, %p158
      %p160 = scmp.le.s32.totalorder 1, %s11
      %p161 = scmp.lt.s32.totalorder %s11, 5
      %p162 = pnand %p160, %p161
      %p163 = pneg %p162
      // Predicated region
      $region9: #{_lambda_.24} parent=5 // pred_check
        _
      $region10: #{_lambda_.24} parent=5 // pred_check_branch
        %165 = sbr.rel (%p162) target = $region12
      $region11: #{_lambda_.24} parent=5 // pred_region
        %s166 = ssub.s32 %s11, 1
        // Predicated region
        $region13: #{_lambda_.24} parent=11 // pred_check
          %p167 = pneg %p44
        $region14: #{_lambda_.24} parent=11 // pred_check_branch
          %169 = sbr.rel (%p167) target = $region16
        $region15: #{_lambda_.24} parent=11 // pred_region
          _
        $region16: #{_lambda_.24} parent=11 // pred_fallthru
          _
      $region12: #{_lambda_.24} parent=5 // pred_fallthru
        _
      %p170 = scmp.lt.s32.totalorder %s11, 4
      // Predicated region
      $region17: #{_lambda_.24} parent=5 // pred_check
        %p171 = pneg %p170
      $region18: #{_lambda_.24} parent=5 // pred_check_branch
        %173 = sbr.rel (%p171) target = $region20
      $region19: #{_lambda_.24} parent=5 // pred_region
        // Predicated region
        $region21: #{_lambda_.24} parent=19 // pred_check
          %p174 = pneg %p66
        $region22: #{_lambda_.24} parent=19 // pred_check_branch
          %176 = sbr.rel (%p174) target = $region24
        $region23: #{_lambda_.24} parent=19 // pred_region
          %s177 = sand.u32 %s56, 1
          %s178 = sand.u32 %s56, 1
          %s179 = smul.addr %s178, 896
          %s180 = scalar_lea.vmem [#allocation4], %s179
          %s181 = smul.u32 16, %s19
          %s182 = smul.addr %s18, 448
          %s183 = sadd.s32 %s181, %s182
          %s184 = smul.addr %s183, 4
          %s185 = scalar_lea.vmem %s1, %s184
          // Predicated region
          $region25: #{_lambda_.24} parent=23 // pred_check
            _
          $region26: #{_lambda_.24} parent=23 // pred_check_branch
            %187 = sbr.rel (0) target = $region28
          $region27: #{_lambda_.24} parent=23 // pred_region
            // Predicated region
            $region29: #{_lambda_.24} parent=27 // pred_check
              _
            $region30: #{_lambda_.24} parent=27 // pred_check_branch
              %189 = sbr.rel (0) target = $region32
            $region31: #{_lambda_.24} parent=27 // pred_region
              loop: start=0, step=1, limit=1
              $region33: #{_lambda_.24} parent=31 // loop_pre_header
                _
              $region34: #{_lambda_.24} parent=31 // loop_header
                %s191 = sphi 0, %s195
                %p192 = scmp.ge.s32.totalorder %s191, 1
                %s196 = sphi %s185, %s185
                %s197 = sphi %s180, %s180
              $region35: #{_lambda_.24} parent=31 // loop_header_branch
                %194 = sbr.rel (%p192) target = $region39
              $region36: #{_lambda_.24} parent=31 // loop_body
                %v198 = vld [vmem:[%s196] sm:$0xff]
                %199 = vst [vmem:[%s197] sm:$0xff] %v198
                %v200 = vld [vmem:[%s196 + $0x8] sm:$0xff]
                %201 = vst [vmem:[%s197 + $0x8] sm:$0xff] %v200
                %v202 = vld [vmem:[%s196 + $0x10] sm:$0xff]
                %203 = vst [vmem:[%s197 + $0x10] sm:$0xff] %v202
                %v204 = vld [vmem:[%s196 + $0x18] sm:$0xff]
                %205 = vst [vmem:[%s197 + $0x18] sm:$0xff] %v204
                %v206 = vld [vmem:[%s196 + $0x20] sm:$0xff]
                %207 = vst [vmem:[%s197 + $0x20] sm:$0xff] %v206
                %v208 = vld [vmem:[%s196 + $0x28] sm:$0xff]
                %209 = vst [vmem:[%s197 + $0x28] sm:$0xff] %v208
                %v210 = vld [vmem:[%s196 + $0x30] sm:$0xff]
                %211 = vst [vmem:[%s197 + $0x30] sm:$0xff] %v210
                %v212 = vld [vmem:[%s196 + $0x38] sm:$0xff]
                %213 = vst [vmem:[%s197 + $0x38] sm:$0xff] %v212
                %v214 = vld [vmem:[%s196 + $0x80] sm:$0xff]
                %215 = vst [vmem:[%s197 + $0x40] sm:$0xff] %v214
                %v216 = vld [vmem:[%s196 + $0x88] sm:$0xff]
                %217 = vst [vmem:[%s197 + $0x48] sm:$0xff] %v216
                %v218 = vld [vmem:[%s196 + $0x90] sm:$0xff]
                %219 = vst [vmem:[%s197 + $0x50] sm:$0xff] %v218
                %v220 = vld [vmem:[%s196 + $0x98] sm:$0xff]
                %221 = vst [vmem:[%s197 + $0x58] sm:$0xff] %v220
                %v222 = vld [vmem:[%s196 + $0xa0] sm:$0xff]
                %223 = vst [vmem:[%s197 + $0x60] sm:$0xff] %v222
                %v224 = vld [vmem:[%s196 + $0xa8] sm:$0xff]
                %225 = vst [vmem:[%s197 + $0x68] sm:$0xff] %v224
                %v226 = vld [vmem:[%s196 + $0xb0] sm:$0xff]
                %227 = vst [vmem:[%s197 + $0x70] sm:$0xff] %v226
                %v228 = vld [vmem:[%s196 + $0xb8] sm:$0xff]
                %229 = vst [vmem:[%s197 + $0x78] sm:$0xff] %v228
                %v230 = vld [vmem:[%s196 + $0x100] sm:$0xff]
                %231 = vst [vmem:[%s197 + $0x80] sm:$0xff] %v230
                %v232 = vld [vmem:[%s196 + $0x108] sm:$0xff]
                %233 = vst [vmem:[%s197 + $0x88] sm:$0xff] %v232
                %v234 = vld [vmem:[%s196 + $0x110] sm:$0xff]
                %235 = vst [vmem:[%s197 + $0x90] sm:$0xff] %v234
                %v236 = vld [vmem:[%s196 + $0x118] sm:$0xff]
                %237 = vst [vmem:[%s197 + $0x98] sm:$0xff] %v236
                %v238 = vld [vmem:[%s196 + $0x120] sm:$0xff]
                %239 = vst [vmem:[%s197 + $0xa0] sm:$0xff] %v238
                %v240 = vld [vmem:[%s196 + $0x128] sm:$0xff]
                %241 = vst [vmem:[%s197 + $0xa8] sm:$0xff] %v240
                %v242 = vld [vmem:[%s196 + $0x130] sm:$0xff]
                %243 = vst [vmem:[%s197 + $0xb0] sm:$0xff] %v242
                %v244 = vld [vmem:[%s196 + $0x138] sm:$0xff]
                %245 = vst [vmem:[%s197 + $0xb8] sm:$0xff] %v244
                %v246 = vld [vmem:[%s196 + $0x180] sm:$0xff]
                %247 = vst [vmem:[%s197 + $0xc0] sm:$0xff] %v246
                %v248 = vld [vmem:[%s196 + $0x188] sm:$0xff]
                %249 = vst [vmem:[%s197 + $0xc8] sm:$0xff] %v248
                %v250 = vld [vmem:[%s196 + $0x190] sm:$0xff]
                %251 = vst [vmem:[%s197 + $0xd0] sm:$0xff] %v250
                %v252 = vld [vmem:[%s196 + $0x198] sm:$0xff]
                %253 = vst [vmem:[%s197 + $0xd8] sm:$0xff] %v252
                %v254 = vld [vmem:[%s196 + $0x1a0] sm:$0xff]
                %255 = vst [vmem:[%s197 + $0xe0] sm:$0xff] %v254
                %v256 = vld [vmem:[%s196 + $0x1a8] sm:$0xff]
                %257 = vst [vmem:[%s197 + $0xe8] sm:$0xff] %v256
                %v258 = vld [vmem:[%s196 + $0x1b0] sm:$0xff]
                %259 = vst [vmem:[%s197 + $0xf0] sm:$0xff] %v258
                %v260 = vld [vmem:[%s196 + $0x1b8] sm:$0xff]
                %261 = vst [vmem:[%s197 + $0xf8] sm:$0xff] %v260
                %v262 = vld [vmem:[%s196 + $0x200] sm:$0xff]
                %263 = vst [vmem:[%s197 + $0x100] sm:$0xff] %v262
                %v264 = vld [vmem:[%s196 + $0x208] sm:$0xff]
                %265 = vst [vmem:[%s197 + $0x108] sm:$0xff] %v264
                %v266 = vld [vmem:[%s196 + $0x210] sm:$0xff]
                %267 = vst [vmem:[%s197 + $0x110] sm:$0xff] %v266
                %v268 = vld [vmem:[%s196 + $0x218] sm:$0xff]
                %269 = vst [vmem:[%s197 + $0x118] sm:$0xff] %v268
                %v270 = vld [vmem:[%s196 + $0x220] sm:$0xff]
                %271 = vst [vmem:[%s197 + $0x120] sm:$0xff] %v270
                %v272 = vld [vmem:[%s196 + $0x228] sm:$0xff]
                %273 = vst [vmem:[%s197 + $0x128] sm:$0xff] %v272
                %v274 = vld [vmem:[%s196 + $0x230] sm:$0xff]
                %275 = vst [vmem:[%s197 + $0x130] sm:$0xff] %v274
                %v276 = vld [vmem:[%s196 + $0x238] sm:$0xff]
                %277 = vst [vmem:[%s197 + $0x138] sm:$0xff] %v276
                %v278 = vld [vmem:[%s196 + $0x280] sm:$0xff]
                %279 = vst [vmem:[%s197 + $0x140] sm:$0xff] %v278
                %v280 = vld [vmem:[%s196 + $0x288] sm:$0xff]
                %281 = vst [vmem:[%s197 + $0x148] sm:$0xff] %v280
                %v282 = vld [vmem:[%s196 + $0x290] sm:$0xff]
                %283 = vst [vmem:[%s197 + $0x150] sm:$0xff] %v282
                %v284 = vld [vmem:[%s196 + $0x298] sm:$0xff]
                %285 = vst [vmem:[%s197 + $0x158] sm:$0xff] %v284
                %v286 = vld [vmem:[%s196 + $0x2a0] sm:$0xff]
                %287 = vst [vmem:[%s197 + $0x160] sm:$0xff] %v286
                %v288 = vld [vmem:[%s196 + $0x2a8] sm:$0xff]
                %289 = vst [vmem:[%s197 + $0x168] sm:$0xff] %v288
                %v290 = vld [vmem:[%s196 + $0x2b0] sm:$0xff]
                %291 = vst [vmem:[%s197 + $0x170] sm:$0xff] %v290
                %v292 = vld [vmem:[%s196 + $0x2b8] sm:$0xff]
                %293 = vst [vmem:[%s197 + $0x178] sm:$0xff] %v292
                %v294 = vld [vmem:[%s196 + $0x300] sm:$0xff]
                %295 = vst [vmem:[%s197 + $0x180] sm:$0xff] %v294
                %v296 = vld [vmem:[%s196 + $0x308] sm:$0xff]
                %297 = vst [vmem:[%s197 + $0x188] sm:$0xff] %v296
                %v298 = vld [vmem:[%s196 + $0x310] sm:$0xff]
                %299 = vst [vmem:[%s197 + $0x190] sm:$0xff] %v298
                %v300 = vld [vmem:[%s196 + $0x318] sm:$0xff]
                %301 = vst [vmem:[%s197 + $0x198] sm:$0xff] %v300
                %v302 = vld [vmem:[%s196 + $0x320] sm:$0xff]
                %303 = vst [vmem:[%s197 + $0x1a0] sm:$0xff] %v302
                %v304 = vld [vmem:[%s196 + $0x328] sm:$0xff]
                %305 = vst [vmem:[%s197 + $0x1a8] sm:$0xff] %v304
                %v306 = vld [vmem:[%s196 + $0x330] sm:$0xff]
                %307 = vst [vmem:[%s197 + $0x1b0] sm:$0xff] %v306
                %v308 = vld [vmem:[%s196 + $0x338] sm:$0xff]
                %309 = vst [vmem:[%s197 + $0x1b8] sm:$0xff] %v308
                %v310 = vld [vmem:[%s196 + $0x380] sm:$0xff]
                %311 = vst [vmem:[%s197 + $0x1c0] sm:$0xff] %v310
                %v312 = vld [vmem:[%s196 + $0x388] sm:$0xff]
                %313 = vst [vmem:[%s197 + $0x1c8] sm:$0xff] %v312
                %v314 = vld [vmem:[%s196 + $0x390] sm:$0xff]
                %315 = vst [vmem:[%s197 + $0x1d0] sm:$0xff] %v314
                %v316 = vld [vmem:[%s196 + $0x398] sm:$0xff]
                %317 = vst [vmem:[%s197 + $0x1d8] sm:$0xff] %v316
                %v318 = vld [vmem:[%s196 + $0x3a0] sm:$0xff]
                %319 = vst [vmem:[%s197 + $0x1e0] sm:$0xff] %v318
                %v320 = vld [vmem:[%s196 + $0x3a8] sm:$0xff]
                %321 = vst [vmem:[%s197 + $0x1e8] sm:$0xff] %v320
                %v322 = vld [vmem:[%s196 + $0x3b0] sm:$0xff]
                %323 = vst [vmem:[%s197 + $0x1f0] sm:$0xff] %v322
                %v324 = vld [vmem:[%s196 + $0x3b8] sm:$0xff]
                %325 = vst [vmem:[%s197 + $0x1f8] sm:$0xff] %v324
                %v326 = vld [vmem:[%s196 + $0x400] sm:$0xff]
                %327 = vst [vmem:[%s197 + $0x200] sm:$0xff] %v326
                %v328 = vld [vmem:[%s196 + $0x408] sm:$0xff]
                %329 = vst [vmem:[%s197 + $0x208] sm:$0xff] %v328
                %v330 = vld [vmem:[%s196 + $0x410] sm:$0xff]
                %331 = vst [vmem:[%s197 + $0x210] sm:$0xff] %v330
                %v332 = vld [vmem:[%s196 + $0x418] sm:$0xff]
                %333 = vst [vmem:[%s197 + $0x218] sm:$0xff] %v332
                %v334 = vld [vmem:[%s196 + $0x420] sm:$0xff]
                %335 = vst [vmem:[%s197 + $0x220] sm:$0xff] %v334
                %v336 = vld [vmem:[%s196 + $0x428] sm:$0xff]
                %337 = vst [vmem:[%s197 + $0x228] sm:$0xff] %v336
                %v338 = vld [vmem:[%s196 + $0x430] sm:$0xff]
                %339 = vst [vmem:[%s197 + $0x230] sm:$0xff] %v338
                %v340 = vld [vmem:[%s196 + $0x438] sm:$0xff]
                %341 = vst [vmem:[%s197 + $0x238] sm:$0xff] %v340
                %v342 = vld [vmem:[%s196 + $0x480] sm:$0xff]
                %343 = vst [vmem:[%s197 + $0x240] sm:$0xff] %v342
                %v344 = vld [vmem:[%s196 + $0x488] sm:$0xff]
                %345 = vst [vmem:[%s197 + $0x248] sm:$0xff] %v344
                %v346 = vld [vmem:[%s196 + $0x490] sm:$0xff]
                %347 = vst [vmem:[%s197 + $0x250] sm:$0xff] %v346
                %v348 = vld [vmem:[%s196 + $0x498] sm:$0xff]
                %349 = vst [vmem:[%s197 + $0x258] sm:$0xff] %v348
                %v350 = vld [vmem:[%s196 + $0x4a0] sm:$0xff]
                %351 = vst [vmem:[%s197 + $0x260] sm:$0xff] %v350
                %v352 = vld [vmem:[%s196 + $0x4a8] sm:$0xff]
                %353 = vst [vmem:[%s197 + $0x268] sm:$0xff] %v352
                %v354 = vld [vmem:[%s196 + $0x4b0] sm:$0xff]
                %355 = vst [vmem:[%s197 + $0x270] sm:$0xff] %v354
                %v356 = vld [vmem:[%s196 + $0x4b8] sm:$0xff]
                %357 = vst [vmem:[%s197 + $0x278] sm:$0xff] %v356
                %v358 = vld [vmem:[%s196 + $0x500] sm:$0xff]
                %359 = vst [vmem:[%s197 + $0x280] sm:$0xff] %v358
                %v360 = vld [vmem:[%s196 + $0x508] sm:$0xff]
                %361 = vst [vmem:[%s197 + $0x288] sm:$0xff] %v360
                %v362 = vld [vmem:[%s196 + $0x510] sm:$0xff]
                %363 = vst [vmem:[%s197 + $0x290] sm:$0xff] %v362
                %v364 = vld [vmem:[%s196 + $0x518] sm:$0xff]
                %365 = vst [vmem:[%s197 + $0x298] sm:$0xff] %v364
                %v366 = vld [vmem:[%s196 + $0x520] sm:$0xff]
                %367 = vst [vmem:[%s197 + $0x2a0] sm:$0xff] %v366
                %v368 = vld [vmem:[%s196 + $0x528] sm:$0xff]
                %369 = vst [vmem:[%s197 + $0x2a8] sm:$0xff] %v368
                %v370 = vld [vmem:[%s196 + $0x530] sm:$0xff]
                %371 = vst [vmem:[%s197 + $0x2b0] sm:$0xff] %v370
                %v372 = vld [vmem:[%s196 + $0x538] sm:$0xff]
                %373 = vst [vmem:[%s197 + $0x2b8] sm:$0xff] %v372
                %v374 = vld [vmem:[%s196 + $0x580] sm:$0xff]
                %375 = vst [vmem:[%s197 + $0x2c0] sm:$0xff] %v374
                %v376 = vld [vmem:[%s196 + $0x588] sm:$0xff]
                %377 = vst [vmem:[%s197 + $0x2c8] sm:$0xff] %v376
                %v378 = vld [vmem:[%s196 + $0x590] sm:$0xff]
                %379 = vst [vmem:[%s197 + $0x2d0] sm:$0xff] %v378
                %v380 = vld [vmem:[%s196 + $0x598] sm:$0xff]
                %381 = vst [vmem:[%s197 + $0x2d8] sm:$0xff] %v380
                %v382 = vld [vmem:[%s196 + $0x5a0] sm:$0xff]
                %383 = vst [vmem:[%s197 + $0x2e0] sm:$0xff] %v382
                %v384 = vld [vmem:[%s196 + $0x5a8] sm:$0xff]
                %385 = vst [vmem:[%s197 + $0x2e8] sm:$0xff] %v384
                %v386 = vld [vmem:[%s196 + $0x5b0] sm:$0xff]
                %387 = vst [vmem:[%s197 + $0x2f0] sm:$0xff] %v386
                %v388 = vld [vmem:[%s196 + $0x5b8] sm:$0xff]
                %389 = vst [vmem:[%s197 + $0x2f8] sm:$0xff] %v388
                %v390 = vld [vmem:[%s196 + $0x600] sm:$0xff]
                %391 = vst [vmem:[%s197 + $0x300] sm:$0xff] %v390
                %v392 = vld [vmem:[%s196 + $0x608] sm:$0xff]
                %393 = vst [vmem:[%s197 + $0x308] sm:$0xff] %v392
                %v394 = vld [vmem:[%s196 + $0x610] sm:$0xff]
                %395 = vst [vmem:[%s197 + $0x310] sm:$0xff] %v394
                %v396 = vld [vmem:[%s196 + $0x618] sm:$0xff]
                %397 = vst [vmem:[%s197 + $0x318] sm:$0xff] %v396
                %v398 = vld [vmem:[%s196 + $0x620] sm:$0xff]
                %399 = vst [vmem:[%s197 + $0x320] sm:$0xff] %v398
                %v400 = vld [vmem:[%s196 + $0x628] sm:$0xff]
                %401 = vst [vmem:[%s197 + $0x328] sm:$0xff] %v400
                %v402 = vld [vmem:[%s196 + $0x630] sm:$0xff]
                %403 = vst [vmem:[%s197 + $0x330] sm:$0xff] %v402
                %v404 = vld [vmem:[%s196 + $0x638] sm:$0xff]
                %405 = vst [vmem:[%s197 + $0x338] sm:$0xff] %v404
                %v406 = vld [vmem:[%s196 + $0x680] sm:$0xff]
                %407 = vst [vmem:[%s197 + $0x340] sm:$0xff] %v406
                %v408 = vld [vmem:[%s196 + $0x688] sm:$0xff]
                %409 = vst [vmem:[%s197 + $0x348] sm:$0xff] %v408
                %v410 = vld [vmem:[%s196 + $0x690] sm:$0xff]
                %411 = vst [vmem:[%s197 + $0x350] sm:$0xff] %v410
                %v412 = vld [vmem:[%s196 + $0x698] sm:$0xff]
                %413 = vst [vmem:[%s197 + $0x358] sm:$0xff] %v412
                %v414 = vld [vmem:[%s196 + $0x6a0] sm:$0xff]
                %415 = vst [vmem:[%s197 + $0x360] sm:$0xff] %v414
                %v416 = vld [vmem:[%s196 + $0x6a8] sm:$0xff]
                %417 = vst [vmem:[%s197 + $0x368] sm:$0xff] %v416
                %v418 = vld [vmem:[%s196 + $0x6b0] sm:$0xff]
                %419 = vst [vmem:[%s197 + $0x370] sm:$0xff] %v418
                %v420 = vld [vmem:[%s196 + $0x6b8] sm:$0xff]
                %421 = vst [vmem:[%s197 + $0x378] sm:$0xff] %v420
              $region37: #{_lambda_.24} parent=31 // loop_footer
                %s195 = sadd.s32 1, %s191
              $region38: #{_lambda_.24} parent=31 // loop_footer_branch
                %190 = sbr.rel target = $region34
              $region39: #{_lambda_.24} parent=31 // loop_exit
                _
            $region32: #{_lambda_.24} parent=27 // pred_fallthru
              _
            // Predicated region
            $region40: #{_lambda_.24} parent=27 // pred_check
              _
            $region41: #{_lambda_.24} parent=27 // pred_check_branch
              %423 = sbr.rel target = $region43
            $region42: #{_lambda_.24} parent=27 // pred_region
              _
            $region43: #{_lambda_.24} parent=27 // pred_fallthru
              _
          $region28: #{_lambda_.24} parent=23 // pred_fallthru
            _
          %424 = vnop
        $region24: #{_lambda_.24} parent=19 // pred_fallthru
          _
      $region20: #{_lambda_.24} parent=5 // pred_fallthru
        _
      %p425 = scmp.le.s32.totalorder 1, %s11
      %p426 = scmp.lt.s32.totalorder %s11, 5
      %p427 = pnand %p425, %p426
      %p428 = pneg %p427
      // Predicated region
      $region44: #{_lambda_.24} parent=5 // pred_check
        _
      $region45: #{_lambda_.24} parent=5 // pred_check_branch
        %430 = sbr.rel (%p427) target = $region47
      $region46: #{_lambda_.24} parent=5 // pred_region
        %s431 = ssub.s32 %s11, 1
        %s432 = sand.u32 %s59, 1
        %s433 = sand.u32 %s59, 1
        %s434 = smul.addr %s433, 896
        %s435 = scalar_lea.vmem [#allocation4], %s434
        // Predicated region
        $region48: #{_lambda_.24} parent=46 // pred_check
          %p436 = pneg %p72
        $region49: #{_lambda_.24} parent=46 // pred_check_branch
          %438 = sbr.rel (%p436) target = $region51
        $region50: #{_lambda_.24} parent=46 // pred_region
          _
        $region51: #{_lambda_.24} parent=46 // pred_fallthru
          _
        %p439 = pneg %p44
        %p440 = pneg %p41
        %s441 = sand.u32 %s59, 1
        %s442 = sand.u32 %s59, 1
        %s443 = smul.addr %s442, 896
        %s444 = scalar_lea.vmem [#allocation4], %s443
        %p445 = pneg %p72
        %p446 = pneg %p69
        %p447 = pneg %p100
        %p448 = pneg %p97
        %s449 = smul.u32 16, %s21
        %p450 = scmp.lt.s32.totalorder %s20, 1
        %s451 = scalar_select %p450, %s20, 1
        %p452 = scmp.lt.s32.totalorder %s449, 31
        %s453 = scalar_select %p452, %s449, 31
        %s454 = smul.addr %s451, 32
        %s455 = sadd.s32 %s453, %s454
        %s456 = smul.addr %s455, 4
        %s457 = scalar_lea.vmem %s2, %s456
        %p458 = pneg %p126
        %p459 = pneg %p123
        %p460 = scmp.lt.s32.totalorder %s20, 1
        %s461 = scalar_select %p460, %s20, 1
        %s462 = smul.addr %s461, 4
        %s463 = scalar_lea.vmem %s3, %s462
        %p464 = pneg %p152
        %p465 = pneg %p149
        %p466 = scmp.lt.s32.totalorder %s20, 1
        %s467 = scalar_select %p466, %s20, 1
        %s468 = smul.addr %s467, 4
        %s469 = scalar_lea.vmem %s4, %s468
        %s470 = smul.u32 16, %s21
        %s471 = smul.u32 16, %s21
        %p472 = scmp.lt.s32.totalorder %s20, 1
        %s473 = scalar_select %p472, %s20, 1
        %p474 = scmp.lt.s32.totalorder %s471, 31
        %s475 = scalar_select %p474, %s471, 31
        %s476 = smul.addr %s473, 32
        %s477 = sadd.s32 %s475, %s476
        %s478 = smul.addr %s477, 4
        %s479 = scalar_lea.vmem %s2, %s478
        %s480 = smul.u32 16, %s21
        %p481 = scmp.lt.s32.totalorder %s20, 1
        %s482 = scalar_select %p481, %s20, 1
        %s483 = smul.addr %s482, 4
        %s484 = scalar_lea.vmem %s3, %s483
        %p485 = scmp.lt.s32.totalorder %s20, 1
        %s486 = scalar_select %p485, %s20, 1
        %s487 = smul.addr %s486, 4
        %s488 = scalar_lea.vmem %s4, %s487
        %p490 = scmp.eq.s32.totalorder %s21, 0
        // Predicated region
        $region52: #{_lambda_.24} parent=46 // pred_check
          %p491 = pneg %p490
        $region53: #{_lambda_.24} parent=46 // pred_check_branch
          %493 = sbr.rel (%p491) target = $region55
        $region54: #{_lambda_.24} parent=46 // pred_region
          %vm494 = vcmask 3072
          %495 = vst.msk [vmem:[#allocation2] sm:$0xf] %vm494, 0.0
          %496 = vst.msk [vmem:[#allocation3] sm:$0xf] %vm494, 0.0
        $region55: #{_lambda_.24} parent=46 // pred_fallthru
          _
        %v497 = vld [vmem:[%s0] sm:$0x3]
        %v498 = vld [vmem:[%s435] sm:$0xff]
        %v499 = vld [vmem:[%s435 + $0x8] sm:$0xff]
        %v500 = vld [vmem:[%s435 + $0x10] sm:$0xff]
        %v501 = vld [vmem:[%s435 + $0x18] sm:$0xff]
        %v502 = vld [vmem:[%s435 + $0x20] sm:$0xff]
        %v503 = vld [vmem:[%s435 + $0x28] sm:$0xff]
        %v504 = vld [vmem:[%s435 + $0x30] sm:$0xff]
        %v505 = vld [vmem:[%s435 + $0x38] sm:$0xff]
        %v506 = vld [vmem:[%s435 + $0x40] sm:$0xff]
        %v507 = vld [vmem:[%s435 + $0x48] sm:$0xff]
        %v508 = vld [vmem:[%s435 + $0x50] sm:$0xff]
        %v509 = vld [vmem:[%s435 + $0x58] sm:$0xff]
        %v510 = vld [vmem:[%s435 + $0x60] sm:$0xff]
        %v511 = vld [vmem:[%s435 + $0x68] sm:$0xff]
        %v512 = vld [vmem:[%s435 + $0x70] sm:$0xff]
        %v513 = vld [vmem:[%s435 + $0x78] sm:$0xff]
        %v514 = vld [vmem:[%s435 + $0x80] sm:$0xff]
        %v515 = vld [vmem:[%s435 + $0x88] sm:$0xff]
        %v516 = vld [vmem:[%s435 + $0x90] sm:$0xff]
        %v517 = vld [vmem:[%s435 + $0x98] sm:$0xff]
        %v518 = vld [vmem:[%s435 + $0xa0] sm:$0xff]
        %v519 = vld [vmem:[%s435 + $0xa8] sm:$0xff]
        %v520 = vld [vmem:[%s435 + $0xb0] sm:$0xff]
        %v521 = vld [vmem:[%s435 + $0xb8] sm:$0xff]
        %v522 = vld [vmem:[%s435 + $0xc0] sm:$0xff]
        %v523 = vld [vmem:[%s435 + $0xc8] sm:$0xff]
        %v524 = vld [vmem:[%s435 + $0xd0] sm:$0xff]
        %v525 = vld [vmem:[%s435 + $0xd8] sm:$0xff]
        %v526 = vld [vmem:[%s435 + $0xe0] sm:$0xff]
        %v527 = vld [vmem:[%s435 + $0xe8] sm:$0xff]
        %v528 = vld [vmem:[%s435 + $0xf0] sm:$0xff]
        %v529 = vld [vmem:[%s435 + $0xf8] sm:$0xff]
        %v530 = vld [vmem:[%s435 + $0x100] sm:$0xff]
        %v531 = vld [vmem:[%s435 + $0x108] sm:$0xff]
        %v532 = vld [vmem:[%s435 + $0x110] sm:$0xff]
        %v533 = vld [vmem:[%s435 + $0x118] sm:$0xff]
        %v534 = vld [vmem:[%s435 + $0x120] sm:$0xff]
        %v535 = vld [vmem:[%s435 + $0x128] sm:$0xff]
        %v536 = vld [vmem:[%s435 + $0x130] sm:$0xff]
        %v537 = vld [vmem:[%s435 + $0x138] sm:$0xff]
        %v538 = vld [vmem:[%s435 + $0x140] sm:$0xff]
        %v539 = vld [vmem:[%s435 + $0x148] sm:$0xff]
        %v540 = vld [vmem:[%s435 + $0x150] sm:$0xff]
        %v541 = vld [vmem:[%s435 + $0x158] sm:$0xff]
        %v542 = vld [vmem:[%s435 + $0x160] sm:$0xff]
        %v543 = vld [vmem:[%s435 + $0x168] sm:$0xff]
        %v544 = vld [vmem:[%s435 + $0x170] sm:$0xff]
        %v545 = vld [vmem:[%s435 + $0x178] sm:$0xff]
        %v546 = vld [vmem:[%s435 + $0x180] sm:$0xff]
        %v547 = vld [vmem:[%s435 + $0x188] sm:$0xff]
        %v548 = vld [vmem:[%s435 + $0x190] sm:$0xff]
        %v549 = vld [vmem:[%s435 + $0x198] sm:$0xff]
        %v550 = vld [vmem:[%s435 + $0x1a0] sm:$0xff]
        %v551 = vld [vmem:[%s435 + $0x1a8] sm:$0xff]
        %v552 = vld [vmem:[%s435 + $0x1b0] sm:$0xff]
        %v553 = vld [vmem:[%s435 + $0x1b8] sm:$0xff]
        %v554 = vld [vmem:[%s435 + $0x1c0] sm:$0xff]
        %v555 = vld [vmem:[%s435 + $0x1c8] sm:$0xff]
        %v556 = vld [vmem:[%s435 + $0x1d0] sm:$0xff]
        %v557 = vld [vmem:[%s435 + $0x1d8] sm:$0xff]
        %v558 = vld [vmem:[%s435 + $0x1e0] sm:$0xff]
        %v559 = vld [vmem:[%s435 + $0x1e8] sm:$0xff]
        %v560 = vld [vmem:[%s435 + $0x1f0] sm:$0xff]
        %v561 = vld [vmem:[%s435 + $0x1f8] sm:$0xff]
        %v562 = vld [vmem:[%s435 + $0x200] sm:$0xff]
        %v563 = vld [vmem:[%s435 + $0x208] sm:$0xff]
        %v564 = vld [vmem:[%s435 + $0x210] sm:$0xff]
        %v565 = vld [vmem:[%s435 + $0x218] sm:$0xff]
        %v566 = vld [vmem:[%s435 + $0x220] sm:$0xff]
        %v567 = vld [vmem:[%s435 + $0x228] sm:$0xff]
        %v568 = vld [vmem:[%s435 + $0x230] sm:$0xff]
        %v569 = vld [vmem:[%s435 + $0x238] sm:$0xff]
        %v570 = vld [vmem:[%s435 + $0x240] sm:$0xff]
        %v571 = vld [vmem:[%s435 + $0x248] sm:$0xff]
        %v572 = vld [vmem:[%s435 + $0x250] sm:$0xff]
        %v573 = vld [vmem:[%s435 + $0x258] sm:$0xff]
        %v574 = vld [vmem:[%s435 + $0x260] sm:$0xff]
        %v575 = vld [vmem:[%s435 + $0x268] sm:$0xff]
        %v576 = vld [vmem:[%s435 + $0x270] sm:$0xff]
        %v577 = vld [vmem:[%s435 + $0x278] sm:$0xff]
        %v578 = vld [vmem:[%s435 + $0x280] sm:$0xff]
        %v579 = vld [vmem:[%s435 + $0x288] sm:$0xff]
        %v580 = vld [vmem:[%s435 + $0x290] sm:$0xff]
        %v581 = vld [vmem:[%s435 + $0x298] sm:$0xff]
        %v582 = vld [vmem:[%s435 + $0x2a0] sm:$0xff]
        %v583 = vld [vmem:[%s435 + $0x2a8] sm:$0xff]
        %v584 = vld [vmem:[%s435 + $0x2b0] sm:$0xff]
        %v585 = vld [vmem:[%s435 + $0x2b8] sm:$0xff]
        %v586 = vld [vmem:[%s435 + $0x2c0] sm:$0xff]
        %v587 = vld [vmem:[%s435 + $0x2c8] sm:$0xff]
        %v588 = vld [vmem:[%s435 + $0x2d0] sm:$0xff]
        %v589 = vld [vmem:[%s435 + $0x2d8] sm:$0xff]
        %v590 = vld [vmem:[%s435 + $0x2e0] sm:$0xff]
        %v591 = vld [vmem:[%s435 + $0x2e8] sm:$0xff]
        %v592 = vld [vmem:[%s435 + $0x2f0] sm:$0xff]
        %v593 = vld [vmem:[%s435 + $0x2f8] sm:$0xff]
        %v594 = vld [vmem:[%s435 + $0x300] sm:$0xff]
        %v595 = vld [vmem:[%s435 + $0x308] sm:$0xff]
        %v596 = vld [vmem:[%s435 + $0x310] sm:$0xff]
        %v597 = vld [vmem:[%s435 + $0x318] sm:$0xff]
        %v598 = vld [vmem:[%s435 + $0x320] sm:$0xff]
        %v599 = vld [vmem:[%s435 + $0x328] sm:$0xff]
        %v600 = vld [vmem:[%s435 + $0x330] sm:$0xff]
        %v601 = vld [vmem:[%s435 + $0x338] sm:$0xff]
        %v602 = vld [vmem:[%s435 + $0x340] sm:$0xff]
        %v603 = vld [vmem:[%s435 + $0x348] sm:$0xff]
        %v604 = vld [vmem:[%s435 + $0x350] sm:$0xff]
        %v605 = vld [vmem:[%s435 + $0x358] sm:$0xff]
        %v606 = vld [vmem:[%s435 + $0x360] sm:$0xff]
        %v607 = vld [vmem:[%s435 + $0x368] sm:$0xff]
        %v608 = vld [vmem:[%s435 + $0x370] sm:$0xff]
        %v609 = vld [vmem:[%s435 + $0x378] sm:$0xff]
        %v722 = vunpack.c.l.b16 %v498
        %v723 = vunpack.c.h.b16 %v498
        %v724 = vunpack.c.l.b16 %v499
        %v725 = vunpack.c.h.b16 %v499
        %v726 = vunpack.c.l.b16 %v500
        %v727 = vunpack.c.h.b16 %v500
        %v728 = vunpack.c.l.b16 %v501
        %v729 = vunpack.c.h.b16 %v501
        %v730 = vunpack.c.l.b16 %v502
        %v731 = vunpack.c.h.b16 %v502
        %v732 = vunpack.c.l.b16 %v503
        %v733 = vunpack.c.h.b16 %v503
        %v734 = vunpack.c.l.b16 %v504
        %v735 = vunpack.c.h.b16 %v504
        %v736 = vunpack.c.l.b16 %v505
        %v737 = vunpack.c.h.b16 %v505
        %v738 = vunpack.c.l.b16 %v506
        %v739 = vunpack.c.h.b16 %v506
        %v740 = vunpack.c.l.b16 %v507
        %v741 = vunpack.c.h.b16 %v507
        %v742 = vunpack.c.l.b16 %v508
        %v743 = vunpack.c.h.b16 %v508
        %v744 = vunpack.c.l.b16 %v509
        %v745 = vunpack.c.h.b16 %v509
        %v746 = vunpack.c.l.b16 %v510
        %v747 = vunpack.c.h.b16 %v510
        %v748 = vunpack.c.l.b16 %v511
        %v749 = vunpack.c.h.b16 %v511
        %v750 = vunpack.c.l.b16 %v512
        %v751 = vunpack.c.h.b16 %v512
        %v752 = vunpack.c.l.b16 %v513
        %v753 = vunpack.c.h.b16 %v513
        %v754 = vunpack.c.l.b16 %v514
        %v755 = vunpack.c.h.b16 %v514
        %v756 = vunpack.c.l.b16 %v515
        %v757 = vunpack.c.h.b16 %v515
        %v758 = vunpack.c.l.b16 %v516
        %v759 = vunpack.c.h.b16 %v516
        %v760 = vunpack.c.l.b16 %v517
        %v761 = vunpack.c.h.b16 %v517
        %v762 = vunpack.c.l.b16 %v518
        %v763 = vunpack.c.h.b16 %v518
        %v764 = vunpack.c.l.b16 %v519
        %v765 = vunpack.c.h.b16 %v519
        %v766 = vunpack.c.l.b16 %v520
        %v767 = vunpack.c.h.b16 %v520
        %v768 = vunpack.c.l.b16 %v521
        %v769 = vunpack.c.h.b16 %v521
        %v770 = vunpack.c.l.b16 %v522
        %v771 = vunpack.c.h.b16 %v522
        %v772 = vunpack.c.l.b16 %v523
        %v773 = vunpack.c.h.b16 %v523
        %v774 = vunpack.c.l.b16 %v524
        %v775 = vunpack.c.h.b16 %v524
        %v776 = vunpack.c.l.b16 %v525
        %v777 = vunpack.c.h.b16 %v525
        %v778 = vunpack.c.l.b16 %v526
        %v779 = vunpack.c.h.b16 %v526
        %v780 = vunpack.c.l.b16 %v527
        %v781 = vunpack.c.h.b16 %v527
        %v782 = vunpack.c.l.b16 %v528
        %v783 = vunpack.c.h.b16 %v528
        %v784 = vunpack.c.l.b16 %v529
        %v785 = vunpack.c.h.b16 %v529
        %v786 = vunpack.c.l.b16 %v530
        %v787 = vunpack.c.h.b16 %v530
        %v788 = vunpack.c.l.b16 %v531
        %v789 = vunpack.c.h.b16 %v531
        %v790 = vunpack.c.l.b16 %v532
        %v791 = vunpack.c.h.b16 %v532
        %v792 = vunpack.c.l.b16 %v533
        %v793 = vunpack.c.h.b16 %v533
        %v794 = vunpack.c.l.b16 %v534
        %v795 = vunpack.c.h.b16 %v534
        %v796 = vunpack.c.l.b16 %v535
        %v797 = vunpack.c.h.b16 %v535
        %v798 = vunpack.c.l.b16 %v536
        %v799 = vunpack.c.h.b16 %v536
        %v800 = vunpack.c.l.b16 %v537
        %v801 = vunpack.c.h.b16 %v537
        %v802 = vunpack.c.l.b16 %v538
        %v803 = vunpack.c.h.b16 %v538
        %v804 = vunpack.c.l.b16 %v539
        %v805 = vunpack.c.h.b16 %v539
        %v806 = vunpack.c.l.b16 %v540
        %v807 = vunpack.c.h.b16 %v540
        %v808 = vunpack.c.l.b16 %v541
        %v809 = vunpack.c.h.b16 %v541
        %v810 = vunpack.c.l.b16 %v542
        %v811 = vunpack.c.h.b16 %v542
        %v812 = vunpack.c.l.b16 %v543
        %v813 = vunpack.c.h.b16 %v543
        %v814 = vunpack.c.l.b16 %v544
        %v815 = vunpack.c.h.b16 %v544
        %v816 = vunpack.c.l.b16 %v545
        %v817 = vunpack.c.h.b16 %v545
        %v818 = vunpack.c.l.b16 %v546
        %v819 = vunpack.c.h.b16 %v546
        %v820 = vunpack.c.l.b16 %v547
        %v821 = vunpack.c.h.b16 %v547
        %v822 = vunpack.c.l.b16 %v548
        %v823 = vunpack.c.h.b16 %v548
        %v824 = vunpack.c.l.b16 %v549
        %v825 = vunpack.c.h.b16 %v549
        %v826 = vunpack.c.l.b16 %v550
        %v827 = vunpack.c.h.b16 %v550
        %v828 = vunpack.c.l.b16 %v551
        %v829 = vunpack.c.h.b16 %v551
        %v830 = vunpack.c.l.b16 %v552
        %v831 = vunpack.c.h.b16 %v552
        %v832 = vunpack.c.l.b16 %v553
        %v833 = vunpack.c.h.b16 %v553
        %v834 = vunpack.c.l.b16 %v554
        %v835 = vunpack.c.h.b16 %v554
        %v836 = vunpack.c.l.b16 %v555
        %v837 = vunpack.c.h.b16 %v555
        %v838 = vunpack.c.l.b16 %v556
        %v839 = vunpack.c.h.b16 %v556
        %v840 = vunpack.c.l.b16 %v557
        %v841 = vunpack.c.h.b16 %v557
        %v842 = vunpack.c.l.b16 %v558
        %v843 = vunpack.c.h.b16 %v558
        %v844 = vunpack.c.l.b16 %v559
        %v845 = vunpack.c.h.b16 %v559
        %v846 = vunpack.c.l.b16 %v560
        %v847 = vunpack.c.h.b16 %v560
        %v848 = vunpack.c.l.b16 %v561
        %v849 = vunpack.c.h.b16 %v561
        %v850 = vunpack.c.l.b16 %v562
        %v851 = vunpack.c.h.b16 %v562
        %v852 = vunpack.c.l.b16 %v563
        %v853 = vunpack.c.h.b16 %v563
        %v854 = vunpack.c.l.b16 %v564
        %v855 = vunpack.c.h.b16 %v564
        %v856 = vunpack.c.l.b16 %v565
        %v857 = vunpack.c.h.b16 %v565
        %v858 = vunpack.c.l.b16 %v566
        %v859 = vunpack.c.h.b16 %v566
        %v860 = vunpack.c.l.b16 %v567
        %v861 = vunpack.c.h.b16 %v567
        %v862 = vunpack.c.l.b16 %v568
        %v863 = vunpack.c.h.b16 %v568
        %v864 = vunpack.c.l.b16 %v569
        %v865 = vunpack.c.h.b16 %v569
        %v866 = vunpack.c.l.b16 %v570
        %v867 = vunpack.c.h.b16 %v570
        %v868 = vunpack.c.l.b16 %v571
        %v869 = vunpack.c.h.b16 %v571
        %v870 = vunpack.c.l.b16 %v572
        %v871 = vunpack.c.h.b16 %v572
        %v872 = vunpack.c.l.b16 %v573
        %v873 = vunpack.c.h.b16 %v573
        %v874 = vunpack.c.l.b16 %v574
        %v875 = vunpack.c.h.b16 %v574
        %v876 = vunpack.c.l.b16 %v575
        %v877 = vunpack.c.h.b16 %v575
        %v878 = vunpack.c.l.b16 %v576
        %v879 = vunpack.c.h.b16 %v576
        %v880 = vunpack.c.l.b16 %v577
        %v881 = vunpack.c.h.b16 %v577
        %v882 = vunpack.c.l.b16 %v578
        %v883 = vunpack.c.h.b16 %v578
        %v884 = vunpack.c.l.b16 %v579
        %v885 = vunpack.c.h.b16 %v579
        %v886 = vunpack.c.l.b16 %v580
        %v887 = vunpack.c.h.b16 %v580
        %v888 = vunpack.c.l.b16 %v581
        %v889 = vunpack.c.h.b16 %v581
        %v890 = vunpack.c.l.b16 %v582
        %v891 = vunpack.c.h.b16 %v582
        %v892 = vunpack.c.l.b16 %v583
        %v893 = vunpack.c.h.b16 %v583
        %v894 = vunpack.c.l.b16 %v584
        %v895 = vunpack.c.h.b16 %v584
        %v896 = vunpack.c.l.b16 %v585
        %v897 = vunpack.c.h.b16 %v585
        %v898 = vunpack.c.l.b16 %v586
        %v899 = vunpack.c.h.b16 %v586
        %v900 = vunpack.c.l.b16 %v587
        %v901 = vunpack.c.h.b16 %v587
        %v902 = vunpack.c.l.b16 %v588
        %v903 = vunpack.c.h.b16 %v588
        %v904 = vunpack.c.l.b16 %v589
        %v905 = vunpack.c.h.b16 %v589
        %v906 = vunpack.c.l.b16 %v590
        %v907 = vunpack.c.h.b16 %v590
        %v908 = vunpack.c.l.b16 %v591
        %v909 = vunpack.c.h.b16 %v591
        %v910 = vunpack.c.l.b16 %v592
        %v911 = vunpack.c.h.b16 %v592
        %v912 = vunpack.c.l.b16 %v593
        %v913 = vunpack.c.h.b16 %v593
        %v914 = vunpack.c.l.b16 %v594
        %v915 = vunpack.c.h.b16 %v594
        %v916 = vunpack.c.l.b16 %v595
        %v917 = vunpack.c.h.b16 %v595
        %v918 = vunpack.c.l.b16 %v596
        %v919 = vunpack.c.h.b16 %v596
        %v920 = vunpack.c.l.b16 %v597
        %v921 = vunpack.c.h.b16 %v597
        %v922 = vunpack.c.l.b16 %v598
        %v923 = vunpack.c.h.b16 %v598
        %v924 = vunpack.c.l.b16 %v599
        %v925 = vunpack.c.h.b16 %v599
        %v926 = vunpack.c.l.b16 %v600
        %v927 = vunpack.c.h.b16 %v600
        %v928 = vunpack.c.l.b16 %v601
        %v929 = vunpack.c.h.b16 %v601
        %v930 = vunpack.c.l.b16 %v602
        %v931 = vunpack.c.h.b16 %v602
        %v932 = vunpack.c.l.b16 %v603
        %v933 = vunpack.c.h.b16 %v603
        %v934 = vunpack.c.l.b16 %v604
        %v935 = vunpack.c.h.b16 %v604
        %v936 = vunpack.c.l.b16 %v605
        %v937 = vunpack.c.h.b16 %v605
        %v938 = vunpack.c.l.b16 %v606
        %v939 = vunpack.c.h.b16 %v606
        %v940 = vunpack.c.l.b16 %v607
        %v941 = vunpack.c.h.b16 %v607
        %v942 = vunpack.c.l.b16 %v608
        %v943 = vunpack.c.h.b16 %v608
        %v944 = vunpack.c.l.b16 %v609
        %v945 = vunpack.c.h.b16 %v609
        %v946 = vpack.c.b16 %v738, %v722
        %v947 = vpack.c.b16 %v739, %v723
        %v948 = vpack.c.b16 %v740, %v724
        %v949 = vpack.c.b16 %v741, %v725
        %v950 = vpack.c.b16 %v742, %v726
        %v951 = vpack.c.b16 %v743, %v727
        %v952 = vpack.c.b16 %v744, %v728
        %v953 = vpack.c.b16 %v745, %v729
        %v954 = vpack.c.b16 %v746, %v730
        %v955 = vpack.c.b16 %v747, %v731
        %v956 = vpack.c.b16 %v748, %v732
        %v957 = vpack.c.b16 %v749, %v733
        %v958 = vpack.c.b16 %v750, %v734
        %v959 = vpack.c.b16 %v751, %v735
        %v960 = vpack.c.b16 %v752, %v736
        %v961 = vpack.c.b16 %v753, %v737
        %v962 = vpack.c.b16 %v770, %v754
        %v963 = vpack.c.b16 %v771, %v755
        %v964 = vpack.c.b16 %v772, %v756
        %v965 = vpack.c.b16 %v773, %v757
        %v966 = vpack.c.b16 %v774, %v758
        %v967 = vpack.c.b16 %v775, %v759
        %v968 = vpack.c.b16 %v776, %v760
        %v969 = vpack.c.b16 %v777, %v761
        %v970 = vpack.c.b16 %v778, %v762
        %v971 = vpack.c.b16 %v779, %v763
        %v972 = vpack.c.b16 %v780, %v764
        %v973 = vpack.c.b16 %v781, %v765
        %v974 = vpack.c.b16 %v782, %v766
        %v975 = vpack.c.b16 %v783, %v767
        %v976 = vpack.c.b16 %v784, %v768
        %v977 = vpack.c.b16 %v785, %v769
        %v978 = vpack.c.b16 %v802, %v786
        %v979 = vpack.c.b16 %v803, %v787
        %v980 = vpack.c.b16 %v804, %v788
        %v981 = vpack.c.b16 %v805, %v789
        %v982 = vpack.c.b16 %v806, %v790
        %v983 = vpack.c.b16 %v807, %v791
        %v984 = vpack.c.b16 %v808, %v792
        %v985 = vpack.c.b16 %v809, %v793
        %v986 = vpack.c.b16 %v810, %v794
        %v987 = vpack.c.b16 %v811, %v795
        %v988 = vpack.c.b16 %v812, %v796
        %v989 = vpack.c.b16 %v813, %v797
        %v990 = vpack.c.b16 %v814, %v798
        %v991 = vpack.c.b16 %v815, %v799
        %v992 = vpack.c.b16 %v816, %v800
        %v993 = vpack.c.b16 %v817, %v801
        %v994 = vpack.c.b16 %v834, %v818
        %v995 = vpack.c.b16 %v835, %v819
        %v996 = vpack.c.b16 %v836, %v820
        %v997 = vpack.c.b16 %v837, %v821
        %v998 = vpack.c.b16 %v838, %v822
        %v999 = vpack.c.b16 %v839, %v823
        %v1000 = vpack.c.b16 %v840, %v824
        %v1001 = vpack.c.b16 %v841, %v825
        %v1002 = vpack.c.b16 %v842, %v826
        %v1003 = vpack.c.b16 %v843, %v827
        %v1004 = vpack.c.b16 %v844, %v828
        %v1005 = vpack.c.b16 %v845, %v829
        %v1006 = vpack.c.b16 %v846, %v830
        %v1007 = vpack.c.b16 %v847, %v831
        %v1008 = vpack.c.b16 %v848, %v832
        %v1009 = vpack.c.b16 %v849, %v833
        %v1010 = vpack.c.b16 %v866, %v850
        %v1011 = vpack.c.b16 %v867, %v851
        %v1012 = vpack.c.b16 %v868, %v852
        %v1013 = vpack.c.b16 %v869, %v853
        %v1014 = vpack.c.b16 %v870, %v854
        %v1015 = vpack.c.b16 %v871, %v855
        %v1016 = vpack.c.b16 %v872, %v856
        %v1017 = vpack.c.b16 %v873, %v857
        %v1018 = vpack.c.b16 %v874, %v858
        %v1019 = vpack.c.b16 %v875, %v859
        %v1020 = vpack.c.b16 %v876, %v860
        %v1021 = vpack.c.b16 %v877, %v861
        %v1022 = vpack.c.b16 %v878, %v862
        %v1023 = vpack.c.b16 %v879, %v863
        %v1024 = vpack.c.b16 %v880, %v864
        %v1025 = vpack.c.b16 %v881, %v865
        %v1026 = vpack.c.b16 %v898, %v882
        %v1027 = vpack.c.b16 %v899, %v883
        %v1028 = vpack.c.b16 %v900, %v884
        %v1029 = vpack.c.b16 %v901, %v885
        %v1030 = vpack.c.b16 %v902, %v886
        %v1031 = vpack.c.b16 %v903, %v887
        %v1032 = vpack.c.b16 %v904, %v888
        %v1033 = vpack.c.b16 %v905, %v889
        %v1034 = vpack.c.b16 %v906, %v890
        %v1035 = vpack.c.b16 %v907, %v891
        %v1036 = vpack.c.b16 %v908, %v892
        %v1037 = vpack.c.b16 %v909, %v893
        %v1038 = vpack.c.b16 %v910, %v894
        %v1039 = vpack.c.b16 %v911, %v895
        %v1040 = vpack.c.b16 %v912, %v896
        %v1041 = vpack.c.b16 %v913, %v897
        %v1042 = vpack.c.b16 %v930, %v914
        %v1043 = vpack.c.b16 %v931, %v915
        %v1044 = vpack.c.b16 %v932, %v916
        %v1045 = vpack.c.b16 %v933, %v917
        %v1046 = vpack.c.b16 %v934, %v918
        %v1047 = vpack.c.b16 %v935, %v919
        %v1048 = vpack.c.b16 %v936, %v920
        %v1049 = vpack.c.b16 %v937, %v921
        %v1050 = vpack.c.b16 %v938, %v922
        %v1051 = vpack.c.b16 %v939, %v923
        %v1052 = vpack.c.b16 %v940, %v924
        %v1053 = vpack.c.b16 %v941, %v925
        %v1054 = vpack.c.b16 %v942, %v926
        %v1055 = vpack.c.b16 %v943, %v927
        %v1056 = vpack.c.b16 %v944, %v928
        %v1057 = vpack.c.b16 %v945, %v929
        %vm1170 = vcmask 916480
        %v1172 = vsel %vm1170, %v497, 0
        %1174 = vmatprep.subr.bf16.mxu0 0
        %1175 = vmatpush1.bf16.msra.mxu0 0
        %1176 = vmatprep.subr.bf16.mxu0 %v1043
        %1177 = vmatpush1.bf16.msra.mxu0 %v1042
        %1178 = vmatprep.subr.bf16.mxu0 %v1027
        %1179 = vmatpush1.bf16.msra.mxu0 %v1026
        %1180 = vmatprep.subr.bf16.mxu0 %v1011
        %1181 = vmatpush1.bf16.msra.mxu0 %v1010
        %1182 = vmatprep.subr.bf16.mxu0 %v995
        %1183 = vmatpush1.bf16.msra.mxu0 %v994
        %1184 = vmatprep.subr.bf16.mxu0 %v979
        %1185 = vmatpush1.bf16.msra.mxu0 %v978
        %1186 = vmatprep.subr.bf16.mxu0 %v963
        %1187 = vmatpush1.bf16.msra.mxu0 %v962
        %1188 = vmatprep.subr.bf16.mxu0 %v947
        %1189 = vmatpush1.bf16.msra.mxu0 %v946
        %1190 = vmatprep.subr.bf16.mxu0 0
        %1191 = vmatpush2.bf16.msra.mxu0 0
        %1192 = vmatprep.subr.bf16.mxu0 0
        %1193 = vmatpush2.bf16.msra.mxu0 0
        %1194 = vmatprep.subr.bf16.mxu0 0
        %1195 = vmatpush2.bf16.msra.mxu0 0
        %1196 = vmatprep.subr.bf16.mxu0 0
        %1197 = vmatpush2.bf16.msra.mxu0 0
        %1198 = vmatprep.subr.bf16.mxu0 0
        %1199 = vmatpush2.bf16.msra.mxu0 0
        %1200 = vmatprep.subr.bf16.mxu0 0
        %1201 = vmatpush2.bf16.msra.mxu0 0
        %1202 = vmatprep.subr.bf16.mxu0 0
        %1203 = vmatpush2.bf16.msra.mxu0 0
        %1204 = vmatprep.subr.bf16.mxu0 0
        %1205 = vmatpush2.bf16.msra.mxu0 0
        %1206 = vmatprep.mubr.bf16.mxu0 0
        %1207 = vmatmul.mubr.bf16.gmra.mxu0 %v1172
        %v1208 = vpop.f32.mrf.mxu0
        %v1209 = vadd.f32 0.0, %v1208
        %v1210 = vpop.f32.mrf.mxu0
        %v1211 = vadd.f32 0.0, %v1210
        %v1212 = vpop.f32.mrf.mxu0
        %v1213 = vpop.f32.mrf.mxu0
        %1214 = vdwg.mxu0
        %1215 = vmatprep.subr.bf16.mxu0 0
        %1216 = vmatpush1.bf16.msra.mxu0 0
        %1217 = vmatprep.subr.bf16.mxu0 %v1045
        %1218 = vmatpush1.bf16.msra.mxu0 %v1044
        %1219 = vmatprep.subr.bf16.mxu0 %v1029
        %1220 = vmatpush1.bf16.msra.mxu0 %v1028
        %1221 = vmatprep.subr.bf16.mxu0 %v1013
        %1222 = vmatpush1.bf16.msra.mxu0 %v1012
        %1223 = vmatprep.subr.bf16.mxu0 %v997
        %1224 = vmatpush1.bf16.msra.mxu0 %v996
        %1225 = vmatprep.subr.bf16.mxu0 %v981
        %1226 = vmatpush1.bf16.msra.mxu0 %v980
        %1227 = vmatprep.subr.bf16.mxu0 %v965
        %1228 = vmatpush1.bf16.msra.mxu0 %v964
        %1229 = vmatprep.subr.bf16.mxu0 %v949
        %1230 = vmatpush1.bf16.msra.mxu0 %v948
        %1231 = vmatprep.subr.bf16.mxu0 0
        %1232 = vmatpush2.bf16.msra.mxu0 0
        %1233 = vmatprep.subr.bf16.mxu0 0
        %1234 = vmatpush2.bf16.msra.mxu0 0
        %1235 = vmatprep.subr.bf16.mxu0 0
        %1236 = vmatpush2.bf16.msra.mxu0 0
        %1237 = vmatprep.subr.bf16.mxu0 0
        %1238 = vmatpush2.bf16.msra.mxu0 0
        %1239 = vmatprep.subr.bf16.mxu0 0
        %1240 = vmatpush2.bf16.msra.mxu0 0
        %1241 = vmatprep.subr.bf16.mxu0 0
        %1242 = vmatpush2.bf16.msra.mxu0 0
        %1243 = vmatprep.subr.bf16.mxu0 0
        %1244 = vmatpush2.bf16.msra.mxu0 0
        %1245 = vmatprep.subr.bf16.mxu0 0
        %1246 = vmatpush2.bf16.msra.mxu0 0
        %1247 = vmatprep.mubr.bf16.mxu0 0
        %1248 = vmatmul.mubr.bf16.gmra.mxu0 %v1172
        %v1249 = vpop.f32.mrf.mxu0
        %v1250 = vadd.f32 0.0, %v1249
        %v1251 = vpop.f32.mrf.mxu0
        %v1252 = vadd.f32 0.0, %v1251
        %v1253 = vpop.f32.mrf.mxu0
        %v1254 = vpop.f32.mrf.mxu0
        %1255 = vdwg.mxu0
        %1256 = vmatprep.subr.bf16.mxu0 0
        %1257 = vmatpush1.bf16.msra.mxu0 0
        %1258 = vmatprep.subr.bf16.mxu0 %v1047
        %1259 = vmatpush1.bf16.msra.mxu0 %v1046
        %1260 = vmatprep.subr.bf16.mxu0 %v1031
        %1261 = vmatpush1.bf16.msra.mxu0 %v1030
        %1262 = vmatprep.subr.bf16.mxu0 %v1015
        %1263 = vmatpush1.bf16.msra.mxu0 %v1014
        %1264 = vmatprep.subr.bf16.mxu0 %v999
        %1265 = vmatpush1.bf16.msra.mxu0 %v998
        %1266 = vmatprep.subr.bf16.mxu0 %v983
        %1267 = vmatpush1.bf16.msra.mxu0 %v982
        %1268 = vmatprep.subr.bf16.mxu0 %v967
        %1269 = vmatpush1.bf16.msra.mxu0 %v966
        %1270 = vmatprep.subr.bf16.mxu0 %v951
        %1271 = vmatpush1.bf16.msra.mxu0 %v950
        %1272 = vmatprep.subr.bf16.mxu0 0
        %1273 = vmatpush2.bf16.msra.mxu0 0
        %1274 = vmatprep.subr.bf16.mxu0 0
        %1275 = vmatpush2.bf16.msra.mxu0 0
        %1276 = vmatprep.subr.bf16.mxu0 0
        %1277 = vmatpush2.bf16.msra.mxu0 0
        %1278 = vmatprep.subr.bf16.mxu0 0
        %1279 = vmatpush2.bf16.msra.mxu0 0
        %1280 = vmatprep.subr.bf16.mxu0 0
        %1281 = vmatpush2.bf16.msra.mxu0 0
        %1282 = vmatprep.subr.bf16.mxu0 0
        %1283 = vmatpush2.bf16.msra.mxu0 0
        %1284 = vmatprep.subr.bf16.mxu0 0
        %1285 = vmatpush2.bf16.msra.mxu0 0
        %1286 = vmatprep.subr.bf16.mxu0 0
        %1287 = vmatpush2.bf16.msra.mxu0 0
        %1288 = vmatprep.mubr.bf16.mxu0 0
        %1289 = vmatmul.mubr.bf16.gmra.mxu0 %v1172
        %v1290 = vpop.f32.mrf.mxu0
        %v1291 = vadd.f32 0.0, %v1290
        %v1292 = vpop.f32.mrf.mxu0
        %v1293 = vadd.f32 0.0, %v1292
        %v1294 = vpop.f32.mrf.mxu0
        %v1295 = vpop.f32.mrf.mxu0
        %1296 = vdwg.mxu0
        %1297 = vmatprep.subr.bf16.mxu0 0
        %1298 = vmatpush1.bf16.msra.mxu0 0
        %1299 = vmatprep.subr.bf16.mxu0 %v1049
        %1300 = vmatpush1.bf16.msra.mxu0 %v1048
        %1301 = vmatprep.subr.bf16.mxu0 %v1033
        %1302 = vmatpush1.bf16.msra.mxu0 %v1032
        %1303 = vmatprep.subr.bf16.mxu0 %v1017
        %1304 = vmatpush1.bf16.msra.mxu0 %v1016
        %1305 = vmatprep.subr.bf16.mxu0 %v1001
        %1306 = vmatpush1.bf16.msra.mxu0 %v1000
        %1307 = vmatprep.subr.bf16.mxu0 %v985
        %1308 = vmatpush1.bf16.msra.mxu0 %v984
        %1309 = vmatprep.subr.bf16.mxu0 %v969
        %1310 = vmatpush1.bf16.msra.mxu0 %v968
        %1311 = vmatprep.subr.bf16.mxu0 %v953
        %1312 = vmatpush1.bf16.msra.mxu0 %v952
        %1313 = vmatprep.subr.bf16.mxu0 0
        %1314 = vmatpush2.bf16.msra.mxu0 0
        %1315 = vmatprep.subr.bf16.mxu0 0
        %1316 = vmatpush2.bf16.msra.mxu0 0
        %1317 = vmatprep.subr.bf16.mxu0 0
        %1318 = vmatpush2.bf16.msra.mxu0 0
        %1319 = vmatprep.subr.bf16.mxu0 0
        %1320 = vmatpush2.bf16.msra.mxu0 0
        %1321 = vmatprep.subr.bf16.mxu0 0
        %1322 = vmatpush2.bf16.msra.mxu0 0
        %1323 = vmatprep.subr.bf16.mxu0 0
        %1324 = vmatpush2.bf16.msra.mxu0 0
        %1325 = vmatprep.subr.bf16.mxu0 0
        %1326 = vmatpush2.bf16.msra.mxu0 0
        %1327 = vmatprep.subr.bf16.mxu0 0
        %1328 = vmatpush2.bf16.msra.mxu0 0
        %1329 = vmatprep.mubr.bf16.mxu0 0
        %1330 = vmatmul.mubr.bf16.gmra.mxu0 %v1172
        %v1331 = vpop.f32.mrf.mxu0
        %v1332 = vadd.f32 0.0, %v1331
        %v1333 = vpop.f32.mrf.mxu0
        %v1334 = vadd.f32 0.0, %v1333
        %v1335 = vpop.f32.mrf.mxu0
        %v1336 = vpop.f32.mrf.mxu0
        %1337 = vdwg.mxu0
        %1338 = vmatprep.subr.bf16.mxu0 0
        %1339 = vmatpush1.bf16.msra.mxu0 0
        %1340 = vmatprep.subr.bf16.mxu0 %v1051
        %1341 = vmatpush1.bf16.msra.mxu0 %v1050
        %1342 = vmatprep.subr.bf16.mxu0 %v1035
        %1343 = vmatpush1.bf16.msra.mxu0 %v1034
        %1344 = vmatprep.subr.bf16.mxu0 %v1019
        %1345 = vmatpush1.bf16.msra.mxu0 %v1018
        %1346 = vmatprep.subr.bf16.mxu0 %v1003
        %1347 = vmatpush1.bf16.msra.mxu0 %v1002
        %1348 = vmatprep.subr.bf16.mxu0 %v987
        %1349 = vmatpush1.bf16.msra.mxu0 %v986
        %1350 = vmatprep.subr.bf16.mxu0 %v971
        %1351 = vmatpush1.bf16.msra.mxu0 %v970
        %1352 = vmatprep.subr.bf16.mxu0 %v955
        %1353 = vmatpush1.bf16.msra.mxu0 %v954
        %1354 = vmatprep.subr.bf16.mxu0 0
        %1355 = vmatpush2.bf16.msra.mxu0 0
        %1356 = vmatprep.subr.bf16.mxu0 0
        %1357 = vmatpush2.bf16.msra.mxu0 0
        %1358 = vmatprep.subr.bf16.mxu0 0
        %1359 = vmatpush2.bf16.msra.mxu0 0
        %1360 = vmatprep.subr.bf16.mxu0 0
        %1361 = vmatpush2.bf16.msra.mxu0 0
        %1362 = vmatprep.subr.bf16.mxu0 0
        %1363 = vmatpush2.bf16.msra.mxu0 0
        %1364 = vmatprep.subr.bf16.mxu0 0
        %1365 = vmatpush2.bf16.msra.mxu0 0
        %1366 = vmatprep.subr.bf16.mxu0 0
        %1367 = vmatpush2.bf16.msra.mxu0 0
        %1368 = vmatprep.subr.bf16.mxu0 0
        %1369 = vmatpush2.bf16.msra.mxu0 0
        %1370 = vmatprep.mubr.bf16.mxu0 0
        %1371 = vmatmul.mubr.bf16.gmra.mxu0 %v1172
        %v1372 = vpop.f32.mrf.mxu0
        %v1373 = vadd.f32 0.0, %v1372
        %v1374 = vpop.f32.mrf.mxu0
        %v1375 = vadd.f32 0.0, %v1374
        %v1376 = vpop.f32.mrf.mxu0
        %v1377 = vpop.f32.mrf.mxu0
        %1378 = vdwg.mxu0
        %1379 = vmatprep.subr.bf16.mxu0 0
        %1380 = vmatpush1.bf16.msra.mxu0 0
        %1381 = vmatprep.subr.bf16.mxu0 %v1053
        %1382 = vmatpush1.bf16.msra.mxu0 %v1052
        %1383 = vmatprep.subr.bf16.mxu0 %v1037
        %1384 = vmatpush1.bf16.msra.mxu0 %v1036
        %1385 = vmatprep.subr.bf16.mxu0 %v1021
        %1386 = vmatpush1.bf16.msra.mxu0 %v1020
        %1387 = vmatprep.subr.bf16.mxu0 %v1005
        %1388 = vmatpush1.bf16.msra.mxu0 %v1004
        %1389 = vmatprep.subr.bf16.mxu0 %v989
        %1390 = vmatpush1.bf16.msra.mxu0 %v988
        %1391 = vmatprep.subr.bf16.mxu0 %v973
        %1392 = vmatpush1.bf16.msra.mxu0 %v972
        %1393 = vmatprep.subr.bf16.mxu0 %v957
        %1394 = vmatpush1.bf16.msra.mxu0 %v956
        %1395 = vmatprep.subr.bf16.mxu0 0
        %1396 = vmatpush2.bf16.msra.mxu0 0
        %1397 = vmatprep.subr.bf16.mxu0 0
        %1398 = vmatpush2.bf16.msra.mxu0 0
        %1399 = vmatprep.subr.bf16.mxu0 0
        %1400 = vmatpush2.bf16.msra.mxu0 0
        %1401 = vmatprep.subr.bf16.mxu0 0
        %1402 = vmatpush2.bf16.msra.mxu0 0
        %1403 = vmatprep.subr.bf16.mxu0 0
        %1404 = vmatpush2.bf16.msra.mxu0 0
        %1405 = vmatprep.subr.bf16.mxu0 0
        %1406 = vmatpush2.bf16.msra.mxu0 0
        %1407 = vmatprep.subr.bf16.mxu0 0
        %1408 = vmatpush2.bf16.msra.mxu0 0
        %1409 = vmatprep.subr.bf16.mxu0 0
        %1410 = vmatpush2.bf16.msra.mxu0 0
        %1411 = vmatprep.mubr.bf16.mxu0 0
        %1412 = vmatmul.mubr.bf16.gmra.mxu0 %v1172
        %v1413 = vpop.f32.mrf.mxu0
        %v1414 = vadd.f32 0.0, %v1413
        %v1415 = vpop.f32.mrf.mxu0
        %v1416 = vadd.f32 0.0, %v1415
        %v1417 = vpop.f32.mrf.mxu0
        %v1418 = vpop.f32.mrf.mxu0
        %1419 = vdwg.mxu0
        %1420 = vmatprep.subr.bf16.mxu0 0
        %1421 = vmatpush1.bf16.msra.mxu0 0
        %1422 = vmatprep.subr.bf16.mxu0 %v1055
        %1423 = vmatpush1.bf16.msra.mxu0 %v1054
        %1424 = vmatprep.subr.bf16.mxu0 %v1039
        %1425 = vmatpush1.bf16.msra.mxu0 %v1038
        %1426 = vmatprep.subr.bf16.mxu0 %v1023
        %1427 = vmatpush1.bf16.msra.mxu0 %v1022
        %1428 = vmatprep.subr.bf16.mxu0 %v1007
        %1429 = vmatpush1.bf16.msra.mxu0 %v1006
        %1430 = vmatprep.subr.bf16.mxu0 %v991
        %1431 = vmatpush1.bf16.msra.mxu0 %v990
        %1432 = vmatprep.subr.bf16.mxu0 %v975
        %1433 = vmatpush1.bf16.msra.mxu0 %v974
        %1434 = vmatprep.subr.bf16.mxu0 %v959
        %1435 = vmatpush1.bf16.msra.mxu0 %v958
        %1436 = vmatprep.subr.bf16.mxu0 0
        %1437 = vmatpush2.bf16.msra.mxu0 0
        %1438 = vmatprep.subr.bf16.mxu0 0
        %1439 = vmatpush2.bf16.msra.mxu0 0
        %1440 = vmatprep.subr.bf16.mxu0 0
        %1441 = vmatpush2.bf16.msra.mxu0 0
        %1442 = vmatprep.subr.bf16.mxu0 0
        %1443 = vmatpush2.bf16.msra.mxu0 0
        %1444 = vmatprep.subr.bf16.mxu0 0
        %1445 = vmatpush2.bf16.msra.mxu0 0
        %1446 = vmatprep.subr.bf16.mxu0 0
        %1447 = vmatpush2.bf16.msra.mxu0 0
        %1448 = vmatprep.subr.bf16.mxu0 0
        %1449 = vmatpush2.bf16.msra.mxu0 0
        %1450 = vmatprep.subr.bf16.mxu0 0
        %1451 = vmatpush2.bf16.msra.mxu0 0
        %1452 = vmatprep.mubr.bf16.mxu0 0
        %1453 = vmatmul.mubr.bf16.gmra.mxu0 %v1172
        %v1454 = vpop.f32.mrf.mxu0
        %v1455 = vadd.f32 0.0, %v1454
        %v1456 = vpop.f32.mrf.mxu0
        %v1457 = vadd.f32 0.0, %v1456
        %v1458 = vpop.f32.mrf.mxu0
        %v1459 = vpop.f32.mrf.mxu0
        %1460 = vdwg.mxu0
        %1461 = vmatprep.subr.bf16.mxu0 0
        %1462 = vmatpush1.bf16.msra.mxu0 0
        %1463 = vmatprep.subr.bf16.mxu0 %v1057
        %1464 = vmatpush1.bf16.msra.mxu0 %v1056
        %1465 = vmatprep.subr.bf16.mxu0 %v1041
        %1466 = vmatpush1.bf16.msra.mxu0 %v1040
        %1467 = vmatprep.subr.bf16.mxu0 %v1025
        %1468 = vmatpush1.bf16.msra.mxu0 %v1024
        %1469 = vmatprep.subr.bf16.mxu0 %v1009
        %1470 = vmatpush1.bf16.msra.mxu0 %v1008
        %1471 = vmatprep.subr.bf16.mxu0 %v993
        %1472 = vmatpush1.bf16.msra.mxu0 %v992
        %1473 = vmatprep.subr.bf16.mxu0 %v977
        %1474 = vmatpush1.bf16.msra.mxu0 %v976
        %1475 = vmatprep.subr.bf16.mxu0 %v961
        %1476 = vmatpush1.bf16.msra.mxu0 %v960
        %1477 = vmatprep.subr.bf16.mxu0 0
        %1478 = vmatpush2.bf16.msra.mxu0 0
        %1479 = vmatprep.subr.bf16.mxu0 0
        %1480 = vmatpush2.bf16.msra.mxu0 0
        %1481 = vmatprep.subr.bf16.mxu0 0
        %1482 = vmatpush2.bf16.msra.mxu0 0
        %1483 = vmatprep.subr.bf16.mxu0 0
        %1484 = vmatpush2.bf16.msra.mxu0 0
        %1485 = vmatprep.subr.bf16.mxu0 0
        %1486 = vmatpush2.bf16.msra.mxu0 0
        %1487 = vmatprep.subr.bf16.mxu0 0
        %1488 = vmatpush2.bf16.msra.mxu0 0
        %1489 = vmatprep.subr.bf16.mxu0 0
        %1490 = vmatpush2.bf16.msra.mxu0 0
        %1491 = vmatprep.subr.bf16.mxu0 0
        %1492 = vmatpush2.bf16.msra.mxu0 0
        %1493 = vmatprep.mubr.bf16.mxu0 0
        %1494 = vmatmul.mubr.bf16.gmra.mxu0 %v1172
        %v1495 = vpop.f32.mrf.mxu0
        %v1496 = vadd.f32 0.0, %v1495
        %v1497 = vpop.f32.mrf.mxu0
        %v1498 = vadd.f32 0.0, %v1497
        %v1499 = vpop.f32.mrf.mxu0
        %v1500 = vpop.f32.mrf.mxu0
        %1501 = vdwg.mxu0
        %v1518 = vcombine.low %v1209, %v1211
        %v1519 = vcombine.low %v1250, %v1252
        %v1520 = vcombine.low %v1291, %v1293
        %v1521 = vcombine.low %v1332, %v1334
        %v1522 = vcombine.low %v1373, %v1375
        %v1523 = vcombine.low %v1414, %v1416
        %v1524 = vcombine.low %v1455, %v1457
        %v1525 = vcombine.low %v1496, %v1498
        %1534 = vst [vmem:[%s479] sm:$0xff] %v1518
        %1535 = vst [vmem:[%s479 + $0x8] sm:$0xff] %v1519
        %1536 = vst [vmem:[%s479 + $0x10] sm:$0xff] %v1520
        %1537 = vst [vmem:[%s479 + $0x18] sm:$0xff] %v1521
        %1538 = vst [vmem:[%s479 + $0x20] sm:$0xff] %v1522
        %1539 = vst [vmem:[%s479 + $0x28] sm:$0xff] %v1523
        %1540 = vst [vmem:[%s479 + $0x30] sm:$0xff] %v1524
        %1541 = vst [vmem:[%s479 + $0x38] sm:$0xff] %v1525
        %v1542 = vld [vmem:[#allocation2] sm:$0xf]
        %vm1543 = vcmask 1043456
        %v1544 = vsel %vm1543, %v1209, 0.0
        %v1545 = vsel %vm1543, %v1211, 0.0
        %v1546 = vadd.f32 %v1544, %v1545
        %v1547 = vsel %vm1543, %v1250, 0.0
        %v1548 = vadd.f32 %v1546, %v1547
        %v1549 = vsel %vm1543, %v1252, 0.0
        %v1550 = vadd.f32 %v1548, %v1549
        %v1551 = vsel %vm1543, %v1291, 0.0
        %v1552 = vadd.f32 %v1550, %v1551
        %v1553 = vsel %vm1543, %v1293, 0.0
        %v1554 = vadd.f32 %v1552, %v1553
        %v1555 = vsel %vm1543, %v1332, 0.0
        %v1556 = vadd.f32 %v1554, %v1555
        %v1557 = vsel %vm1543, %v1334, 0.0
        %v1558 = vadd.f32 %v1556, %v1557
        %v1559 = vsel %vm1543, %v1373, 0.0
        %v1560 = vadd.f32 %v1558, %v1559
        %v1561 = vsel %vm1543, %v1375, 0.0
        %v1562 = vadd.f32 %v1560, %v1561
        %v1563 = vsel %vm1543, %v1414, 0.0
        %v1564 = vadd.f32 %v1562, %v1563
        %v1565 = vsel %vm1543, %v1416, 0.0
        %v1566 = vadd.f32 %v1564, %v1565
        %v1567 = vsel %vm1543, %v1455, 0.0
        %v1568 = vadd.f32 %v1566, %v1567
        %v1569 = vsel %vm1543, %v1457, 0.0
        %v1570 = vadd.f32 %v1568, %v1569
        %v1571 = vsel %vm1543, %v1496, 0.0
        %v1572 = vadd.f32 %v1570, %v1571
        %v1573 = vsel %vm1543, %v1498, 0.0
        %v1574 = vadd.f32 %v1572, %v1573
        %1575 = vadd.xlane.f32.xlu0 %v1574
        %v1576 = vpop.xlane.xlu0 %1575
        %v1577 = vadd.f32 %v1542, %v1576
        %vm1578 = vcmask 3072
        %1579 = vst.msk [vmem:[#allocation2] sm:$0xf] %vm1578, %v1577
        %v1580 = vld [vmem:[#allocation3] sm:$0xf]
        %v1581 = vmul.f32 %v1209, %v1209
        %v1582 = vmul.f32 %v1211, %v1211
        %v1583 = vmul.f32 %v1250, %v1250
        %v1584 = vmul.f32 %v1252, %v1252
        %v1585 = vmul.f32 %v1291, %v1291
        %v1586 = vmul.f32 %v1293, %v1293
        %v1587 = vmul.f32 %v1332, %v1332
        %v1588 = vmul.f32 %v1334, %v1334
        %v1589 = vmul.f32 %v1373, %v1373
        %v1590 = vmul.f32 %v1375, %v1375
        %v1591 = vmul.f32 %v1414, %v1414
        %v1592 = vmul.f32 %v1416, %v1416
        %v1593 = vmul.f32 %v1455, %v1455
        %v1594 = vmul.f32 %v1457, %v1457
        %v1595 = vmul.f32 %v1496, %v1496
        %v1596 = vmul.f32 %v1498, %v1498
        %v1597 = vsel %vm1543, %v1581, 0.0
        %v1598 = vsel %vm1543, %v1582, 0.0
        %v1599 = vadd.f32 %v1597, %v1598
        %v1600 = vsel %vm1543, %v1583, 0.0
        %v1601 = vadd.f32 %v1599, %v1600
        %v1602 = vsel %vm1543, %v1584, 0.0
        %v1603 = vadd.f32 %v1601, %v1602
        %v1604 = vsel %vm1543, %v1585, 0.0
        %v1605 = vadd.f32 %v1603, %v1604
        %v1606 = vsel %vm1543, %v1586, 0.0
        %v1607 = vadd.f32 %v1605, %v1606
        %v1608 = vsel %vm1543, %v1587, 0.0
        %v1609 = vadd.f32 %v1607, %v1608
        %v1610 = vsel %vm1543, %v1588, 0.0
        %v1611 = vadd.f32 %v1609, %v1610
        %v1612 = vsel %vm1543, %v1589, 0.0
        %v1613 = vadd.f32 %v1611, %v1612
        %v1614 = vsel %vm1543, %v1590, 0.0
        %v1615 = vadd.f32 %v1613, %v1614
        %v1616 = vsel %vm1543, %v1591, 0.0
        %v1617 = vadd.f32 %v1615, %v1616
        %v1618 = vsel %vm1543, %v1592, 0.0
        %v1619 = vadd.f32 %v1617, %v1618
        %v1620 = vsel %vm1543, %v1593, 0.0
        %v1621 = vadd.f32 %v1619, %v1620
        %v1622 = vsel %vm1543, %v1594, 0.0
        %v1623 = vadd.f32 %v1621, %v1622
        %v1624 = vsel %vm1543, %v1595, 0.0
        %v1625 = vadd.f32 %v1623, %v1624
        %v1626 = vsel %vm1543, %v1596, 0.0
        %v1627 = vadd.f32 %v1625, %v1626
        %1628 = vadd.xlane.f32.xlu0 %v1627
        %v1629 = vpop.xlane.xlu0 %1628
        %v1630 = vadd.f32 %v1580, %v1629
        %1631 = vst.msk [vmem:[#allocation3] sm:$0xf] %vm1578, %v1630
        %p1632 = scmp.eq.s32.totalorder %s21, 1
        // Predicated region
        $region56: #{_lambda_.24} parent=46 // pred_check
          %p1633 = pneg %p1632
        $region57: #{_lambda_.24} parent=46 // pred_check_branch
          %1635 = sbr.rel (%p1633) target = $region59
        $region58: #{_lambda_.24} parent=46 // pred_region
          %v1636 = vld [vmem:[#allocation2] sm:$0xf]
          %v1637 = vmul.f32 %v1636, 0.00024414063
          %v1638 = vld [vmem:[#allocation3] sm:$0xf]
          %v1639 = vmul.f32 %v1638, 0.00024414063
          %v1640 = vmul.f32 %v1637, %v1637
          %v1641 = vsub.f32 %v1639, %v1640
          %v1642 = vmax.f32 %v1641, 0.0
          %1643 = vst.msk [vmem:[%s484] sm:$0xf] %vm1578, %v1637
          %v1644 = vadd.f32 %v1642, 1e-05
          %v1645 = vrsqrt.pop %v1644
          %1646 = vst.msk [vmem:[%s488] sm:$0xf] %vm1578, %v1645
        $region59: #{_lambda_.24} parent=46 // pred_fallthru
          _
        %s1647 = smul.u32 16, %s21
        %p1648 = scmp.lt.s32.totalorder %s20, 1
        %s1649 = scalar_select %p1648, %s20, 1
        %p1650 = scmp.lt.s32.totalorder %s1647, 31
        %s1651 = scalar_select %p1650, %s1647, 31
        %s1652 = smul.addr %s1649, 32
        %s1653 = sadd.s32 %s1651, %s1652
        %s1654 = smul.addr %s1653, 4
        %s1655 = scalar_lea.vmem %s2, %s1654
        %p1656 = scmp.lt.s32.totalorder %s20, 1
        %s1657 = scalar_select %p1656, %s20, 1
        %s1658 = smul.addr %s1657, 4
        %s1659 = scalar_lea.vmem %s3, %s1658
        %p1660 = scmp.lt.s32.totalorder %s20, 1
        %s1661 = scalar_select %p1660, %s20, 1
        %s1662 = smul.addr %s1661, 4
        %s1663 = scalar_lea.vmem %s4, %s1662
        // Predicated region
        $region60: #{_lambda_.24} parent=46 // pred_check
          %p1664 = pneg %p97
        $region61: #{_lambda_.24} parent=46 // pred_check_branch
          %1666 = sbr.rel (%p1664) target = $region63
        $region62: #{_lambda_.24} parent=46 // pred_region
          %s1667 = smul.u32 16, %s21
        $region63: #{_lambda_.24} parent=46 // pred_fallthru
          _
        // Predicated region
        $region64: #{_lambda_.24} parent=46 // pred_check
          %p1668 = pneg %p123
        $region65: #{_lambda_.24} parent=46 // pred_check_branch
          %1670 = sbr.rel (%p1668) target = $region67
        $region66: #{_lambda_.24} parent=46 // pred_region
          _
        $region67: #{_lambda_.24} parent=46 // pred_fallthru
          _
        // Predicated region
        $region68: #{_lambda_.24} parent=46 // pred_check
          %p1671 = pneg %p149
        $region69: #{_lambda_.24} parent=46 // pred_check_branch
          %1673 = sbr.rel (%p1671) target = $region71
        $region70: #{_lambda_.24} parent=46 // pred_region
          _
        $region71: #{_lambda_.24} parent=46 // pred_fallthru
          _
      $region47: #{_lambda_.24} parent=5 // pred_fallthru
        _
      %p1674 = scmp.le.s32.totalorder 2, %s11
      // Predicated region
      $region72: #{_lambda_.24} parent=5 // pred_check
        %p1675 = pneg %p1674
      $region73: #{_lambda_.24} parent=5 // pred_check_branch
        %1677 = sbr.rel (%p1675) target = $region75
      $region74: #{_lambda_.24} parent=5 // pred_region
        %s1678 = ssub.s32 %s11, 2
        // Predicated region
        $region76: #{_lambda_.24} parent=74 // pred_check
          %p1679 = pneg %p103
        $region77: #{_lambda_.24} parent=74 // pred_check_branch
          %1681 = sbr.rel (%p1679) target = $region79
        $region78: #{_lambda_.24} parent=74 // pred_region
          %s1682 = smul.u32 16, %s23
          %p1683 = scmp.lt.s32.totalorder %s22, 1
          %s1684 = scalar_select %p1683, %s22, 1
          %p1685 = scmp.lt.s32.totalorder %s1682, 31
          %s1686 = scalar_select %p1685, %s1682, 31
          %s1687 = smul.addr %s1684, 32
          %s1688 = sadd.s32 %s1686, %s1687
          %s1689 = smul.addr %s1688, 4
          %s1690 = scalar_lea.vmem %s2, %s1689
        $region79: #{_lambda_.24} parent=74 // pred_fallthru
          _
        // Predicated region
        $region80: #{_lambda_.24} parent=74 // pred_check
          %p1691 = pneg %p129
        $region81: #{_lambda_.24} parent=74 // pred_check_branch
          %1693 = sbr.rel (%p1691) target = $region83
        $region82: #{_lambda_.24} parent=74 // pred_region
          %p1694 = scmp.lt.s32.totalorder %s22, 1
          %s1695 = scalar_select %p1694, %s22, 1
          %s1696 = smul.addr %s1695, 4
          %s1697 = scalar_lea.vmem %s3, %s1696
        $region83: #{_lambda_.24} parent=74 // pred_fallthru
          _
        // Predicated region
        $region84: #{_lambda_.24} parent=74 // pred_check
          %p1698 = pneg %p155
        $region85: #{_lambda_.24} parent=74 // pred_check_branch
          %1700 = sbr.rel (%p1698) target = $region87
        $region86: #{_lambda_.24} parent=74 // pred_region
          %p1701 = scmp.lt.s32.totalorder %s22, 1
          %s1702 = scalar_select %p1701, %s22, 1
          %s1703 = smul.addr %s1702, 4
          %s1704 = scalar_lea.vmem %s4, %s1703
        $region87: #{_lambda_.24} parent=74 // pred_fallthru
          _
      $region75: #{_lambda_.24} parent=5 // pred_fallthru
        _
    $region6: #{_lambda_.24} parent=1 // loop_footer
      %s15 = sadd.s32 1, %s11
    $region7: #{_lambda_.24} parent=1 // loop_footer_branch
      %10 = sbr.rel target = $region3
    $region8: #{_lambda_.24} parent=1 // loop_exit
      _

// kernel: _lambda_.28
$region0: #{_lambda_.28}
  #allocation0 [shape = 'u32[]', space=smem, size = 0x4, offset = 0x4, fixed_abs, tag = 'smem constant byte address 0x4 - core index']
  #allocation1 [shape = 'u32[144,128]{1,0:T(1,128)}', space=vmem, size = 0x12000, scoped, tag = 'internal scratch']
  %s0 = inlined_call_operand.vmem [shape: bf16[8,112], index: 0, kind: input, shape index: {}]
  %s1 = inlined_call_operand.vmem [shape: bf16[2,112,512], index: 1, kind: input, shape index: {}]
  %s2 = inlined_call_operand.vmem [shape: f32[2,8,512], index: 2, kind: output, shape index: {}]
  %s3 = sld [smem:[#allocation0]]
  $region41: #{_lambda_.28} parent=0
    _
  %s5 = ssub.s32 1, %s3
  %s6 = scalar_select 0, %s5, %s3
  loop: start=0, step=1, limit=4
  $region2: #{_lambda_.28} parent=0 // loop_pre_header
    _
  $region3: #{_lambda_.28} parent=0 // loop_header
    %s8 = sphi 0, %s12
    %p9 = scmp.ge.s32.totalorder %s8, 4
    %s16 = sphi 0, %s16
    %s18 = sphi 0, %s16
    %s19 = sphi 0, %s18
    %s33 = sphi 0, %s19
    %s39 = sphi 0, %s41
    %s42 = sphi 0, %s39
    %s43 = sphi 0, %s42
    %s59 = sphi 0, %s43
    %s65 = sphi 0, %s67
    %s68 = sphi 0, %s65
    %s69 = sphi 0, %s68
    %s85 = sphi 0, %s69
  $region4: #{_lambda_.28} parent=0 // loop_header_branch
    %11 = sbr.rel (%p9) target = $region8
  $region5: #{_lambda_.28} parent=0 // loop_body
    %s13 = ssub.s32 %s8, 1
    %s14 = ssub.s32 %s8, 2
    %s15 = sadd.s32 %s8, 1
    %s17 = sadd.s32 %s16, 1
    %p20 = scmp.eq.s32.totalorder %s8, 1
    %p21 = scmp.ne.s32.totalorder %s16, %s18
    %p22 = scmp.eq.s32.totalorder %s8, 0
    %p23 = por %p21, %p22
    %p24 = scmp.ne.s32.totalorder %s16, %s18
    %p25 = scmp.eq.s32.totalorder %s13, 1
    %p26 = por %p24, %p25
    %p27 = scmp.ne.s32.totalorder %s18, %s19
    %p28 = scmp.eq.s32.totalorder %s13, 0
    %p29 = por %p27, %p28
    %p30 = scmp.ne.s32.totalorder %s18, %s19
    %p31 = scmp.eq.s32.totalorder %s14, 1
    %p32 = por %p30, %p31
    %p34 = scmp.ne.s32.totalorder %s19, %s33
    %p35 = scmp.eq.s32.totalorder %s14, 0
    %p36 = por %p34, %p35
    %s37 = ssub.s32 %s8, %s15
    %p38 = scmp.eq.s32.totalorder %s37, 0
    %s40 = sadd.s32 %s39, 1
    %s41 = scalar_select %p38, %s39, %s40
    %p44 = pneg %p38
    %p45 = scmp.eq.s32.totalorder %s8, 1
    %p46 = por %p44, %p45
    %p47 = scmp.ne.s32.totalorder %s39, %s42
    %p48 = scmp.eq.s32.totalorder %s8, 0
    %p49 = por %p47, %p48
    %p50 = scmp.ne.s32.totalorder %s39, %s42
    %p51 = scmp.eq.s32.totalorder %s13, 1
    %p52 = por %p50, %p51
    %p53 = scmp.ne.s32.totalorder %s42, %s43
    %p54 = scmp.eq.s32.totalorder %s13, 0
    %p55 = por %p53, %p54
    %p56 = scmp.ne.s32.totalorder %s42, %s43
    %p57 = scmp.eq.s32.totalorder %s14, 1
    %p58 = por %p56, %p57
    %p60 = scmp.ne.s32.totalorder %s43, %s59
    %p61 = scmp.eq.s32.totalorder %s14, 0
    %p62 = por %p60, %p61
    %s63 = ssub.s32 %s8, %s15
    %p64 = scmp.eq.s32.totalorder %s63, 0
    %s66 = sadd.s32 %s65, 1
    %s67 = scalar_select %p64, %s65, %s66
    %p70 = pneg %p64
    %p71 = scmp.eq.s32.totalorder %s8, 1
    %p72 = por %p70, %p71
    %p73 = scmp.ne.s32.totalorder %s65, %s68
    %p74 = scmp.eq.s32.totalorder %s8, 0
    %p75 = por %p73, %p74
    %p76 = scmp.ne.s32.totalorder %s65, %s68
    %p77 = scmp.eq.s32.totalorder %s13, 1
    %p78 = por %p76, %p77
    %p79 = scmp.ne.s32.totalorder %s68, %s69
    %p80 = scmp.eq.s32.totalorder %s13, 0
    %p81 = por %p79, %p80
    %p82 = scmp.ne.s32.totalorder %s68, %s69
    %p83 = scmp.eq.s32.totalorder %s14, 1
    %p84 = por %p82, %p83
    %p86 = scmp.ne.s32.totalorder %s69, %s85
    %p87 = scmp.eq.s32.totalorder %s14, 0
    %p88 = por %p86, %p87
    %p89 = scmp.le.s32.totalorder 1, %s8
    %p90 = scmp.lt.s32.totalorder %s8, 3
    %p91 = pnand %p89, %p90
    %p92 = pneg %p91
    // Predicated region
    $region9: #{_lambda_.28} parent=5 // pred_check
      _
    $region10: #{_lambda_.28} parent=5 // pred_check_branch
      %94 = sbr.rel (%p91) target = $region12
    $region11: #{_lambda_.28} parent=5 // pred_region
      %s95 = ssub.s32 %s8, 1
      // Predicated region
      $region13: #{_lambda_.28} parent=11 // pred_check
        %p96 = pneg %p29
      $region14: #{_lambda_.28} parent=11 // pred_check_branch
        %98 = sbr.rel (%p96) target = $region16
      $region15: #{_lambda_.28} parent=11 // pred_region
        _
      $region16: #{_lambda_.28} parent=11 // pred_fallthru
        _
    $region12: #{_lambda_.28} parent=5 // pred_fallthru
      _
    %p99 = scmp.lt.s32.totalorder %s8, 2
    // Predicated region
    $region17: #{_lambda_.28} parent=5 // pred_check
      %p100 = pneg %p99
    $region18: #{_lambda_.28} parent=5 // pred_check_branch
      %102 = sbr.rel (%p100) target = $region20
    $region19: #{_lambda_.28} parent=5 // pred_region
      // Predicated region
      $region21: #{_lambda_.28} parent=19 // pred_check
        %p103 = pneg %p49
      $region22: #{_lambda_.28} parent=19 // pred_check_branch
        %105 = sbr.rel (%p103) target = $region24
      $region23: #{_lambda_.28} parent=19 // pred_region
        %p106 = scmp.lt.s32.totalorder %s8, 1
        %s107 = scalar_select %p106, %s8, 1
        %s108 = smul.addr %s107, 56
        %s109 = smul.addr %s108, 4
        %s110 = scalar_lea.vmem %s1, %s109
      $region24: #{_lambda_.28} parent=19 // pred_fallthru
        _
    $region20: #{_lambda_.28} parent=5 // pred_fallthru
      _
    %p111 = scmp.le.s32.totalorder 1, %s8
    %p112 = scmp.lt.s32.totalorder %s8, 3
    %p113 = pnand %p111, %p112
    %p114 = pneg %p113
    // Predicated region
    $region25: #{_lambda_.28} parent=5 // pred_check
      _
    $region26: #{_lambda_.28} parent=5 // pred_check_branch
      %116 = sbr.rel (%p113) target = $region28
    $region27: #{_lambda_.28} parent=5 // pred_region
      %s117 = ssub.s32 %s8, 1
      %p118 = pneg %p29
      %p119 = pneg %p26
      %p120 = scmp.lt.s32.totalorder %s13, 1
      %s121 = scalar_select %p120, %s13, 1
      %s122 = smul.addr %s121, 56
      %s123 = smul.addr %s122, 4
      %s124 = scalar_lea.vmem %s1, %s123
      %p125 = pneg %p55
      %p126 = pneg %p52
      %p127 = pneg %p81
      %p128 = pneg %p78
      %p129 = scmp.lt.s32.totalorder %s13, 1
      %s130 = scalar_select %p129, %s13, 1
      %s131 = smul.addr %s130, 4
      %s132 = smul.addr %s131, 8
      %s133 = scalar_lea.vmem %s2, %s132
      %p134 = scmp.lt.s32.totalorder %s13, 1
      %s135 = scalar_select %p134, %s13, 1
      %s136 = smul.addr %s135, 56
      %s137 = smul.addr %s136, 4
      %s138 = scalar_lea.vmem %s1, %s137
      %p139 = scmp.lt.s32.totalorder %s13, 1
      %s140 = scalar_select %p139, %s13, 1
      %s141 = smul.addr %s140, 4
      %s142 = smul.addr %s141, 8
      %s143 = scalar_lea.vmem %s2, %s142
      %v145 = vld [vmem:[%s0] sm:$0xf]
      %v146 = vld [vmem:[%s138] sm:$0xff]
      %v147 = vld [vmem:[%s138 + $0x8] sm:$0xff]
      %v148 = vld [vmem:[%s138 + $0x10] sm:$0xff]
      %v149 = vld [vmem:[%s138 + $0x18] sm:$0xff]
      %v150 = vld [vmem:[%s138 + $0x20] sm:$0xff]
      %v151 = vld [vmem:[%s138 + $0x28] sm:$0xff]
      %v152 = vld [vmem:[%s138 + $0x30] sm:$0xff]
      %v153 = vld [vmem:[%s138 + $0x38] sm:$0xff]
      %v154 = vld [vmem:[%s138 + $0x40] sm:$0xff]
      %v155 = vld [vmem:[%s138 + $0x48] sm:$0xff]
      %v156 = vld [vmem:[%s138 + $0x50] sm:$0xff]
      %v157 = vld [vmem:[%s138 + $0x58] sm:$0xff]
      %v158 = vld [vmem:[%s138 + $0x60] sm:$0xff]
      %v159 = vld [vmem:[%s138 + $0x68] sm:$0xff]
      %v160 = vld [vmem:[%s138 + $0x70] sm:$0xff]
      %v161 = vld [vmem:[%s138 + $0x78] sm:$0xff]
      %v162 = vld [vmem:[%s138 + $0x80] sm:$0xff]
      %v163 = vld [vmem:[%s138 + $0x88] sm:$0xff]
      %v164 = vld [vmem:[%s138 + $0x90] sm:$0xff]
      %v165 = vld [vmem:[%s138 + $0x98] sm:$0xff]
      %v166 = vld [vmem:[%s138 + $0xa0] sm:$0xff]
      %v167 = vld [vmem:[%s138 + $0xa8] sm:$0xff]
      %v168 = vld [vmem:[%s138 + $0xb0] sm:$0xff]
      %v169 = vld [vmem:[%s138 + $0xb8] sm:$0xff]
      %v170 = vld [vmem:[%s138 + $0xc0] sm:$0xff]
      %v171 = vld [vmem:[%s138 + $0xc8] sm:$0xff]
      %v172 = vld [vmem:[%s138 + $0xd0] sm:$0xff]
      %v173 = vld [vmem:[%s138 + $0xd8] sm:$0xff]
      %v202 = vunpack.c.l.b16 %v146
      %v203 = vunpack.c.h.b16 %v146
      %v204 = vunpack.c.l.b16 %v147
      %v205 = vunpack.c.h.b16 %v147
      %v206 = vunpack.c.l.b16 %v148
      %v207 = vunpack.c.h.b16 %v148
      %v208 = vunpack.c.l.b16 %v149
      %v209 = vunpack.c.h.b16 %v149
      %v210 = vunpack.c.l.b16 %v150
      %v211 = vunpack.c.h.b16 %v150
      %v212 = vunpack.c.l.b16 %v151
      %v213 = vunpack.c.h.b16 %v151
      %v214 = vunpack.c.l.b16 %v152
      %v215 = vunpack.c.h.b16 %v152
      %v216 = vunpack.c.l.b16 %v153
      %v217 = vunpack.c.h.b16 %v153
      %v218 = vunpack.c.l.b16 %v154
      %v219 = vunpack.c.h.b16 %v154
      %v220 = vunpack.c.l.b16 %v155
      %v221 = vunpack.c.h.b16 %v155
      %v222 = vunpack.c.l.b16 %v156
      %v223 = vunpack.c.h.b16 %v156
      %v224 = vunpack.c.l.b16 %v157
      %v225 = vunpack.c.h.b16 %v157
      %v226 = vunpack.c.l.b16 %v158
      %v227 = vunpack.c.h.b16 %v158
      %v228 = vunpack.c.l.b16 %v159
      %v229 = vunpack.c.h.b16 %v159
      %v230 = vunpack.c.l.b16 %v160
      %v231 = vunpack.c.h.b16 %v160
      %v232 = vunpack.c.l.b16 %v161
      %v233 = vunpack.c.h.b16 %v161
      %v234 = vunpack.c.l.b16 %v162
      %v235 = vunpack.c.h.b16 %v162
      %v236 = vunpack.c.l.b16 %v163
      %v237 = vunpack.c.h.b16 %v163
      %v238 = vunpack.c.l.b16 %v164
      %v239 = vunpack.c.h.b16 %v164
      %v240 = vunpack.c.l.b16 %v165
      %v241 = vunpack.c.h.b16 %v165
      %v242 = vunpack.c.l.b16 %v166
      %v243 = vunpack.c.h.b16 %v166
      %v244 = vunpack.c.l.b16 %v167
      %v245 = vunpack.c.h.b16 %v167
      %v246 = vunpack.c.l.b16 %v168
      %v247 = vunpack.c.h.b16 %v168
      %v248 = vunpack.c.l.b16 %v169
      %v249 = vunpack.c.h.b16 %v169
      %v250 = vunpack.c.l.b16 %v170
      %v251 = vunpack.c.h.b16 %v170
      %v252 = vunpack.c.l.b16 %v171
      %v253 = vunpack.c.h.b16 %v171
      %v254 = vunpack.c.l.b16 %v172
      %v255 = vunpack.c.h.b16 %v172
      %v256 = vunpack.c.l.b16 %v173
      %v257 = vunpack.c.h.b16 %v173
      %v258 = vpack.c.b16 %v206, %v202
      %v259 = vpack.c.b16 %v207, %v203
      %v260 = vpack.c.b16 %v208, %v204
      %v261 = vpack.c.b16 %v209, %v205
      %v262 = vpack.c.b16 %v214, %v210
      %v263 = vpack.c.b16 %v215, %v211
      %v264 = vpack.c.b16 %v216, %v212
      %v265 = vpack.c.b16 %v217, %v213
      %v266 = vpack.c.b16 %v222, %v218
      %v267 = vpack.c.b16 %v223, %v219
      %v268 = vpack.c.b16 %v224, %v220
      %v269 = vpack.c.b16 %v225, %v221
      %v270 = vpack.c.b16 %v230, %v226
      %v271 = vpack.c.b16 %v231, %v227
      %v272 = vpack.c.b16 %v232, %v228
      %v273 = vpack.c.b16 %v233, %v229
      %v274 = vpack.c.b16 %v238, %v234
      %v275 = vpack.c.b16 %v239, %v235
      %v276 = vpack.c.b16 %v240, %v236
      %v277 = vpack.c.b16 %v241, %v237
      %v278 = vpack.c.b16 %v246, %v242
      %v279 = vpack.c.b16 %v247, %v243
      %v280 = vpack.c.b16 %v248, %v244
      %v281 = vpack.c.b16 %v249, %v245
      %v282 = vpack.c.b16 %v254, %v250
      %v283 = vpack.c.b16 %v255, %v251
      %v284 = vpack.c.b16 %v256, %v252
      %v285 = vpack.c.b16 %v257, %v253
      %vm314 = vcmask 916480
      %v316 = vsel %vm314, %v145, 0
      %318 = vmatprep.subr.bf16.mxu0 0
      %319 = vmatpush1.bf16.msra.mxu0 0
      %320 = vmatprep.subr.bf16.mxu0 %v283
      %321 = vmatpush1.bf16.msra.mxu0 %v282
      %322 = vmatprep.subr.bf16.mxu0 %v279
      %323 = vmatpush1.bf16.msra.mxu0 %v278
      %324 = vmatprep.subr.bf16.mxu0 %v275
      %325 = vmatpush1.bf16.msra.mxu0 %v274
      %326 = vmatprep.subr.bf16.mxu0 %v271
      %327 = vmatpush1.bf16.msra.mxu0 %v270
      %328 = vmatprep.subr.bf16.mxu0 %v267
      %329 = vmatpush1.bf16.msra.mxu0 %v266
      %330 = vmatprep.subr.bf16.mxu0 %v263
      %331 = vmatpush1.bf16.msra.mxu0 %v262
      %332 = vmatprep.subr.bf16.mxu0 %v259
      %333 = vmatpush1.bf16.msra.mxu0 %v258
      %334 = vmatprep.subr.bf16.mxu0 0
      %335 = vmatpush2.bf16.msra.mxu0 0
      %336 = vmatprep.subr.bf16.mxu0 0
      %337 = vmatpush2.bf16.msra.mxu0 0
      %338 = vmatprep.subr.bf16.mxu0 0
      %339 = vmatpush2.bf16.msra.mxu0 0
      %340 = vmatprep.subr.bf16.mxu0 0
      %341 = vmatpush2.bf16.msra.mxu0 0
      %342 = vmatprep.subr.bf16.mxu0 0
      %343 = vmatpush2.bf16.msra.mxu0 0
      %344 = vmatprep.subr.bf16.mxu0 0
      %345 = vmatpush2.bf16.msra.mxu0 0
      %346 = vmatprep.subr.bf16.mxu0 0
      %347 = vmatpush2.bf16.msra.mxu0 0
      %348 = vmatprep.subr.bf16.mxu0 0
      %349 = vmatpush2.bf16.msra.mxu0 0
      %350 = vmatprep.mubr.bf16.mxu0 0
      %351 = vmatmul.mubr.bf16.gmra.mxu0 %v316
      %v352 = vpop.f32.mrf.mxu0
      %v353 = vadd.f32 0.0, %v352
      %v354 = vpop.f32.mrf.mxu0
      %v355 = vadd.f32 0.0, %v354
      %v356 = vpop.f32.mrf.mxu0
      %v357 = vpop.f32.mrf.mxu0
      %358 = vdwg.mxu0
      %359 = vmatprep.subr.bf16.mxu0 0
      %360 = vmatpush1.bf16.msra.mxu0 0
      %361 = vmatprep.subr.bf16.mxu0 %v285
      %362 = vmatpush1.bf16.msra.mxu0 %v284
      %363 = vmatprep.subr.bf16.mxu0 %v281
      %364 = vmatpush1.bf16.msra.mxu0 %v280
      %365 = vmatprep.subr.bf16.mxu0 %v277
      %366 = vmatpush1.bf16.msra.mxu0 %v276
      %367 = vmatprep.subr.bf16.mxu0 %v273
      %368 = vmatpush1.bf16.msra.mxu0 %v272
      %369 = vmatprep.subr.bf16.mxu0 %v269
      %370 = vmatpush1.bf16.msra.mxu0 %v268
      %371 = vmatprep.subr.bf16.mxu0 %v265
      %372 = vmatpush1.bf16.msra.mxu0 %v264
      %373 = vmatprep.subr.bf16.mxu0 %v261
      %374 = vmatpush1.bf16.msra.mxu0 %v260
      %375 = vmatprep.subr.bf16.mxu0 0
      %376 = vmatpush2.bf16.msra.mxu0 0
      %377 = vmatprep.subr.bf16.mxu0 0
      %378 = vmatpush2.bf16.msra.mxu0 0
      %379 = vmatprep.subr.bf16.mxu0 0
      %380 = vmatpush2.bf16.msra.mxu0 0
      %381 = vmatprep.subr.bf16.mxu0 0
      %382 = vmatpush2.bf16.msra.mxu0 0
      %383 = vmatprep.subr.bf16.mxu0 0
      %384 = vmatpush2.bf16.msra.mxu0 0
      %385 = vmatprep.subr.bf16.mxu0 0
      %386 = vmatpush2.bf16.msra.mxu0 0
      %387 = vmatprep.subr.bf16.mxu0 0
      %388 = vmatpush2.bf16.msra.mxu0 0
      %389 = vmatprep.subr.bf16.mxu0 0
      %390 = vmatpush2.bf16.msra.mxu0 0
      %391 = vmatprep.mubr.bf16.mxu0 0
      %392 = vmatmul.mubr.bf16.gmra.mxu0 %v316
      %v393 = vpop.f32.mrf.mxu0
      %v394 = vadd.f32 0.0, %v393
      %v395 = vpop.f32.mrf.mxu0
      %v396 = vadd.f32 0.0, %v395
      %v397 = vpop.f32.mrf.mxu0
      %v398 = vpop.f32.mrf.mxu0
      %399 = vdwg.mxu0
      %v400 = vadd.f32 %v353, %v355
      %v401 = vadd.f32 %v400, %v394
      %v402 = vadd.f32 %v401, %v396
      %403 = vadd.xlane.f32.xlu0 %v402
      %v404 = vpop.xlane.xlu0 %403
      %v405 = vrcp.pop 512.0
      %v406 = vmul.f32 %v404, %v405
      %v407 = vsub.f32 %v353, %v406
      %v408 = vsub.f32 %v355, %v406
      %v409 = vsub.f32 %v394, %v406
      %v410 = vsub.f32 %v396, %v406
      %v411 = vmul.f32 %v407, %v407
      %v412 = vmul.f32 %v408, %v408
      %v413 = vmul.f32 %v409, %v409
      %v414 = vmul.f32 %v410, %v410
      %v415 = vadd.f32 %v411, %v412
      %v416 = vadd.f32 %v415, %v413
      %v417 = vadd.f32 %v416, %v414
      %418 = vadd.xlane.f32.xlu0 %v417
      %v419 = vpop.xlane.xlu0 %418
      %v420 = vmul.f32 %v419, %v405
      %v421 = vadd.f32 %v420, 1e-05
      %v422 = vrsqrt.pop %v421
      %v423 = vmul.f32 %v407, %v422
      %v424 = vmul.f32 %v408, %v422
      %v425 = vmul.f32 %v409, %v422
      %v426 = vmul.f32 %v410, %v422
      %vm427 = vcmp.ge.f32.partialorder %v423, 0.0
      %vm428 = vcmp.ge.f32.partialorder %v424, 0.0
      %vm429 = vcmp.ge.f32.partialorder %v425, 0.0
      %vm430 = vcmp.ge.f32.partialorder %v426, 0.0
      %v431 = vmul.f32 %v423, 0.01
      %v432 = vmul.f32 %v424, 0.01
      %v433 = vmul.f32 %v425, 0.01
      %v434 = vmul.f32 %v426, 0.01
      %v435 = vsel %vm427, %v423, %v431
      %v436 = vsel %vm428, %v424, %v432
      %v437 = vsel %vm429, %v425, %v433
      %v438 = vsel %vm430, %v426, %v434
      %439 = vst [vmem:[%s143] sm:$0xff] %v435
      %440 = vst [vmem:[%s143 + $0x8] sm:$0xff] %v436
      %441 = vst [vmem:[%s143 + $0x10] sm:$0xff] %v437
      %442 = vst [vmem:[%s143 + $0x18] sm:$0xff] %v438
      %p443 = scmp.lt.s32.totalorder %s13, 1
      %s444 = scalar_select %p443, %s13, 1
      %s445 = smul.addr %s444, 4
      %s446 = smul.addr %s445, 8
      %s447 = scalar_lea.vmem %s2, %s446
      // Predicated region
      $region29: #{_lambda_.28} parent=27 // pred_check
        %p448 = pneg %p78
      $region30: #{_lambda_.28} parent=27 // pred_check_branch
        %450 = sbr.rel (%p448) target = $region32
      $region31: #{_lambda_.28} parent=27 // pred_region
        _
      $region32: #{_lambda_.28} parent=27 // pred_fallthru
        _
    $region28: #{_lambda_.28} parent=5 // pred_fallthru
      _
    %p451 = scmp.le.s32.totalorder 2, %s8
    // Predicated region
    $region33: #{_lambda_.28} parent=5 // pred_check
      %p452 = pneg %p451
    $region34: #{_lambda_.28} parent=5 // pred_check_branch
      %454 = sbr.rel (%p452) target = $region36
    $region35: #{_lambda_.28} parent=5 // pred_region
      %s455 = ssub.s32 %s8, 2
      // Predicated region
      $region37: #{_lambda_.28} parent=35 // pred_check
        %p456 = pneg %p84
      $region38: #{_lambda_.28} parent=35 // pred_check_branch
        %458 = sbr.rel (%p456) target = $region40
      $region39: #{_lambda_.28} parent=35 // pred_region
        %p459 = scmp.lt.s32.totalorder %s14, 1
        %s460 = scalar_select %p459, %s14, 1
        %s461 = smul.addr %s460, 4
        %s462 = smul.addr %s461, 8
        %s463 = scalar_lea.vmem %s2, %s462
      $region40: #{_lambda_.28} parent=35 // pred_fallthru
        _
    $region36: #{_lambda_.28} parent=5 // pred_fallthru
      _
  $region6: #{_lambda_.28} parent=0 // loop_footer
    %s12 = sadd.s32 1, %s8
  $region7: #{_lambda_.28} parent=0 // loop_footer_branch
    %7 = sbr.rel target = $region3
  $region8: #{_lambda_.28} parent=0 // loop_exit
    _

// kernel: _lambda_.29
$region0: #{_lambda_.29}
  #allocation0 [shape = 'u32[]', space=smem, size = 0x4, offset = 0x4, fixed_abs, tag = 'smem constant byte address 0x4 - core index']
  #allocation1 [shape = 'u32[144,128]{1,0:T(1,128)}', space=vmem, size = 0x12000, scoped, tag = 'internal scratch']
  %s0 = inlined_call_operand.vmem [shape: bf16[8,224], index: 0, kind: input, shape index: {}]
  %s1 = inlined_call_operand.vmem [shape: bf16[2,224,512], index: 1, kind: input, shape index: {}]
  %s2 = inlined_call_operand.vmem [shape: f32[2,8,512], index: 2, kind: output, shape index: {}]
  %s3 = sld [smem:[#allocation0]]
  $region41: #{_lambda_.29} parent=0
    _
  %s5 = ssub.s32 1, %s3
  %s6 = scalar_select 0, %s5, %s3
  loop: start=0, step=1, limit=4
  $region2: #{_lambda_.29} parent=0 // loop_pre_header
    _
  $region3: #{_lambda_.29} parent=0 // loop_header
    %s8 = sphi 0, %s12
    %p9 = scmp.ge.s32.totalorder %s8, 4
    %s16 = sphi 0, %s16
    %s18 = sphi 0, %s16
    %s19 = sphi 0, %s18
    %s33 = sphi 0, %s19
    %s39 = sphi 0, %s41
    %s42 = sphi 0, %s39
    %s43 = sphi 0, %s42
    %s59 = sphi 0, %s43
    %s65 = sphi 0, %s67
    %s68 = sphi 0, %s65
    %s69 = sphi 0, %s68
    %s85 = sphi 0, %s69
  $region4: #{_lambda_.29} parent=0 // loop_header_branch
    %11 = sbr.rel (%p9) target = $region8
  $region5: #{_lambda_.29} parent=0 // loop_body
    %s13 = ssub.s32 %s8, 1
    %s14 = ssub.s32 %s8, 2
    %s15 = sadd.s32 %s8, 1
    %s17 = sadd.s32 %s16, 1
    %p20 = scmp.eq.s32.totalorder %s8, 1
    %p21 = scmp.ne.s32.totalorder %s16, %s18
    %p22 = scmp.eq.s32.totalorder %s8, 0
    %p23 = por %p21, %p22
    %p24 = scmp.ne.s32.totalorder %s16, %s18
    %p25 = scmp.eq.s32.totalorder %s13, 1
    %p26 = por %p24, %p25
    %p27 = scmp.ne.s32.totalorder %s18, %s19
    %p28 = scmp.eq.s32.totalorder %s13, 0
    %p29 = por %p27, %p28
    %p30 = scmp.ne.s32.totalorder %s18, %s19
    %p31 = scmp.eq.s32.totalorder %s14, 1
    %p32 = por %p30, %p31
    %p34 = scmp.ne.s32.totalorder %s19, %s33
    %p35 = scmp.eq.s32.totalorder %s14, 0
    %p36 = por %p34, %p35
    %s37 = ssub.s32 %s8, %s15
    %p38 = scmp.eq.s32.totalorder %s37, 0
    %s40 = sadd.s32 %s39, 1
    %s41 = scalar_select %p38, %s39, %s40
    %p44 = pneg %p38
    %p45 = scmp.eq.s32.totalorder %s8, 1
    %p46 = por %p44, %p45
    %p47 = scmp.ne.s32.totalorder %s39, %s42
    %p48 = scmp.eq.s32.totalorder %s8, 0
    %p49 = por %p47, %p48
    %p50 = scmp.ne.s32.totalorder %s39, %s42
    %p51 = scmp.eq.s32.totalorder %s13, 1
    %p52 = por %p50, %p51
    %p53 = scmp.ne.s32.totalorder %s42, %s43
    %p54 = scmp.eq.s32.totalorder %s13, 0
    %p55 = por %p53, %p54
    %p56 = scmp.ne.s32.totalorder %s42, %s43
    %p57 = scmp.eq.s32.totalorder %s14, 1
    %p58 = por %p56, %p57
    %p60 = scmp.ne.s32.totalorder %s43, %s59
    %p61 = scmp.eq.s32.totalorder %s14, 0
    %p62 = por %p60, %p61
    %s63 = ssub.s32 %s8, %s15
    %p64 = scmp.eq.s32.totalorder %s63, 0
    %s66 = sadd.s32 %s65, 1
    %s67 = scalar_select %p64, %s65, %s66
    %p70 = pneg %p64
    %p71 = scmp.eq.s32.totalorder %s8, 1
    %p72 = por %p70, %p71
    %p73 = scmp.ne.s32.totalorder %s65, %s68
    %p74 = scmp.eq.s32.totalorder %s8, 0
    %p75 = por %p73, %p74
    %p76 = scmp.ne.s32.totalorder %s65, %s68
    %p77 = scmp.eq.s32.totalorder %s13, 1
    %p78 = por %p76, %p77
    %p79 = scmp.ne.s32.totalorder %s68, %s69
    %p80 = scmp.eq.s32.totalorder %s13, 0
    %p81 = por %p79, %p80
    %p82 = scmp.ne.s32.totalorder %s68, %s69
    %p83 = scmp.eq.s32.totalorder %s14, 1
    %p84 = por %p82, %p83
    %p86 = scmp.ne.s32.totalorder %s69, %s85
    %p87 = scmp.eq.s32.totalorder %s14, 0
    %p88 = por %p86, %p87
    %p89 = scmp.le.s32.totalorder 1, %s8
    %p90 = scmp.lt.s32.totalorder %s8, 3
    %p91 = pnand %p89, %p90
    %p92 = pneg %p91
    // Predicated region
    $region9: #{_lambda_.29} parent=5 // pred_check
      _
    $region10: #{_lambda_.29} parent=5 // pred_check_branch
      %94 = sbr.rel (%p91) target = $region12
    $region11: #{_lambda_.29} parent=5 // pred_region
      %s95 = ssub.s32 %s8, 1
      // Predicated region
      $region13: #{_lambda_.29} parent=11 // pred_check
        %p96 = pneg %p29
      $region14: #{_lambda_.29} parent=11 // pred_check_branch
        %98 = sbr.rel (%p96) target = $region16
      $region15: #{_lambda_.29} parent=11 // pred_region
        _
      $region16: #{_lambda_.29} parent=11 // pred_fallthru
        _
    $region12: #{_lambda_.29} parent=5 // pred_fallthru
      _
    %p99 = scmp.lt.s32.totalorder %s8, 2
    // Predicated region
    $region17: #{_lambda_.29} parent=5 // pred_check
      %p100 = pneg %p99
    $region18: #{_lambda_.29} parent=5 // pred_check_branch
      %102 = sbr.rel (%p100) target = $region20
    $region19: #{_lambda_.29} parent=5 // pred_region
      // Predicated region
      $region21: #{_lambda_.29} parent=19 // pred_check
        %p103 = pneg %p49
      $region22: #{_lambda_.29} parent=19 // pred_check_branch
        %105 = sbr.rel (%p103) target = $region24
      $region23: #{_lambda_.29} parent=19 // pred_region
        %p106 = scmp.lt.s32.totalorder %s8, 1
        %s107 = scalar_select %p106, %s8, 1
        %s108 = smul.addr %s107, 112
        %s109 = smul.addr %s108, 4
        %s110 = scalar_lea.vmem %s1, %s109
      $region24: #{_lambda_.29} parent=19 // pred_fallthru
        _
    $region20: #{_lambda_.29} parent=5 // pred_fallthru
      _
    %p111 = scmp.le.s32.totalorder 1, %s8
    %p112 = scmp.lt.s32.totalorder %s8, 3
    %p113 = pnand %p111, %p112
    %p114 = pneg %p113
    // Predicated region
    $region25: #{_lambda_.29} parent=5 // pred_check
      _
    $region26: #{_lambda_.29} parent=5 // pred_check_branch
      %116 = sbr.rel (%p113) target = $region28
    $region27: #{_lambda_.29} parent=5 // pred_region
      %s117 = ssub.s32 %s8, 1
      %p118 = pneg %p29
      %p119 = pneg %p26
      %p120 = scmp.lt.s32.totalorder %s13, 1
      %s121 = scalar_select %p120, %s13, 1
      %s122 = smul.addr %s121, 112
      %s123 = smul.addr %s122, 4
      %s124 = scalar_lea.vmem %s1, %s123
      %p125 = pneg %p55
      %p126 = pneg %p52
      %p127 = pneg %p81
      %p128 = pneg %p78
      %p129 = scmp.lt.s32.totalorder %s13, 1
      %s130 = scalar_select %p129, %s13, 1
      %s131 = smul.addr %s130, 4
      %s132 = smul.addr %s131, 8
      %s133 = scalar_lea.vmem %s2, %s132
      %p134 = scmp.lt.s32.totalorder %s13, 1
      %s135 = scalar_select %p134, %s13, 1
      %s136 = smul.addr %s135, 112
      %s137 = smul.addr %s136, 4
      %s138 = scalar_lea.vmem %s1, %s137
      %p139 = scmp.lt.s32.totalorder %s13, 1
      %s140 = scalar_select %p139, %s13, 1
      %s141 = smul.addr %s140, 4
      %s142 = smul.addr %s141, 8
      %s143 = scalar_lea.vmem %s2, %s142
      %v145 = vld [vmem:[%s0] sm:$0xff]
      %v146 = vld [vmem:[%s138] sm:$0xff]
      %v147 = vld [vmem:[%s138 + $0x8] sm:$0xff]
      %v148 = vld [vmem:[%s138 + $0x10] sm:$0xff]
      %v149 = vld [vmem:[%s138 + $0x18] sm:$0xff]
      %v150 = vld [vmem:[%s138 + $0x20] sm:$0xff]
      %v151 = vld [vmem:[%s138 + $0x28] sm:$0xff]
      %v152 = vld [vmem:[%s138 + $0x30] sm:$0xff]
      %v153 = vld [vmem:[%s138 + $0x38] sm:$0xff]
      %v154 = vld [vmem:[%s138 + $0x40] sm:$0xff]
      %v155 = vld [vmem:[%s138 + $0x48] sm:$0xff]
      %v156 = vld [vmem:[%s138 + $0x50] sm:$0xff]
      %v157 = vld [vmem:[%s138 + $0x58] sm:$0xff]
      %v158 = vld [vmem:[%s138 + $0x60] sm:$0xff]
      %v159 = vld [vmem:[%s138 + $0x68] sm:$0xff]
      %v160 = vld [vmem:[%s138 + $0x70] sm:$0xff]
      %v161 = vld [vmem:[%s138 + $0x78] sm:$0xff]
      %v162 = vld [vmem:[%s138 + $0x80] sm:$0xff]
      %v163 = vld [vmem:[%s138 + $0x88] sm:$0xff]
      %v164 = vld [vmem:[%s138 + $0x90] sm:$0xff]
      %v165 = vld [vmem:[%s138 + $0x98] sm:$0xff]
      %v166 = vld [vmem:[%s138 + $0xa0] sm:$0xff]
      %v167 = vld [vmem:[%s138 + $0xa8] sm:$0xff]
      %v168 = vld [vmem:[%s138 + $0xb0] sm:$0xff]
      %v169 = vld [vmem:[%s138 + $0xb8] sm:$0xff]
      %v170 = vld [vmem:[%s138 + $0xc0] sm:$0xff]
      %v171 = vld [vmem:[%s138 + $0xc8] sm:$0xff]
      %v172 = vld [vmem:[%s138 + $0xd0] sm:$0xff]
      %v173 = vld [vmem:[%s138 + $0xd8] sm:$0xff]
      %v174 = vld [vmem:[%s138 + $0xe0] sm:$0xff]
      %v175 = vld [vmem:[%s138 + $0xe8] sm:$0xff]
      %v176 = vld [vmem:[%s138 + $0xf0] sm:$0xff]
      %v177 = vld [vmem:[%s138 + $0xf8] sm:$0xff]
      %v178 = vld [vmem:[%s138 + $0x100] sm:$0xff]
      %v179 = vld [vmem:[%s138 + $0x108] sm:$0xff]
      %v180 = vld [vmem:[%s138 + $0x110] sm:$0xff]
      %v181 = vld [vmem:[%s138 + $0x118] sm:$0xff]
      %v182 = vld [vmem:[%s138 + $0x120] sm:$0xff]
      %v183 = vld [vmem:[%s138 + $0x128] sm:$0xff]
      %v184 = vld [vmem:[%s138 + $0x130] sm:$0xff]
      %v185 = vld [vmem:[%s138 + $0x138] sm:$0xff]
      %v186 = vld [vmem:[%s138 + $0x140] sm:$0xff]
      %v187 = vld [vmem:[%s138 + $0x148] sm:$0xff]
      %v188 = vld [vmem:[%s138 + $0x150] sm:$0xff]
      %v189 = vld [vmem:[%s138 + $0x158] sm:$0xff]
      %v190 = vld [vmem:[%s138 + $0x160] sm:$0xff]
      %v191 = vld [vmem:[%s138 + $0x168] sm:$0xff]
      %v192 = vld [vmem:[%s138 + $0x170] sm:$0xff]
      %v193 = vld [vmem:[%s138 + $0x178] sm:$0xff]
      %v194 = vld [vmem:[%s138 + $0x180] sm:$0xff]
      %v195 = vld [vmem:[%s138 + $0x188] sm:$0xff]
      %v196 = vld [vmem:[%s138 + $0x190] sm:$0xff]
      %v197 = vld [vmem:[%s138 + $0x198] sm:$0xff]
      %v198 = vld [vmem:[%s138 + $0x1a0] sm:$0xff]
      %v199 = vld [vmem:[%s138 + $0x1a8] sm:$0xff]
      %v200 = vld [vmem:[%s138 + $0x1b0] sm:$0xff]
      %v201 = vld [vmem:[%s138 + $0x1b8] sm:$0xff]
      %v203 = vunpack.c.l.b16 %v145
      %v204 = vunpack.c.h.b16 %v145
      %v205 = vpack.c.b16 %v203, %v203
      %v206 = vpack.c.b16 %v204, %v204
      %v264 = vunpack.c.l.b16 %v146
      %v265 = vunpack.c.h.b16 %v146
      %v266 = vunpack.c.l.b16 %v147
      %v267 = vunpack.c.h.b16 %v147
      %v268 = vunpack.c.l.b16 %v148
      %v269 = vunpack.c.h.b16 %v148
      %v270 = vunpack.c.l.b16 %v149
      %v271 = vunpack.c.h.b16 %v149
      %v272 = vunpack.c.l.b16 %v150
      %v273 = vunpack.c.h.b16 %v150
      %v274 = vunpack.c.l.b16 %v151
      %v275 = vunpack.c.h.b16 %v151
      %v276 = vunpack.c.l.b16 %v152
      %v277 = vunpack.c.h.b16 %v152
      %v278 = vunpack.c.l.b16 %v153
      %v279 = vunpack.c.h.b16 %v153
      %v280 = vunpack.c.l.b16 %v154
      %v281 = vunpack.c.h.b16 %v154
      %v282 = vunpack.c.l.b16 %v155
      %v283 = vunpack.c.h.b16 %v155
      %v284 = vunpack.c.l.b16 %v156
      %v285 = vunpack.c.h.b16 %v156
      %v286 = vunpack.c.l.b16 %v157
      %v287 = vunpack.c.h.b16 %v157
      %v288 = vunpack.c.l.b16 %v158
      %v289 = vunpack.c.h.b16 %v158
      %v290 = vunpack.c.l.b16 %v159
      %v291 = vunpack.c.h.b16 %v159
      %v292 = vunpack.c.l.b16 %v160
      %v293 = vunpack.c.h.b16 %v160
      %v294 = vunpack.c.l.b16 %v161
      %v295 = vunpack.c.h.b16 %v161
      %v296 = vunpack.c.l.b16 %v162
      %v297 = vunpack.c.h.b16 %v162
      %v298 = vunpack.c.l.b16 %v163
      %v299 = vunpack.c.h.b16 %v163
      %v300 = vunpack.c.l.b16 %v164
      %v301 = vunpack.c.h.b16 %v164
      %v302 = vunpack.c.l.b16 %v165
      %v303 = vunpack.c.h.b16 %v165
      %v304 = vunpack.c.l.b16 %v166
      %v305 = vunpack.c.h.b16 %v166
      %v306 = vunpack.c.l.b16 %v167
      %v307 = vunpack.c.h.b16 %v167
      %v308 = vunpack.c.l.b16 %v168
      %v309 = vunpack.c.h.b16 %v168
      %v310 = vunpack.c.l.b16 %v169
      %v311 = vunpack.c.h.b16 %v169
      %v312 = vunpack.c.l.b16 %v170
      %v313 = vunpack.c.h.b16 %v170
      %v314 = vunpack.c.l.b16 %v171
      %v315 = vunpack.c.h.b16 %v171
      %v316 = vunpack.c.l.b16 %v172
      %v317 = vunpack.c.h.b16 %v172
      %v318 = vunpack.c.l.b16 %v173
      %v319 = vunpack.c.h.b16 %v173
      %v320 = vunpack.c.l.b16 %v174
      %v321 = vunpack.c.h.b16 %v174
      %v322 = vunpack.c.l.b16 %v175
      %v323 = vunpack.c.h.b16 %v175
      %v324 = vunpack.c.l.b16 %v176
      %v325 = vunpack.c.h.b16 %v176
      %v326 = vunpack.c.l.b16 %v177
      %v327 = vunpack.c.h.b16 %v177
      %v328 = vunpack.c.l.b16 %v178
      %v329 = vunpack.c.h.b16 %v178
      %v330 = vunpack.c.l.b16 %v179
      %v331 = vunpack.c.h.b16 %v179
      %v332 = vunpack.c.l.b16 %v180
      %v333 = vunpack.c.h.b16 %v180
      %v334 = vunpack.c.l.b16 %v181
      %v335 = vunpack.c.h.b16 %v181
      %v336 = vunpack.c.l.b16 %v182
      %v337 = vunpack.c.h.b16 %v182
      %v338 = vunpack.c.l.b16 %v183
      %v339 = vunpack.c.h.b16 %v183
      %v340 = vunpack.c.l.b16 %v184
      %v341 = vunpack.c.h.b16 %v184
      %v342 = vunpack.c.l.b16 %v185
      %v343 = vunpack.c.h.b16 %v185
      %v344 = vunpack.c.l.b16 %v186
      %v345 = vunpack.c.h.b16 %v186
      %v346 = vunpack.c.l.b16 %v187
      %v347 = vunpack.c.h.b16 %v187
      %v348 = vunpack.c.l.b16 %v188
      %v349 = vunpack.c.h.b16 %v188
      %v350 = vunpack.c.l.b16 %v189
      %v351 = vunpack.c.h.b16 %v189
      %v352 = vunpack.c.l.b16 %v190
      %v353 = vunpack.c.h.b16 %v190
      %v354 = vunpack.c.l.b16 %v191
      %v355 = vunpack.c.h.b16 %v191
      %v356 = vunpack.c.l.b16 %v192
      %v357 = vunpack.c.h.b16 %v192
      %v358 = vunpack.c.l.b16 %v193
      %v359 = vunpack.c.h.b16 %v193
      %v360 = vunpack.c.l.b16 %v194
      %v361 = vunpack.c.h.b16 %v194
      %v362 = vunpack.c.l.b16 %v195
      %v363 = vunpack.c.h.b16 %v195
      %v364 = vunpack.c.l.b16 %v196
      %v365 = vunpack.c.h.b16 %v196
      %v366 = vunpack.c.l.b16 %v197
      %v367 = vunpack.c.h.b16 %v197
      %v368 = vunpack.c.l.b16 %v198
      %v369 = vunpack.c.h.b16 %v198
      %v370 = vunpack.c.l.b16 %v199
      %v371 = vunpack.c.h.b16 %v199
      %v372 = vunpack.c.l.b16 %v200
      %v373 = vunpack.c.h.b16 %v200
      %v374 = vunpack.c.l.b16 %v201
      %v375 = vunpack.c.h.b16 %v201
      %v376 = vpack.c.b16 %v268, %v264
      %v377 = vpack.c.b16 %v269, %v265
      %v378 = vpack.c.b16 %v270, %v266
      %v379 = vpack.c.b16 %v271, %v267
      %v380 = vpack.c.b16 %v276, %v272
      %v381 = vpack.c.b16 %v277, %v273
      %v382 = vpack.c.b16 %v278, %v274
      %v383 = vpack.c.b16 %v279, %v275
      %v384 = vpack.c.b16 %v284, %v280
      %v385 = vpack.c.b16 %v285, %v281
      %v386 = vpack.c.b16 %v286, %v282
      %v387 = vpack.c.b16 %v287, %v283
      %v388 = vpack.c.b16 %v292, %v288
      %v389 = vpack.c.b16 %v293, %v289
      %v390 = vpack.c.b16 %v294, %v290
      %v391 = vpack.c.b16 %v295, %v291
      %v392 = vpack.c.b16 %v300, %v296
      %v393 = vpack.c.b16 %v301, %v297
      %v394 = vpack.c.b16 %v302, %v298
      %v395 = vpack.c.b16 %v303, %v299
      %v396 = vpack.c.b16 %v308, %v304
      %v397 = vpack.c.b16 %v309, %v305
      %v398 = vpack.c.b16 %v310, %v306
      %v399 = vpack.c.b16 %v311, %v307
      %v400 = vpack.c.b16 %v316, %v312
      %v401 = vpack.c.b16 %v317, %v313
      %v402 = vpack.c.b16 %v318, %v314
      %v403 = vpack.c.b16 %v319, %v315
      %v404 = vpack.c.b16 %v324, %v320
      %v405 = vpack.c.b16 %v325, %v321
      %v406 = vpack.c.b16 %v326, %v322
      %v407 = vpack.c.b16 %v327, %v323
      %v408 = vpack.c.b16 %v332, %v328
      %v409 = vpack.c.b16 %v333, %v329
      %v410 = vpack.c.b16 %v334, %v330
      %v411 = vpack.c.b16 %v335, %v331
      %v412 = vpack.c.b16 %v340, %v336
      %v413 = vpack.c.b16 %v341, %v337
      %v414 = vpack.c.b16 %v342, %v338
      %v415 = vpack.c.b16 %v343, %v339
      %v416 = vpack.c.b16 %v348, %v344
      %v417 = vpack.c.b16 %v349, %v345
      %v418 = vpack.c.b16 %v350, %v346
      %v419 = vpack.c.b16 %v351, %v347
      %v420 = vpack.c.b16 %v356, %v352
      %v421 = vpack.c.b16 %v357, %v353
      %v422 = vpack.c.b16 %v358, %v354
      %v423 = vpack.c.b16 %v359, %v355
      %v424 = vpack.c.b16 %v364, %v360
      %v425 = vpack.c.b16 %v365, %v361
      %v426 = vpack.c.b16 %v366, %v362
      %v427 = vpack.c.b16 %v367, %v363
      %v428 = vpack.c.b16 %v372, %v368
      %v429 = vpack.c.b16 %v373, %v369
      %v430 = vpack.c.b16 %v374, %v370
      %v431 = vpack.c.b16 %v375, %v371
      %vm488 = vcmask 785408
      %v490 = vsel %vm488, %v206, 0
      %492 = vmatprep.subr.bf16.mxu0 %v405
      %493 = vmatpush1.bf16.msra.mxu0 %v404
      %494 = vmatprep.subr.bf16.mxu0 %v401
      %495 = vmatpush1.bf16.msra.mxu0 %v400
      %496 = vmatprep.subr.bf16.mxu0 %v397
      %497 = vmatpush1.bf16.msra.mxu0 %v396
      %498 = vmatprep.subr.bf16.mxu0 %v393
      %499 = vmatpush1.bf16.msra.mxu0 %v392
      %500 = vmatprep.subr.bf16.mxu0 %v389
      %501 = vmatpush1.bf16.msra.mxu0 %v388
      %502 = vmatprep.subr.bf16.mxu0 %v385
      %503 = vmatpush1.bf16.msra.mxu0 %v384
      %504 = vmatprep.subr.bf16.mxu0 %v381
      %505 = vmatpush1.bf16.msra.mxu0 %v380
      %506 = vmatprep.subr.bf16.mxu0 %v377
      %507 = vmatpush1.bf16.msra.mxu0 %v376
      %508 = vmatprep.subr.bf16.mxu0 0
      %509 = vmatpush2.bf16.msra.mxu0 0
      %510 = vmatprep.subr.bf16.mxu0 0
      %511 = vmatpush2.bf16.msra.mxu0 0
      %512 = vmatprep.subr.bf16.mxu0 %v429
      %513 = vmatpush2.bf16.msra.mxu0 %v428
      %514 = vmatprep.subr.bf16.mxu0 %v425
      %515 = vmatpush2.bf16.msra.mxu0 %v424
      %516 = vmatprep.subr.bf16.mxu0 %v421
      %517 = vmatpush2.bf16.msra.mxu0 %v420
      %518 = vmatprep.subr.bf16.mxu0 %v417
      %519 = vmatpush2.bf16.msra.mxu0 %v416
      %520 = vmatprep.subr.bf16.mxu0 %v413
      %521 = vmatpush2.bf16.msra.mxu0 %v412
      %522 = vmatprep.subr.bf16.mxu0 %v409
      %523 = vmatpush2.bf16.msra.mxu0 %v408
      %524 = vmatprep.mubr.bf16.mxu0 %v490
      %525 = vmatmul.mubr.bf16.gmra.mxu0 %v205
      %v526 = vpop.f32.mrf.mxu0
      %v527 = vadd.f32 0.0, %v526
      %v528 = vpop.f32.mrf.mxu0
      %v529 = vadd.f32 0.0, %v528
      %v530 = vpop.f32.mrf.mxu0
      %v531 = vpop.f32.mrf.mxu0
      %532 = vdwg.mxu0
      %533 = vmatprep.subr.bf16.mxu0 %v407
      %534 = vmatpush1.bf16.msra.mxu0 %v406
      %535 = vmatprep.subr.bf16.mxu0 %v403
      %536 = vmatpush1.bf16.msra.mxu0 %v402
      %537 = vmatprep.subr.bf16.mxu0 %v399
      %538 = vmatpush1.bf16.msra.mxu0 %v398
      %539 = vmatprep.subr.bf16.mxu0 %v395
      %540 = vmatpush1.bf16.msra.mxu0 %v394
      %541 = vmatprep.subr.bf16.mxu0 %v391
      %542 = vmatpush1.bf16.msra.mxu0 %v390
      %543 = vmatprep.subr.bf16.mxu0 %v387
      %544 = vmatpush1.bf16.msra.mxu0 %v386
      %545 = vmatprep.subr.bf16.mxu0 %v383
      %546 = vmatpush1.bf16.msra.mxu0 %v382
      %547 = vmatprep.subr.bf16.mxu0 %v379
      %548 = vmatpush1.bf16.msra.mxu0 %v378
      %549 = vmatprep.subr.bf16.mxu0 0
      %550 = vmatpush2.bf16.msra.mxu0 0
      %551 = vmatprep.subr.bf16.mxu0 0
      %552 = vmatpush2.bf16.msra.mxu0 0
      %553 = vmatprep.subr.bf16.mxu0 %v431
      %554 = vmatpush2.bf16.msra.mxu0 %v430
      %555 = vmatprep.subr.bf16.mxu0 %v427
      %556 = vmatpush2.bf16.msra.mxu0 %v426
      %557 = vmatprep.subr.bf16.mxu0 %v423
      %558 = vmatpush2.bf16.msra.mxu0 %v422
      %559 = vmatprep.subr.bf16.mxu0 %v419
      %560 = vmatpush2.bf16.msra.mxu0 %v418
      %561 = vmatprep.subr.bf16.mxu0 %v415
      %562 = vmatpush2.bf16.msra.mxu0 %v414
      %563 = vmatprep.subr.bf16.mxu0 %v411
      %564 = vmatpush2.bf16.msra.mxu0 %v410
      %565 = vmatprep.mubr.bf16.mxu0 %v490
      %566 = vmatmul.mubr.bf16.gmra.mxu0 %v205
      %v567 = vpop.f32.mrf.mxu0
      %v568 = vadd.f32 0.0, %v567
      %v569 = vpop.f32.mrf.mxu0
      %v570 = vadd.f32 0.0, %v569
      %v571 = vpop.f32.mrf.mxu0
      %v572 = vpop.f32.mrf.mxu0
      %573 = vdwg.mxu0
      %v574 = vadd.f32 %v527, %v529
      %v575 = vadd.f32 %v574, %v568
      %v576 = vadd.f32 %v575, %v570
      %577 = vadd.xlane.f32.xlu0 %v576
      %v578 = vpop.xlane.xlu0 %577
      %v579 = vrcp.pop 512.0
      %v580 = vmul.f32 %v578, %v579
      %v581 = vsub.f32 %v527, %v580
      %v582 = vsub.f32 %v529, %v580
      %v583 = vsub.f32 %v568, %v580
      %v584 = vsub.f32 %v570, %v580
      %v585 = vmul.f32 %v581, %v581
      %v586 = vmul.f32 %v582, %v582
      %v587 = vmul.f32 %v583, %v583
      %v588 = vmul.f32 %v584, %v584
      %v589 = vadd.f32 %v585, %v586
      %v590 = vadd.f32 %v589, %v587
      %v591 = vadd.f32 %v590, %v588
      %592 = vadd.xlane.f32.xlu0 %v591
      %v593 = vpop.xlane.xlu0 %592
      %v594 = vmul.f32 %v593, %v579
      %v595 = vadd.f32 %v594, 1e-05
      %v596 = vrsqrt.pop %v595
      %v597 = vmul.f32 %v581, %v596
      %v598 = vmul.f32 %v582, %v596
      %v599 = vmul.f32 %v583, %v596
      %v600 = vmul.f32 %v584, %v596
      %vm601 = vcmp.ge.f32.partialorder %v597, 0.0
      %vm602 = vcmp.ge.f32.partialorder %v598, 0.0
      %vm603 = vcmp.ge.f32.partialorder %v599, 0.0
      %vm604 = vcmp.ge.f32.partialorder %v600, 0.0
      %v605 = vmul.f32 %v597, 0.01
      %v606 = vmul.f32 %v598, 0.01
      %v607 = vmul.f32 %v599, 0.01
      %v608 = vmul.f32 %v600, 0.01
      %v609 = vsel %vm601, %v597, %v605
      %v610 = vsel %vm602, %v598, %v606
      %v611 = vsel %vm603, %v599, %v607
      %v612 = vsel %vm604, %v600, %v608
      %613 = vst [vmem:[%s143] sm:$0xff] %v609
      %614 = vst [vmem:[%s143 + $0x8] sm:$0xff] %v610
      %615 = vst [vmem:[%s143 + $0x10] sm:$0xff] %v611
      %616 = vst [vmem:[%s143 + $0x18] sm:$0xff] %v612
      %p617 = scmp.lt.s32.totalorder %s13, 1
      %s618 = scalar_select %p617, %s13, 1
      %s619 = smul.addr %s618, 4
      %s620 = smul.addr %s619, 8
      %s621 = scalar_lea.vmem %s2, %s620
      // Predicated region
      $region29: #{_lambda_.29} parent=27 // pred_check
        %p622 = pneg %p78
      $region30: #{_lambda_.29} parent=27 // pred_check_branch
        %624 = sbr.rel (%p622) target = $region32
      $region31: #{_lambda_.29} parent=27 // pred_region
        _
      $region32: #{_lambda_.29} parent=27 // pred_fallthru
        _
    $region28: #{_lambda_.29} parent=5 // pred_fallthru
      _
    %p625 = scmp.le.s32.totalorder 2, %s8
    // Predicated region
    $region33: #{_lambda_.29} parent=5 // pred_check
      %p626 = pneg %p625
    $region34: #{_lambda_.29} parent=5 // pred_check_branch
      %628 = sbr.rel (%p626) target = $region36
    $region35: #{_lambda_.29} parent=5 // pred_region
      %s629 = ssub.s32 %s8, 2
      // Predicated region
      $region37: #{_lambda_.29} parent=35 // pred_check
        %p630 = pneg %p84
      $region38: #{_lambda_.29} parent=35 // pred_check_branch
        %632 = sbr.rel (%p630) target = $region40
      $region39: #{_lambda_.29} parent=35 // pred_region
        %p633 = scmp.lt.s32.totalorder %s14, 1
        %s634 = scalar_select %p633, %s14, 1
        %s635 = smul.addr %s634, 4
        %s636 = smul.addr %s635, 8
        %s637 = scalar_lea.vmem %s2, %s636
      $region40: #{_lambda_.29} parent=35 // pred_fallthru
        _
    $region36: #{_lambda_.29} parent=5 // pred_fallthru
      _
  $region6: #{_lambda_.29} parent=0 // loop_footer
    %s12 = sadd.s32 1, %s8
  $region7: #{_lambda_.29} parent=0 // loop_footer_branch
    %7 = sbr.rel target = $region3
  $region8: #{_lambda_.29} parent=0 // loop_exit
    _

// kernel: _lambda_.31
$region0: #{_lambda_.31}
  #allocation0 [shape = 'u32[]', space=smem, size = 0x4, offset = 0x4, fixed_abs, tag = 'smem constant byte address 0x4 - core index']
  #allocation1 [shape = 'u32[144,128]{1,0:T(1,128)}', space=vmem, size = 0x12000, scoped, tag = 'internal scratch']
  %s0 = inlined_call_operand.vmem [shape: bf16[16,224], index: 0, kind: input, shape index: {}]
  %s1 = inlined_call_operand.vmem [shape: bf16[2,224,64], index: 1, kind: input, shape index: {}]
  %s2 = inlined_call_operand.vmem [shape: f32[2,16,64], index: 2, kind: output, shape index: {}]
  %s3 = sld [smem:[#allocation0]]
  $region41: #{_lambda_.31} parent=0
    _
  %s5 = ssub.s32 1, %s3
  %s6 = scalar_select 0, %s5, %s3
  loop: start=0, step=1, limit=4
  $region2: #{_lambda_.31} parent=0 // loop_pre_header
    _
  $region3: #{_lambda_.31} parent=0 // loop_header
    %s8 = sphi 0, %s12
    %p9 = scmp.ge.s32.totalorder %s8, 4
    %s16 = sphi 0, %s16
    %s18 = sphi 0, %s16
    %s19 = sphi 0, %s18
    %s33 = sphi 0, %s19
    %s39 = sphi 0, %s41
    %s42 = sphi 0, %s39
    %s43 = sphi 0, %s42
    %s59 = sphi 0, %s43
    %s65 = sphi 0, %s67
    %s68 = sphi 0, %s65
    %s69 = sphi 0, %s68
    %s85 = sphi 0, %s69
  $region4: #{_lambda_.31} parent=0 // loop_header_branch
    %11 = sbr.rel (%p9) target = $region8
  $region5: #{_lambda_.31} parent=0 // loop_body
    %s13 = ssub.s32 %s8, 1
    %s14 = ssub.s32 %s8, 2
    %s15 = sadd.s32 %s8, 1
    %s17 = sadd.s32 %s16, 1
    %p20 = scmp.eq.s32.totalorder %s8, 1
    %p21 = scmp.ne.s32.totalorder %s16, %s18
    %p22 = scmp.eq.s32.totalorder %s8, 0
    %p23 = por %p21, %p22
    %p24 = scmp.ne.s32.totalorder %s16, %s18
    %p25 = scmp.eq.s32.totalorder %s13, 1
    %p26 = por %p24, %p25
    %p27 = scmp.ne.s32.totalorder %s18, %s19
    %p28 = scmp.eq.s32.totalorder %s13, 0
    %p29 = por %p27, %p28
    %p30 = scmp.ne.s32.totalorder %s18, %s19
    %p31 = scmp.eq.s32.totalorder %s14, 1
    %p32 = por %p30, %p31
    %p34 = scmp.ne.s32.totalorder %s19, %s33
    %p35 = scmp.eq.s32.totalorder %s14, 0
    %p36 = por %p34, %p35
    %s37 = ssub.s32 %s8, %s15
    %p38 = scmp.eq.s32.totalorder %s37, 0
    %s40 = sadd.s32 %s39, 1
    %s41 = scalar_select %p38, %s39, %s40
    %p44 = pneg %p38
    %p45 = scmp.eq.s32.totalorder %s8, 1
    %p46 = por %p44, %p45
    %p47 = scmp.ne.s32.totalorder %s39, %s42
    %p48 = scmp.eq.s32.totalorder %s8, 0
    %p49 = por %p47, %p48
    %p50 = scmp.ne.s32.totalorder %s39, %s42
    %p51 = scmp.eq.s32.totalorder %s13, 1
    %p52 = por %p50, %p51
    %p53 = scmp.ne.s32.totalorder %s42, %s43
    %p54 = scmp.eq.s32.totalorder %s13, 0
    %p55 = por %p53, %p54
    %p56 = scmp.ne.s32.totalorder %s42, %s43
    %p57 = scmp.eq.s32.totalorder %s14, 1
    %p58 = por %p56, %p57
    %p60 = scmp.ne.s32.totalorder %s43, %s59
    %p61 = scmp.eq.s32.totalorder %s14, 0
    %p62 = por %p60, %p61
    %s63 = ssub.s32 %s8, %s15
    %p64 = scmp.eq.s32.totalorder %s63, 0
    %s66 = sadd.s32 %s65, 1
    %s67 = scalar_select %p64, %s65, %s66
    %p70 = pneg %p64
    %p71 = scmp.eq.s32.totalorder %s8, 1
    %p72 = por %p70, %p71
    %p73 = scmp.ne.s32.totalorder %s65, %s68
    %p74 = scmp.eq.s32.totalorder %s8, 0
    %p75 = por %p73, %p74
    %p76 = scmp.ne.s32.totalorder %s65, %s68
    %p77 = scmp.eq.s32.totalorder %s13, 1
    %p78 = por %p76, %p77
    %p79 = scmp.ne.s32.totalorder %s68, %s69
    %p80 = scmp.eq.s32.totalorder %s13, 0
    %p81 = por %p79, %p80
    %p82 = scmp.ne.s32.totalorder %s68, %s69
    %p83 = scmp.eq.s32.totalorder %s14, 1
    %p84 = por %p82, %p83
    %p86 = scmp.ne.s32.totalorder %s69, %s85
    %p87 = scmp.eq.s32.totalorder %s14, 0
    %p88 = por %p86, %p87
    %p89 = scmp.le.s32.totalorder 1, %s8
    %p90 = scmp.lt.s32.totalorder %s8, 3
    %p91 = pnand %p89, %p90
    %p92 = pneg %p91
    // Predicated region
    $region9: #{_lambda_.31} parent=5 // pred_check
      _
    $region10: #{_lambda_.31} parent=5 // pred_check_branch
      %94 = sbr.rel (%p91) target = $region12
    $region11: #{_lambda_.31} parent=5 // pred_region
      %s95 = ssub.s32 %s8, 1
      // Predicated region
      $region13: #{_lambda_.31} parent=11 // pred_check
        %p96 = pneg %p29
      $region14: #{_lambda_.31} parent=11 // pred_check_branch
        %98 = sbr.rel (%p96) target = $region16
      $region15: #{_lambda_.31} parent=11 // pred_region
        _
      $region16: #{_lambda_.31} parent=11 // pred_fallthru
        _
    $region12: #{_lambda_.31} parent=5 // pred_fallthru
      _
    %p99 = scmp.lt.s32.totalorder %s8, 2
    // Predicated region
    $region17: #{_lambda_.31} parent=5 // pred_check
      %p100 = pneg %p99
    $region18: #{_lambda_.31} parent=5 // pred_check_branch
      %102 = sbr.rel (%p100) target = $region20
    $region19: #{_lambda_.31} parent=5 // pred_region
      // Predicated region
      $region21: #{_lambda_.31} parent=19 // pred_check
        %p103 = pneg %p49
      $region22: #{_lambda_.31} parent=19 // pred_check_branch
        %105 = sbr.rel (%p103) target = $region24
      $region23: #{_lambda_.31} parent=19 // pred_region
        %p106 = scmp.lt.s32.totalorder %s8, 1
        %s107 = scalar_select %p106, %s8, 1
        %s108 = smul.addr %s107, 28
        %s109 = smul.addr %s108, 4
        %s110 = scalar_lea.vmem %s1, %s109
      $region24: #{_lambda_.31} parent=19 // pred_fallthru
        _
    $region20: #{_lambda_.31} parent=5 // pred_fallthru
      _
    %p111 = scmp.le.s32.totalorder 1, %s8
    %p112 = scmp.lt.s32.totalorder %s8, 3
    %p113 = pnand %p111, %p112
    %p114 = pneg %p113
    // Predicated region
    $region25: #{_lambda_.31} parent=5 // pred_check
      _
    $region26: #{_lambda_.31} parent=5 // pred_check_branch
      %116 = sbr.rel (%p113) target = $region28
    $region27: #{_lambda_.31} parent=5 // pred_region
      %s117 = ssub.s32 %s8, 1
      %p118 = pneg %p29
      %p119 = pneg %p26
      %p120 = scmp.lt.s32.totalorder %s13, 1
      %s121 = scalar_select %p120, %s13, 1
      %s122 = smul.addr %s121, 28
      %s123 = smul.addr %s122, 4
      %s124 = scalar_lea.vmem %s1, %s123
      %p125 = pneg %p55
      %p126 = pneg %p52
      %p127 = pneg %p81
      %p128 = pneg %p78
      %p129 = scmp.lt.s32.totalorder %s13, 1
      %s130 = scalar_select %p129, %s13, 1
      %s131 = smul.addr %s130, 2
      %s132 = smul.addr %s131, 8
      %s133 = scalar_lea.vmem %s2, %s132
      %p134 = scmp.lt.s32.totalorder %s13, 1
      %s135 = scalar_select %p134, %s13, 1
      %s136 = smul.addr %s135, 28
      %s137 = smul.addr %s136, 4
      %s138 = scalar_lea.vmem %s1, %s137
      %p139 = scmp.lt.s32.totalorder %s13, 1
      %s140 = scalar_select %p139, %s13, 1
      %s141 = smul.addr %s140, 2
      %s142 = smul.addr %s141, 8
      %s143 = scalar_lea.vmem %s2, %s142
      %v145 = vld [vmem:[%s0] sm:$0xff]
      %v146 = vld [vmem:[%s0 + $0x8] sm:$0xff]
      %v147 = vld [vmem:[%s138] sm:$0xf]
      %v148 = vld [vmem:[%s138 + $0x4] sm:$0xf]
      %v149 = vld [vmem:[%s138 + $0x8] sm:$0xf]
      %v150 = vld [vmem:[%s138 + $0xc] sm:$0xf]
      %v151 = vld [vmem:[%s138 + $0x10] sm:$0xf]
      %v152 = vld [vmem:[%s138 + $0x14] sm:$0xf]
      %v153 = vld [vmem:[%s138 + $0x18] sm:$0xf]
      %v154 = vld [vmem:[%s138 + $0x1c] sm:$0xf]
      %v155 = vld [vmem:[%s138 + $0x20] sm:$0xf]
      %v156 = vld [vmem:[%s138 + $0x24] sm:$0xf]
      %v157 = vld [vmem:[%s138 + $0x28] sm:$0xf]
      %v158 = vld [vmem:[%s138 + $0x2c] sm:$0xf]
      %v159 = vld [vmem:[%s138 + $0x30] sm:$0xf]
      %v160 = vld [vmem:[%s138 + $0x34] sm:$0xf]
      %v161 = vld [vmem:[%s138 + $0x38] sm:$0xf]
      %v162 = vld [vmem:[%s138 + $0x3c] sm:$0xf]
      %v163 = vld [vmem:[%s138 + $0x40] sm:$0xf]
      %v164 = vld [vmem:[%s138 + $0x44] sm:$0xf]
      %v165 = vld [vmem:[%s138 + $0x48] sm:$0xf]
      %v166 = vld [vmem:[%s138 + $0x4c] sm:$0xf]
      %v167 = vld [vmem:[%s138 + $0x50] sm:$0xf]
      %v168 = vld [vmem:[%s138 + $0x54] sm:$0xf]
      %v169 = vld [vmem:[%s138 + $0x58] sm:$0xf]
      %v170 = vld [vmem:[%s138 + $0x5c] sm:$0xf]
      %v171 = vld [vmem:[%s138 + $0x60] sm:$0xf]
      %v172 = vld [vmem:[%s138 + $0x64] sm:$0xf]
      %v173 = vld [vmem:[%s138 + $0x68] sm:$0xf]
      %v174 = vld [vmem:[%s138 + $0x6c] sm:$0xf]
      %v177 = vunpack.c.l.b16 %v145
      %v178 = vunpack.c.h.b16 %v145
      %v179 = vunpack.c.l.b16 %v146
      %v180 = vunpack.c.h.b16 %v146
      %v181 = vpack.c.b16 %v179, %v177
      %v182 = vpack.c.b16 %v180, %v178
      %v212 = vunpack.c.l.b16 %v147
      %v213 = vunpack.c.l.b16 %v148
      %v214 = vunpack.c.l.b16 %v149
      %v215 = vunpack.c.l.b16 %v150
      %v216 = vunpack.c.l.b16 %v151
      %v217 = vunpack.c.l.b16 %v152
      %v218 = vunpack.c.l.b16 %v153
      %v219 = vunpack.c.l.b16 %v154
      %v220 = vunpack.c.l.b16 %v155
      %v221 = vunpack.c.l.b16 %v156
      %v222 = vunpack.c.l.b16 %v157
      %v223 = vunpack.c.l.b16 %v158
      %v224 = vunpack.c.l.b16 %v159
      %v225 = vunpack.c.l.b16 %v160
      %v226 = vunpack.c.l.b16 %v161
      %v227 = vunpack.c.l.b16 %v162
      %v228 = vunpack.c.l.b16 %v163
      %v229 = vunpack.c.l.b16 %v164
      %v230 = vunpack.c.l.b16 %v165
      %v231 = vunpack.c.l.b16 %v166
      %v232 = vunpack.c.l.b16 %v167
      %v233 = vunpack.c.l.b16 %v168
      %v234 = vunpack.c.l.b16 %v169
      %v235 = vunpack.c.l.b16 %v170
      %v236 = vunpack.c.l.b16 %v171
      %v237 = vunpack.c.l.b16 %v172
      %v238 = vunpack.c.l.b16 %v173
      %v239 = vunpack.c.l.b16 %v174
      %v240 = vpack.c.b16 %v213, %v212
      %v241 = vpack.c.b16 %v215, %v214
      %v242 = vpack.c.b16 %v217, %v216
      %v243 = vpack.c.b16 %v219, %v218
      %v244 = vpack.c.b16 %v221, %v220
      %v245 = vpack.c.b16 %v223, %v222
      %v246 = vpack.c.b16 %v225, %v224
      %v247 = vpack.c.b16 %v227, %v226
      %v248 = vpack.c.b16 %v229, %v228
      %v249 = vpack.c.b16 %v231, %v230
      %v250 = vpack.c.b16 %v233, %v232
      %v251 = vpack.c.b16 %v235, %v234
      %v252 = vpack.c.b16 %v237, %v236
      %v253 = vpack.c.b16 %v239, %v238
      %vm268 = vcmask 785408
      %v270 = vsel %vm268, %v182, 0
      %272 = vmatprep.subr.bf16.mxu0 0
      %273 = vmatpush1.bf16.msra.mxu0 %v247
      %274 = vmatprep.subr.bf16.mxu0 0
      %275 = vmatpush1.bf16.msra.mxu0 %v246
      %276 = vmatprep.subr.bf16.mxu0 0
      %277 = vmatpush1.bf16.msra.mxu0 %v245
      %278 = vmatprep.subr.bf16.mxu0 0
      %279 = vmatpush1.bf16.msra.mxu0 %v244
      %280 = vmatprep.subr.bf16.mxu0 0
      %281 = vmatpush1.bf16.msra.mxu0 %v243
      %282 = vmatprep.subr.bf16.mxu0 0
      %283 = vmatpush1.bf16.msra.mxu0 %v242
      %284 = vmatprep.subr.bf16.mxu0 0
      %285 = vmatpush1.bf16.msra.mxu0 %v241
      %286 = vmatprep.subr.bf16.mxu0 0
      %287 = vmatpush1.bf16.msra.mxu0 %v240
      %288 = vmatprep.subr.bf16.mxu0 0
      %289 = vmatpush2.bf16.msra.mxu0 0
      %290 = vmatprep.subr.bf16.mxu0 0
      %291 = vmatpush2.bf16.msra.mxu0 0
      %292 = vmatprep.subr.bf16.mxu0 0
      %293 = vmatpush2.bf16.msra.mxu0 %v253
      %294 = vmatprep.subr.bf16.mxu0 0
      %295 = vmatpush2.bf16.msra.mxu0 %v252
      %296 = vmatprep.subr.bf16.mxu0 0
      %297 = vmatpush2.bf16.msra.mxu0 %v251
      %298 = vmatprep.subr.bf16.mxu0 0
      %299 = vmatpush2.bf16.msra.mxu0 %v250
      %300 = vmatprep.subr.bf16.mxu0 0
      %301 = vmatpush2.bf16.msra.mxu0 %v249
      %302 = vmatprep.subr.bf16.mxu0 0
      %303 = vmatpush2.bf16.msra.mxu0 %v248
      %304 = vmatprep.mubr.bf16.mxu0 %v270
      %305 = vmatmul.mubr.bf16.gmra.mxu0 %v181
      %v306 = vpop.f32.mrf.mxu0
      %v307 = vadd.f32 0.0, %v306
      %v308 = vpop.f32.mrf.mxu0
      %v309 = vpop.f32.mrf.mxu0
      %v310 = vadd.f32 0.0, %v309
      %v311 = vpop.f32.mrf.mxu0
      %312 = vdwg.mxu0
      %vm313 = vcmask 523264
      %v314 = vsel %vm313, %v307, 0.0
      %315 = vadd.xlane.f32.xlu0 %v314
      %v316 = vpop.xlane.xlu0 %315
      %v317 = vsel %vm313, %v310, 0.0
      %318 = vadd.xlane.f32.xlu0 %v317
      %v319 = vpop.xlane.xlu0 %318
      %v320 = vrcp.pop 64.0
      %v321 = vmul.f32 %v316, %v320
      %v322 = vmul.f32 %v319, %v320
      %v323 = vsub.f32 %v307, %v321
      %v324 = vsub.f32 %v310, %v322
      %v325 = vmul.f32 %v323, %v323
      %v326 = vmul.f32 %v324, %v324
      %v327 = vsel %vm313, %v325, 0.0
      %328 = vadd.xlane.f32.xlu0 %v327
      %v329 = vpop.xlane.xlu0 %328
      %v330 = vsel %vm313, %v326, 0.0
      %331 = vadd.xlane.f32.xlu0 %v330
      %v332 = vpop.xlane.xlu0 %331
      %v333 = vmul.f32 %v329, %v320
      %v334 = vmul.f32 %v332, %v320
      %v335 = vadd.f32 %v333, 1e-05
      %v336 = vadd.f32 %v334, 1e-05
      %v337 = vrsqrt.pop %v335
      %v338 = vrsqrt.pop %v336
      %v339 = vmul.f32 %v323, %v337
      %v340 = vmul.f32 %v324, %v338
      %vm341 = vcmp.ge.f32.partialorder %v339, 0.0
      %vm342 = vcmp.ge.f32.partialorder %v340, 0.0
      %v343 = vmul.f32 %v339, 0.01
      %v344 = vmul.f32 %v340, 0.01
      %v345 = vsel %vm341, %v339, %v343
      %v346 = vsel %vm342, %v340, %v344
      %347 = vst.msk [vmem:[%s143] sm:$0xff] %vm313, %v345
      %348 = vst.msk [vmem:[%s143 + $0x8] sm:$0xff] %vm313, %v346
      %p349 = scmp.lt.s32.totalorder %s13, 1
      %s350 = scalar_select %p349, %s13, 1
      %s351 = smul.addr %s350, 2
      %s352 = smul.addr %s351, 8
      %s353 = scalar_lea.vmem %s2, %s352
      // Predicated region
      $region29: #{_lambda_.31} parent=27 // pred_check
        %p354 = pneg %p78
      $region30: #{_lambda_.31} parent=27 // pred_check_branch
        %356 = sbr.rel (%p354) target = $region32
      $region31: #{_lambda_.31} parent=27 // pred_region
        _
      $region32: #{_lambda_.31} parent=27 // pred_fallthru
        _
    $region28: #{_lambda_.31} parent=5 // pred_fallthru
      _
    %p357 = scmp.le.s32.totalorder 2, %s8
    // Predicated region
    $region33: #{_lambda_.31} parent=5 // pred_check
      %p358 = pneg %p357
    $region34: #{_lambda_.31} parent=5 // pred_check_branch
      %360 = sbr.rel (%p358) target = $region36
    $region35: #{_lambda_.31} parent=5 // pred_region
      %s361 = ssub.s32 %s8, 2
      // Predicated region
      $region37: #{_lambda_.31} parent=35 // pred_check
        %p362 = pneg %p84
      $region38: #{_lambda_.31} parent=35 // pred_check_branch
        %364 = sbr.rel (%p362) target = $region40
      $region39: #{_lambda_.31} parent=35 // pred_region
        %p365 = scmp.lt.s32.totalorder %s14, 1
        %s366 = scalar_select %p365, %s14, 1
        %s367 = smul.addr %s366, 2
        %s368 = smul.addr %s367, 8
        %s369 = scalar_lea.vmem %s2, %s368
      $region40: #{_lambda_.31} parent=35 // pred_fallthru
        _
    $region36: #{_lambda_.31} parent=5 // pred_fallthru
      _
  $region6: #{_lambda_.31} parent=0 // loop_footer
    %s12 = sadd.s32 1, %s8
  $region7: #{_lambda_.31} parent=0 // loop_footer_branch
    %7 = sbr.rel target = $region3
  $region8: #{_lambda_.31} parent=0 // loop_exit
    _

// kernel: _lambda_.32
$region0: #{_lambda_.32}
  #allocation0 [shape = 'u32[]', space=smem, size = 0x4, offset = 0x4, fixed_abs, tag = 'smem constant byte address 0x4 - core index']
  #allocation1 [shape = 'u32[144,128]{1,0:T(1,128)}', space=vmem, size = 0x12000, scoped, tag = 'internal scratch']
  %s0 = inlined_call_operand.vmem [shape: bf16[16,432], index: 0, kind: input, shape index: {}]
  %s1 = inlined_call_operand.vmem [shape: bf16[2,432,64], index: 1, kind: input, shape index: {}]
  %s2 = inlined_call_operand.vmem [shape: f32[2,16,64], index: 2, kind: output, shape index: {}]
  %s3 = sld [smem:[#allocation0]]
  $region41: #{_lambda_.32} parent=0
    _
  %s5 = ssub.s32 1, %s3
  %s6 = scalar_select 0, %s5, %s3
  loop: start=0, step=1, limit=4
  $region2: #{_lambda_.32} parent=0 // loop_pre_header
    _
  $region3: #{_lambda_.32} parent=0 // loop_header
    %s8 = sphi 0, %s12
    %p9 = scmp.ge.s32.totalorder %s8, 4
    %s16 = sphi 0, %s16
    %s18 = sphi 0, %s16
    %s19 = sphi 0, %s18
    %s33 = sphi 0, %s19
    %s39 = sphi 0, %s41
    %s42 = sphi 0, %s39
    %s43 = sphi 0, %s42
    %s59 = sphi 0, %s43
    %s65 = sphi 0, %s67
    %s68 = sphi 0, %s65
    %s69 = sphi 0, %s68
    %s85 = sphi 0, %s69
  $region4: #{_lambda_.32} parent=0 // loop_header_branch
    %11 = sbr.rel (%p9) target = $region8
  $region5: #{_lambda_.32} parent=0 // loop_body
    %s13 = ssub.s32 %s8, 1
    %s14 = ssub.s32 %s8, 2
    %s15 = sadd.s32 %s8, 1
    %s17 = sadd.s32 %s16, 1
    %p20 = scmp.eq.s32.totalorder %s8, 1
    %p21 = scmp.ne.s32.totalorder %s16, %s18
    %p22 = scmp.eq.s32.totalorder %s8, 0
    %p23 = por %p21, %p22
    %p24 = scmp.ne.s32.totalorder %s16, %s18
    %p25 = scmp.eq.s32.totalorder %s13, 1
    %p26 = por %p24, %p25
    %p27 = scmp.ne.s32.totalorder %s18, %s19
    %p28 = scmp.eq.s32.totalorder %s13, 0
    %p29 = por %p27, %p28
    %p30 = scmp.ne.s32.totalorder %s18, %s19
    %p31 = scmp.eq.s32.totalorder %s14, 1
    %p32 = por %p30, %p31
    %p34 = scmp.ne.s32.totalorder %s19, %s33
    %p35 = scmp.eq.s32.totalorder %s14, 0
    %p36 = por %p34, %p35
    %s37 = ssub.s32 %s8, %s15
    %p38 = scmp.eq.s32.totalorder %s37, 0
    %s40 = sadd.s32 %s39, 1
    %s41 = scalar_select %p38, %s39, %s40
    %p44 = pneg %p38
    %p45 = scmp.eq.s32.totalorder %s8, 1
    %p46 = por %p44, %p45
    %p47 = scmp.ne.s32.totalorder %s39, %s42
    %p48 = scmp.eq.s32.totalorder %s8, 0
    %p49 = por %p47, %p48
    %p50 = scmp.ne.s32.totalorder %s39, %s42
    %p51 = scmp.eq.s32.totalorder %s13, 1
    %p52 = por %p50, %p51
    %p53 = scmp.ne.s32.totalorder %s42, %s43
    %p54 = scmp.eq.s32.totalorder %s13, 0
    %p55 = por %p53, %p54
    %p56 = scmp.ne.s32.totalorder %s42, %s43
    %p57 = scmp.eq.s32.totalorder %s14, 1
    %p58 = por %p56, %p57
    %p60 = scmp.ne.s32.totalorder %s43, %s59
    %p61 = scmp.eq.s32.totalorder %s14, 0
    %p62 = por %p60, %p61
    %s63 = ssub.s32 %s8, %s15
    %p64 = scmp.eq.s32.totalorder %s63, 0
    %s66 = sadd.s32 %s65, 1
    %s67 = scalar_select %p64, %s65, %s66
    %p70 = pneg %p64
    %p71 = scmp.eq.s32.totalorder %s8, 1
    %p72 = por %p70, %p71
    %p73 = scmp.ne.s32.totalorder %s65, %s68
    %p74 = scmp.eq.s32.totalorder %s8, 0
    %p75 = por %p73, %p74
    %p76 = scmp.ne.s32.totalorder %s65, %s68
    %p77 = scmp.eq.s32.totalorder %s13, 1
    %p78 = por %p76, %p77
    %p79 = scmp.ne.s32.totalorder %s68, %s69
    %p80 = scmp.eq.s32.totalorder %s13, 0
    %p81 = por %p79, %p80
    %p82 = scmp.ne.s32.totalorder %s68, %s69
    %p83 = scmp.eq.s32.totalorder %s14, 1
    %p84 = por %p82, %p83
    %p86 = scmp.ne.s32.totalorder %s69, %s85
    %p87 = scmp.eq.s32.totalorder %s14, 0
    %p88 = por %p86, %p87
    %p89 = scmp.le.s32.totalorder 1, %s8
    %p90 = scmp.lt.s32.totalorder %s8, 3
    %p91 = pnand %p89, %p90
    %p92 = pneg %p91
    // Predicated region
    $region9: #{_lambda_.32} parent=5 // pred_check
      _
    $region10: #{_lambda_.32} parent=5 // pred_check_branch
      %94 = sbr.rel (%p91) target = $region12
    $region11: #{_lambda_.32} parent=5 // pred_region
      %s95 = ssub.s32 %s8, 1
      // Predicated region
      $region13: #{_lambda_.32} parent=11 // pred_check
        %p96 = pneg %p29
      $region14: #{_lambda_.32} parent=11 // pred_check_branch
        %98 = sbr.rel (%p96) target = $region16
      $region15: #{_lambda_.32} parent=11 // pred_region
        _
      $region16: #{_lambda_.32} parent=11 // pred_fallthru
        _
    $region12: #{_lambda_.32} parent=5 // pred_fallthru
      _
    %p99 = scmp.lt.s32.totalorder %s8, 2
    // Predicated region
    $region17: #{_lambda_.32} parent=5 // pred_check
      %p100 = pneg %p99
    $region18: #{_lambda_.32} parent=5 // pred_check_branch
      %102 = sbr.rel (%p100) target = $region20
    $region19: #{_lambda_.32} parent=5 // pred_region
      // Predicated region
      $region21: #{_lambda_.32} parent=19 // pred_check
        %p103 = pneg %p49
      $region22: #{_lambda_.32} parent=19 // pred_check_branch
        %105 = sbr.rel (%p103) target = $region24
      $region23: #{_lambda_.32} parent=19 // pred_region
        %p106 = scmp.lt.s32.totalorder %s8, 1
        %s107 = scalar_select %p106, %s8, 1
        %s108 = smul.addr %s107, 54
        %s109 = smul.addr %s108, 4
        %s110 = scalar_lea.vmem %s1, %s109
      $region24: #{_lambda_.32} parent=19 // pred_fallthru
        _
    $region20: #{_lambda_.32} parent=5 // pred_fallthru
      _
    %p111 = scmp.le.s32.totalorder 1, %s8
    %p112 = scmp.lt.s32.totalorder %s8, 3
    %p113 = pnand %p111, %p112
    %p114 = pneg %p113
    // Predicated region
    $region25: #{_lambda_.32} parent=5 // pred_check
      _
    $region26: #{_lambda_.32} parent=5 // pred_check_branch
      %116 = sbr.rel (%p113) target = $region28
    $region27: #{_lambda_.32} parent=5 // pred_region
      %s117 = ssub.s32 %s8, 1
      %p118 = pneg %p29
      %p119 = pneg %p26
      %p120 = scmp.lt.s32.totalorder %s13, 1
      %s121 = scalar_select %p120, %s13, 1
      %s122 = smul.addr %s121, 54
      %s123 = smul.addr %s122, 4
      %s124 = scalar_lea.vmem %s1, %s123
      %p125 = pneg %p55
      %p126 = pneg %p52
      %p127 = pneg %p81
      %p128 = pneg %p78
      %p129 = scmp.lt.s32.totalorder %s13, 1
      %s130 = scalar_select %p129, %s13, 1
      %s131 = smul.addr %s130, 2
      %s132 = smul.addr %s131, 8
      %s133 = scalar_lea.vmem %s2, %s132
      %p134 = scmp.lt.s32.totalorder %s13, 1
      %s135 = scalar_select %p134, %s13, 1
      %s136 = smul.addr %s135, 54
      %s137 = smul.addr %s136, 4
      %s138 = scalar_lea.vmem %s1, %s137
      %p139 = scmp.lt.s32.totalorder %s13, 1
      %s140 = scalar_select %p139, %s13, 1
      %s141 = smul.addr %s140, 2
      %s142 = smul.addr %s141, 8
      %s143 = scalar_lea.vmem %s2, %s142
      %v145 = vld [vmem:[%s0] sm:$0xff]
      %v146 = vld [vmem:[%s0 + $0x8] sm:$0xff]
      %v147 = vld [vmem:[%s0 + $0x10] sm:$0xff]
      %v148 = vld [vmem:[%s0 + $0x18] sm:$0xff]
      %v149 = vld [vmem:[%s138] sm:$0xf]
      %v150 = vld [vmem:[%s138 + $0x4] sm:$0xf]
      %v151 = vld [vmem:[%s138 + $0x8] sm:$0xf]
      %v152 = vld [vmem:[%s138 + $0xc] sm:$0xf]
      %v153 = vld [vmem:[%s138 + $0x10] sm:$0xf]
      %v154 = vld [vmem:[%s138 + $0x14] sm:$0xf]
      %v155 = vld [vmem:[%s138 + $0x18] sm:$0xf]
      %v156 = vld [vmem:[%s138 + $0x1c] sm:$0xf]
      %v157 = vld [vmem:[%s138 + $0x20] sm:$0xf]
      %v158 = vld [vmem:[%s138 + $0x24] sm:$0xf]
      %v159 = vld [vmem:[%s138 + $0x28] sm:$0xf]
      %v160 = vld [vmem:[%s138 + $0x2c] sm:$0xf]
      %v161 = vld [vmem:[%s138 + $0x30] sm:$0xf]
      %v162 = vld [vmem:[%s138 + $0x34] sm:$0xf]
      %v163 = vld [vmem:[%s138 + $0x38] sm:$0xf]
      %v164 = vld [vmem:[%s138 + $0x3c] sm:$0xf]
      %v165 = vld [vmem:[%s138 + $0x40] sm:$0xf]
      %v166 = vld [vmem:[%s138 + $0x44] sm:$0xf]
      %v167 = vld [vmem:[%s138 + $0x48] sm:$0xf]
      %v168 = vld [vmem:[%s138 + $0x4c] sm:$0xf]
      %v169 = vld [vmem:[%s138 + $0x50] sm:$0xf]
      %v170 = vld [vmem:[%s138 + $0x54] sm:$0xf]
      %v171 = vld [vmem:[%s138 + $0x58] sm:$0xf]
      %v172 = vld [vmem:[%s138 + $0x5c] sm:$0xf]
      %v173 = vld [vmem:[%s138 + $0x60] sm:$0xf]
      %v174 = vld [vmem:[%s138 + $0x64] sm:$0xf]
      %v175 = vld [vmem:[%s138 + $0x68] sm:$0xf]
      %v176 = vld [vmem:[%s138 + $0x6c] sm:$0xf]
      %v177 = vld [vmem:[%s138 + $0x70] sm:$0xf]
      %v178 = vld [vmem:[%s138 + $0x74] sm:$0xf]
      %v179 = vld [vmem:[%s138 + $0x78] sm:$0xf]
      %v180 = vld [vmem:[%s138 + $0x7c] sm:$0xf]
      %v181 = vld [vmem:[%s138 + $0x80] sm:$0xf]
      %v182 = vld [vmem:[%s138 + $0x84] sm:$0xf]
      %v183 = vld [vmem:[%s138 + $0x88] sm:$0xf]
      %v184 = vld [vmem:[%s138 + $0x8c] sm:$0xf]
      %v185 = vld [vmem:[%s138 + $0x90] sm:$0xf]
      %v186 = vld [vmem:[%s138 + $0x94] sm:$0xf]
      %v187 = vld [vmem:[%s138 + $0x98] sm:$0xf]
      %v188 = vld [vmem:[%s138 + $0x9c] sm:$0xf]
      %v189 = vld [vmem:[%s138 + $0xa0] sm:$0xf]
      %v190 = vld [vmem:[%s138 + $0xa4] sm:$0xf]
      %v191 = vld [vmem:[%s138 + $0xa8] sm:$0xf]
      %v192 = vld [vmem:[%s138 + $0xac] sm:$0xf]
      %v193 = vld [vmem:[%s138 + $0xb0] sm:$0xf]
      %v194 = vld [vmem:[%s138 + $0xb4] sm:$0xf]
      %v195 = vld [vmem:[%s138 + $0xb8] sm:$0xf]
      %v196 = vld [vmem:[%s138 + $0xbc] sm:$0xf]
      %v197 = vld [vmem:[%s138 + $0xc0] sm:$0xf]
      %v198 = vld [vmem:[%s138 + $0xc4] sm:$0xf]
      %v199 = vld [vmem:[%s138 + $0xc8] sm:$0xf]
      %v200 = vld [vmem:[%s138 + $0xcc] sm:$0xf]
      %v201 = vld [vmem:[%s138 + $0xd0] sm:$0xf]
      %v202 = vld [vmem:[%s138 + $0xd4] sm:$0xf]
      %v207 = vunpack.c.l.b16 %v145
      %v208 = vunpack.c.h.b16 %v145
      %v209 = vunpack.c.l.b16 %v146
      %v210 = vunpack.c.h.b16 %v146
      %v211 = vunpack.c.l.b16 %v147
      %v212 = vunpack.c.h.b16 %v147
      %v213 = vunpack.c.l.b16 %v148
      %v214 = vunpack.c.h.b16 %v148
      %v215 = vpack.c.b16 %v211, %v207
      %v216 = vpack.c.b16 %v212, %v208
      %v217 = vpack.c.b16 %v213, %v209
      %v218 = vpack.c.b16 %v214, %v210
      %v276 = vunpack.c.l.b16 %v149
      %v277 = vunpack.c.l.b16 %v150
      %v278 = vunpack.c.l.b16 %v151
      %v279 = vunpack.c.l.b16 %v152
      %v280 = vunpack.c.l.b16 %v153
      %v281 = vunpack.c.l.b16 %v154
      %v282 = vunpack.c.l.b16 %v155
      %v283 = vunpack.c.l.b16 %v156
      %v284 = vunpack.c.l.b16 %v157
      %v285 = vunpack.c.l.b16 %v158
      %v286 = vunpack.c.l.b16 %v159
      %v287 = vunpack.c.l.b16 %v160
      %v288 = vunpack.c.l.b16 %v161
      %v289 = vunpack.c.l.b16 %v162
      %v290 = vunpack.c.l.b16 %v163
      %v291 = vunpack.c.l.b16 %v164
      %v292 = vunpack.c.l.b16 %v165
      %v293 = vunpack.c.l.b16 %v166
      %v294 = vunpack.c.l.b16 %v167
      %v295 = vunpack.c.l.b16 %v168
      %v296 = vunpack.c.l.b16 %v169
      %v297 = vunpack.c.l.b16 %v170
      %v298 = vunpack.c.l.b16 %v171
      %v299 = vunpack.c.l.b16 %v172
      %v300 = vunpack.c.l.b16 %v173
      %v301 = vunpack.c.l.b16 %v174
      %v302 = vunpack.c.l.b16 %v175
      %v303 = vunpack.c.l.b16 %v176
      %v304 = vunpack.c.l.b16 %v177
      %v305 = vunpack.c.l.b16 %v178
      %v306 = vunpack.c.l.b16 %v179
      %v307 = vunpack.c.l.b16 %v180
      %v308 = vunpack.c.l.b16 %v181
      %v309 = vunpack.c.l.b16 %v182
      %v310 = vunpack.c.l.b16 %v183
      %v311 = vunpack.c.l.b16 %v184
      %v312 = vunpack.c.l.b16 %v185
      %v313 = vunpack.c.l.b16 %v186
      %v314 = vunpack.c.l.b16 %v187
      %v315 = vunpack.c.l.b16 %v188
      %v316 = vunpack.c.l.b16 %v189
      %v317 = vunpack.c.l.b16 %v190
      %v318 = vunpack.c.l.b16 %v191
      %v319 = vunpack.c.l.b16 %v192
      %v320 = vunpack.c.l.b16 %v193
      %v321 = vunpack.c.l.b16 %v194
      %v322 = vunpack.c.l.b16 %v195
      %v323 = vunpack.c.l.b16 %v196
      %v324 = vunpack.c.l.b16 %v197
      %v325 = vunpack.c.l.b16 %v198
      %v326 = vunpack.c.l.b16 %v199
      %v327 = vunpack.c.l.b16 %v200
      %v328 = vunpack.c.l.b16 %v201
      %v329 = vunpack.c.l.b16 %v202
      %v330 = vpack.c.b16 %v277, %v276
      %v331 = vpack.c.b16 %v279, %v278
      %v332 = vpack.c.b16 %v281, %v280
      %v333 = vpack.c.b16 %v283, %v282
      %v334 = vpack.c.b16 %v285, %v284
      %v335 = vpack.c.b16 %v287, %v286
      %v336 = vpack.c.b16 %v289, %v288
      %v337 = vpack.c.b16 %v291, %v290
      %v338 = vpack.c.b16 %v293, %v292
      %v339 = vpack.c.b16 %v295, %v294
      %v340 = vpack.c.b16 %v297, %v296
      %v341 = vpack.c.b16 %v299, %v298
      %v342 = vpack.c.b16 %v301, %v300
      %v343 = vpack.c.b16 %v303, %v302
      %v344 = vpack.c.b16 %v305, %v304
      %v345 = vpack.c.b16 %v307, %v306
      %v346 = vpack.c.b16 %v309, %v308
      %v347 = vpack.c.b16 %v311, %v310
      %v348 = vpack.c.b16 %v313, %v312
      %v349 = vpack.c.b16 %v315, %v314
      %v350 = vpack.c.b16 %v317, %v316
      %v351 = vpack.c.b16 %v319, %v318
      %v352 = vpack.c.b16 %v321, %v320
      %v353 = vpack.c.b16 %v323, %v322
      %v354 = vpack.c.b16 %v325, %v324
      %v355 = vpack.c.b16 %v327, %v326
      %v356 = vpack.c.b16 %v329, %v328
      %vm384 = vcmask 392192
      %v386 = vsel %vm384, %v218, 0
      %388 = vmatprep.subr.bf16.mxu0 0
      %389 = vmatpush1.bf16.msra.mxu0 %v337
      %390 = vmatprep.subr.bf16.mxu0 0
      %391 = vmatpush1.bf16.msra.mxu0 %v336
      %392 = vmatprep.subr.bf16.mxu0 0
      %393 = vmatpush1.bf16.msra.mxu0 %v335
      %394 = vmatprep.subr.bf16.mxu0 0
      %395 = vmatpush1.bf16.msra.mxu0 %v334
      %396 = vmatprep.subr.bf16.mxu0 0
      %397 = vmatpush1.bf16.msra.mxu0 %v333
      %398 = vmatprep.subr.bf16.mxu0 0
      %399 = vmatpush1.bf16.msra.mxu0 %v332
      %400 = vmatprep.subr.bf16.mxu0 0
      %401 = vmatpush1.bf16.msra.mxu0 %v331
      %402 = vmatprep.subr.bf16.mxu0 0
      %403 = vmatpush1.bf16.msra.mxu0 %v330
      %404 = vmatprep.subr.bf16.mxu0 0
      %405 = vmatpush2.bf16.msra.mxu0 %v345
      %406 = vmatprep.subr.bf16.mxu0 0
      %407 = vmatpush2.bf16.msra.mxu0 %v344
      %408 = vmatprep.subr.bf16.mxu0 0
      %409 = vmatpush2.bf16.msra.mxu0 %v343
      %410 = vmatprep.subr.bf16.mxu0 0
      %411 = vmatpush2.bf16.msra.mxu0 %v342
      %412 = vmatprep.subr.bf16.mxu0 0
      %413 = vmatpush2.bf16.msra.mxu0 %v341
      %414 = vmatprep.subr.bf16.mxu0 0
      %415 = vmatpush2.bf16.msra.mxu0 %v340
      %416 = vmatprep.subr.bf16.mxu0 0
      %417 = vmatpush2.bf16.msra.mxu0 %v339
      %418 = vmatprep.subr.bf16.mxu0 0
      %419 = vmatpush2.bf16.msra.mxu0 %v338
      %420 = vmatprep.mubr.bf16.mxu0 %v216
      %421 = vmatmul.mubr.bf16.gmra.mxu0 %v215
      %v422 = vpop.f32.mrf.mxu0
      %v423 = vadd.f32 0.0, %v422
      %v424 = vpop.f32.mrf.mxu0
      %v425 = vpop.f32.mrf.mxu0
      %v426 = vadd.f32 0.0, %v425
      %v427 = vpop.f32.mrf.mxu0
      %428 = vdwg.mxu0
      %429 = vmatprep.subr.bf16.mxu0 0
      %430 = vmatpush1.bf16.msra.mxu0 %v353
      %431 = vmatprep.subr.bf16.mxu0 0
      %432 = vmatpush1.bf16.msra.mxu0 %v352
      %433 = vmatprep.subr.bf16.mxu0 0
      %434 = vmatpush1.bf16.msra.mxu0 %v351
      %435 = vmatprep.subr.bf16.mxu0 0
      %436 = vmatpush1.bf16.msra.mxu0 %v350
      %437 = vmatprep.subr.bf16.mxu0 0
      %438 = vmatpush1.bf16.msra.mxu0 %v349
      %439 = vmatprep.subr.bf16.mxu0 0
      %440 = vmatpush1.bf16.msra.mxu0 %v348
      %441 = vmatprep.subr.bf16.mxu0 0
      %442 = vmatpush1.bf16.msra.mxu0 %v347
      %443 = vmatprep.subr.bf16.mxu0 0
      %444 = vmatpush1.bf16.msra.mxu0 %v346
      %445 = vmatprep.subr.bf16.mxu0 0
      %446 = vmatpush2.bf16.msra.mxu0 0
      %447 = vmatprep.subr.bf16.mxu0 0
      %448 = vmatpush2.bf16.msra.mxu0 0
      %449 = vmatprep.subr.bf16.mxu0 0
      %450 = vmatpush2.bf16.msra.mxu0 0
      %451 = vmatprep.subr.bf16.mxu0 0
      %452 = vmatpush2.bf16.msra.mxu0 0
      %453 = vmatprep.subr.bf16.mxu0 0
      %454 = vmatpush2.bf16.msra.mxu0 0
      %455 = vmatprep.subr.bf16.mxu0 0
      %456 = vmatpush2.bf16.msra.mxu0 %v356
      %457 = vmatprep.subr.bf16.mxu0 0
      %458 = vmatpush2.bf16.msra.mxu0 %v355
      %459 = vmatprep.subr.bf16.mxu0 0
      %460 = vmatpush2.bf16.msra.mxu0 %v354
      %461 = vmatprep.mubr.bf16.mxu0 %v386
      %462 = vmatmul.mubr.bf16.gmra.mxu0 %v217
      %v463 = vpop.f32.mrf.mxu0
      %v464 = vadd.f32 %v423, %v463
      %v465 = vpop.f32.mrf.mxu0
      %v466 = vpop.f32.mrf.mxu0
      %v467 = vadd.f32 %v426, %v466
      %v468 = vpop.f32.mrf.mxu0
      %469 = vdwg.mxu0
      %vm470 = vcmask 523264
      %v471 = vsel %vm470, %v464, 0.0
      %472 = vadd.xlane.f32.xlu0 %v471
      %v473 = vpop.xlane.xlu0 %472
      %v474 = vsel %vm470, %v467, 0.0
      %475 = vadd.xlane.f32.xlu0 %v474
      %v476 = vpop.xlane.xlu0 %475
      %v477 = vrcp.pop 64.0
      %v478 = vmul.f32 %v473, %v477
      %v479 = vmul.f32 %v476, %v477
      %v480 = vsub.f32 %v464, %v478
      %v481 = vsub.f32 %v467, %v479
      %v482 = vmul.f32 %v480, %v480
      %v483 = vmul.f32 %v481, %v481
      %v484 = vsel %vm470, %v482, 0.0
      %485 = vadd.xlane.f32.xlu0 %v484
      %v486 = vpop.xlane.xlu0 %485
      %v487 = vsel %vm470, %v483, 0.0
      %488 = vadd.xlane.f32.xlu0 %v487
      %v489 = vpop.xlane.xlu0 %488
      %v490 = vmul.f32 %v486, %v477
      %v491 = vmul.f32 %v489, %v477
      %v492 = vadd.f32 %v490, 1e-05
      %v493 = vadd.f32 %v491, 1e-05
      %v494 = vrsqrt.pop %v492
      %v495 = vrsqrt.pop %v493
      %v496 = vmul.f32 %v480, %v494
      %v497 = vmul.f32 %v481, %v495
      %vm498 = vcmp.ge.f32.partialorder %v496, 0.0
      %vm499 = vcmp.ge.f32.partialorder %v497, 0.0
      %v500 = vmul.f32 %v496, 0.01
      %v501 = vmul.f32 %v497, 0.01
      %v502 = vsel %vm498, %v496, %v500
      %v503 = vsel %vm499, %v497, %v501
      %504 = vst.msk [vmem:[%s143] sm:$0xff] %vm470, %v502
      %505 = vst.msk [vmem:[%s143 + $0x8] sm:$0xff] %vm470, %v503
      %p506 = scmp.lt.s32.totalorder %s13, 1
      %s507 = scalar_select %p506, %s13, 1
      %s508 = smul.addr %s507, 2
      %s509 = smul.addr %s508, 8
      %s510 = scalar_lea.vmem %s2, %s509
      // Predicated region
      $region29: #{_lambda_.32} parent=27 // pred_check
        %p511 = pneg %p78
      $region30: #{_lambda_.32} parent=27 // pred_check_branch
        %513 = sbr.rel (%p511) target = $region32
      $region31: #{_lambda_.32} parent=27 // pred_region
        _
      $region32: #{_lambda_.32} parent=27 // pred_fallthru
        _
    $region28: #{_lambda_.32} parent=5 // pred_fallthru
      _
    %p514 = scmp.le.s32.totalorder 2, %s8
    // Predicated region
    $region33: #{_lambda_.32} parent=5 // pred_check
      %p515 = pneg %p514
    $region34: #{_lambda_.32} parent=5 // pred_check_branch
      %517 = sbr.rel (%p515) target = $region36
    $region35: #{_lambda_.32} parent=5 // pred_region
      %s518 = ssub.s32 %s8, 2
      // Predicated region
      $region37: #{_lambda_.32} parent=35 // pred_check
        %p519 = pneg %p84
      $region38: #{_lambda_.32} parent=35 // pred_check_branch
        %521 = sbr.rel (%p519) target = $region40
      $region39: #{_lambda_.32} parent=35 // pred_region
        %p522 = scmp.lt.s32.totalorder %s14, 1
        %s523 = scalar_select %p522, %s14, 1
        %s524 = smul.addr %s523, 2
        %s525 = smul.addr %s524, 8
        %s526 = scalar_lea.vmem %s2, %s525
      $region40: #{_lambda_.32} parent=35 // pred_fallthru
        _
    $region36: #{_lambda_.32} parent=5 // pred_fallthru
      _
  $region6: #{_lambda_.32} parent=0 // loop_footer
    %s12 = sadd.s32 1, %s8
  $region7: #{_lambda_.32} parent=0 // loop_footer_branch
    %7 = sbr.rel target = $region3
  $region8: #{_lambda_.32} parent=0 // loop_exit
    _

// kernel: _lambda_.34
$region0: #{_lambda_.34}
  #allocation0 [shape = 'u32[]', space=smem, size = 0x4, offset = 0x4, fixed_abs, tag = 'smem constant byte address 0x4 - core index']
  #allocation1 [shape = 'u32[144,128]{1,0:T(1,128)}', space=vmem, size = 0x12000, scoped, tag = 'internal scratch']
  %s0 = inlined_call_operand.vmem [shape: bf16[8,432], index: 0, kind: input, shape index: {}]
  %s1 = inlined_call_operand.vmem [shape: bf16[2,432,512], index: 1, kind: input, shape index: {}]
  %s2 = inlined_call_operand.vmem [shape: f32[2,8,512], index: 2, kind: output, shape index: {}]
  %s3 = sld [smem:[#allocation0]]
  $region41: #{_lambda_.34} parent=0
    _
  %s5 = ssub.s32 1, %s3
  %s6 = scalar_select 0, %s5, %s3
  loop: start=0, step=1, limit=4
  $region2: #{_lambda_.34} parent=0 // loop_pre_header
    _
  $region3: #{_lambda_.34} parent=0 // loop_header
    %s8 = sphi 0, %s12
    %p9 = scmp.ge.s32.totalorder %s8, 4
    %s16 = sphi 0, %s16
    %s18 = sphi 0, %s16
    %s19 = sphi 0, %s18
    %s33 = sphi 0, %s19
    %s39 = sphi 0, %s41
    %s42 = sphi 0, %s39
    %s43 = sphi 0, %s42
    %s59 = sphi 0, %s43
    %s65 = sphi 0, %s67
    %s68 = sphi 0, %s65
    %s69 = sphi 0, %s68
    %s85 = sphi 0, %s69
  $region4: #{_lambda_.34} parent=0 // loop_header_branch
    %11 = sbr.rel (%p9) target = $region8
  $region5: #{_lambda_.34} parent=0 // loop_body
    %s13 = ssub.s32 %s8, 1
    %s14 = ssub.s32 %s8, 2
    %s15 = sadd.s32 %s8, 1
    %s17 = sadd.s32 %s16, 1
    %p20 = scmp.eq.s32.totalorder %s8, 1
    %p21 = scmp.ne.s32.totalorder %s16, %s18
    %p22 = scmp.eq.s32.totalorder %s8, 0
    %p23 = por %p21, %p22
    %p24 = scmp.ne.s32.totalorder %s16, %s18
    %p25 = scmp.eq.s32.totalorder %s13, 1
    %p26 = por %p24, %p25
    %p27 = scmp.ne.s32.totalorder %s18, %s19
    %p28 = scmp.eq.s32.totalorder %s13, 0
    %p29 = por %p27, %p28
    %p30 = scmp.ne.s32.totalorder %s18, %s19
    %p31 = scmp.eq.s32.totalorder %s14, 1
    %p32 = por %p30, %p31
    %p34 = scmp.ne.s32.totalorder %s19, %s33
    %p35 = scmp.eq.s32.totalorder %s14, 0
    %p36 = por %p34, %p35
    %s37 = ssub.s32 %s8, %s15
    %p38 = scmp.eq.s32.totalorder %s37, 0
    %s40 = sadd.s32 %s39, 1
    %s41 = scalar_select %p38, %s39, %s40
    %p44 = pneg %p38
    %p45 = scmp.eq.s32.totalorder %s8, 1
    %p46 = por %p44, %p45
    %p47 = scmp.ne.s32.totalorder %s39, %s42
    %p48 = scmp.eq.s32.totalorder %s8, 0
    %p49 = por %p47, %p48
    %p50 = scmp.ne.s32.totalorder %s39, %s42
    %p51 = scmp.eq.s32.totalorder %s13, 1
    %p52 = por %p50, %p51
    %p53 = scmp.ne.s32.totalorder %s42, %s43
    %p54 = scmp.eq.s32.totalorder %s13, 0
    %p55 = por %p53, %p54
    %p56 = scmp.ne.s32.totalorder %s42, %s43
    %p57 = scmp.eq.s32.totalorder %s14, 1
    %p58 = por %p56, %p57
    %p60 = scmp.ne.s32.totalorder %s43, %s59
    %p61 = scmp.eq.s32.totalorder %s14, 0
    %p62 = por %p60, %p61
    %s63 = ssub.s32 %s8, %s15
    %p64 = scmp.eq.s32.totalorder %s63, 0
    %s66 = sadd.s32 %s65, 1
    %s67 = scalar_select %p64, %s65, %s66
    %p70 = pneg %p64
    %p71 = scmp.eq.s32.totalorder %s8, 1
    %p72 = por %p70, %p71
    %p73 = scmp.ne.s32.totalorder %s65, %s68
    %p74 = scmp.eq.s32.totalorder %s8, 0
    %p75 = por %p73, %p74
    %p76 = scmp.ne.s32.totalorder %s65, %s68
    %p77 = scmp.eq.s32.totalorder %s13, 1
    %p78 = por %p76, %p77
    %p79 = scmp.ne.s32.totalorder %s68, %s69
    %p80 = scmp.eq.s32.totalorder %s13, 0
    %p81 = por %p79, %p80
    %p82 = scmp.ne.s32.totalorder %s68, %s69
    %p83 = scmp.eq.s32.totalorder %s14, 1
    %p84 = por %p82, %p83
    %p86 = scmp.ne.s32.totalorder %s69, %s85
    %p87 = scmp.eq.s32.totalorder %s14, 0
    %p88 = por %p86, %p87
    %p89 = scmp.le.s32.totalorder 1, %s8
    %p90 = scmp.lt.s32.totalorder %s8, 3
    %p91 = pnand %p89, %p90
    %p92 = pneg %p91
    // Predicated region
    $region9: #{_lambda_.34} parent=5 // pred_check
      _
    $region10: #{_lambda_.34} parent=5 // pred_check_branch
      %94 = sbr.rel (%p91) target = $region12
    $region11: #{_lambda_.34} parent=5 // pred_region
      %s95 = ssub.s32 %s8, 1
      // Predicated region
      $region13: #{_lambda_.34} parent=11 // pred_check
        %p96 = pneg %p29
      $region14: #{_lambda_.34} parent=11 // pred_check_branch
        %98 = sbr.rel (%p96) target = $region16
      $region15: #{_lambda_.34} parent=11 // pred_region
        _
      $region16: #{_lambda_.34} parent=11 // pred_fallthru
        _
    $region12: #{_lambda_.34} parent=5 // pred_fallthru
      _
    %p99 = scmp.lt.s32.totalorder %s8, 2
    // Predicated region
    $region17: #{_lambda_.34} parent=5 // pred_check
      %p100 = pneg %p99
    $region18: #{_lambda_.34} parent=5 // pred_check_branch
      %102 = sbr.rel (%p100) target = $region20
    $region19: #{_lambda_.34} parent=5 // pred_region
      // Predicated region
      $region21: #{_lambda_.34} parent=19 // pred_check
        %p103 = pneg %p49
      $region22: #{_lambda_.34} parent=19 // pred_check_branch
        %105 = sbr.rel (%p103) target = $region24
      $region23: #{_lambda_.34} parent=19 // pred_region
        %p106 = scmp.lt.s32.totalorder %s8, 1
        %s107 = scalar_select %p106, %s8, 1
        %s108 = smul.addr %s107, 216
        %s109 = smul.addr %s108, 4
        %s110 = scalar_lea.vmem %s1, %s109
      $region24: #{_lambda_.34} parent=19 // pred_fallthru
        _
    $region20: #{_lambda_.34} parent=5 // pred_fallthru
      _
    %p111 = scmp.le.s32.totalorder 1, %s8
    %p112 = scmp.lt.s32.totalorder %s8, 3
    %p113 = pnand %p111, %p112
    %p114 = pneg %p113
    // Predicated region
    $region25: #{_lambda_.34} parent=5 // pred_check
      _
    $region26: #{_lambda_.34} parent=5 // pred_check_branch
      %116 = sbr.rel (%p113) target = $region28
    $region27: #{_lambda_.34} parent=5 // pred_region
      %s117 = ssub.s32 %s8, 1
      %p118 = pneg %p29
      %p119 = pneg %p26
      %p120 = scmp.lt.s32.totalorder %s13, 1
      %s121 = scalar_select %p120, %s13, 1
      %s122 = smul.addr %s121, 216
      %s123 = smul.addr %s122, 4
      %s124 = scalar_lea.vmem %s1, %s123
      %p125 = pneg %p55
      %p126 = pneg %p52
      %p127 = pneg %p81
      %p128 = pneg %p78
      %p129 = scmp.lt.s32.totalorder %s13, 1
      %s130 = scalar_select %p129, %s13, 1
      %s131 = smul.addr %s130, 4
      %s132 = smul.addr %s131, 8
      %s133 = scalar_lea.vmem %s2, %s132
      %p134 = scmp.lt.s32.totalorder %s13, 1
      %s135 = scalar_select %p134, %s13, 1
      %s136 = smul.addr %s135, 216
      %s137 = smul.addr %s136, 4
      %s138 = scalar_lea.vmem %s1, %s137
      %p139 = scmp.lt.s32.totalorder %s13, 1
      %s140 = scalar_select %p139, %s13, 1
      %s141 = smul.addr %s140, 4
      %s142 = smul.addr %s141, 8
      %s143 = scalar_lea.vmem %s2, %s142
      %v145 = vld [vmem:[%s0] sm:$0xff]
      %v146 = vld [vmem:[%s0 + $0x8] sm:$0xff]
      %v147 = vld [vmem:[%s138] sm:$0xff]
      %v148 = vld [vmem:[%s138 + $0x8] sm:$0xff]
      %v149 = vld [vmem:[%s138 + $0x10] sm:$0xff]
      %v150 = vld [vmem:[%s138 + $0x18] sm:$0xff]
      %v151 = vld [vmem:[%s138 + $0x20] sm:$0xff]
      %v152 = vld [vmem:[%s138 + $0x28] sm:$0xff]
      %v153 = vld [vmem:[%s138 + $0x30] sm:$0xff]
      %v154 = vld [vmem:[%s138 + $0x38] sm:$0xff]
      %v155 = vld [vmem:[%s138 + $0x40] sm:$0xff]
      %v156 = vld [vmem:[%s138 + $0x48] sm:$0xff]
      %v157 = vld [vmem:[%s138 + $0x50] sm:$0xff]
      %v158 = vld [vmem:[%s138 + $0x58] sm:$0xff]
      %v159 = vld [vmem:[%s138 + $0x60] sm:$0xff]
      %v160 = vld [vmem:[%s138 + $0x68] sm:$0xff]
      %v161 = vld [vmem:[%s138 + $0x70] sm:$0xff]
      %v162 = vld [vmem:[%s138 + $0x78] sm:$0xff]
      %v163 = vld [vmem:[%s138 + $0x80] sm:$0xff]
      %v164 = vld [vmem:[%s138 + $0x88] sm:$0xff]
      %v165 = vld [vmem:[%s138 + $0x90] sm:$0xff]
      %v166 = vld [vmem:[%s138 + $0x98] sm:$0xff]
      %v167 = vld [vmem:[%s138 + $0xa0] sm:$0xff]
      %v168 = vld [vmem:[%s138 + $0xa8] sm:$0xff]
      %v169 = vld [vmem:[%s138 + $0xb0] sm:$0xff]
      %v170 = vld [vmem:[%s138 + $0xb8] sm:$0xff]
      %v171 = vld [vmem:[%s138 + $0xc0] sm:$0xff]
      %v172 = vld [vmem:[%s138 + $0xc8] sm:$0xff]
      %v173 = vld [vmem:[%s138 + $0xd0] sm:$0xff]
      %v174 = vld [vmem:[%s138 + $0xd8] sm:$0xff]
      %v175 = vld [vmem:[%s138 + $0xe0] sm:$0xff]
      %v176 = vld [vmem:[%s138 + $0xe8] sm:$0xff]
      %v177 = vld [vmem:[%s138 + $0xf0] sm:$0xff]
      %v178 = vld [vmem:[%s138 + $0xf8] sm:$0xff]
      %v179 = vld [vmem:[%s138 + $0x100] sm:$0xff]
      %v180 = vld [vmem:[%s138 + $0x108] sm:$0xff]
      %v181 = vld [vmem:[%s138 + $0x110] sm:$0xff]
      %v182 = vld [vmem:[%s138 + $0x118] sm:$0xff]
      %v183 = vld [vmem:[%s138 + $0x120] sm:$0xff]
      %v184 = vld [vmem:[%s138 + $0x128] sm:$0xff]
      %v185 = vld [vmem:[%s138 + $0x130] sm:$0xff]
      %v186 = vld [vmem:[%s138 + $0x138] sm:$0xff]
      %v187 = vld [vmem:[%s138 + $0x140] sm:$0xff]
      %v188 = vld [vmem:[%s138 + $0x148] sm:$0xff]
      %v189 = vld [vmem:[%s138 + $0x150] sm:$0xff]
      %v190 = vld [vmem:[%s138 + $0x158] sm:$0xff]
      %v191 = vld [vmem:[%s138 + $0x160] sm:$0xff]
      %v192 = vld [vmem:[%s138 + $0x168] sm:$0xff]
      %v193 = vld [vmem:[%s138 + $0x170] sm:$0xff]
      %v194 = vld [vmem:[%s138 + $0x178] sm:$0xff]
      %v195 = vld [vmem:[%s138 + $0x180] sm:$0xff]
      %v196 = vld [vmem:[%s138 + $0x188] sm:$0xff]
      %v197 = vld [vmem:[%s138 + $0x190] sm:$0xff]
      %v198 = vld [vmem:[%s138 + $0x198] sm:$0xff]
      %v199 = vld [vmem:[%s138 + $0x1a0] sm:$0xff]
      %v200 = vld [vmem:[%s138 + $0x1a8] sm:$0xff]
      %v201 = vld [vmem:[%s138 + $0x1b0] sm:$0xff]
      %v202 = vld [vmem:[%s138 + $0x1b8] sm:$0xff]
      %v203 = vld [vmem:[%s138 + $0x1c0] sm:$0xff]
      %v204 = vld [vmem:[%s138 + $0x1c8] sm:$0xff]
      %v205 = vld [vmem:[%s138 + $0x1d0] sm:$0xff]
      %v206 = vld [vmem:[%s138 + $0x1d8] sm:$0xff]
      %v207 = vld [vmem:[%s138 + $0x1e0] sm:$0xff]
      %v208 = vld [vmem:[%s138 + $0x1e8] sm:$0xff]
      %v209 = vld [vmem:[%s138 + $0x1f0] sm:$0xff]
      %v210 = vld [vmem:[%s138 + $0x1f8] sm:$0xff]
      %v211 = vld [vmem:[%s138 + $0x200] sm:$0xff]
      %v212 = vld [vmem:[%s138 + $0x208] sm:$0xff]
      %v213 = vld [vmem:[%s138 + $0x210] sm:$0xff]
      %v214 = vld [vmem:[%s138 + $0x218] sm:$0xff]
      %v215 = vld [vmem:[%s138 + $0x220] sm:$0xff]
      %v216 = vld [vmem:[%s138 + $0x228] sm:$0xff]
      %v217 = vld [vmem:[%s138 + $0x230] sm:$0xff]
      %v218 = vld [vmem:[%s138 + $0x238] sm:$0xff]
      %v219 = vld [vmem:[%s138 + $0x240] sm:$0xff]
      %v220 = vld [vmem:[%s138 + $0x248] sm:$0xff]
      %v221 = vld [vmem:[%s138 + $0x250] sm:$0xff]
      %v222 = vld [vmem:[%s138 + $0x258] sm:$0xff]
      %v223 = vld [vmem:[%s138 + $0x260] sm:$0xff]
      %v224 = vld [vmem:[%s138 + $0x268] sm:$0xff]
      %v225 = vld [vmem:[%s138 + $0x270] sm:$0xff]
      %v226 = vld [vmem:[%s138 + $0x278] sm:$0xff]
      %v227 = vld [vmem:[%s138 + $0x280] sm:$0xff]
      %v228 = vld [vmem:[%s138 + $0x288] sm:$0xff]
      %v229 = vld [vmem:[%s138 + $0x290] sm:$0xff]
      %v230 = vld [vmem:[%s138 + $0x298] sm:$0xff]
      %v231 = vld [vmem:[%s138 + $0x2a0] sm:$0xff]
      %v232 = vld [vmem:[%s138 + $0x2a8] sm:$0xff]
      %v233 = vld [vmem:[%s138 + $0x2b0] sm:$0xff]
      %v234 = vld [vmem:[%s138 + $0x2b8] sm:$0xff]
      %v235 = vld [vmem:[%s138 + $0x2c0] sm:$0xff]
      %v236 = vld [vmem:[%s138 + $0x2c8] sm:$0xff]
      %v237 = vld [vmem:[%s138 + $0x2d0] sm:$0xff]
      %v238 = vld [vmem:[%s138 + $0x2d8] sm:$0xff]
      %v239 = vld [vmem:[%s138 + $0x2e0] sm:$0xff]
      %v240 = vld [vmem:[%s138 + $0x2e8] sm:$0xff]
      %v241 = vld [vmem:[%s138 + $0x2f0] sm:$0xff]
      %v242 = vld [vmem:[%s138 + $0x2f8] sm:$0xff]
      %v243 = vld [vmem:[%s138 + $0x300] sm:$0xff]
      %v244 = vld [vmem:[%s138 + $0x308] sm:$0xff]
      %v245 = vld [vmem:[%s138 + $0x310] sm:$0xff]
      %v246 = vld [vmem:[%s138 + $0x318] sm:$0xff]
      %v247 = vld [vmem:[%s138 + $0x320] sm:$0xff]
      %v248 = vld [vmem:[%s138 + $0x328] sm:$0xff]
      %v249 = vld [vmem:[%s138 + $0x330] sm:$0xff]
      %v250 = vld [vmem:[%s138 + $0x338] sm:$0xff]
      %v251 = vld [vmem:[%s138 + $0x340] sm:$0xff]
      %v252 = vld [vmem:[%s138 + $0x348] sm:$0xff]
      %v253 = vld [vmem:[%s138 + $0x350] sm:$0xff]
      %v254 = vld [vmem:[%s138 + $0x358] sm:$0xff]
      %v257 = vunpack.c.l.b16 %v145
      %v258 = vunpack.c.h.b16 %v145
      %v259 = vunpack.c.l.b16 %v146
      %v260 = vunpack.c.h.b16 %v146
      %v261 = vpack.c.b16 %v257, %v257
      %v262 = vpack.c.b16 %v258, %v258
      %v263 = vpack.c.b16 %v259, %v259
      %v264 = vpack.c.b16 %v260, %v260
      %v376 = vunpack.c.l.b16 %v147
      %v377 = vunpack.c.h.b16 %v147
      %v378 = vunpack.c.l.b16 %v148
      %v379 = vunpack.c.h.b16 %v148
      %v380 = vunpack.c.l.b16 %v149
      %v381 = vunpack.c.h.b16 %v149
      %v382 = vunpack.c.l.b16 %v150
      %v383 = vunpack.c.h.b16 %v150
      %v384 = vunpack.c.l.b16 %v151
      %v385 = vunpack.c.h.b16 %v151
      %v386 = vunpack.c.l.b16 %v152
      %v387 = vunpack.c.h.b16 %v152
      %v388 = vunpack.c.l.b16 %v153
      %v389 = vunpack.c.h.b16 %v153
      %v390 = vunpack.c.l.b16 %v154
      %v391 = vunpack.c.h.b16 %v154
      %v392 = vunpack.c.l.b16 %v155
      %v393 = vunpack.c.h.b16 %v155
      %v394 = vunpack.c.l.b16 %v156
      %v395 = vunpack.c.h.b16 %v156
      %v396 = vunpack.c.l.b16 %v157
      %v397 = vunpack.c.h.b16 %v157
      %v398 = vunpack.c.l.b16 %v158
      %v399 = vunpack.c.h.b16 %v158
      %v400 = vunpack.c.l.b16 %v159
      %v401 = vunpack.c.h.b16 %v159
      %v402 = vunpack.c.l.b16 %v160
      %v403 = vunpack.c.h.b16 %v160
      %v404 = vunpack.c.l.b16 %v161
      %v405 = vunpack.c.h.b16 %v161
      %v406 = vunpack.c.l.b16 %v162
      %v407 = vunpack.c.h.b16 %v162
      %v408 = vunpack.c.l.b16 %v163
      %v409 = vunpack.c.h.b16 %v163
      %v410 = vunpack.c.l.b16 %v164
      %v411 = vunpack.c.h.b16 %v164
      %v412 = vunpack.c.l.b16 %v165
      %v413 = vunpack.c.h.b16 %v165
      %v414 = vunpack.c.l.b16 %v166
      %v415 = vunpack.c.h.b16 %v166
      %v416 = vunpack.c.l.b16 %v167
      %v417 = vunpack.c.h.b16 %v167
      %v418 = vunpack.c.l.b16 %v168
      %v419 = vunpack.c.h.b16 %v168
      %v420 = vunpack.c.l.b16 %v169
      %v421 = vunpack.c.h.b16 %v169
      %v422 = vunpack.c.l.b16 %v170
      %v423 = vunpack.c.h.b16 %v170
      %v424 = vunpack.c.l.b16 %v171
      %v425 = vunpack.c.h.b16 %v171
      %v426 = vunpack.c.l.b16 %v172
      %v427 = vunpack.c.h.b16 %v172
      %v428 = vunpack.c.l.b16 %v173
      %v429 = vunpack.c.h.b16 %v173
      %v430 = vunpack.c.l.b16 %v174
      %v431 = vunpack.c.h.b16 %v174
      %v432 = vunpack.c.l.b16 %v175
      %v433 = vunpack.c.h.b16 %v175
      %v434 = vunpack.c.l.b16 %v176
      %v435 = vunpack.c.h.b16 %v176
      %v436 = vunpack.c.l.b16 %v177
      %v437 = vunpack.c.h.b16 %v177
      %v438 = vunpack.c.l.b16 %v178
      %v439 = vunpack.c.h.b16 %v178
      %v440 = vunpack.c.l.b16 %v179
      %v441 = vunpack.c.h.b16 %v179
      %v442 = vunpack.c.l.b16 %v180
      %v443 = vunpack.c.h.b16 %v180
      %v444 = vunpack.c.l.b16 %v181
      %v445 = vunpack.c.h.b16 %v181
      %v446 = vunpack.c.l.b16 %v182
      %v447 = vunpack.c.h.b16 %v182
      %v448 = vunpack.c.l.b16 %v183
      %v449 = vunpack.c.h.b16 %v183
      %v450 = vunpack.c.l.b16 %v184
      %v451 = vunpack.c.h.b16 %v184
      %v452 = vunpack.c.l.b16 %v185
      %v453 = vunpack.c.h.b16 %v185
      %v454 = vunpack.c.l.b16 %v186
      %v455 = vunpack.c.h.b16 %v186
      %v456 = vunpack.c.l.b16 %v187
      %v457 = vunpack.c.h.b16 %v187
      %v458 = vunpack.c.l.b16 %v188
      %v459 = vunpack.c.h.b16 %v188
      %v460 = vunpack.c.l.b16 %v189
      %v461 = vunpack.c.h.b16 %v189
      %v462 = vunpack.c.l.b16 %v190
      %v463 = vunpack.c.h.b16 %v190
      %v464 = vunpack.c.l.b16 %v191
      %v465 = vunpack.c.h.b16 %v191
      %v466 = vunpack.c.l.b16 %v192
      %v467 = vunpack.c.h.b16 %v192
      %v468 = vunpack.c.l.b16 %v193
      %v469 = vunpack.c.h.b16 %v193
      %v470 = vunpack.c.l.b16 %v194
      %v471 = vunpack.c.h.b16 %v194
      %v472 = vunpack.c.l.b16 %v195
      %v473 = vunpack.c.h.b16 %v195
      %v474 = vunpack.c.l.b16 %v196
      %v475 = vunpack.c.h.b16 %v196
      %v476 = vunpack.c.l.b16 %v197
      %v477 = vunpack.c.h.b16 %v197
      %v478 = vunpack.c.l.b16 %v198
      %v479 = vunpack.c.h.b16 %v198
      %v480 = vunpack.c.l.b16 %v199
      %v481 = vunpack.c.h.b16 %v199
      %v482 = vunpack.c.l.b16 %v200
      %v483 = vunpack.c.h.b16 %v200
      %v484 = vunpack.c.l.b16 %v201
      %v485 = vunpack.c.h.b16 %v201
      %v486 = vunpack.c.l.b16 %v202
      %v487 = vunpack.c.h.b16 %v202
      %v488 = vunpack.c.l.b16 %v203
      %v489 = vunpack.c.h.b16 %v203
      %v490 = vunpack.c.l.b16 %v204
      %v491 = vunpack.c.h.b16 %v204
      %v492 = vunpack.c.l.b16 %v205
      %v493 = vunpack.c.h.b16 %v205
      %v494 = vunpack.c.l.b16 %v206
      %v495 = vunpack.c.h.b16 %v206
      %v496 = vunpack.c.l.b16 %v207
      %v497 = vunpack.c.h.b16 %v207
      %v498 = vunpack.c.l.b16 %v208
      %v499 = vunpack.c.h.b16 %v208
      %v500 = vunpack.c.l.b16 %v209
      %v501 = vunpack.c.h.b16 %v209
      %v502 = vunpack.c.l.b16 %v210
      %v503 = vunpack.c.h.b16 %v210
      %v504 = vunpack.c.l.b16 %v211
      %v505 = vunpack.c.h.b16 %v211
      %v506 = vunpack.c.l.b16 %v212
      %v507 = vunpack.c.h.b16 %v212
      %v508 = vunpack.c.l.b16 %v213
      %v509 = vunpack.c.h.b16 %v213
      %v510 = vunpack.c.l.b16 %v214
      %v511 = vunpack.c.h.b16 %v214
      %v512 = vunpack.c.l.b16 %v215
      %v513 = vunpack.c.h.b16 %v215
      %v514 = vunpack.c.l.b16 %v216
      %v515 = vunpack.c.h.b16 %v216
      %v516 = vunpack.c.l.b16 %v217
      %v517 = vunpack.c.h.b16 %v217
      %v518 = vunpack.c.l.b16 %v218
      %v519 = vunpack.c.h.b16 %v218
      %v520 = vunpack.c.l.b16 %v219
      %v521 = vunpack.c.h.b16 %v219
      %v522 = vunpack.c.l.b16 %v220
      %v523 = vunpack.c.h.b16 %v220
      %v524 = vunpack.c.l.b16 %v221
      %v525 = vunpack.c.h.b16 %v221
      %v526 = vunpack.c.l.b16 %v222
      %v527 = vunpack.c.h.b16 %v222
      %v528 = vunpack.c.l.b16 %v223
      %v529 = vunpack.c.h.b16 %v223
      %v530 = vunpack.c.l.b16 %v224
      %v531 = vunpack.c.h.b16 %v224
      %v532 = vunpack.c.l.b16 %v225
      %v533 = vunpack.c.h.b16 %v225
      %v534 = vunpack.c.l.b16 %v226
      %v535 = vunpack.c.h.b16 %v226
      %v536 = vunpack.c.l.b16 %v227
      %v537 = vunpack.c.h.b16 %v227
      %v538 = vunpack.c.l.b16 %v228
      %v539 = vunpack.c.h.b16 %v228
      %v540 = vunpack.c.l.b16 %v229
      %v541 = vunpack.c.h.b16 %v229
      %v542 = vunpack.c.l.b16 %v230
      %v543 = vunpack.c.h.b16 %v230
      %v544 = vunpack.c.l.b16 %v231
      %v545 = vunpack.c.h.b16 %v231
      %v546 = vunpack.c.l.b16 %v232
      %v547 = vunpack.c.h.b16 %v232
      %v548 = vunpack.c.l.b16 %v233
      %v549 = vunpack.c.h.b16 %v233
      %v550 = vunpack.c.l.b16 %v234
      %v551 = vunpack.c.h.b16 %v234
      %v552 = vunpack.c.l.b16 %v235
      %v553 = vunpack.c.h.b16 %v235
      %v554 = vunpack.c.l.b16 %v236
      %v555 = vunpack.c.h.b16 %v236
      %v556 = vunpack.c.l.b16 %v237
      %v557 = vunpack.c.h.b16 %v237
      %v558 = vunpack.c.l.b16 %v238
      %v559 = vunpack.c.h.b16 %v238
      %v560 = vunpack.c.l.b16 %v239
      %v561 = vunpack.c.h.b16 %v239
      %v562 = vunpack.c.l.b16 %v240
      %v563 = vunpack.c.h.b16 %v240
      %v564 = vunpack.c.l.b16 %v241
      %v565 = vunpack.c.h.b16 %v241
      %v566 = vunpack.c.l.b16 %v242
      %v567 = vunpack.c.h.b16 %v242
      %v568 = vunpack.c.l.b16 %v243
      %v569 = vunpack.c.h.b16 %v243
      %v570 = vunpack.c.l.b16 %v244
      %v571 = vunpack.c.h.b16 %v244
      %v572 = vunpack.c.l.b16 %v245
      %v573 = vunpack.c.h.b16 %v245
      %v574 = vunpack.c.l.b16 %v246
      %v575 = vunpack.c.h.b16 %v246
      %v576 = vunpack.c.l.b16 %v247
      %v577 = vunpack.c.h.b16 %v247
      %v578 = vunpack.c.l.b16 %v248
      %v579 = vunpack.c.h.b16 %v248
      %v580 = vunpack.c.l.b16 %v249
      %v581 = vunpack.c.h.b16 %v249
      %v582 = vunpack.c.l.b16 %v250
      %v583 = vunpack.c.h.b16 %v250
      %v584 = vunpack.c.l.b16 %v251
      %v585 = vunpack.c.h.b16 %v251
      %v586 = vunpack.c.l.b16 %v252
      %v587 = vunpack.c.h.b16 %v252
      %v588 = vunpack.c.l.b16 %v253
      %v589 = vunpack.c.h.b16 %v253
      %v590 = vunpack.c.l.b16 %v254
      %v591 = vunpack.c.h.b16 %v254
      %v592 = vpack.c.b16 %v380, %v376
      %v593 = vpack.c.b16 %v381, %v377
      %v594 = vpack.c.b16 %v382, %v378
      %v595 = vpack.c.b16 %v383, %v379
      %v596 = vpack.c.b16 %v388, %v384
      %v597 = vpack.c.b16 %v389, %v385
      %v598 = vpack.c.b16 %v390, %v386
      %v599 = vpack.c.b16 %v391, %v387
      %v600 = vpack.c.b16 %v396, %v392
      %v601 = vpack.c.b16 %v397, %v393
      %v602 = vpack.c.b16 %v398, %v394
      %v603 = vpack.c.b16 %v399, %v395
      %v604 = vpack.c.b16 %v404, %v400
      %v605 = vpack.c.b16 %v405, %v401
      %v606 = vpack.c.b16 %v406, %v402
      %v607 = vpack.c.b16 %v407, %v403
      %v608 = vpack.c.b16 %v412, %v408
      %v609 = vpack.c.b16 %v413, %v409
      %v610 = vpack.c.b16 %v414, %v410
      %v611 = vpack.c.b16 %v415, %v411
      %v612 = vpack.c.b16 %v420, %v416
      %v613 = vpack.c.b16 %v421, %v417
      %v614 = vpack.c.b16 %v422, %v418
      %v615 = vpack.c.b16 %v423, %v419
      %v616 = vpack.c.b16 %v428, %v424
      %v617 = vpack.c.b16 %v429, %v425
      %v618 = vpack.c.b16 %v430, %v426
      %v619 = vpack.c.b16 %v431, %v427
      %v620 = vpack.c.b16 %v436, %v432
      %v621 = vpack.c.b16 %v437, %v433
      %v622 = vpack.c.b16 %v438, %v434
      %v623 = vpack.c.b16 %v439, %v435
      %v624 = vpack.c.b16 %v444, %v440
      %v625 = vpack.c.b16 %v445, %v441
      %v626 = vpack.c.b16 %v446, %v442
      %v627 = vpack.c.b16 %v447, %v443
      %v628 = vpack.c.b16 %v452, %v448
      %v629 = vpack.c.b16 %v453, %v449
      %v630 = vpack.c.b16 %v454, %v450
      %v631 = vpack.c.b16 %v455, %v451
      %v632 = vpack.c.b16 %v460, %v456
      %v633 = vpack.c.b16 %v461, %v457
      %v634 = vpack.c.b16 %v462, %v458
      %v635 = vpack.c.b16 %v463, %v459
      %v636 = vpack.c.b16 %v468, %v464
      %v637 = vpack.c.b16 %v469, %v465
      %v638 = vpack.c.b16 %v470, %v466
      %v639 = vpack.c.b16 %v471, %v467
      %v640 = vpack.c.b16 %v476, %v472
      %v641 = vpack.c.b16 %v477, %v473
      %v642 = vpack.c.b16 %v478, %v474
      %v643 = vpack.c.b16 %v479, %v475
      %v644 = vpack.c.b16 %v484, %v480
      %v645 = vpack.c.b16 %v485, %v481
      %v646 = vpack.c.b16 %v486, %v482
      %v647 = vpack.c.b16 %v487, %v483
      %v648 = vpack.c.b16 %v492, %v488
      %v649 = vpack.c.b16 %v493, %v489
      %v650 = vpack.c.b16 %v494, %v490
      %v651 = vpack.c.b16 %v495, %v491
      %v652 = vpack.c.b16 %v500, %v496
      %v653 = vpack.c.b16 %v501, %v497
      %v654 = vpack.c.b16 %v502, %v498
      %v655 = vpack.c.b16 %v503, %v499
      %v656 = vpack.c.b16 %v508, %v504
      %v657 = vpack.c.b16 %v509, %v505
      %v658 = vpack.c.b16 %v510, %v506
      %v659 = vpack.c.b16 %v511, %v507
      %v660 = vpack.c.b16 %v516, %v512
      %v661 = vpack.c.b16 %v517, %v513
      %v662 = vpack.c.b16 %v518, %v514
      %v663 = vpack.c.b16 %v519, %v515
      %v664 = vpack.c.b16 %v524, %v520
      %v665 = vpack.c.b16 %v525, %v521
      %v666 = vpack.c.b16 %v526, %v522
      %v667 = vpack.c.b16 %v527, %v523
      %v668 = vpack.c.b16 %v532, %v528
      %v669 = vpack.c.b16 %v533, %v529
      %v670 = vpack.c.b16 %v534, %v530
      %v671 = vpack.c.b16 %v535, %v531
      %v672 = vpack.c.b16 %v540, %v536
      %v673 = vpack.c.b16 %v541, %v537
      %v674 = vpack.c.b16 %v542, %v538
      %v675 = vpack.c.b16 %v543, %v539
      %v676 = vpack.c.b16 %v548, %v544
      %v677 = vpack.c.b16 %v549, %v545
      %v678 = vpack.c.b16 %v550, %v546
      %v679 = vpack.c.b16 %v551, %v547
      %v680 = vpack.c.b16 %v556, %v552
      %v681 = vpack.c.b16 %v557, %v553
      %v682 = vpack.c.b16 %v558, %v554
      %v683 = vpack.c.b16 %v559, %v555
      %v684 = vpack.c.b16 %v564, %v560
      %v685 = vpack.c.b16 %v565, %v561
      %v686 = vpack.c.b16 %v566, %v562
      %v687 = vpack.c.b16 %v567, %v563
      %v688 = vpack.c.b16 %v572, %v568
      %v689 = vpack.c.b16 %v573, %v569
      %v690 = vpack.c.b16 %v574, %v570
      %v691 = vpack.c.b16 %v575, %v571
      %v692 = vpack.c.b16 %v580, %v576
      %v693 = vpack.c.b16 %v581, %v577
      %v694 = vpack.c.b16 %v582, %v578
      %v695 = vpack.c.b16 %v583, %v579
      %v696 = vpack.c.b16 %v588, %v584
      %v697 = vpack.c.b16 %v589, %v585
      %v698 = vpack.c.b16 %v590, %v586
      %v699 = vpack.c.b16 %v591, %v587
      %vm808 = vcmask 392192
      %v810 = vsel %vm808, %v264, 0
      %812 = vmatprep.subr.bf16.mxu0 %v621
      %813 = vmatpush1.bf16.msra.mxu0 %v620
      %814 = vmatprep.subr.bf16.mxu0 %v617
      %815 = vmatpush1.bf16.msra.mxu0 %v616
      %816 = vmatprep.subr.bf16.mxu0 %v613
      %817 = vmatpush1.bf16.msra.mxu0 %v612
      %818 = vmatprep.subr.bf16.mxu0 %v609
      %819 = vmatpush1.bf16.msra.mxu0 %v608
      %820 = vmatprep.subr.bf16.mxu0 %v605
      %821 = vmatpush1.bf16.msra.mxu0 %v604
      %822 = vmatprep.subr.bf16.mxu0 %v601
      %823 = vmatpush1.bf16.msra.mxu0 %v600
      %824 = vmatprep.subr.bf16.mxu0 %v597
      %825 = vmatpush1.bf16.msra.mxu0 %v596
      %826 = vmatprep.subr.bf16.mxu0 %v593
      %827 = vmatpush1.bf16.msra.mxu0 %v592
      %828 = vmatprep.subr.bf16.mxu0 %v653
      %829 = vmatpush2.bf16.msra.mxu0 %v652
      %830 = vmatprep.subr.bf16.mxu0 %v649
      %831 = vmatpush2.bf16.msra.mxu0 %v648
      %832 = vmatprep.subr.bf16.mxu0 %v645
      %833 = vmatpush2.bf16.msra.mxu0 %v644
      %834 = vmatprep.subr.bf16.mxu0 %v641
      %835 = vmatpush2.bf16.msra.mxu0 %v640
      %836 = vmatprep.subr.bf16.mxu0 %v637
      %837 = vmatpush2.bf16.msra.mxu0 %v636
      %838 = vmatprep.subr.bf16.mxu0 %v633
      %839 = vmatpush2.bf16.msra.mxu0 %v632
      %840 = vmatprep.subr.bf16.mxu0 %v629
      %841 = vmatpush2.bf16.msra.mxu0 %v628
      %842 = vmatprep.subr.bf16.mxu0 %v625
      %843 = vmatpush2.bf16.msra.mxu0 %v624
      %844 = vmatprep.mubr.bf16.mxu0 %v262
      %845 = vmatmul.mubr.bf16.gmra.mxu0 %v261
      %v846 = vpop.f32.mrf.mxu0
      %v847 = vadd.f32 0.0, %v846
      %v848 = vpop.f32.mrf.mxu0
      %v849 = vadd.f32 0.0, %v848
      %v850 = vpop.f32.mrf.mxu0
      %v851 = vpop.f32.mrf.mxu0
      %852 = vdwg.mxu0
      %853 = vmatprep.subr.bf16.mxu0 %v685
      %854 = vmatpush1.bf16.msra.mxu0 %v684
      %855 = vmatprep.subr.bf16.mxu0 %v681
      %856 = vmatpush1.bf16.msra.mxu0 %v680
      %857 = vmatprep.subr.bf16.mxu0 %v677
      %858 = vmatpush1.bf16.msra.mxu0 %v676
      %859 = vmatprep.subr.bf16.mxu0 %v673
      %860 = vmatpush1.bf16.msra.mxu0 %v672
      %861 = vmatprep.subr.bf16.mxu0 %v669
      %862 = vmatpush1.bf16.msra.mxu0 %v668
      %863 = vmatprep.subr.bf16.mxu0 %v665
      %864 = vmatpush1.bf16.msra.mxu0 %v664
      %865 = vmatprep.subr.bf16.mxu0 %v661
      %866 = vmatpush1.bf16.msra.mxu0 %v660
      %867 = vmatprep.subr.bf16.mxu0 %v657
      %868 = vmatpush1.bf16.msra.mxu0 %v656
      %869 = vmatprep.subr.bf16.mxu0 0
      %870 = vmatpush2.bf16.msra.mxu0 0
      %871 = vmatprep.subr.bf16.mxu0 0
      %872 = vmatpush2.bf16.msra.mxu0 0
      %873 = vmatprep.subr.bf16.mxu0 0
      %874 = vmatpush2.bf16.msra.mxu0 0
      %875 = vmatprep.subr.bf16.mxu0 0
      %876 = vmatpush2.bf16.msra.mxu0 0
      %877 = vmatprep.subr.bf16.mxu0 0
      %878 = vmatpush2.bf16.msra.mxu0 0
      %879 = vmatprep.subr.bf16.mxu0 %v697
      %880 = vmatpush2.bf16.msra.mxu0 %v696
      %881 = vmatprep.subr.bf16.mxu0 %v693
      %882 = vmatpush2.bf16.msra.mxu0 %v692
      %883 = vmatprep.subr.bf16.mxu0 %v689
      %884 = vmatpush2.bf16.msra.mxu0 %v688
      %885 = vmatprep.mubr.bf16.mxu0 %v810
      %886 = vmatmul.mubr.bf16.gmra.mxu0 %v263
      %v887 = vpop.f32.mrf.mxu0
      %v888 = vadd.f32 %v847, %v887
      %v889 = vpop.f32.mrf.mxu0
      %v890 = vadd.f32 %v849, %v889
      %v891 = vpop.f32.mrf.mxu0
      %v892 = vpop.f32.mrf.mxu0
      %893 = vdwg.mxu0
      %894 = vmatprep.subr.bf16.mxu0 %v623
      %895 = vmatpush1.bf16.msra.mxu0 %v622
      %896 = vmatprep.subr.bf16.mxu0 %v619
      %897 = vmatpush1.bf16.msra.mxu0 %v618
      %898 = vmatprep.subr.bf16.mxu0 %v615
      %899 = vmatpush1.bf16.msra.mxu0 %v614
      %900 = vmatprep.subr.bf16.mxu0 %v611
      %901 = vmatpush1.bf16.msra.mxu0 %v610
      %902 = vmatprep.subr.bf16.mxu0 %v607
      %903 = vmatpush1.bf16.msra.mxu0 %v606
      %904 = vmatprep.subr.bf16.mxu0 %v603
      %905 = vmatpush1.bf16.msra.mxu0 %v602
      %906 = vmatprep.subr.bf16.mxu0 %v599
      %907 = vmatpush1.bf16.msra.mxu0 %v598
      %908 = vmatprep.subr.bf16.mxu0 %v595
      %909 = vmatpush1.bf16.msra.mxu0 %v594
      %910 = vmatprep.subr.bf16.mxu0 %v655
      %911 = vmatpush2.bf16.msra.mxu0 %v654
      %912 = vmatprep.subr.bf16.mxu0 %v651
      %913 = vmatpush2.bf16.msra.mxu0 %v650
      %914 = vmatprep.subr.bf16.mxu0 %v647
      %915 = vmatpush2.bf16.msra.mxu0 %v646
      %916 = vmatprep.subr.bf16.mxu0 %v643
      %917 = vmatpush2.bf16.msra.mxu0 %v642
      %918 = vmatprep.subr.bf16.mxu0 %v639
      %919 = vmatpush2.bf16.msra.mxu0 %v638
      %920 = vmatprep.subr.bf16.mxu0 %v635
      %921 = vmatpush2.bf16.msra.mxu0 %v634
      %922 = vmatprep.subr.bf16.mxu0 %v631
      %923 = vmatpush2.bf16.msra.mxu0 %v630
      %924 = vmatprep.subr.bf16.mxu0 %v627
      %925 = vmatpush2.bf16.msra.mxu0 %v626
      %926 = vmatprep.mubr.bf16.mxu0 %v262
      %927 = vmatmul.mubr.bf16.gmra.mxu0 %v261
      %v928 = vpop.f32.mrf.mxu0
      %v929 = vadd.f32 0.0, %v928
      %v930 = vpop.f32.mrf.mxu0
      %v931 = vadd.f32 0.0, %v930
      %v932 = vpop.f32.mrf.mxu0
      %v933 = vpop.f32.mrf.mxu0
      %934 = vdwg.mxu0
      %935 = vmatprep.subr.bf16.mxu0 %v687
      %936 = vmatpush1.bf16.msra.mxu0 %v686
      %937 = vmatprep.subr.bf16.mxu0 %v683
      %938 = vmatpush1.bf16.msra.mxu0 %v682
      %939 = vmatprep.subr.bf16.mxu0 %v679
      %940 = vmatpush1.bf16.msra.mxu0 %v678
      %941 = vmatprep.subr.bf16.mxu0 %v675
      %942 = vmatpush1.bf16.msra.mxu0 %v674
      %943 = vmatprep.subr.bf16.mxu0 %v671
      %944 = vmatpush1.bf16.msra.mxu0 %v670
      %945 = vmatprep.subr.bf16.mxu0 %v667
      %946 = vmatpush1.bf16.msra.mxu0 %v666
      %947 = vmatprep.subr.bf16.mxu0 %v663
      %948 = vmatpush1.bf16.msra.mxu0 %v662
      %949 = vmatprep.subr.bf16.mxu0 %v659
      %950 = vmatpush1.bf16.msra.mxu0 %v658
      %951 = vmatprep.subr.bf16.mxu0 0
      %952 = vmatpush2.bf16.msra.mxu0 0
      %953 = vmatprep.subr.bf16.mxu0 0
      %954 = vmatpush2.bf16.msra.mxu0 0
      %955 = vmatprep.subr.bf16.mxu0 0
      %956 = vmatpush2.bf16.msra.mxu0 0
      %957 = vmatprep.subr.bf16.mxu0 0
      %958 = vmatpush2.bf16.msra.mxu0 0
      %959 = vmatprep.subr.bf16.mxu0 0
      %960 = vmatpush2.bf16.msra.mxu0 0
      %961 = vmatprep.subr.bf16.mxu0 %v699
      %962 = vmatpush2.bf16.msra.mxu0 %v698
      %963 = vmatprep.subr.bf16.mxu0 %v695
      %964 = vmatpush2.bf16.msra.mxu0 %v694
      %965 = vmatprep.subr.bf16.mxu0 %v691
      %966 = vmatpush2.bf16.msra.mxu0 %v690
      %967 = vmatprep.mubr.bf16.mxu0 %v810
      %968 = vmatmul.mubr.bf16.gmra.mxu0 %v263
      %v969 = vpop.f32.mrf.mxu0
      %v970 = vadd.f32 %v929, %v969
      %v971 = vpop.f32.mrf.mxu0
      %v972 = vadd.f32 %v931, %v971
      %v973 = vpop.f32.mrf.mxu0
      %v974 = vpop.f32.mrf.mxu0
      %975 = vdwg.mxu0
      %v976 = vadd.f32 %v888, %v890
      %v977 = vadd.f32 %v976, %v970
      %v978 = vadd.f32 %v977, %v972
      %979 = vadd.xlane.f32.xlu0 %v978
      %v980 = vpop.xlane.xlu0 %979
      %v981 = vrcp.pop 512.0
      %v982 = vmul.f32 %v980, %v981
      %v983 = vsub.f32 %v888, %v982
      %v984 = vsub.f32 %v890, %v982
      %v985 = vsub.f32 %v970, %v982
      %v986 = vsub.f32 %v972, %v982
      %v987 = vmul.f32 %v983, %v983
      %v988 = vmul.f32 %v984, %v984
      %v989 = vmul.f32 %v985, %v985
      %v990 = vmul.f32 %v986, %v986
      %v991 = vadd.f32 %v987, %v988
      %v992 = vadd.f32 %v991, %v989
      %v993 = vadd.f32 %v992, %v990
      %994 = vadd.xlane.f32.xlu0 %v993
      %v995 = vpop.xlane.xlu0 %994
      %v996 = vmul.f32 %v995, %v981
      %v997 = vadd.f32 %v996, 1e-05
      %v998 = vrsqrt.pop %v997
      %v999 = vmul.f32 %v983, %v998
      %v1000 = vmul.f32 %v984, %v998
      %v1001 = vmul.f32 %v985, %v998
      %v1002 = vmul.f32 %v986, %v998
      %vm1003 = vcmp.ge.f32.partialorder %v999, 0.0
      %vm1004 = vcmp.ge.f32.partialorder %v1000, 0.0
      %vm1005 = vcmp.ge.f32.partialorder %v1001, 0.0
      %vm1006 = vcmp.ge.f32.partialorder %v1002, 0.0
      %v1007 = vmul.f32 %v999, 0.01
      %v1008 = vmul.f32 %v1000, 0.01
      %v1009 = vmul.f32 %v1001, 0.01
      %v1010 = vmul.f32 %v1002, 0.01
      %v1011 = vsel %vm1003, %v999, %v1007
      %v1012 = vsel %vm1004, %v1000, %v1008
      %v1013 = vsel %vm1005, %v1001, %v1009
      %v1014 = vsel %vm1006, %v1002, %v1010
      %1015 = vst [vmem:[%s143] sm:$0xff] %v1011
      %1016 = vst [vmem:[%s143 + $0x8] sm:$0xff] %v1012
      %1017 = vst [vmem:[%s143 + $0x10] sm:$0xff] %v1013
      %1018 = vst [vmem:[%s143 + $0x18] sm:$0xff] %v1014
      %p1019 = scmp.lt.s32.totalorder %s13, 1
      %s1020 = scalar_select %p1019, %s13, 1
      %s1021 = smul.addr %s1020, 4
      %s1022 = smul.addr %s1021, 8
      %s1023 = scalar_lea.vmem %s2, %s1022
      // Predicated region
      $region29: #{_lambda_.34} parent=27 // pred_check
        %p1024 = pneg %p78
      $region30: #{_lambda_.34} parent=27 // pred_check_branch
        %1026 = sbr.rel (%p1024) target = $region32
      $region31: #{_lambda_.34} parent=27 // pred_region
        _
      $region32: #{_lambda_.34} parent=27 // pred_fallthru
        _
    $region28: #{_lambda_.34} parent=5 // pred_fallthru
      _
    %p1027 = scmp.le.s32.totalorder 2, %s8
    // Predicated region
    $region33: #{_lambda_.34} parent=5 // pred_check
      %p1028 = pneg %p1027
    $region34: #{_lambda_.34} parent=5 // pred_check_branch
      %1030 = sbr.rel (%p1028) target = $region36
    $region35: #{_lambda_.34} parent=5 // pred_region
      %s1031 = ssub.s32 %s8, 2
      // Predicated region
      $region37: #{_lambda_.34} parent=35 // pred_check
        %p1032 = pneg %p84
      $region38: #{_lambda_.34} parent=35 // pred_check_branch
        %1034 = sbr.rel (%p1032) target = $region40
      $region39: #{_lambda_.34} parent=35 // pred_region
        %p1035 = scmp.lt.s32.totalorder %s14, 1
        %s1036 = scalar_select %p1035, %s14, 1
        %s1037 = smul.addr %s1036, 4
        %s1038 = smul.addr %s1037, 8
        %s1039 = scalar_lea.vmem %s2, %s1038
      $region40: #{_lambda_.34} parent=35 // pred_fallthru
        _
    $region36: #{_lambda_.34} parent=5 // pred_fallthru
      _
  $region6: #{_lambda_.34} parent=0 // loop_footer
    %s12 = sadd.s32 1, %s8
  $region7: #{_lambda_.34} parent=0 // loop_footer_branch
    %7 = sbr.rel target = $region3
  $region8: #{_lambda_.34} parent=0 // loop_exit
    _

// kernel: _lambda_.37
$region0: #{_lambda_.37}
  #allocation0 [shape = 'u32[]', space=smem, size = 0x4, offset = 0x4, fixed_abs, tag = 'smem constant byte address 0x4 - core index']
  #allocation1 [shape = 'u32[144,128]{1,0:T(1,128)}', space=vmem, size = 0x12000, scoped, tag = 'internal scratch']
  #allocation2 [shape = 'f32[4,1]{1,0:T(4,128)}', space=vmem, size = 0x800, scoped, tag = 'scratch operand']
  #allocation3 [shape = 'f32[4,1]{1,0:T(4,128)}', space=vmem, size = 0x800, scoped, tag = 'scratch operand']
  %s0 = inlined_call_operand.vmem [shape: bf16[4,224], index: 0, kind: input, shape index: {}]
  %s1 = inlined_call_operand.vmem [shape: bf16[2,224,4096], index: 1, kind: input, shape index: {}]
  %s2 = inlined_call_operand.vmem [shape: f32[2,4,4096], index: 2, kind: output, shape index: {0}]
  %s3 = inlined_call_operand.vmem [shape: f32[2,4,1], index: 3, kind: output, shape index: {1}]
  %s4 = inlined_call_operand.vmem [shape: f32[2,4,1], index: 4, kind: output, shape index: {2}]
  %5 = xla_tuple %s2, %s3, %s4
  %s6 = sld [smem:[#allocation0]]
  $region88: #{_lambda_.37} parent=0
    _
  %s8 = ssub.s32 1, %s6
  %s9 = scalar_select 0, %s8, %s6
  $region1: #{_lambda_.37} parent=0
    #allocation4 [shape = 'u8[1835008]{0}', space=vmem, size = 0x1c0000, scoped, tag = 'input window, operand 1']
    loop: start=0, step=1, limit=6
    $region2: #{_lambda_.37} parent=1 // loop_pre_header
      _
    $region3: #{_lambda_.37} parent=1 // loop_header
      %s11 = sphi 0, %s15
      %p12 = scmp.ge.s32.totalorder %s11, 6
      %s18 = sphi 0, %s30
      %s19 = sphi 0, %s26
      %s20 = sphi 0, %s18
      %s21 = sphi 0, %s19
      %s22 = sphi 0, %s20
      %s23 = sphi 0, %s21
      %s31 = sphi 0, %s31
      %s33 = sphi 0, %s31
      %s34 = sphi 0, %s33
      %s48 = sphi 0, %s34
      %s56 = sphi 0, %s58
      %s59 = sphi 0, %s56
      %s60 = sphi 0, %s59
      %s76 = sphi 0, %s60
      %s84 = sphi 0, %s86
      %s87 = sphi 0, %s84
      %s88 = sphi 0, %s87
      %s104 = sphi 0, %s88
      %s110 = sphi 0, %s112
      %s113 = sphi 0, %s110
      %s114 = sphi 0, %s113
      %s130 = sphi 0, %s114
      %s136 = sphi 0, %s138
      %s139 = sphi 0, %s136
      %s140 = sphi 0, %s139
      %s156 = sphi 0, %s140
    $region4: #{_lambda_.37} parent=1 // loop_header_branch
      %14 = sbr.rel (%p12) target = $region8
    $region5: #{_lambda_.37} parent=1 // loop_body
      %s16 = ssub.s32 %s11, 1
      %s17 = ssub.s32 %s11, 2
      %s24 = sadd.s32 1, %s19
      %p25 = scmp.ge.s32.totalorder %s24, 2
      %s26 = scalar_select %p25, 0, %s24
      %s27 = sadd.s32 1, %s18
      %s28 = scalar_select %p25, %s27, %s18
      %p29 = scmp.ge.s32.totalorder %s28, 2
      %s30 = scalar_select %p29, 0, %s28
      %s32 = sadd.s32 %s31, 1
      %p35 = scmp.eq.s32.totalorder %s11, 3
      %p36 = scmp.ne.s32.totalorder %s31, %s33
      %p37 = scmp.eq.s32.totalorder %s11, 0
      %p38 = por %p36, %p37
      %p39 = scmp.ne.s32.totalorder %s31, %s33
      %p40 = scmp.eq.s32.totalorder %s16, 3
      %p41 = por %p39, %p40
      %p42 = scmp.ne.s32.totalorder %s33, %s34
      %p43 = scmp.eq.s32.totalorder %s16, 0
      %p44 = por %p42, %p43
      %p45 = scmp.ne.s32.totalorder %s33, %s34
      %p46 = scmp.eq.s32.totalorder %s17, 3
      %p47 = por %p45, %p46
      %p49 = scmp.ne.s32.totalorder %s34, %s48
      %p50 = scmp.eq.s32.totalorder %s17, 0
      %p51 = por %p49, %p50
      %s52 = ssub.s32 %s18, %s30
      %s53 = ssub.s32 %s19, %s26
      %s54 = sor.u32 %s52, %s53
      %p55 = scmp.eq.s32.totalorder %s54, 0
      %s57 = sadd.s32 %s56, 1
      %s58 = scalar_select %p55, %s56, %s57
      %p61 = pneg %p55
      %p62 = scmp.eq.s32.totalorder %s11, 3
      %p63 = por %p61, %p62
      %p64 = scmp.ne.s32.totalorder %s56, %s59
      %p65 = scmp.eq.s32.totalorder %s11, 0
      %p66 = por %p64, %p65
      %p67 = scmp.ne.s32.totalorder %s56, %s59
      %p68 = scmp.eq.s32.totalorder %s16, 3
      %p69 = por %p67, %p68
      %p70 = scmp.ne.s32.totalorder %s59, %s60
      %p71 = scmp.eq.s32.totalorder %s16, 0
      %p72 = por %p70, %p71
      %p73 = scmp.ne.s32.totalorder %s59, %s60
      %p74 = scmp.eq.s32.totalorder %s17, 3
      %p75 = por %p73, %p74
      %p77 = scmp.ne.s32.totalorder %s60, %s76
      %p78 = scmp.eq.s32.totalorder %s17, 0
      %p79 = por %p77, %p78
      %s80 = ssub.s32 %s18, %s30
      %s81 = ssub.s32 %s19, %s26
      %s82 = sor.u32 %s80, %s81
      %p83 = scmp.eq.s32.totalorder %s82, 0
      %s85 = sadd.s32 %s84, 1
      %s86 = scalar_select %p83, %s84, %s85
      %p89 = pneg %p83
      %p90 = scmp.eq.s32.totalorder %s11, 3
      %p91 = por %p89, %p90
      %p92 = scmp.ne.s32.totalorder %s84, %s87
      %p93 = scmp.eq.s32.totalorder %s11, 0
      %p94 = por %p92, %p93
      %p95 = scmp.ne.s32.totalorder %s84, %s87
      %p96 = scmp.eq.s32.totalorder %s16, 3
      %p97 = por %p95, %p96
      %p98 = scmp.ne.s32.totalorder %s87, %s88
      %p99 = scmp.eq.s32.totalorder %s16, 0
      %p100 = por %p98, %p99
      %p101 = scmp.ne.s32.totalorder %s87, %s88
      %p102 = scmp.eq.s32.totalorder %s17, 3
      %p103 = por %p101, %p102
      %p105 = scmp.ne.s32.totalorder %s88, %s104
      %p106 = scmp.eq.s32.totalorder %s17, 0
      %p107 = por %p105, %p106
      %s108 = ssub.s32 %s18, %s30
      %p109 = scmp.eq.s32.totalorder %s108, 0
      %s111 = sadd.s32 %s110, 1
      %s112 = scalar_select %p109, %s110, %s111
      %p115 = pneg %p109
      %p116 = scmp.eq.s32.totalorder %s11, 3
      %p117 = por %p115, %p116
      %p118 = scmp.ne.s32.totalorder %s110, %s113
      %p119 = scmp.eq.s32.totalorder %s11, 0
      %p120 = por %p118, %p119
      %p121 = scmp.ne.s32.totalorder %s110, %s113
      %p122 = scmp.eq.s32.totalorder %s16, 3
      %p123 = por %p121, %p122
      %p124 = scmp.ne.s32.totalorder %s113, %s114
      %p125 = scmp.eq.s32.totalorder %s16, 0
      %p126 = por %p124, %p125
      %p127 = scmp.ne.s32.totalorder %s113, %s114
      %p128 = scmp.eq.s32.totalorder %s17, 3
      %p129 = por %p127, %p128
      %p131 = scmp.ne.s32.totalorder %s114, %s130
      %p132 = scmp.eq.s32.totalorder %s17, 0
      %p133 = por %p131, %p132
      %s134 = ssub.s32 %s18, %s30
      %p135 = scmp.eq.s32.totalorder %s134, 0
      %s137 = sadd.s32 %s136, 1
      %s138 = scalar_select %p135, %s136, %s137
      %p141 = pneg %p135
      %p142 = scmp.eq.s32.totalorder %s11, 3
      %p143 = por %p141, %p142
      %p144 = scmp.ne.s32.totalorder %s136, %s139
      %p145 = scmp.eq.s32.totalorder %s11, 0
      %p146 = por %p144, %p145
      %p147 = scmp.ne.s32.totalorder %s136, %s139
      %p148 = scmp.eq.s32.totalorder %s16, 3
      %p149 = por %p147, %p148
      %p150 = scmp.ne.s32.totalorder %s139, %s140
      %p151 = scmp.eq.s32.totalorder %s16, 0
      %p152 = por %p150, %p151
      %p153 = scmp.ne.s32.totalorder %s139, %s140
      %p154 = scmp.eq.s32.totalorder %s17, 3
      %p155 = por %p153, %p154
      %p157 = scmp.ne.s32.totalorder %s140, %s156
      %p158 = scmp.eq.s32.totalorder %s17, 0
      %p159 = por %p157, %p158
      %p160 = scmp.le.s32.totalorder 1, %s11
      %p161 = scmp.lt.s32.totalorder %s11, 5
      %p162 = pnand %p160, %p161
      %p163 = pneg %p162
      // Predicated region
      $region9: #{_lambda_.37} parent=5 // pred_check
        _
      $region10: #{_lambda_.37} parent=5 // pred_check_branch
        %165 = sbr.rel (%p162) target = $region12
      $region11: #{_lambda_.37} parent=5 // pred_region
        %s166 = ssub.s32 %s11, 1
        // Predicated region
        $region13: #{_lambda_.37} parent=11 // pred_check
          %p167 = pneg %p44
        $region14: #{_lambda_.37} parent=11 // pred_check_branch
          %169 = sbr.rel (%p167) target = $region16
        $region15: #{_lambda_.37} parent=11 // pred_region
          _
        $region16: #{_lambda_.37} parent=11 // pred_fallthru
          _
      $region12: #{_lambda_.37} parent=5 // pred_fallthru
        _
      %p170 = scmp.lt.s32.totalorder %s11, 4
      // Predicated region
      $region17: #{_lambda_.37} parent=5 // pred_check
        %p171 = pneg %p170
      $region18: #{_lambda_.37} parent=5 // pred_check_branch
        %173 = sbr.rel (%p171) target = $region20
      $region19: #{_lambda_.37} parent=5 // pred_region
        // Predicated region
        $region21: #{_lambda_.37} parent=19 // pred_check
          %p174 = pneg %p66
        $region22: #{_lambda_.37} parent=19 // pred_check_branch
          %176 = sbr.rel (%p174) target = $region24
        $region23: #{_lambda_.37} parent=19 // pred_region
          %s177 = sand.u32 %s56, 1
          %s178 = sand.u32 %s56, 1
          %s179 = smul.addr %s178, 1792
          %s180 = scalar_lea.vmem [#allocation4], %s179
          %s181 = smul.u32 16, %s19
          %s182 = smul.addr %s18, 896
          %s183 = sadd.s32 %s181, %s182
          %s184 = smul.addr %s183, 4
          %s185 = scalar_lea.vmem %s1, %s184
          // Predicated region
          $region25: #{_lambda_.37} parent=23 // pred_check
            _
          $region26: #{_lambda_.37} parent=23 // pred_check_branch
            %187 = sbr.rel (0) target = $region28
          $region27: #{_lambda_.37} parent=23 // pred_region
            // Predicated region
            $region29: #{_lambda_.37} parent=27 // pred_check
              _
            $region30: #{_lambda_.37} parent=27 // pred_check_branch
              %189 = sbr.rel (0) target = $region32
            $region31: #{_lambda_.37} parent=27 // pred_region
              loop: start=0, step=1, limit=1
              $region33: #{_lambda_.37} parent=31 // loop_pre_header
                _
              $region34: #{_lambda_.37} parent=31 // loop_header
                %s191 = sphi 0, %s195
                %p192 = scmp.ge.s32.totalorder %s191, 1
                %s196 = sphi %s185, %s185
                %s197 = sphi %s180, %s180
              $region35: #{_lambda_.37} parent=31 // loop_header_branch
                %194 = sbr.rel (%p192) target = $region39
              $region36: #{_lambda_.37} parent=31 // loop_body
                %v198 = vld [vmem:[%s196] sm:$0xff]
                %199 = vst [vmem:[%s197] sm:$0xff] %v198
                %v200 = vld [vmem:[%s196 + $0x8] sm:$0xff]
                %201 = vst [vmem:[%s197 + $0x8] sm:$0xff] %v200
                %v202 = vld [vmem:[%s196 + $0x10] sm:$0xff]
                %203 = vst [vmem:[%s197 + $0x10] sm:$0xff] %v202
                %v204 = vld [vmem:[%s196 + $0x18] sm:$0xff]
                %205 = vst [vmem:[%s197 + $0x18] sm:$0xff] %v204
                %v206 = vld [vmem:[%s196 + $0x20] sm:$0xff]
                %207 = vst [vmem:[%s197 + $0x20] sm:$0xff] %v206
                %v208 = vld [vmem:[%s196 + $0x28] sm:$0xff]
                %209 = vst [vmem:[%s197 + $0x28] sm:$0xff] %v208
                %v210 = vld [vmem:[%s196 + $0x30] sm:$0xff]
                %211 = vst [vmem:[%s197 + $0x30] sm:$0xff] %v210
                %v212 = vld [vmem:[%s196 + $0x38] sm:$0xff]
                %213 = vst [vmem:[%s197 + $0x38] sm:$0xff] %v212
                %v214 = vld [vmem:[%s196 + $0x80] sm:$0xff]
                %215 = vst [vmem:[%s197 + $0x40] sm:$0xff] %v214
                %v216 = vld [vmem:[%s196 + $0x88] sm:$0xff]
                %217 = vst [vmem:[%s197 + $0x48] sm:$0xff] %v216
                %v218 = vld [vmem:[%s196 + $0x90] sm:$0xff]
                %219 = vst [vmem:[%s197 + $0x50] sm:$0xff] %v218
                %v220 = vld [vmem:[%s196 + $0x98] sm:$0xff]
                %221 = vst [vmem:[%s197 + $0x58] sm:$0xff] %v220
                %v222 = vld [vmem:[%s196 + $0xa0] sm:$0xff]
                %223 = vst [vmem:[%s197 + $0x60] sm:$0xff] %v222
                %v224 = vld [vmem:[%s196 + $0xa8] sm:$0xff]
                %225 = vst [vmem:[%s197 + $0x68] sm:$0xff] %v224
                %v226 = vld [vmem:[%s196 + $0xb0] sm:$0xff]
                %227 = vst [vmem:[%s197 + $0x70] sm:$0xff] %v226
                %v228 = vld [vmem:[%s196 + $0xb8] sm:$0xff]
                %229 = vst [vmem:[%s197 + $0x78] sm:$0xff] %v228
                %v230 = vld [vmem:[%s196 + $0x100] sm:$0xff]
                %231 = vst [vmem:[%s197 + $0x80] sm:$0xff] %v230
                %v232 = vld [vmem:[%s196 + $0x108] sm:$0xff]
                %233 = vst [vmem:[%s197 + $0x88] sm:$0xff] %v232
                %v234 = vld [vmem:[%s196 + $0x110] sm:$0xff]
                %235 = vst [vmem:[%s197 + $0x90] sm:$0xff] %v234
                %v236 = vld [vmem:[%s196 + $0x118] sm:$0xff]
                %237 = vst [vmem:[%s197 + $0x98] sm:$0xff] %v236
                %v238 = vld [vmem:[%s196 + $0x120] sm:$0xff]
                %239 = vst [vmem:[%s197 + $0xa0] sm:$0xff] %v238
                %v240 = vld [vmem:[%s196 + $0x128] sm:$0xff]
                %241 = vst [vmem:[%s197 + $0xa8] sm:$0xff] %v240
                %v242 = vld [vmem:[%s196 + $0x130] sm:$0xff]
                %243 = vst [vmem:[%s197 + $0xb0] sm:$0xff] %v242
                %v244 = vld [vmem:[%s196 + $0x138] sm:$0xff]
                %245 = vst [vmem:[%s197 + $0xb8] sm:$0xff] %v244
                %v246 = vld [vmem:[%s196 + $0x180] sm:$0xff]
                %247 = vst [vmem:[%s197 + $0xc0] sm:$0xff] %v246
                %v248 = vld [vmem:[%s196 + $0x188] sm:$0xff]
                %249 = vst [vmem:[%s197 + $0xc8] sm:$0xff] %v248
                %v250 = vld [vmem:[%s196 + $0x190] sm:$0xff]
                %251 = vst [vmem:[%s197 + $0xd0] sm:$0xff] %v250
                %v252 = vld [vmem:[%s196 + $0x198] sm:$0xff]
                %253 = vst [vmem:[%s197 + $0xd8] sm:$0xff] %v252
                %v254 = vld [vmem:[%s196 + $0x1a0] sm:$0xff]
                %255 = vst [vmem:[%s197 + $0xe0] sm:$0xff] %v254
                %v256 = vld [vmem:[%s196 + $0x1a8] sm:$0xff]
                %257 = vst [vmem:[%s197 + $0xe8] sm:$0xff] %v256
                %v258 = vld [vmem:[%s196 + $0x1b0] sm:$0xff]
                %259 = vst [vmem:[%s197 + $0xf0] sm:$0xff] %v258
                %v260 = vld [vmem:[%s196 + $0x1b8] sm:$0xff]
                %261 = vst [vmem:[%s197 + $0xf8] sm:$0xff] %v260
                %v262 = vld [vmem:[%s196 + $0x200] sm:$0xff]
                %263 = vst [vmem:[%s197 + $0x100] sm:$0xff] %v262
                %v264 = vld [vmem:[%s196 + $0x208] sm:$0xff]
                %265 = vst [vmem:[%s197 + $0x108] sm:$0xff] %v264
                %v266 = vld [vmem:[%s196 + $0x210] sm:$0xff]
                %267 = vst [vmem:[%s197 + $0x110] sm:$0xff] %v266
                %v268 = vld [vmem:[%s196 + $0x218] sm:$0xff]
                %269 = vst [vmem:[%s197 + $0x118] sm:$0xff] %v268
                %v270 = vld [vmem:[%s196 + $0x220] sm:$0xff]
                %271 = vst [vmem:[%s197 + $0x120] sm:$0xff] %v270
                %v272 = vld [vmem:[%s196 + $0x228] sm:$0xff]
                %273 = vst [vmem:[%s197 + $0x128] sm:$0xff] %v272
                %v274 = vld [vmem:[%s196 + $0x230] sm:$0xff]
                %275 = vst [vmem:[%s197 + $0x130] sm:$0xff] %v274
                %v276 = vld [vmem:[%s196 + $0x238] sm:$0xff]
                %277 = vst [vmem:[%s197 + $0x138] sm:$0xff] %v276
                %v278 = vld [vmem:[%s196 + $0x280] sm:$0xff]
                %279 = vst [vmem:[%s197 + $0x140] sm:$0xff] %v278
                %v280 = vld [vmem:[%s196 + $0x288] sm:$0xff]
                %281 = vst [vmem:[%s197 + $0x148] sm:$0xff] %v280
                %v282 = vld [vmem:[%s196 + $0x290] sm:$0xff]
                %283 = vst [vmem:[%s197 + $0x150] sm:$0xff] %v282
                %v284 = vld [vmem:[%s196 + $0x298] sm:$0xff]
                %285 = vst [vmem:[%s197 + $0x158] sm:$0xff] %v284
                %v286 = vld [vmem:[%s196 + $0x2a0] sm:$0xff]
                %287 = vst [vmem:[%s197 + $0x160] sm:$0xff] %v286
                %v288 = vld [vmem:[%s196 + $0x2a8] sm:$0xff]
                %289 = vst [vmem:[%s197 + $0x168] sm:$0xff] %v288
                %v290 = vld [vmem:[%s196 + $0x2b0] sm:$0xff]
                %291 = vst [vmem:[%s197 + $0x170] sm:$0xff] %v290
                %v292 = vld [vmem:[%s196 + $0x2b8] sm:$0xff]
                %293 = vst [vmem:[%s197 + $0x178] sm:$0xff] %v292
                %v294 = vld [vmem:[%s196 + $0x300] sm:$0xff]
                %295 = vst [vmem:[%s197 + $0x180] sm:$0xff] %v294
                %v296 = vld [vmem:[%s196 + $0x308] sm:$0xff]
                %297 = vst [vmem:[%s197 + $0x188] sm:$0xff] %v296
                %v298 = vld [vmem:[%s196 + $0x310] sm:$0xff]
                %299 = vst [vmem:[%s197 + $0x190] sm:$0xff] %v298
                %v300 = vld [vmem:[%s196 + $0x318] sm:$0xff]
                %301 = vst [vmem:[%s197 + $0x198] sm:$0xff] %v300
                %v302 = vld [vmem:[%s196 + $0x320] sm:$0xff]
                %303 = vst [vmem:[%s197 + $0x1a0] sm:$0xff] %v302
                %v304 = vld [vmem:[%s196 + $0x328] sm:$0xff]
                %305 = vst [vmem:[%s197 + $0x1a8] sm:$0xff] %v304
                %v306 = vld [vmem:[%s196 + $0x330] sm:$0xff]
                %307 = vst [vmem:[%s197 + $0x1b0] sm:$0xff] %v306
                %v308 = vld [vmem:[%s196 + $0x338] sm:$0xff]
                %309 = vst [vmem:[%s197 + $0x1b8] sm:$0xff] %v308
                %v310 = vld [vmem:[%s196 + $0x380] sm:$0xff]
                %311 = vst [vmem:[%s197 + $0x1c0] sm:$0xff] %v310
                %v312 = vld [vmem:[%s196 + $0x388] sm:$0xff]
                %313 = vst [vmem:[%s197 + $0x1c8] sm:$0xff] %v312
                %v314 = vld [vmem:[%s196 + $0x390] sm:$0xff]
                %315 = vst [vmem:[%s197 + $0x1d0] sm:$0xff] %v314
                %v316 = vld [vmem:[%s196 + $0x398] sm:$0xff]
                %317 = vst [vmem:[%s197 + $0x1d8] sm:$0xff] %v316
                %v318 = vld [vmem:[%s196 + $0x3a0] sm:$0xff]
                %319 = vst [vmem:[%s197 + $0x1e0] sm:$0xff] %v318
                %v320 = vld [vmem:[%s196 + $0x3a8] sm:$0xff]
                %321 = vst [vmem:[%s197 + $0x1e8] sm:$0xff] %v320
                %v322 = vld [vmem:[%s196 + $0x3b0] sm:$0xff]
                %323 = vst [vmem:[%s197 + $0x1f0] sm:$0xff] %v322
                %v324 = vld [vmem:[%s196 + $0x3b8] sm:$0xff]
                %325 = vst [vmem:[%s197 + $0x1f8] sm:$0xff] %v324
                %v326 = vld [vmem:[%s196 + $0x400] sm:$0xff]
                %327 = vst [vmem:[%s197 + $0x200] sm:$0xff] %v326
                %v328 = vld [vmem:[%s196 + $0x408] sm:$0xff]
                %329 = vst [vmem:[%s197 + $0x208] sm:$0xff] %v328
                %v330 = vld [vmem:[%s196 + $0x410] sm:$0xff]
                %331 = vst [vmem:[%s197 + $0x210] sm:$0xff] %v330
                %v332 = vld [vmem:[%s196 + $0x418] sm:$0xff]
                %333 = vst [vmem:[%s197 + $0x218] sm:$0xff] %v332
                %v334 = vld [vmem:[%s196 + $0x420] sm:$0xff]
                %335 = vst [vmem:[%s197 + $0x220] sm:$0xff] %v334
                %v336 = vld [vmem:[%s196 + $0x428] sm:$0xff]
                %337 = vst [vmem:[%s197 + $0x228] sm:$0xff] %v336
                %v338 = vld [vmem:[%s196 + $0x430] sm:$0xff]
                %339 = vst [vmem:[%s197 + $0x230] sm:$0xff] %v338
                %v340 = vld [vmem:[%s196 + $0x438] sm:$0xff]
                %341 = vst [vmem:[%s197 + $0x238] sm:$0xff] %v340
                %v342 = vld [vmem:[%s196 + $0x480] sm:$0xff]
                %343 = vst [vmem:[%s197 + $0x240] sm:$0xff] %v342
                %v344 = vld [vmem:[%s196 + $0x488] sm:$0xff]
                %345 = vst [vmem:[%s197 + $0x248] sm:$0xff] %v344
                %v346 = vld [vmem:[%s196 + $0x490] sm:$0xff]
                %347 = vst [vmem:[%s197 + $0x250] sm:$0xff] %v346
                %v348 = vld [vmem:[%s196 + $0x498] sm:$0xff]
                %349 = vst [vmem:[%s197 + $0x258] sm:$0xff] %v348
                %v350 = vld [vmem:[%s196 + $0x4a0] sm:$0xff]
                %351 = vst [vmem:[%s197 + $0x260] sm:$0xff] %v350
                %v352 = vld [vmem:[%s196 + $0x4a8] sm:$0xff]
                %353 = vst [vmem:[%s197 + $0x268] sm:$0xff] %v352
                %v354 = vld [vmem:[%s196 + $0x4b0] sm:$0xff]
                %355 = vst [vmem:[%s197 + $0x270] sm:$0xff] %v354
                %v356 = vld [vmem:[%s196 + $0x4b8] sm:$0xff]
                %357 = vst [vmem:[%s197 + $0x278] sm:$0xff] %v356
                %v358 = vld [vmem:[%s196 + $0x500] sm:$0xff]
                %359 = vst [vmem:[%s197 + $0x280] sm:$0xff] %v358
                %v360 = vld [vmem:[%s196 + $0x508] sm:$0xff]
                %361 = vst [vmem:[%s197 + $0x288] sm:$0xff] %v360
                %v362 = vld [vmem:[%s196 + $0x510] sm:$0xff]
                %363 = vst [vmem:[%s197 + $0x290] sm:$0xff] %v362
                %v364 = vld [vmem:[%s196 + $0x518] sm:$0xff]
                %365 = vst [vmem:[%s197 + $0x298] sm:$0xff] %v364
                %v366 = vld [vmem:[%s196 + $0x520] sm:$0xff]
                %367 = vst [vmem:[%s197 + $0x2a0] sm:$0xff] %v366
                %v368 = vld [vmem:[%s196 + $0x528] sm:$0xff]
                %369 = vst [vmem:[%s197 + $0x2a8] sm:$0xff] %v368
                %v370 = vld [vmem:[%s196 + $0x530] sm:$0xff]
                %371 = vst [vmem:[%s197 + $0x2b0] sm:$0xff] %v370
                %v372 = vld [vmem:[%s196 + $0x538] sm:$0xff]
                %373 = vst [vmem:[%s197 + $0x2b8] sm:$0xff] %v372
                %v374 = vld [vmem:[%s196 + $0x580] sm:$0xff]
                %375 = vst [vmem:[%s197 + $0x2c0] sm:$0xff] %v374
                %v376 = vld [vmem:[%s196 + $0x588] sm:$0xff]
                %377 = vst [vmem:[%s197 + $0x2c8] sm:$0xff] %v376
                %v378 = vld [vmem:[%s196 + $0x590] sm:$0xff]
                %379 = vst [vmem:[%s197 + $0x2d0] sm:$0xff] %v378
                %v380 = vld [vmem:[%s196 + $0x598] sm:$0xff]
                %381 = vst [vmem:[%s197 + $0x2d8] sm:$0xff] %v380
                %v382 = vld [vmem:[%s196 + $0x5a0] sm:$0xff]
                %383 = vst [vmem:[%s197 + $0x2e0] sm:$0xff] %v382
                %v384 = vld [vmem:[%s196 + $0x5a8] sm:$0xff]
                %385 = vst [vmem:[%s197 + $0x2e8] sm:$0xff] %v384
                %v386 = vld [vmem:[%s196 + $0x5b0] sm:$0xff]
                %387 = vst [vmem:[%s197 + $0x2f0] sm:$0xff] %v386
                %v388 = vld [vmem:[%s196 + $0x5b8] sm:$0xff]
                %389 = vst [vmem:[%s197 + $0x2f8] sm:$0xff] %v388
                %v390 = vld [vmem:[%s196 + $0x600] sm:$0xff]
                %391 = vst [vmem:[%s197 + $0x300] sm:$0xff] %v390
                %v392 = vld [vmem:[%s196 + $0x608] sm:$0xff]
                %393 = vst [vmem:[%s197 + $0x308] sm:$0xff] %v392
                %v394 = vld [vmem:[%s196 + $0x610] sm:$0xff]
                %395 = vst [vmem:[%s197 + $0x310] sm:$0xff] %v394
                %v396 = vld [vmem:[%s196 + $0x618] sm:$0xff]
                %397 = vst [vmem:[%s197 + $0x318] sm:$0xff] %v396
                %v398 = vld [vmem:[%s196 + $0x620] sm:$0xff]
                %399 = vst [vmem:[%s197 + $0x320] sm:$0xff] %v398
                %v400 = vld [vmem:[%s196 + $0x628] sm:$0xff]
                %401 = vst [vmem:[%s197 + $0x328] sm:$0xff] %v400
                %v402 = vld [vmem:[%s196 + $0x630] sm:$0xff]
                %403 = vst [vmem:[%s197 + $0x330] sm:$0xff] %v402
                %v404 = vld [vmem:[%s196 + $0x638] sm:$0xff]
                %405 = vst [vmem:[%s197 + $0x338] sm:$0xff] %v404
                %v406 = vld [vmem:[%s196 + $0x680] sm:$0xff]
                %407 = vst [vmem:[%s197 + $0x340] sm:$0xff] %v406
                %v408 = vld [vmem:[%s196 + $0x688] sm:$0xff]
                %409 = vst [vmem:[%s197 + $0x348] sm:$0xff] %v408
                %v410 = vld [vmem:[%s196 + $0x690] sm:$0xff]
                %411 = vst [vmem:[%s197 + $0x350] sm:$0xff] %v410
                %v412 = vld [vmem:[%s196 + $0x698] sm:$0xff]
                %413 = vst [vmem:[%s197 + $0x358] sm:$0xff] %v412
                %v414 = vld [vmem:[%s196 + $0x6a0] sm:$0xff]
                %415 = vst [vmem:[%s197 + $0x360] sm:$0xff] %v414
                %v416 = vld [vmem:[%s196 + $0x6a8] sm:$0xff]
                %417 = vst [vmem:[%s197 + $0x368] sm:$0xff] %v416
                %v418 = vld [vmem:[%s196 + $0x6b0] sm:$0xff]
                %419 = vst [vmem:[%s197 + $0x370] sm:$0xff] %v418
                %v420 = vld [vmem:[%s196 + $0x6b8] sm:$0xff]
                %421 = vst [vmem:[%s197 + $0x378] sm:$0xff] %v420
                %v422 = vld [vmem:[%s196 + $0x700] sm:$0xff]
                %423 = vst [vmem:[%s197 + $0x380] sm:$0xff] %v422
                %v424 = vld [vmem:[%s196 + $0x708] sm:$0xff]
                %425 = vst [vmem:[%s197 + $0x388] sm:$0xff] %v424
                %v426 = vld [vmem:[%s196 + $0x710] sm:$0xff]
                %427 = vst [vmem:[%s197 + $0x390] sm:$0xff] %v426
                %v428 = vld [vmem:[%s196 + $0x718] sm:$0xff]
                %429 = vst [vmem:[%s197 + $0x398] sm:$0xff] %v428
                %v430 = vld [vmem:[%s196 + $0x720] sm:$0xff]
                %431 = vst [vmem:[%s197 + $0x3a0] sm:$0xff] %v430
                %v432 = vld [vmem:[%s196 + $0x728] sm:$0xff]
                %433 = vst [vmem:[%s197 + $0x3a8] sm:$0xff] %v432
                %v434 = vld [vmem:[%s196 + $0x730] sm:$0xff]
                %435 = vst [vmem:[%s197 + $0x3b0] sm:$0xff] %v434
                %v436 = vld [vmem:[%s196 + $0x738] sm:$0xff]
                %437 = vst [vmem:[%s197 + $0x3b8] sm:$0xff] %v436
                %v438 = vld [vmem:[%s196 + $0x780] sm:$0xff]
                %439 = vst [vmem:[%s197 + $0x3c0] sm:$0xff] %v438
                %v440 = vld [vmem:[%s196 + $0x788] sm:$0xff]
                %441 = vst [vmem:[%s197 + $0x3c8] sm:$0xff] %v440
                %v442 = vld [vmem:[%s196 + $0x790] sm:$0xff]
                %443 = vst [vmem:[%s197 + $0x3d0] sm:$0xff] %v442
                %v444 = vld [vmem:[%s196 + $0x798] sm:$0xff]
                %445 = vst [vmem:[%s197 + $0x3d8] sm:$0xff] %v444
                %v446 = vld [vmem:[%s196 + $0x7a0] sm:$0xff]
                %447 = vst [vmem:[%s197 + $0x3e0] sm:$0xff] %v446
                %v448 = vld [vmem:[%s196 + $0x7a8] sm:$0xff]
                %449 = vst [vmem:[%s197 + $0x3e8] sm:$0xff] %v448
                %v450 = vld [vmem:[%s196 + $0x7b0] sm:$0xff]
                %451 = vst [vmem:[%s197 + $0x3f0] sm:$0xff] %v450
                %v452 = vld [vmem:[%s196 + $0x7b8] sm:$0xff]
                %453 = vst [vmem:[%s197 + $0x3f8] sm:$0xff] %v452
                %v454 = vld [vmem:[%s196 + $0x800] sm:$0xff]
                %455 = vst [vmem:[%s197 + $0x400] sm:$0xff] %v454
                %v456 = vld [vmem:[%s196 + $0x808] sm:$0xff]
                %457 = vst [vmem:[%s197 + $0x408] sm:$0xff] %v456
                %v458 = vld [vmem:[%s196 + $0x810] sm:$0xff]
                %459 = vst [vmem:[%s197 + $0x410] sm:$0xff] %v458
                %v460 = vld [vmem:[%s196 + $0x818] sm:$0xff]
                %461 = vst [vmem:[%s197 + $0x418] sm:$0xff] %v460
                %v462 = vld [vmem:[%s196 + $0x820] sm:$0xff]
                %463 = vst [vmem:[%s197 + $0x420] sm:$0xff] %v462
                %v464 = vld [vmem:[%s196 + $0x828] sm:$0xff]
                %465 = vst [vmem:[%s197 + $0x428] sm:$0xff] %v464
                %v466 = vld [vmem:[%s196 + $0x830] sm:$0xff]
                %467 = vst [vmem:[%s197 + $0x430] sm:$0xff] %v466
                %v468 = vld [vmem:[%s196 + $0x838] sm:$0xff]
                %469 = vst [vmem:[%s197 + $0x438] sm:$0xff] %v468
                %v470 = vld [vmem:[%s196 + $0x880] sm:$0xff]
                %471 = vst [vmem:[%s197 + $0x440] sm:$0xff] %v470
                %v472 = vld [vmem:[%s196 + $0x888] sm:$0xff]
                %473 = vst [vmem:[%s197 + $0x448] sm:$0xff] %v472
                %v474 = vld [vmem:[%s196 + $0x890] sm:$0xff]
                %475 = vst [vmem:[%s197 + $0x450] sm:$0xff] %v474
                %v476 = vld [vmem:[%s196 + $0x898] sm:$0xff]
                %477 = vst [vmem:[%s197 + $0x458] sm:$0xff] %v476
                %v478 = vld [vmem:[%s196 + $0x8a0] sm:$0xff]
                %479 = vst [vmem:[%s197 + $0x460] sm:$0xff] %v478
                %v480 = vld [vmem:[%s196 + $0x8a8] sm:$0xff]
                %481 = vst [vmem:[%s197 + $0x468] sm:$0xff] %v480
                %v482 = vld [vmem:[%s196 + $0x8b0] sm:$0xff]
                %483 = vst [vmem:[%s197 + $0x470] sm:$0xff] %v482
                %v484 = vld [vmem:[%s196 + $0x8b8] sm:$0xff]
                %485 = vst [vmem:[%s197 + $0x478] sm:$0xff] %v484
                %v486 = vld [vmem:[%s196 + $0x900] sm:$0xff]
                %487 = vst [vmem:[%s197 + $0x480] sm:$0xff] %v486
                %v488 = vld [vmem:[%s196 + $0x908] sm:$0xff]
                %489 = vst [vmem:[%s197 + $0x488] sm:$0xff] %v488
                %v490 = vld [vmem:[%s196 + $0x910] sm:$0xff]
                %491 = vst [vmem:[%s197 + $0x490] sm:$0xff] %v490
                %v492 = vld [vmem:[%s196 + $0x918] sm:$0xff]
                %493 = vst [vmem:[%s197 + $0x498] sm:$0xff] %v492
                %v494 = vld [vmem:[%s196 + $0x920] sm:$0xff]
                %495 = vst [vmem:[%s197 + $0x4a0] sm:$0xff] %v494
                %v496 = vld [vmem:[%s196 + $0x928] sm:$0xff]
                %497 = vst [vmem:[%s197 + $0x4a8] sm:$0xff] %v496
                %v498 = vld [vmem:[%s196 + $0x930] sm:$0xff]
                %499 = vst [vmem:[%s197 + $0x4b0] sm:$0xff] %v498
                %v500 = vld [vmem:[%s196 + $0x938] sm:$0xff]
                %501 = vst [vmem:[%s197 + $0x4b8] sm:$0xff] %v500
                %v502 = vld [vmem:[%s196 + $0x980] sm:$0xff]
                %503 = vst [vmem:[%s197 + $0x4c0] sm:$0xff] %v502
                %v504 = vld [vmem:[%s196 + $0x988] sm:$0xff]
                %505 = vst [vmem:[%s197 + $0x4c8] sm:$0xff] %v504
                %v506 = vld [vmem:[%s196 + $0x990] sm:$0xff]
                %507 = vst [vmem:[%s197 + $0x4d0] sm:$0xff] %v506
                %v508 = vld [vmem:[%s196 + $0x998] sm:$0xff]
                %509 = vst [vmem:[%s197 + $0x4d8] sm:$0xff] %v508
                %v510 = vld [vmem:[%s196 + $0x9a0] sm:$0xff]
                %511 = vst [vmem:[%s197 + $0x4e0] sm:$0xff] %v510
                %v512 = vld [vmem:[%s196 + $0x9a8] sm:$0xff]
                %513 = vst [vmem:[%s197 + $0x4e8] sm:$0xff] %v512
                %v514 = vld [vmem:[%s196 + $0x9b0] sm:$0xff]
                %515 = vst [vmem:[%s197 + $0x4f0] sm:$0xff] %v514
                %v516 = vld [vmem:[%s196 + $0x9b8] sm:$0xff]
                %517 = vst [vmem:[%s197 + $0x4f8] sm:$0xff] %v516
                %v518 = vld [vmem:[%s196 + $0xa00] sm:$0xff]
                %519 = vst [vmem:[%s197 + $0x500] sm:$0xff] %v518
                %v520 = vld [vmem:[%s196 + $0xa08] sm:$0xff]
                %521 = vst [vmem:[%s197 + $0x508] sm:$0xff] %v520
                %v522 = vld [vmem:[%s196 + $0xa10] sm:$0xff]
                %523 = vst [vmem:[%s197 + $0x510] sm:$0xff] %v522
                %v524 = vld [vmem:[%s196 + $0xa18] sm:$0xff]
                %525 = vst [vmem:[%s197 + $0x518] sm:$0xff] %v524
                %v526 = vld [vmem:[%s196 + $0xa20] sm:$0xff]
                %527 = vst [vmem:[%s197 + $0x520] sm:$0xff] %v526
                %v528 = vld [vmem:[%s196 + $0xa28] sm:$0xff]
                %529 = vst [vmem:[%s197 + $0x528] sm:$0xff] %v528
                %v530 = vld [vmem:[%s196 + $0xa30] sm:$0xff]
                %531 = vst [vmem:[%s197 + $0x530] sm:$0xff] %v530
                %v532 = vld [vmem:[%s196 + $0xa38] sm:$0xff]
                %533 = vst [vmem:[%s197 + $0x538] sm:$0xff] %v532
                %v534 = vld [vmem:[%s196 + $0xa80] sm:$0xff]
                %535 = vst [vmem:[%s197 + $0x540] sm:$0xff] %v534
                %v536 = vld [vmem:[%s196 + $0xa88] sm:$0xff]
                %537 = vst [vmem:[%s197 + $0x548] sm:$0xff] %v536
                %v538 = vld [vmem:[%s196 + $0xa90] sm:$0xff]
                %539 = vst [vmem:[%s197 + $0x550] sm:$0xff] %v538
                %v540 = vld [vmem:[%s196 + $0xa98] sm:$0xff]
                %541 = vst [vmem:[%s197 + $0x558] sm:$0xff] %v540
                %v542 = vld [vmem:[%s196 + $0xaa0] sm:$0xff]
                %543 = vst [vmem:[%s197 + $0x560] sm:$0xff] %v542
                %v544 = vld [vmem:[%s196 + $0xaa8] sm:$0xff]
                %545 = vst [vmem:[%s197 + $0x568] sm:$0xff] %v544
                %v546 = vld [vmem:[%s196 + $0xab0] sm:$0xff]
                %547 = vst [vmem:[%s197 + $0x570] sm:$0xff] %v546
                %v548 = vld [vmem:[%s196 + $0xab8] sm:$0xff]
                %549 = vst [vmem:[%s197 + $0x578] sm:$0xff] %v548
                %v550 = vld [vmem:[%s196 + $0xb00] sm:$0xff]
                %551 = vst [vmem:[%s197 + $0x580] sm:$0xff] %v550
                %v552 = vld [vmem:[%s196 + $0xb08] sm:$0xff]
                %553 = vst [vmem:[%s197 + $0x588] sm:$0xff] %v552
                %v554 = vld [vmem:[%s196 + $0xb10] sm:$0xff]
                %555 = vst [vmem:[%s197 + $0x590] sm:$0xff] %v554
                %v556 = vld [vmem:[%s196 + $0xb18] sm:$0xff]
                %557 = vst [vmem:[%s197 + $0x598] sm:$0xff] %v556
                %v558 = vld [vmem:[%s196 + $0xb20] sm:$0xff]
                %559 = vst [vmem:[%s197 + $0x5a0] sm:$0xff] %v558
                %v560 = vld [vmem:[%s196 + $0xb28] sm:$0xff]
                %561 = vst [vmem:[%s197 + $0x5a8] sm:$0xff] %v560
                %v562 = vld [vmem:[%s196 + $0xb30] sm:$0xff]
                %563 = vst [vmem:[%s197 + $0x5b0] sm:$0xff] %v562
                %v564 = vld [vmem:[%s196 + $0xb38] sm:$0xff]
                %565 = vst [vmem:[%s197 + $0x5b8] sm:$0xff] %v564
                %v566 = vld [vmem:[%s196 + $0xb80] sm:$0xff]
                %567 = vst [vmem:[%s197 + $0x5c0] sm:$0xff] %v566
                %v568 = vld [vmem:[%s196 + $0xb88] sm:$0xff]
                %569 = vst [vmem:[%s197 + $0x5c8] sm:$0xff] %v568
                %v570 = vld [vmem:[%s196 + $0xb90] sm:$0xff]
                %571 = vst [vmem:[%s197 + $0x5d0] sm:$0xff] %v570
                %v572 = vld [vmem:[%s196 + $0xb98] sm:$0xff]
                %573 = vst [vmem:[%s197 + $0x5d8] sm:$0xff] %v572
                %v574 = vld [vmem:[%s196 + $0xba0] sm:$0xff]
                %575 = vst [vmem:[%s197 + $0x5e0] sm:$0xff] %v574
                %v576 = vld [vmem:[%s196 + $0xba8] sm:$0xff]
                %577 = vst [vmem:[%s197 + $0x5e8] sm:$0xff] %v576
                %v578 = vld [vmem:[%s196 + $0xbb0] sm:$0xff]
                %579 = vst [vmem:[%s197 + $0x5f0] sm:$0xff] %v578
                %v580 = vld [vmem:[%s196 + $0xbb8] sm:$0xff]
                %581 = vst [vmem:[%s197 + $0x5f8] sm:$0xff] %v580
                %v582 = vld [vmem:[%s196 + $0xc00] sm:$0xff]
                %583 = vst [vmem:[%s197 + $0x600] sm:$0xff] %v582
                %v584 = vld [vmem:[%s196 + $0xc08] sm:$0xff]
                %585 = vst [vmem:[%s197 + $0x608] sm:$0xff] %v584
                %v586 = vld [vmem:[%s196 + $0xc10] sm:$0xff]
                %587 = vst [vmem:[%s197 + $0x610] sm:$0xff] %v586
                %v588 = vld [vmem:[%s196 + $0xc18] sm:$0xff]
                %589 = vst [vmem:[%s197 + $0x618] sm:$0xff] %v588
                %v590 = vld [vmem:[%s196 + $0xc20] sm:$0xff]
                %591 = vst [vmem:[%s197 + $0x620] sm:$0xff] %v590
                %v592 = vld [vmem:[%s196 + $0xc28] sm:$0xff]
                %593 = vst [vmem:[%s197 + $0x628] sm:$0xff] %v592
                %v594 = vld [vmem:[%s196 + $0xc30] sm:$0xff]
                %595 = vst [vmem:[%s197 + $0x630] sm:$0xff] %v594
                %v596 = vld [vmem:[%s196 + $0xc38] sm:$0xff]
                %597 = vst [vmem:[%s197 + $0x638] sm:$0xff] %v596
                %v598 = vld [vmem:[%s196 + $0xc80] sm:$0xff]
                %599 = vst [vmem:[%s197 + $0x640] sm:$0xff] %v598
                %v600 = vld [vmem:[%s196 + $0xc88] sm:$0xff]
                %601 = vst [vmem:[%s197 + $0x648] sm:$0xff] %v600
                %v602 = vld [vmem:[%s196 + $0xc90] sm:$0xff]
                %603 = vst [vmem:[%s197 + $0x650] sm:$0xff] %v602
                %v604 = vld [vmem:[%s196 + $0xc98] sm:$0xff]
                %605 = vst [vmem:[%s197 + $0x658] sm:$0xff] %v604
                %v606 = vld [vmem:[%s196 + $0xca0] sm:$0xff]
                %607 = vst [vmem:[%s197 + $0x660] sm:$0xff] %v606
                %v608 = vld [vmem:[%s196 + $0xca8] sm:$0xff]
                %609 = vst [vmem:[%s197 + $0x668] sm:$0xff] %v608
                %v610 = vld [vmem:[%s196 + $0xcb0] sm:$0xff]
                %611 = vst [vmem:[%s197 + $0x670] sm:$0xff] %v610
                %v612 = vld [vmem:[%s196 + $0xcb8] sm:$0xff]
                %613 = vst [vmem:[%s197 + $0x678] sm:$0xff] %v612
                %v614 = vld [vmem:[%s196 + $0xd00] sm:$0xff]
                %615 = vst [vmem:[%s197 + $0x680] sm:$0xff] %v614
                %v616 = vld [vmem:[%s196 + $0xd08] sm:$0xff]
                %617 = vst [vmem:[%s197 + $0x688] sm:$0xff] %v616
                %v618 = vld [vmem:[%s196 + $0xd10] sm:$0xff]
                %619 = vst [vmem:[%s197 + $0x690] sm:$0xff] %v618
                %v620 = vld [vmem:[%s196 + $0xd18] sm:$0xff]
                %621 = vst [vmem:[%s197 + $0x698] sm:$0xff] %v620
                %v622 = vld [vmem:[%s196 + $0xd20] sm:$0xff]
                %623 = vst [vmem:[%s197 + $0x6a0] sm:$0xff] %v622
                %v624 = vld [vmem:[%s196 + $0xd28] sm:$0xff]
                %625 = vst [vmem:[%s197 + $0x6a8] sm:$0xff] %v624
                %v626 = vld [vmem:[%s196 + $0xd30] sm:$0xff]
                %627 = vst [vmem:[%s197 + $0x6b0] sm:$0xff] %v626
                %v628 = vld [vmem:[%s196 + $0xd38] sm:$0xff]
                %629 = vst [vmem:[%s197 + $0x6b8] sm:$0xff] %v628
                %v630 = vld [vmem:[%s196 + $0xd80] sm:$0xff]
                %631 = vst [vmem:[%s197 + $0x6c0] sm:$0xff] %v630
                %v632 = vld [vmem:[%s196 + $0xd88] sm:$0xff]
                %633 = vst [vmem:[%s197 + $0x6c8] sm:$0xff] %v632
                %v634 = vld [vmem:[%s196 + $0xd90] sm:$0xff]
                %635 = vst [vmem:[%s197 + $0x6d0] sm:$0xff] %v634
                %v636 = vld [vmem:[%s196 + $0xd98] sm:$0xff]
                %637 = vst [vmem:[%s197 + $0x6d8] sm:$0xff] %v636
                %v638 = vld [vmem:[%s196 + $0xda0] sm:$0xff]
                %639 = vst [vmem:[%s197 + $0x6e0] sm:$0xff] %v638
                %v640 = vld [vmem:[%s196 + $0xda8] sm:$0xff]
                %641 = vst [vmem:[%s197 + $0x6e8] sm:$0xff] %v640
                %v642 = vld [vmem:[%s196 + $0xdb0] sm:$0xff]
                %643 = vst [vmem:[%s197 + $0x6f0] sm:$0xff] %v642
                %v644 = vld [vmem:[%s196 + $0xdb8] sm:$0xff]
                %645 = vst [vmem:[%s197 + $0x6f8] sm:$0xff] %v644
              $region37: #{_lambda_.37} parent=31 // loop_footer
                %s195 = sadd.s32 1, %s191
              $region38: #{_lambda_.37} parent=31 // loop_footer_branch
                %190 = sbr.rel target = $region34
              $region39: #{_lambda_.37} parent=31 // loop_exit
                _
            $region32: #{_lambda_.37} parent=27 // pred_fallthru
              _
            // Predicated region
            $region40: #{_lambda_.37} parent=27 // pred_check
              _
            $region41: #{_lambda_.37} parent=27 // pred_check_branch
              %647 = sbr.rel target = $region43
            $region42: #{_lambda_.37} parent=27 // pred_region
              _
            $region43: #{_lambda_.37} parent=27 // pred_fallthru
              _
          $region28: #{_lambda_.37} parent=23 // pred_fallthru
            _
          %648 = vnop
        $region24: #{_lambda_.37} parent=19 // pred_fallthru
          _
      $region20: #{_lambda_.37} parent=5 // pred_fallthru
        _
      %p649 = scmp.le.s32.totalorder 1, %s11
      %p650 = scmp.lt.s32.totalorder %s11, 5
      %p651 = pnand %p649, %p650
      %p652 = pneg %p651
      // Predicated region
      $region44: #{_lambda_.37} parent=5 // pred_check
        _
      $region45: #{_lambda_.37} parent=5 // pred_check_branch
        %654 = sbr.rel (%p651) target = $region47
      $region46: #{_lambda_.37} parent=5 // pred_region
        %s655 = ssub.s32 %s11, 1
        %s656 = sand.u32 %s59, 1
        %s657 = sand.u32 %s59, 1
        %s658 = smul.addr %s657, 1792
        %s659 = scalar_lea.vmem [#allocation4], %s658
        // Predicated region
        $region48: #{_lambda_.37} parent=46 // pred_check
          %p660 = pneg %p72
        $region49: #{_lambda_.37} parent=46 // pred_check_branch
          %662 = sbr.rel (%p660) target = $region51
        $region50: #{_lambda_.37} parent=46 // pred_region
          _
        $region51: #{_lambda_.37} parent=46 // pred_fallthru
          _
        %p663 = pneg %p44
        %p664 = pneg %p41
        %s665 = sand.u32 %s59, 1
        %s666 = sand.u32 %s59, 1
        %s667 = smul.addr %s666, 1792
        %s668 = scalar_lea.vmem [#allocation4], %s667
        %p669 = pneg %p72
        %p670 = pneg %p69
        %p671 = pneg %p100
        %p672 = pneg %p97
        %s673 = smul.u32 16, %s21
        %p674 = scmp.lt.s32.totalorder %s20, 1
        %s675 = scalar_select %p674, %s20, 1
        %p676 = scmp.lt.s32.totalorder %s673, 31
        %s677 = scalar_select %p676, %s673, 31
        %s678 = smul.addr %s675, 32
        %s679 = sadd.s32 %s677, %s678
        %s680 = smul.addr %s679, 4
        %s681 = scalar_lea.vmem %s2, %s680
        %p682 = pneg %p126
        %p683 = pneg %p123
        %p684 = scmp.lt.s32.totalorder %s20, 1
        %s685 = scalar_select %p684, %s20, 1
        %s686 = smul.addr %s685, 4
        %s687 = scalar_lea.vmem %s3, %s686
        %p688 = pneg %p152
        %p689 = pneg %p149
        %p690 = scmp.lt.s32.totalorder %s20, 1
        %s691 = scalar_select %p690, %s20, 1
        %s692 = smul.addr %s691, 4
        %s693 = scalar_lea.vmem %s4, %s692
        %s694 = smul.u32 16, %s21
        %s695 = smul.u32 16, %s21
        %p696 = scmp.lt.s32.totalorder %s20, 1
        %s697 = scalar_select %p696, %s20, 1
        %p698 = scmp.lt.s32.totalorder %s695, 31
        %s699 = scalar_select %p698, %s695, 31
        %s700 = smul.addr %s697, 32
        %s701 = sadd.s32 %s699, %s700
        %s702 = smul.addr %s701, 4
        %s703 = scalar_lea.vmem %s2, %s702
        %s704 = smul.u32 16, %s21
        %p705 = scmp.lt.s32.totalorder %s20, 1
        %s706 = scalar_select %p705, %s20, 1
        %s707 = smul.addr %s706, 4
        %s708 = scalar_lea.vmem %s3, %s707
        %p709 = scmp.lt.s32.totalorder %s20, 1
        %s710 = scalar_select %p709, %s20, 1
        %s711 = smul.addr %s710, 4
        %s712 = scalar_lea.vmem %s4, %s711
        %p714 = scmp.eq.s32.totalorder %s21, 0
        // Predicated region
        $region52: #{_lambda_.37} parent=46 // pred_check
          %p715 = pneg %p714
        $region53: #{_lambda_.37} parent=46 // pred_check_branch
          %717 = sbr.rel (%p715) target = $region55
        $region54: #{_lambda_.37} parent=46 // pred_region
          %vm718 = vcmask 3072
          %719 = vst.msk [vmem:[#allocation2] sm:$0xf] %vm718, 0.0
          %720 = vst.msk [vmem:[#allocation3] sm:$0xf] %vm718, 0.0
        $region55: #{_lambda_.37} parent=46 // pred_fallthru
          _
        %v721 = vld [vmem:[%s0] sm:$0xf]
        %v722 = vld [vmem:[%s659] sm:$0xff]
        %v723 = vld [vmem:[%s659 + $0x8] sm:$0xff]
        %v724 = vld [vmem:[%s659 + $0x10] sm:$0xff]
        %v725 = vld [vmem:[%s659 + $0x18] sm:$0xff]
        %v726 = vld [vmem:[%s659 + $0x20] sm:$0xff]
        %v727 = vld [vmem:[%s659 + $0x28] sm:$0xff]
        %v728 = vld [vmem:[%s659 + $0x30] sm:$0xff]
        %v729 = vld [vmem:[%s659 + $0x38] sm:$0xff]
        %v730 = vld [vmem:[%s659 + $0x40] sm:$0xff]
        %v731 = vld [vmem:[%s659 + $0x48] sm:$0xff]
        %v732 = vld [vmem:[%s659 + $0x50] sm:$0xff]
        %v733 = vld [vmem:[%s659 + $0x58] sm:$0xff]
        %v734 = vld [vmem:[%s659 + $0x60] sm:$0xff]
        %v735 = vld [vmem:[%s659 + $0x68] sm:$0xff]
        %v736 = vld [vmem:[%s659 + $0x70] sm:$0xff]
        %v737 = vld [vmem:[%s659 + $0x78] sm:$0xff]
        %v738 = vld [vmem:[%s659 + $0x80] sm:$0xff]
        %v739 = vld [vmem:[%s659 + $0x88] sm:$0xff]
        %v740 = vld [vmem:[%s659 + $0x90] sm:$0xff]
        %v741 = vld [vmem:[%s659 + $0x98] sm:$0xff]
        %v742 = vld [vmem:[%s659 + $0xa0] sm:$0xff]
        %v743 = vld [vmem:[%s659 + $0xa8] sm:$0xff]
        %v744 = vld [vmem:[%s659 + $0xb0] sm:$0xff]
        %v745 = vld [vmem:[%s659 + $0xb8] sm:$0xff]
        %v746 = vld [vmem:[%s659 + $0xc0] sm:$0xff]
        %v747 = vld [vmem:[%s659 + $0xc8] sm:$0xff]
        %v748 = vld [vmem:[%s659 + $0xd0] sm:$0xff]
        %v749 = vld [vmem:[%s659 + $0xd8] sm:$0xff]
        %v750 = vld [vmem:[%s659 + $0xe0] sm:$0xff]
        %v751 = vld [vmem:[%s659 + $0xe8] sm:$0xff]
        %v752 = vld [vmem:[%s659 + $0xf0] sm:$0xff]
        %v753 = vld [vmem:[%s659 + $0xf8] sm:$0xff]
        %v754 = vld [vmem:[%s659 + $0x100] sm:$0xff]
        %v755 = vld [vmem:[%s659 + $0x108] sm:$0xff]
        %v756 = vld [vmem:[%s659 + $0x110] sm:$0xff]
        %v757 = vld [vmem:[%s659 + $0x118] sm:$0xff]
        %v758 = vld [vmem:[%s659 + $0x120] sm:$0xff]
        %v759 = vld [vmem:[%s659 + $0x128] sm:$0xff]
        %v760 = vld [vmem:[%s659 + $0x130] sm:$0xff]
        %v761 = vld [vmem:[%s659 + $0x138] sm:$0xff]
        %v762 = vld [vmem:[%s659 + $0x140] sm:$0xff]
        %v763 = vld [vmem:[%s659 + $0x148] sm:$0xff]
        %v764 = vld [vmem:[%s659 + $0x150] sm:$0xff]
        %v765 = vld [vmem:[%s659 + $0x158] sm:$0xff]
        %v766 = vld [vmem:[%s659 + $0x160] sm:$0xff]
        %v767 = vld [vmem:[%s659 + $0x168] sm:$0xff]
        %v768 = vld [vmem:[%s659 + $0x170] sm:$0xff]
        %v769 = vld [vmem:[%s659 + $0x178] sm:$0xff]
        %v770 = vld [vmem:[%s659 + $0x180] sm:$0xff]
        %v771 = vld [vmem:[%s659 + $0x188] sm:$0xff]
        %v772 = vld [vmem:[%s659 + $0x190] sm:$0xff]
        %v773 = vld [vmem:[%s659 + $0x198] sm:$0xff]
        %v774 = vld [vmem:[%s659 + $0x1a0] sm:$0xff]
        %v775 = vld [vmem:[%s659 + $0x1a8] sm:$0xff]
        %v776 = vld [vmem:[%s659 + $0x1b0] sm:$0xff]
        %v777 = vld [vmem:[%s659 + $0x1b8] sm:$0xff]
        %v778 = vld [vmem:[%s659 + $0x1c0] sm:$0xff]
        %v779 = vld [vmem:[%s659 + $0x1c8] sm:$0xff]
        %v780 = vld [vmem:[%s659 + $0x1d0] sm:$0xff]
        %v781 = vld [vmem:[%s659 + $0x1d8] sm:$0xff]
        %v782 = vld [vmem:[%s659 + $0x1e0] sm:$0xff]
        %v783 = vld [vmem:[%s659 + $0x1e8] sm:$0xff]
        %v784 = vld [vmem:[%s659 + $0x1f0] sm:$0xff]
        %v785 = vld [vmem:[%s659 + $0x1f8] sm:$0xff]
        %v786 = vld [vmem:[%s659 + $0x200] sm:$0xff]
        %v787 = vld [vmem:[%s659 + $0x208] sm:$0xff]
        %v788 = vld [vmem:[%s659 + $0x210] sm:$0xff]
        %v789 = vld [vmem:[%s659 + $0x218] sm:$0xff]
        %v790 = vld [vmem:[%s659 + $0x220] sm:$0xff]
        %v791 = vld [vmem:[%s659 + $0x228] sm:$0xff]
        %v792 = vld [vmem:[%s659 + $0x230] sm:$0xff]
        %v793 = vld [vmem:[%s659 + $0x238] sm:$0xff]
        %v794 = vld [vmem:[%s659 + $0x240] sm:$0xff]
        %v795 = vld [vmem:[%s659 + $0x248] sm:$0xff]
        %v796 = vld [vmem:[%s659 + $0x250] sm:$0xff]
        %v797 = vld [vmem:[%s659 + $0x258] sm:$0xff]
        %v798 = vld [vmem:[%s659 + $0x260] sm:$0xff]
        %v799 = vld [vmem:[%s659 + $0x268] sm:$0xff]
        %v800 = vld [vmem:[%s659 + $0x270] sm:$0xff]
        %v801 = vld [vmem:[%s659 + $0x278] sm:$0xff]
        %v802 = vld [vmem:[%s659 + $0x280] sm:$0xff]
        %v803 = vld [vmem:[%s659 + $0x288] sm:$0xff]
        %v804 = vld [vmem:[%s659 + $0x290] sm:$0xff]
        %v805 = vld [vmem:[%s659 + $0x298] sm:$0xff]
        %v806 = vld [vmem:[%s659 + $0x2a0] sm:$0xff]
        %v807 = vld [vmem:[%s659 + $0x2a8] sm:$0xff]
        %v808 = vld [vmem:[%s659 + $0x2b0] sm:$0xff]
        %v809 = vld [vmem:[%s659 + $0x2b8] sm:$0xff]
        %v810 = vld [vmem:[%s659 + $0x2c0] sm:$0xff]
        %v811 = vld [vmem:[%s659 + $0x2c8] sm:$0xff]
        %v812 = vld [vmem:[%s659 + $0x2d0] sm:$0xff]
        %v813 = vld [vmem:[%s659 + $0x2d8] sm:$0xff]
        %v814 = vld [vmem:[%s659 + $0x2e0] sm:$0xff]
        %v815 = vld [vmem:[%s659 + $0x2e8] sm:$0xff]
        %v816 = vld [vmem:[%s659 + $0x2f0] sm:$0xff]
        %v817 = vld [vmem:[%s659 + $0x2f8] sm:$0xff]
        %v818 = vld [vmem:[%s659 + $0x300] sm:$0xff]
        %v819 = vld [vmem:[%s659 + $0x308] sm:$0xff]
        %v820 = vld [vmem:[%s659 + $0x310] sm:$0xff]
        %v821 = vld [vmem:[%s659 + $0x318] sm:$0xff]
        %v822 = vld [vmem:[%s659 + $0x320] sm:$0xff]
        %v823 = vld [vmem:[%s659 + $0x328] sm:$0xff]
        %v824 = vld [vmem:[%s659 + $0x330] sm:$0xff]
        %v825 = vld [vmem:[%s659 + $0x338] sm:$0xff]
        %v826 = vld [vmem:[%s659 + $0x340] sm:$0xff]
        %v827 = vld [vmem:[%s659 + $0x348] sm:$0xff]
        %v828 = vld [vmem:[%s659 + $0x350] sm:$0xff]
        %v829 = vld [vmem:[%s659 + $0x358] sm:$0xff]
        %v830 = vld [vmem:[%s659 + $0x360] sm:$0xff]
        %v831 = vld [vmem:[%s659 + $0x368] sm:$0xff]
        %v832 = vld [vmem:[%s659 + $0x370] sm:$0xff]
        %v833 = vld [vmem:[%s659 + $0x378] sm:$0xff]
        %v834 = vld [vmem:[%s659 + $0x380] sm:$0xff]
        %v835 = vld [vmem:[%s659 + $0x388] sm:$0xff]
        %v836 = vld [vmem:[%s659 + $0x390] sm:$0xff]
        %v837 = vld [vmem:[%s659 + $0x398] sm:$0xff]
        %v838 = vld [vmem:[%s659 + $0x3a0] sm:$0xff]
        %v839 = vld [vmem:[%s659 + $0x3a8] sm:$0xff]
        %v840 = vld [vmem:[%s659 + $0x3b0] sm:$0xff]
        %v841 = vld [vmem:[%s659 + $0x3b8] sm:$0xff]
        %v842 = vld [vmem:[%s659 + $0x3c0] sm:$0xff]
        %v843 = vld [vmem:[%s659 + $0x3c8] sm:$0xff]
        %v844 = vld [vmem:[%s659 + $0x3d0] sm:$0xff]
        %v845 = vld [vmem:[%s659 + $0x3d8] sm:$0xff]
        %v846 = vld [vmem:[%s659 + $0x3e0] sm:$0xff]
        %v847 = vld [vmem:[%s659 + $0x3e8] sm:$0xff]
        %v848 = vld [vmem:[%s659 + $0x3f0] sm:$0xff]
        %v849 = vld [vmem:[%s659 + $0x3f8] sm:$0xff]
        %v850 = vld [vmem:[%s659 + $0x400] sm:$0xff]
        %v851 = vld [vmem:[%s659 + $0x408] sm:$0xff]
        %v852 = vld [vmem:[%s659 + $0x410] sm:$0xff]
        %v853 = vld [vmem:[%s659 + $0x418] sm:$0xff]
        %v854 = vld [vmem:[%s659 + $0x420] sm:$0xff]
        %v855 = vld [vmem:[%s659 + $0x428] sm:$0xff]
        %v856 = vld [vmem:[%s659 + $0x430] sm:$0xff]
        %v857 = vld [vmem:[%s659 + $0x438] sm:$0xff]
        %v858 = vld [vmem:[%s659 + $0x440] sm:$0xff]
        %v859 = vld [vmem:[%s659 + $0x448] sm:$0xff]
        %v860 = vld [vmem:[%s659 + $0x450] sm:$0xff]
        %v861 = vld [vmem:[%s659 + $0x458] sm:$0xff]
        %v862 = vld [vmem:[%s659 + $0x460] sm:$0xff]
        %v863 = vld [vmem:[%s659 + $0x468] sm:$0xff]
        %v864 = vld [vmem:[%s659 + $0x470] sm:$0xff]
        %v865 = vld [vmem:[%s659 + $0x478] sm:$0xff]
        %v866 = vld [vmem:[%s659 + $0x480] sm:$0xff]
        %v867 = vld [vmem:[%s659 + $0x488] sm:$0xff]
        %v868 = vld [vmem:[%s659 + $0x490] sm:$0xff]
        %v869 = vld [vmem:[%s659 + $0x498] sm:$0xff]
        %v870 = vld [vmem:[%s659 + $0x4a0] sm:$0xff]
        %v871 = vld [vmem:[%s659 + $0x4a8] sm:$0xff]
        %v872 = vld [vmem:[%s659 + $0x4b0] sm:$0xff]
        %v873 = vld [vmem:[%s659 + $0x4b8] sm:$0xff]
        %v874 = vld [vmem:[%s659 + $0x4c0] sm:$0xff]
        %v875 = vld [vmem:[%s659 + $0x4c8] sm:$0xff]
        %v876 = vld [vmem:[%s659 + $0x4d0] sm:$0xff]
        %v877 = vld [vmem:[%s659 + $0x4d8] sm:$0xff]
        %v878 = vld [vmem:[%s659 + $0x4e0] sm:$0xff]
        %v879 = vld [vmem:[%s659 + $0x4e8] sm:$0xff]
        %v880 = vld [vmem:[%s659 + $0x4f0] sm:$0xff]
        %v881 = vld [vmem:[%s659 + $0x4f8] sm:$0xff]
        %v882 = vld [vmem:[%s659 + $0x500] sm:$0xff]
        %v883 = vld [vmem:[%s659 + $0x508] sm:$0xff]
        %v884 = vld [vmem:[%s659 + $0x510] sm:$0xff]
        %v885 = vld [vmem:[%s659 + $0x518] sm:$0xff]
        %v886 = vld [vmem:[%s659 + $0x520] sm:$0xff]
        %v887 = vld [vmem:[%s659 + $0x528] sm:$0xff]
        %v888 = vld [vmem:[%s659 + $0x530] sm:$0xff]
        %v889 = vld [vmem:[%s659 + $0x538] sm:$0xff]
        %v890 = vld [vmem:[%s659 + $0x540] sm:$0xff]
        %v891 = vld [vmem:[%s659 + $0x548] sm:$0xff]
        %v892 = vld [vmem:[%s659 + $0x550] sm:$0xff]
        %v893 = vld [vmem:[%s659 + $0x558] sm:$0xff]
        %v894 = vld [vmem:[%s659 + $0x560] sm:$0xff]
        %v895 = vld [vmem:[%s659 + $0x568] sm:$0xff]
        %v896 = vld [vmem:[%s659 + $0x570] sm:$0xff]
        %v897 = vld [vmem:[%s659 + $0x578] sm:$0xff]
        %v898 = vld [vmem:[%s659 + $0x580] sm:$0xff]
        %v899 = vld [vmem:[%s659 + $0x588] sm:$0xff]
        %v900 = vld [vmem:[%s659 + $0x590] sm:$0xff]
        %v901 = vld [vmem:[%s659 + $0x598] sm:$0xff]
        %v902 = vld [vmem:[%s659 + $0x5a0] sm:$0xff]
        %v903 = vld [vmem:[%s659 + $0x5a8] sm:$0xff]
        %v904 = vld [vmem:[%s659 + $0x5b0] sm:$0xff]
        %v905 = vld [vmem:[%s659 + $0x5b8] sm:$0xff]
        %v906 = vld [vmem:[%s659 + $0x5c0] sm:$0xff]
        %v907 = vld [vmem:[%s659 + $0x5c8] sm:$0xff]
        %v908 = vld [vmem:[%s659 + $0x5d0] sm:$0xff]
        %v909 = vld [vmem:[%s659 + $0x5d8] sm:$0xff]
        %v910 = vld [vmem:[%s659 + $0x5e0] sm:$0xff]
        %v911 = vld [vmem:[%s659 + $0x5e8] sm:$0xff]
        %v912 = vld [vmem:[%s659 + $0x5f0] sm:$0xff]
        %v913 = vld [vmem:[%s659 + $0x5f8] sm:$0xff]
        %v914 = vld [vmem:[%s659 + $0x600] sm:$0xff]
        %v915 = vld [vmem:[%s659 + $0x608] sm:$0xff]
        %v916 = vld [vmem:[%s659 + $0x610] sm:$0xff]
        %v917 = vld [vmem:[%s659 + $0x618] sm:$0xff]
        %v918 = vld [vmem:[%s659 + $0x620] sm:$0xff]
        %v919 = vld [vmem:[%s659 + $0x628] sm:$0xff]
        %v920 = vld [vmem:[%s659 + $0x630] sm:$0xff]
        %v921 = vld [vmem:[%s659 + $0x638] sm:$0xff]
        %v922 = vld [vmem:[%s659 + $0x640] sm:$0xff]
        %v923 = vld [vmem:[%s659 + $0x648] sm:$0xff]
        %v924 = vld [vmem:[%s659 + $0x650] sm:$0xff]
        %v925 = vld [vmem:[%s659 + $0x658] sm:$0xff]
        %v926 = vld [vmem:[%s659 + $0x660] sm:$0xff]
        %v927 = vld [vmem:[%s659 + $0x668] sm:$0xff]
        %v928 = vld [vmem:[%s659 + $0x670] sm:$0xff]
        %v929 = vld [vmem:[%s659 + $0x678] sm:$0xff]
        %v930 = vld [vmem:[%s659 + $0x680] sm:$0xff]
        %v931 = vld [vmem:[%s659 + $0x688] sm:$0xff]
        %v932 = vld [vmem:[%s659 + $0x690] sm:$0xff]
        %v933 = vld [vmem:[%s659 + $0x698] sm:$0xff]
        %v934 = vld [vmem:[%s659 + $0x6a0] sm:$0xff]
        %v935 = vld [vmem:[%s659 + $0x6a8] sm:$0xff]
        %v936 = vld [vmem:[%s659 + $0x6b0] sm:$0xff]
        %v937 = vld [vmem:[%s659 + $0x6b8] sm:$0xff]
        %v938 = vld [vmem:[%s659 + $0x6c0] sm:$0xff]
        %v939 = vld [vmem:[%s659 + $0x6c8] sm:$0xff]
        %v940 = vld [vmem:[%s659 + $0x6d0] sm:$0xff]
        %v941 = vld [vmem:[%s659 + $0x6d8] sm:$0xff]
        %v942 = vld [vmem:[%s659 + $0x6e0] sm:$0xff]
        %v943 = vld [vmem:[%s659 + $0x6e8] sm:$0xff]
        %v944 = vld [vmem:[%s659 + $0x6f0] sm:$0xff]
        %v945 = vld [vmem:[%s659 + $0x6f8] sm:$0xff]
        %v948 = vunpack.c.l.s4 1983009808
        %v949 = vunpack.c.0.s8 %v948
        %v950 = vlaneseq
        %v951 = vshrl.u32 %v950, 7
        %v952 = vsub.s32 %v949, %v951
        %v953 = vrot.slane %v721, %v952
        %v954 = vcombine.high %v953, %v953
        %v1180 = vunpack.c.l.b16 %v722
        %v1181 = vunpack.c.h.b16 %v722
        %v1182 = vunpack.c.l.b16 %v723
        %v1183 = vunpack.c.h.b16 %v723
        %v1184 = vunpack.c.l.b16 %v724
        %v1185 = vunpack.c.h.b16 %v724
        %v1186 = vunpack.c.l.b16 %v725
        %v1187 = vunpack.c.h.b16 %v725
        %v1188 = vunpack.c.l.b16 %v726
        %v1189 = vunpack.c.h.b16 %v726
        %v1190 = vunpack.c.l.b16 %v727
        %v1191 = vunpack.c.h.b16 %v727
        %v1192 = vunpack.c.l.b16 %v728
        %v1193 = vunpack.c.h.b16 %v728
        %v1194 = vunpack.c.l.b16 %v729
        %v1195 = vunpack.c.h.b16 %v729
        %v1196 = vunpack.c.l.b16 %v730
        %v1197 = vunpack.c.h.b16 %v730
        %v1198 = vunpack.c.l.b16 %v731
        %v1199 = vunpack.c.h.b16 %v731
        %v1200 = vunpack.c.l.b16 %v732
        %v1201 = vunpack.c.h.b16 %v732
        %v1202 = vunpack.c.l.b16 %v733
        %v1203 = vunpack.c.h.b16 %v733
        %v1204 = vunpack.c.l.b16 %v734
        %v1205 = vunpack.c.h.b16 %v734
        %v1206 = vunpack.c.l.b16 %v735
        %v1207 = vunpack.c.h.b16 %v735
        %v1208 = vunpack.c.l.b16 %v736
        %v1209 = vunpack.c.h.b16 %v736
        %v1210 = vunpack.c.l.b16 %v737
        %v1211 = vunpack.c.h.b16 %v737
        %v1212 = vunpack.c.l.b16 %v738
        %v1213 = vunpack.c.h.b16 %v738
        %v1214 = vunpack.c.l.b16 %v739
        %v1215 = vunpack.c.h.b16 %v739
        %v1216 = vunpack.c.l.b16 %v740
        %v1217 = vunpack.c.h.b16 %v740
        %v1218 = vunpack.c.l.b16 %v741
        %v1219 = vunpack.c.h.b16 %v741
        %v1220 = vunpack.c.l.b16 %v742
        %v1221 = vunpack.c.h.b16 %v742
        %v1222 = vunpack.c.l.b16 %v743
        %v1223 = vunpack.c.h.b16 %v743
        %v1224 = vunpack.c.l.b16 %v744
        %v1225 = vunpack.c.h.b16 %v744
        %v1226 = vunpack.c.l.b16 %v745
        %v1227 = vunpack.c.h.b16 %v745
        %v1228 = vunpack.c.l.b16 %v746
        %v1229 = vunpack.c.h.b16 %v746
        %v1230 = vunpack.c.l.b16 %v747
        %v1231 = vunpack.c.h.b16 %v747
        %v1232 = vunpack.c.l.b16 %v748
        %v1233 = vunpack.c.h.b16 %v748
        %v1234 = vunpack.c.l.b16 %v749
        %v1235 = vunpack.c.h.b16 %v749
        %v1236 = vunpack.c.l.b16 %v750
        %v1237 = vunpack.c.h.b16 %v750
        %v1238 = vunpack.c.l.b16 %v751
        %v1239 = vunpack.c.h.b16 %v751
        %v1240 = vunpack.c.l.b16 %v752
        %v1241 = vunpack.c.h.b16 %v752
        %v1242 = vunpack.c.l.b16 %v753
        %v1243 = vunpack.c.h.b16 %v753
        %v1244 = vunpack.c.l.b16 %v754
        %v1245 = vunpack.c.h.b16 %v754
        %v1246 = vunpack.c.l.b16 %v755
        %v1247 = vunpack.c.h.b16 %v755
        %v1248 = vunpack.c.l.b16 %v756
        %v1249 = vunpack.c.h.b16 %v756
        %v1250 = vunpack.c.l.b16 %v757
        %v1251 = vunpack.c.h.b16 %v757
        %v1252 = vunpack.c.l.b16 %v758
        %v1253 = vunpack.c.h.b16 %v758
        %v1254 = vunpack.c.l.b16 %v759
        %v1255 = vunpack.c.h.b16 %v759
        %v1256 = vunpack.c.l.b16 %v760
        %v1257 = vunpack.c.h.b16 %v760
        %v1258 = vunpack.c.l.b16 %v761
        %v1259 = vunpack.c.h.b16 %v761
        %v1260 = vunpack.c.l.b16 %v762
        %v1261 = vunpack.c.h.b16 %v762
        %v1262 = vunpack.c.l.b16 %v763
        %v1263 = vunpack.c.h.b16 %v763
        %v1264 = vunpack.c.l.b16 %v764
        %v1265 = vunpack.c.h.b16 %v764
        %v1266 = vunpack.c.l.b16 %v765
        %v1267 = vunpack.c.h.b16 %v765
        %v1268 = vunpack.c.l.b16 %v766
        %v1269 = vunpack.c.h.b16 %v766
        %v1270 = vunpack.c.l.b16 %v767
        %v1271 = vunpack.c.h.b16 %v767
        %v1272 = vunpack.c.l.b16 %v768
        %v1273 = vunpack.c.h.b16 %v768
        %v1274 = vunpack.c.l.b16 %v769
        %v1275 = vunpack.c.h.b16 %v769
        %v1276 = vunpack.c.l.b16 %v770
        %v1277 = vunpack.c.h.b16 %v770
        %v1278 = vunpack.c.l.b16 %v771
        %v1279 = vunpack.c.h.b16 %v771
        %v1280 = vunpack.c.l.b16 %v772
        %v1281 = vunpack.c.h.b16 %v772
        %v1282 = vunpack.c.l.b16 %v773
        %v1283 = vunpack.c.h.b16 %v773
        %v1284 = vunpack.c.l.b16 %v774
        %v1285 = vunpack.c.h.b16 %v774
        %v1286 = vunpack.c.l.b16 %v775
        %v1287 = vunpack.c.h.b16 %v775
        %v1288 = vunpack.c.l.b16 %v776
        %v1289 = vunpack.c.h.b16 %v776
        %v1290 = vunpack.c.l.b16 %v777
        %v1291 = vunpack.c.h.b16 %v777
        %v1292 = vunpack.c.l.b16 %v778
        %v1293 = vunpack.c.h.b16 %v778
        %v1294 = vunpack.c.l.b16 %v779
        %v1295 = vunpack.c.h.b16 %v779
        %v1296 = vunpack.c.l.b16 %v780
        %v1297 = vunpack.c.h.b16 %v780
        %v1298 = vunpack.c.l.b16 %v781
        %v1299 = vunpack.c.h.b16 %v781
        %v1300 = vunpack.c.l.b16 %v782
        %v1301 = vunpack.c.h.b16 %v782
        %v1302 = vunpack.c.l.b16 %v783
        %v1303 = vunpack.c.h.b16 %v783
        %v1304 = vunpack.c.l.b16 %v784
        %v1305 = vunpack.c.h.b16 %v784
        %v1306 = vunpack.c.l.b16 %v785
        %v1307 = vunpack.c.h.b16 %v785
        %v1308 = vunpack.c.l.b16 %v786
        %v1309 = vunpack.c.h.b16 %v786
        %v1310 = vunpack.c.l.b16 %v787
        %v1311 = vunpack.c.h.b16 %v787
        %v1312 = vunpack.c.l.b16 %v788
        %v1313 = vunpack.c.h.b16 %v788
        %v1314 = vunpack.c.l.b16 %v789
        %v1315 = vunpack.c.h.b16 %v789
        %v1316 = vunpack.c.l.b16 %v790
        %v1317 = vunpack.c.h.b16 %v790
        %v1318 = vunpack.c.l.b16 %v791
        %v1319 = vunpack.c.h.b16 %v791
        %v1320 = vunpack.c.l.b16 %v792
        %v1321 = vunpack.c.h.b16 %v792
        %v1322 = vunpack.c.l.b16 %v793
        %v1323 = vunpack.c.h.b16 %v793
        %v1324 = vunpack.c.l.b16 %v794
        %v1325 = vunpack.c.h.b16 %v794
        %v1326 = vunpack.c.l.b16 %v795
        %v1327 = vunpack.c.h.b16 %v795
        %v1328 = vunpack.c.l.b16 %v796
        %v1329 = vunpack.c.h.b16 %v796
        %v1330 = vunpack.c.l.b16 %v797
        %v1331 = vunpack.c.h.b16 %v797
        %v1332 = vunpack.c.l.b16 %v798
        %v1333 = vunpack.c.h.b16 %v798
        %v1334 = vunpack.c.l.b16 %v799
        %v1335 = vunpack.c.h.b16 %v799
        %v1336 = vunpack.c.l.b16 %v800
        %v1337 = vunpack.c.h.b16 %v800
        %v1338 = vunpack.c.l.b16 %v801
        %v1339 = vunpack.c.h.b16 %v801
        %v1340 = vunpack.c.l.b16 %v802
        %v1341 = vunpack.c.h.b16 %v802
        %v1342 = vunpack.c.l.b16 %v803
        %v1343 = vunpack.c.h.b16 %v803
        %v1344 = vunpack.c.l.b16 %v804
        %v1345 = vunpack.c.h.b16 %v804
        %v1346 = vunpack.c.l.b16 %v805
        %v1347 = vunpack.c.h.b16 %v805
        %v1348 = vunpack.c.l.b16 %v806
        %v1349 = vunpack.c.h.b16 %v806
        %v1350 = vunpack.c.l.b16 %v807
        %v1351 = vunpack.c.h.b16 %v807
        %v1352 = vunpack.c.l.b16 %v808
        %v1353 = vunpack.c.h.b16 %v808
        %v1354 = vunpack.c.l.b16 %v809
        %v1355 = vunpack.c.h.b16 %v809
        %v1356 = vunpack.c.l.b16 %v810
        %v1357 = vunpack.c.h.b16 %v810
        %v1358 = vunpack.c.l.b16 %v811
        %v1359 = vunpack.c.h.b16 %v811
        %v1360 = vunpack.c.l.b16 %v812
        %v1361 = vunpack.c.h.b16 %v812
        %v1362 = vunpack.c.l.b16 %v813
        %v1363 = vunpack.c.h.b16 %v813
        %v1364 = vunpack.c.l.b16 %v814
        %v1365 = vunpack.c.h.b16 %v814
        %v1366 = vunpack.c.l.b16 %v815
        %v1367 = vunpack.c.h.b16 %v815
        %v1368 = vunpack.c.l.b16 %v816
        %v1369 = vunpack.c.h.b16 %v816
        %v1370 = vunpack.c.l.b16 %v817
        %v1371 = vunpack.c.h.b16 %v817
        %v1372 = vunpack.c.l.b16 %v818
        %v1373 = vunpack.c.h.b16 %v818
        %v1374 = vunpack.c.l.b16 %v819
        %v1375 = vunpack.c.h.b16 %v819
        %v1376 = vunpack.c.l.b16 %v820
        %v1377 = vunpack.c.h.b16 %v820
        %v1378 = vunpack.c.l.b16 %v821
        %v1379 = vunpack.c.h.b16 %v821
        %v1380 = vunpack.c.l.b16 %v822
        %v1381 = vunpack.c.h.b16 %v822
        %v1382 = vunpack.c.l.b16 %v823
        %v1383 = vunpack.c.h.b16 %v823
        %v1384 = vunpack.c.l.b16 %v824
        %v1385 = vunpack.c.h.b16 %v824
        %v1386 = vunpack.c.l.b16 %v825
        %v1387 = vunpack.c.h.b16 %v825
        %v1388 = vunpack.c.l.b16 %v826
        %v1389 = vunpack.c.h.b16 %v826
        %v1390 = vunpack.c.l.b16 %v827
        %v1391 = vunpack.c.h.b16 %v827
        %v1392 = vunpack.c.l.b16 %v828
        %v1393 = vunpack.c.h.b16 %v828
        %v1394 = vunpack.c.l.b16 %v829
        %v1395 = vunpack.c.h.b16 %v829
        %v1396 = vunpack.c.l.b16 %v830
        %v1397 = vunpack.c.h.b16 %v830
        %v1398 = vunpack.c.l.b16 %v831
        %v1399 = vunpack.c.h.b16 %v831
        %v1400 = vunpack.c.l.b16 %v832
        %v1401 = vunpack.c.h.b16 %v832
        %v1402 = vunpack.c.l.b16 %v833
        %v1403 = vunpack.c.h.b16 %v833
        %v1404 = vunpack.c.l.b16 %v834
        %v1405 = vunpack.c.h.b16 %v834
        %v1406 = vunpack.c.l.b16 %v835
        %v1407 = vunpack.c.h.b16 %v835
        %v1408 = vunpack.c.l.b16 %v836
        %v1409 = vunpack.c.h.b16 %v836
        %v1410 = vunpack.c.l.b16 %v837
        %v1411 = vunpack.c.h.b16 %v837
        %v1412 = vunpack.c.l.b16 %v838
        %v1413 = vunpack.c.h.b16 %v838
        %v1414 = vunpack.c.l.b16 %v839
        %v1415 = vunpack.c.h.b16 %v839
        %v1416 = vunpack.c.l.b16 %v840
        %v1417 = vunpack.c.h.b16 %v840
        %v1418 = vunpack.c.l.b16 %v841
        %v1419 = vunpack.c.h.b16 %v841
        %v1420 = vunpack.c.l.b16 %v842
        %v1421 = vunpack.c.h.b16 %v842
        %v1422 = vunpack.c.l.b16 %v843
        %v1423 = vunpack.c.h.b16 %v843
        %v1424 = vunpack.c.l.b16 %v844
        %v1425 = vunpack.c.h.b16 %v844
        %v1426 = vunpack.c.l.b16 %v845
        %v1427 = vunpack.c.h.b16 %v845
        %v1428 = vunpack.c.l.b16 %v846
        %v1429 = vunpack.c.h.b16 %v846
        %v1430 = vunpack.c.l.b16 %v847
        %v1431 = vunpack.c.h.b16 %v847
        %v1432 = vunpack.c.l.b16 %v848
        %v1433 = vunpack.c.h.b16 %v848
        %v1434 = vunpack.c.l.b16 %v849
        %v1435 = vunpack.c.h.b16 %v849
        %v1436 = vunpack.c.l.b16 %v850
        %v1437 = vunpack.c.h.b16 %v850
        %v1438 = vunpack.c.l.b16 %v851
        %v1439 = vunpack.c.h.b16 %v851
        %v1440 = vunpack.c.l.b16 %v852
        %v1441 = vunpack.c.h.b16 %v852
        %v1442 = vunpack.c.l.b16 %v853
        %v1443 = vunpack.c.h.b16 %v853
        %v1444 = vunpack.c.l.b16 %v854
        %v1445 = vunpack.c.h.b16 %v854
        %v1446 = vunpack.c.l.b16 %v855
        %v1447 = vunpack.c.h.b16 %v855
        %v1448 = vunpack.c.l.b16 %v856
        %v1449 = vunpack.c.h.b16 %v856
        %v1450 = vunpack.c.l.b16 %v857
        %v1451 = vunpack.c.h.b16 %v857
        %v1452 = vunpack.c.l.b16 %v858
        %v1453 = vunpack.c.h.b16 %v858
        %v1454 = vunpack.c.l.b16 %v859
        %v1455 = vunpack.c.h.b16 %v859
        %v1456 = vunpack.c.l.b16 %v860
        %v1457 = vunpack.c.h.b16 %v860
        %v1458 = vunpack.c.l.b16 %v861
        %v1459 = vunpack.c.h.b16 %v861
        %v1460 = vunpack.c.l.b16 %v862
        %v1461 = vunpack.c.h.b16 %v862
        %v1462 = vunpack.c.l.b16 %v863
        %v1463 = vunpack.c.h.b16 %v863
        %v1464 = vunpack.c.l.b16 %v864
        %v1465 = vunpack.c.h.b16 %v864
        %v1466 = vunpack.c.l.b16 %v865
        %v1467 = vunpack.c.h.b16 %v865
        %v1468 = vunpack.c.l.b16 %v866
        %v1469 = vunpack.c.h.b16 %v866
        %v1470 = vunpack.c.l.b16 %v867
        %v1471 = vunpack.c.h.b16 %v867
        %v1472 = vunpack.c.l.b16 %v868
        %v1473 = vunpack.c.h.b16 %v868
        %v1474 = vunpack.c.l.b16 %v869
        %v1475 = vunpack.c.h.b16 %v869
        %v1476 = vunpack.c.l.b16 %v870
        %v1477 = vunpack.c.h.b16 %v870
        %v1478 = vunpack.c.l.b16 %v871
        %v1479 = vunpack.c.h.b16 %v871
        %v1480 = vunpack.c.l.b16 %v872
        %v1481 = vunpack.c.h.b16 %v872
        %v1482 = vunpack.c.l.b16 %v873
        %v1483 = vunpack.c.h.b16 %v873
        %v1484 = vunpack.c.l.b16 %v874
        %v1485 = vunpack.c.h.b16 %v874
        %v1486 = vunpack.c.l.b16 %v875
        %v1487 = vunpack.c.h.b16 %v875
        %v1488 = vunpack.c.l.b16 %v876
        %v1489 = vunpack.c.h.b16 %v876
        %v1490 = vunpack.c.l.b16 %v877
        %v1491 = vunpack.c.h.b16 %v877
        %v1492 = vunpack.c.l.b16 %v878
        %v1493 = vunpack.c.h.b16 %v878
        %v1494 = vunpack.c.l.b16 %v879
        %v1495 = vunpack.c.h.b16 %v879
        %v1496 = vunpack.c.l.b16 %v880
        %v1497 = vunpack.c.h.b16 %v880
        %v1498 = vunpack.c.l.b16 %v881
        %v1499 = vunpack.c.h.b16 %v881
        %v1500 = vunpack.c.l.b16 %v882
        %v1501 = vunpack.c.h.b16 %v882
        %v1502 = vunpack.c.l.b16 %v883
        %v1503 = vunpack.c.h.b16 %v883
        %v1504 = vunpack.c.l.b16 %v884
        %v1505 = vunpack.c.h.b16 %v884
        %v1506 = vunpack.c.l.b16 %v885
        %v1507 = vunpack.c.h.b16 %v885
        %v1508 = vunpack.c.l.b16 %v886
        %v1509 = vunpack.c.h.b16 %v886
        %v1510 = vunpack.c.l.b16 %v887
        %v1511 = vunpack.c.h.b16 %v887
        %v1512 = vunpack.c.l.b16 %v888
        %v1513 = vunpack.c.h.b16 %v888
        %v1514 = vunpack.c.l.b16 %v889
        %v1515 = vunpack.c.h.b16 %v889
        %v1516 = vunpack.c.l.b16 %v890
        %v1517 = vunpack.c.h.b16 %v890
        %v1518 = vunpack.c.l.b16 %v891
        %v1519 = vunpack.c.h.b16 %v891
        %v1520 = vunpack.c.l.b16 %v892
        %v1521 = vunpack.c.h.b16 %v892
        %v1522 = vunpack.c.l.b16 %v893
        %v1523 = vunpack.c.h.b16 %v893
        %v1524 = vunpack.c.l.b16 %v894
        %v1525 = vunpack.c.h.b16 %v894
        %v1526 = vunpack.c.l.b16 %v895
        %v1527 = vunpack.c.h.b16 %v895
        %v1528 = vunpack.c.l.b16 %v896
        %v1529 = vunpack.c.h.b16 %v896
        %v1530 = vunpack.c.l.b16 %v897
        %v1531 = vunpack.c.h.b16 %v897
        %v1532 = vunpack.c.l.b16 %v898
        %v1533 = vunpack.c.h.b16 %v898
        %v1534 = vunpack.c.l.b16 %v899
        %v1535 = vunpack.c.h.b16 %v899
        %v1536 = vunpack.c.l.b16 %v900
        %v1537 = vunpack.c.h.b16 %v900
        %v1538 = vunpack.c.l.b16 %v901
        %v1539 = vunpack.c.h.b16 %v901
        %v1540 = vunpack.c.l.b16 %v902
        %v1541 = vunpack.c.h.b16 %v902
        %v1542 = vunpack.c.l.b16 %v903
        %v1543 = vunpack.c.h.b16 %v903
        %v1544 = vunpack.c.l.b16 %v904
        %v1545 = vunpack.c.h.b16 %v904
        %v1546 = vunpack.c.l.b16 %v905
        %v1547 = vunpack.c.h.b16 %v905
        %v1548 = vunpack.c.l.b16 %v906
        %v1549 = vunpack.c.h.b16 %v906
        %v1550 = vunpack.c.l.b16 %v907
        %v1551 = vunpack.c.h.b16 %v907
        %v1552 = vunpack.c.l.b16 %v908
        %v1553 = vunpack.c.h.b16 %v908
        %v1554 = vunpack.c.l.b16 %v909
        %v1555 = vunpack.c.h.b16 %v909
        %v1556 = vunpack.c.l.b16 %v910
        %v1557 = vunpack.c.h.b16 %v910
        %v1558 = vunpack.c.l.b16 %v911
        %v1559 = vunpack.c.h.b16 %v911
        %v1560 = vunpack.c.l.b16 %v912
        %v1561 = vunpack.c.h.b16 %v912
        %v1562 = vunpack.c.l.b16 %v913
        %v1563 = vunpack.c.h.b16 %v913
        %v1564 = vunpack.c.l.b16 %v914
        %v1565 = vunpack.c.h.b16 %v914
        %v1566 = vunpack.c.l.b16 %v915
        %v1567 = vunpack.c.h.b16 %v915
        %v1568 = vunpack.c.l.b16 %v916
        %v1569 = vunpack.c.h.b16 %v916
        %v1570 = vunpack.c.l.b16 %v917
        %v1571 = vunpack.c.h.b16 %v917
        %v1572 = vunpack.c.l.b16 %v918
        %v1573 = vunpack.c.h.b16 %v918
        %v1574 = vunpack.c.l.b16 %v919
        %v1575 = vunpack.c.h.b16 %v919
        %v1576 = vunpack.c.l.b16 %v920
        %v1577 = vunpack.c.h.b16 %v920
        %v1578 = vunpack.c.l.b16 %v921
        %v1579 = vunpack.c.h.b16 %v921
        %v1580 = vunpack.c.l.b16 %v922
        %v1581 = vunpack.c.h.b16 %v922
        %v1582 = vunpack.c.l.b16 %v923
        %v1583 = vunpack.c.h.b16 %v923
        %v1584 = vunpack.c.l.b16 %v924
        %v1585 = vunpack.c.h.b16 %v924
        %v1586 = vunpack.c.l.b16 %v925
        %v1587 = vunpack.c.h.b16 %v925
        %v1588 = vunpack.c.l.b16 %v926
        %v1589 = vunpack.c.h.b16 %v926
        %v1590 = vunpack.c.l.b16 %v927
        %v1591 = vunpack.c.h.b16 %v927
        %v1592 = vunpack.c.l.b16 %v928
        %v1593 = vunpack.c.h.b16 %v928
        %v1594 = vunpack.c.l.b16 %v929
        %v1595 = vunpack.c.h.b16 %v929
        %v1596 = vunpack.c.l.b16 %v930
        %v1597 = vunpack.c.h.b16 %v930
        %v1598 = vunpack.c.l.b16 %v931
        %v1599 = vunpack.c.h.b16 %v931
        %v1600 = vunpack.c.l.b16 %v932
        %v1601 = vunpack.c.h.b16 %v932
        %v1602 = vunpack.c.l.b16 %v933
        %v1603 = vunpack.c.h.b16 %v933
        %v1604 = vunpack.c.l.b16 %v934
        %v1605 = vunpack.c.h.b16 %v934
        %v1606 = vunpack.c.l.b16 %v935
        %v1607 = vunpack.c.h.b16 %v935
        %v1608 = vunpack.c.l.b16 %v936
        %v1609 = vunpack.c.h.b16 %v936
        %v1610 = vunpack.c.l.b16 %v937
        %v1611 = vunpack.c.h.b16 %v937
        %v1612 = vunpack.c.l.b16 %v938
        %v1613 = vunpack.c.h.b16 %v938
        %v1614 = vunpack.c.l.b16 %v939
        %v1615 = vunpack.c.h.b16 %v939
        %v1616 = vunpack.c.l.b16 %v940
        %v1617 = vunpack.c.h.b16 %v940
        %v1618 = vunpack.c.l.b16 %v941
        %v1619 = vunpack.c.h.b16 %v941
        %v1620 = vunpack.c.l.b16 %v942
        %v1621 = vunpack.c.h.b16 %v942
        %v1622 = vunpack.c.l.b16 %v943
        %v1623 = vunpack.c.h.b16 %v943
        %v1624 = vunpack.c.l.b16 %v944
        %v1625 = vunpack.c.h.b16 %v944
        %v1626 = vunpack.c.l.b16 %v945
        %v1627 = vunpack.c.h.b16 %v945
        %v1628 = vpack.c.b16 %v1196, %v1180
        %v1629 = vpack.c.b16 %v1197, %v1181
        %v1630 = vpack.c.b16 %v1198, %v1182
        %v1631 = vpack.c.b16 %v1199, %v1183
        %v1632 = vpack.c.b16 %v1200, %v1184
        %v1633 = vpack.c.b16 %v1201, %v1185
        %v1634 = vpack.c.b16 %v1202, %v1186
        %v1635 = vpack.c.b16 %v1203, %v1187
        %v1636 = vpack.c.b16 %v1204, %v1188
        %v1637 = vpack.c.b16 %v1205, %v1189
        %v1638 = vpack.c.b16 %v1206, %v1190
        %v1639 = vpack.c.b16 %v1207, %v1191
        %v1640 = vpack.c.b16 %v1208, %v1192
        %v1641 = vpack.c.b16 %v1209, %v1193
        %v1642 = vpack.c.b16 %v1210, %v1194
        %v1643 = vpack.c.b16 %v1211, %v1195
        %v1644 = vpack.c.b16 %v1228, %v1212
        %v1645 = vpack.c.b16 %v1229, %v1213
        %v1646 = vpack.c.b16 %v1230, %v1214
        %v1647 = vpack.c.b16 %v1231, %v1215
        %v1648 = vpack.c.b16 %v1232, %v1216
        %v1649 = vpack.c.b16 %v1233, %v1217
        %v1650 = vpack.c.b16 %v1234, %v1218
        %v1651 = vpack.c.b16 %v1235, %v1219
        %v1652 = vpack.c.b16 %v1236, %v1220
        %v1653 = vpack.c.b16 %v1237, %v1221
        %v1654 = vpack.c.b16 %v1238, %v1222
        %v1655 = vpack.c.b16 %v1239, %v1223
        %v1656 = vpack.c.b16 %v1240, %v1224
        %v1657 = vpack.c.b16 %v1241, %v1225
        %v1658 = vpack.c.b16 %v1242, %v1226
        %v1659 = vpack.c.b16 %v1243, %v1227
        %v1660 = vpack.c.b16 %v1260, %v1244
        %v1661 = vpack.c.b16 %v1261, %v1245
        %v1662 = vpack.c.b16 %v1262, %v1246
        %v1663 = vpack.c.b16 %v1263, %v1247
        %v1664 = vpack.c.b16 %v1264, %v1248
        %v1665 = vpack.c.b16 %v1265, %v1249
        %v1666 = vpack.c.b16 %v1266, %v1250
        %v1667 = vpack.c.b16 %v1267, %v1251
        %v1668 = vpack.c.b16 %v1268, %v1252
        %v1669 = vpack.c.b16 %v1269, %v1253
        %v1670 = vpack.c.b16 %v1270, %v1254
        %v1671 = vpack.c.b16 %v1271, %v1255
        %v1672 = vpack.c.b16 %v1272, %v1256
        %v1673 = vpack.c.b16 %v1273, %v1257
        %v1674 = vpack.c.b16 %v1274, %v1258
        %v1675 = vpack.c.b16 %v1275, %v1259
        %v1676 = vpack.c.b16 %v1292, %v1276
        %v1677 = vpack.c.b16 %v1293, %v1277
        %v1678 = vpack.c.b16 %v1294, %v1278
        %v1679 = vpack.c.b16 %v1295, %v1279
        %v1680 = vpack.c.b16 %v1296, %v1280
        %v1681 = vpack.c.b16 %v1297, %v1281
        %v1682 = vpack.c.b16 %v1298, %v1282
        %v1683 = vpack.c.b16 %v1299, %v1283
        %v1684 = vpack.c.b16 %v1300, %v1284
        %v1685 = vpack.c.b16 %v1301, %v1285
        %v1686 = vpack.c.b16 %v1302, %v1286
        %v1687 = vpack.c.b16 %v1303, %v1287
        %v1688 = vpack.c.b16 %v1304, %v1288
        %v1689 = vpack.c.b16 %v1305, %v1289
        %v1690 = vpack.c.b16 %v1306, %v1290
        %v1691 = vpack.c.b16 %v1307, %v1291
        %v1692 = vpack.c.b16 %v1324, %v1308
        %v1693 = vpack.c.b16 %v1325, %v1309
        %v1694 = vpack.c.b16 %v1326, %v1310
        %v1695 = vpack.c.b16 %v1327, %v1311
        %v1696 = vpack.c.b16 %v1328, %v1312
        %v1697 = vpack.c.b16 %v1329, %v1313
        %v1698 = vpack.c.b16 %v1330, %v1314
        %v1699 = vpack.c.b16 %v1331, %v1315
        %v1700 = vpack.c.b16 %v1332, %v1316
        %v1701 = vpack.c.b16 %v1333, %v1317
        %v1702 = vpack.c.b16 %v1334, %v1318
        %v1703 = vpack.c.b16 %v1335, %v1319
        %v1704 = vpack.c.b16 %v1336, %v1320
        %v1705 = vpack.c.b16 %v1337, %v1321
        %v1706 = vpack.c.b16 %v1338, %v1322
        %v1707 = vpack.c.b16 %v1339, %v1323
        %v1708 = vpack.c.b16 %v1356, %v1340
        %v1709 = vpack.c.b16 %v1357, %v1341
        %v1710 = vpack.c.b16 %v1358, %v1342
        %v1711 = vpack.c.b16 %v1359, %v1343
        %v1712 = vpack.c.b16 %v1360, %v1344
        %v1713 = vpack.c.b16 %v1361, %v1345
        %v1714 = vpack.c.b16 %v1362, %v1346
        %v1715 = vpack.c.b16 %v1363, %v1347
        %v1716 = vpack.c.b16 %v1364, %v1348
        %v1717 = vpack.c.b16 %v1365, %v1349
        %v1718 = vpack.c.b16 %v1366, %v1350
        %v1719 = vpack.c.b16 %v1367, %v1351
        %v1720 = vpack.c.b16 %v1368, %v1352
        %v1721 = vpack.c.b16 %v1369, %v1353
        %v1722 = vpack.c.b16 %v1370, %v1354
        %v1723 = vpack.c.b16 %v1371, %v1355
        %v1724 = vpack.c.b16 %v1388, %v1372
        %v1725 = vpack.c.b16 %v1389, %v1373
        %v1726 = vpack.c.b16 %v1390, %v1374
        %v1727 = vpack.c.b16 %v1391, %v1375
        %v1728 = vpack.c.b16 %v1392, %v1376
        %v1729 = vpack.c.b16 %v1393, %v1377
        %v1730 = vpack.c.b16 %v1394, %v1378
        %v1731 = vpack.c.b16 %v1395, %v1379
        %v1732 = vpack.c.b16 %v1396, %v1380
        %v1733 = vpack.c.b16 %v1397, %v1381
        %v1734 = vpack.c.b16 %v1398, %v1382
        %v1735 = vpack.c.b16 %v1399, %v1383
        %v1736 = vpack.c.b16 %v1400, %v1384
        %v1737 = vpack.c.b16 %v1401, %v1385
        %v1738 = vpack.c.b16 %v1402, %v1386
        %v1739 = vpack.c.b16 %v1403, %v1387
        %v1740 = vpack.c.b16 %v1420, %v1404
        %v1741 = vpack.c.b16 %v1421, %v1405
        %v1742 = vpack.c.b16 %v1422, %v1406
        %v1743 = vpack.c.b16 %v1423, %v1407
        %v1744 = vpack.c.b16 %v1424, %v1408
        %v1745 = vpack.c.b16 %v1425, %v1409
        %v1746 = vpack.c.b16 %v1426, %v1410
        %v1747 = vpack.c.b16 %v1427, %v1411
        %v1748 = vpack.c.b16 %v1428, %v1412
        %v1749 = vpack.c.b16 %v1429, %v1413
        %v1750 = vpack.c.b16 %v1430, %v1414
        %v1751 = vpack.c.b16 %v1431, %v1415
        %v1752 = vpack.c.b16 %v1432, %v1416
        %v1753 = vpack.c.b16 %v1433, %v1417
        %v1754 = vpack.c.b16 %v1434, %v1418
        %v1755 = vpack.c.b16 %v1435, %v1419
        %v1756 = vpack.c.b16 %v1452, %v1436
        %v1757 = vpack.c.b16 %v1453, %v1437
        %v1758 = vpack.c.b16 %v1454, %v1438
        %v1759 = vpack.c.b16 %v1455, %v1439
        %v1760 = vpack.c.b16 %v1456, %v1440
        %v1761 = vpack.c.b16 %v1457, %v1441
        %v1762 = vpack.c.b16 %v1458, %v1442
        %v1763 = vpack.c.b16 %v1459, %v1443
        %v1764 = vpack.c.b16 %v1460, %v1444
        %v1765 = vpack.c.b16 %v1461, %v1445
        %v1766 = vpack.c.b16 %v1462, %v1446
        %v1767 = vpack.c.b16 %v1463, %v1447
        %v1768 = vpack.c.b16 %v1464, %v1448
        %v1769 = vpack.c.b16 %v1465, %v1449
        %v1770 = vpack.c.b16 %v1466, %v1450
        %v1771 = vpack.c.b16 %v1467, %v1451
        %v1772 = vpack.c.b16 %v1484, %v1468
        %v1773 = vpack.c.b16 %v1485, %v1469
        %v1774 = vpack.c.b16 %v1486, %v1470
        %v1775 = vpack.c.b16 %v1487, %v1471
        %v1776 = vpack.c.b16 %v1488, %v1472
        %v1777 = vpack.c.b16 %v1489, %v1473
        %v1778 = vpack.c.b16 %v1490, %v1474
        %v1779 = vpack.c.b16 %v1491, %v1475
        %v1780 = vpack.c.b16 %v1492, %v1476
        %v1781 = vpack.c.b16 %v1493, %v1477
        %v1782 = vpack.c.b16 %v1494, %v1478
        %v1783 = vpack.c.b16 %v1495, %v1479
        %v1784 = vpack.c.b16 %v1496, %v1480
        %v1785 = vpack.c.b16 %v1497, %v1481
        %v1786 = vpack.c.b16 %v1498, %v1482
        %v1787 = vpack.c.b16 %v1499, %v1483
        %v1788 = vpack.c.b16 %v1516, %v1500
        %v1789 = vpack.c.b16 %v1517, %v1501
        %v1790 = vpack.c.b16 %v1518, %v1502
        %v1791 = vpack.c.b16 %v1519, %v1503
        %v1792 = vpack.c.b16 %v1520, %v1504
        %v1793 = vpack.c.b16 %v1521, %v1505
        %v1794 = vpack.c.b16 %v1522, %v1506
        %v1795 = vpack.c.b16 %v1523, %v1507
        %v1796 = vpack.c.b16 %v1524, %v1508
        %v1797 = vpack.c.b16 %v1525, %v1509
        %v1798 = vpack.c.b16 %v1526, %v1510
        %v1799 = vpack.c.b16 %v1527, %v1511
        %v1800 = vpack.c.b16 %v1528, %v1512
        %v1801 = vpack.c.b16 %v1529, %v1513
        %v1802 = vpack.c.b16 %v1530, %v1514
        %v1803 = vpack.c.b16 %v1531, %v1515
        %v1804 = vpack.c.b16 %v1548, %v1532
        %v1805 = vpack.c.b16 %v1549, %v1533
        %v1806 = vpack.c.b16 %v1550, %v1534
        %v1807 = vpack.c.b16 %v1551, %v1535
        %v1808 = vpack.c.b16 %v1552, %v1536
        %v1809 = vpack.c.b16 %v1553, %v1537
        %v1810 = vpack.c.b16 %v1554, %v1538
        %v1811 = vpack.c.b16 %v1555, %v1539
        %v1812 = vpack.c.b16 %v1556, %v1540
        %v1813 = vpack.c.b16 %v1557, %v1541
        %v1814 = vpack.c.b16 %v1558, %v1542
        %v1815 = vpack.c.b16 %v1559, %v1543
        %v1816 = vpack.c.b16 %v1560, %v1544
        %v1817 = vpack.c.b16 %v1561, %v1545
        %v1818 = vpack.c.b16 %v1562, %v1546
        %v1819 = vpack.c.b16 %v1563, %v1547
        %v1820 = vpack.c.b16 %v1580, %v1564
        %v1821 = vpack.c.b16 %v1581, %v1565
        %v1822 = vpack.c.b16 %v1582, %v1566
        %v1823 = vpack.c.b16 %v1583, %v1567
        %v1824 = vpack.c.b16 %v1584, %v1568
        %v1825 = vpack.c.b16 %v1585, %v1569
        %v1826 = vpack.c.b16 %v1586, %v1570
        %v1827 = vpack.c.b16 %v1587, %v1571
        %v1828 = vpack.c.b16 %v1588, %v1572
        %v1829 = vpack.c.b16 %v1589, %v1573
        %v1830 = vpack.c.b16 %v1590, %v1574
        %v1831 = vpack.c.b16 %v1591, %v1575
        %v1832 = vpack.c.b16 %v1592, %v1576
        %v1833 = vpack.c.b16 %v1593, %v1577
        %v1834 = vpack.c.b16 %v1594, %v1578
        %v1835 = vpack.c.b16 %v1595, %v1579
        %v1836 = vpack.c.b16 %v1612, %v1596
        %v1837 = vpack.c.b16 %v1613, %v1597
        %v1838 = vpack.c.b16 %v1614, %v1598
        %v1839 = vpack.c.b16 %v1615, %v1599
        %v1840 = vpack.c.b16 %v1616, %v1600
        %v1841 = vpack.c.b16 %v1617, %v1601
        %v1842 = vpack.c.b16 %v1618, %v1602
        %v1843 = vpack.c.b16 %v1619, %v1603
        %v1844 = vpack.c.b16 %v1620, %v1604
        %v1845 = vpack.c.b16 %v1621, %v1605
        %v1846 = vpack.c.b16 %v1622, %v1606
        %v1847 = vpack.c.b16 %v1623, %v1607
        %v1848 = vpack.c.b16 %v1624, %v1608
        %v1849 = vpack.c.b16 %v1625, %v1609
        %v1850 = vpack.c.b16 %v1626, %v1610
        %v1851 = vpack.c.b16 %v1627, %v1611
        %vm2076 = vcmask 785408
        %v2078 = vsel %vm2076, %v954, 0
        %2080 = vmatprep.subr.bf16.mxu0 %v1741
        %2081 = vmatpush1.bf16.msra.mxu0 %v1740
        %2082 = vmatprep.subr.bf16.mxu0 %v1725
        %2083 = vmatpush1.bf16.msra.mxu0 %v1724
        %2084 = vmatprep.subr.bf16.mxu0 %v1709
        %2085 = vmatpush1.bf16.msra.mxu0 %v1708
        %2086 = vmatprep.subr.bf16.mxu0 %v1693
        %2087 = vmatpush1.bf16.msra.mxu0 %v1692
        %2088 = vmatprep.subr.bf16.mxu0 %v1677
        %2089 = vmatpush1.bf16.msra.mxu0 %v1676
        %2090 = vmatprep.subr.bf16.mxu0 %v1661
        %2091 = vmatpush1.bf16.msra.mxu0 %v1660
        %2092 = vmatprep.subr.bf16.mxu0 %v1645
        %2093 = vmatpush1.bf16.msra.mxu0 %v1644
        %2094 = vmatprep.subr.bf16.mxu0 %v1629
        %2095 = vmatpush1.bf16.msra.mxu0 %v1628
        %2096 = vmatprep.subr.bf16.mxu0 0
        %2097 = vmatpush2.bf16.msra.mxu0 0
        %2098 = vmatprep.subr.bf16.mxu0 0
        %2099 = vmatpush2.bf16.msra.mxu0 0
        %2100 = vmatprep.subr.bf16.mxu0 %v1837
        %2101 = vmatpush2.bf16.msra.mxu0 %v1836
        %2102 = vmatprep.subr.bf16.mxu0 %v1821
        %2103 = vmatpush2.bf16.msra.mxu0 %v1820
        %2104 = vmatprep.subr.bf16.mxu0 %v1805
        %2105 = vmatpush2.bf16.msra.mxu0 %v1804
        %2106 = vmatprep.subr.bf16.mxu0 %v1789
        %2107 = vmatpush2.bf16.msra.mxu0 %v1788
        %2108 = vmatprep.subr.bf16.mxu0 %v1773
        %2109 = vmatpush2.bf16.msra.mxu0 %v1772
        %2110 = vmatprep.subr.bf16.mxu0 %v1757
        %2111 = vmatpush2.bf16.msra.mxu0 %v1756
        %2112 = vmatprep.mubr.bf16.mxu0 %v2078
        %2113 = vmatmul.mubr.bf16.gmra.mxu0 %v953
        %v2114 = vpop.f32.mrf.mxu0
        %v2115 = vadd.f32 0.0, %v2114
        %v2116 = vpop.f32.mrf.mxu0
        %v2117 = vadd.f32 0.0, %v2116
        %v2118 = vpop.f32.mrf.mxu0
        %v2119 = vpop.f32.mrf.mxu0
        %2120 = vdwg.mxu0
        %2121 = vmatprep.subr.bf16.mxu0 %v1743
        %2122 = vmatpush1.bf16.msra.mxu0 %v1742
        %2123 = vmatprep.subr.bf16.mxu0 %v1727
        %2124 = vmatpush1.bf16.msra.mxu0 %v1726
        %2125 = vmatprep.subr.bf16.mxu0 %v1711
        %2126 = vmatpush1.bf16.msra.mxu0 %v1710
        %2127 = vmatprep.subr.bf16.mxu0 %v1695
        %2128 = vmatpush1.bf16.msra.mxu0 %v1694
        %2129 = vmatprep.subr.bf16.mxu0 %v1679
        %2130 = vmatpush1.bf16.msra.mxu0 %v1678
        %2131 = vmatprep.subr.bf16.mxu0 %v1663
        %2132 = vmatpush1.bf16.msra.mxu0 %v1662
        %2133 = vmatprep.subr.bf16.mxu0 %v1647
        %2134 = vmatpush1.bf16.msra.mxu0 %v1646
        %2135 = vmatprep.subr.bf16.mxu0 %v1631
        %2136 = vmatpush1.bf16.msra.mxu0 %v1630
        %2137 = vmatprep.subr.bf16.mxu0 0
        %2138 = vmatpush2.bf16.msra.mxu0 0
        %2139 = vmatprep.subr.bf16.mxu0 0
        %2140 = vmatpush2.bf16.msra.mxu0 0
        %2141 = vmatprep.subr.bf16.mxu0 %v1839
        %2142 = vmatpush2.bf16.msra.mxu0 %v1838
        %2143 = vmatprep.subr.bf16.mxu0 %v1823
        %2144 = vmatpush2.bf16.msra.mxu0 %v1822
        %2145 = vmatprep.subr.bf16.mxu0 %v1807
        %2146 = vmatpush2.bf16.msra.mxu0 %v1806
        %2147 = vmatprep.subr.bf16.mxu0 %v1791
        %2148 = vmatpush2.bf16.msra.mxu0 %v1790
        %2149 = vmatprep.subr.bf16.mxu0 %v1775
        %2150 = vmatpush2.bf16.msra.mxu0 %v1774
        %2151 = vmatprep.subr.bf16.mxu0 %v1759
        %2152 = vmatpush2.bf16.msra.mxu0 %v1758
        %2153 = vmatprep.mubr.bf16.mxu0 %v2078
        %2154 = vmatmul.mubr.bf16.gmra.mxu0 %v953
        %v2155 = vpop.f32.mrf.mxu0
        %v2156 = vadd.f32 0.0, %v2155
        %v2157 = vpop.f32.mrf.mxu0
        %v2158 = vadd.f32 0.0, %v2157
        %v2159 = vpop.f32.mrf.mxu0
        %v2160 = vpop.f32.mrf.mxu0
        %2161 = vdwg.mxu0
        %2162 = vmatprep.subr.bf16.mxu0 %v1745
        %2163 = vmatpush1.bf16.msra.mxu0 %v1744
        %2164 = vmatprep.subr.bf16.mxu0 %v1729
        %2165 = vmatpush1.bf16.msra.mxu0 %v1728
        %2166 = vmatprep.subr.bf16.mxu0 %v1713
        %2167 = vmatpush1.bf16.msra.mxu0 %v1712
        %2168 = vmatprep.subr.bf16.mxu0 %v1697
        %2169 = vmatpush1.bf16.msra.mxu0 %v1696
        %2170 = vmatprep.subr.bf16.mxu0 %v1681
        %2171 = vmatpush1.bf16.msra.mxu0 %v1680
        %2172 = vmatprep.subr.bf16.mxu0 %v1665
        %2173 = vmatpush1.bf16.msra.mxu0 %v1664
        %2174 = vmatprep.subr.bf16.mxu0 %v1649
        %2175 = vmatpush1.bf16.msra.mxu0 %v1648
        %2176 = vmatprep.subr.bf16.mxu0 %v1633
        %2177 = vmatpush1.bf16.msra.mxu0 %v1632
        %2178 = vmatprep.subr.bf16.mxu0 0
        %2179 = vmatpush2.bf16.msra.mxu0 0
        %2180 = vmatprep.subr.bf16.mxu0 0
        %2181 = vmatpush2.bf16.msra.mxu0 0
        %2182 = vmatprep.subr.bf16.mxu0 %v1841
        %2183 = vmatpush2.bf16.msra.mxu0 %v1840
        %2184 = vmatprep.subr.bf16.mxu0 %v1825
        %2185 = vmatpush2.bf16.msra.mxu0 %v1824
        %2186 = vmatprep.subr.bf16.mxu0 %v1809
        %2187 = vmatpush2.bf16.msra.mxu0 %v1808
        %2188 = vmatprep.subr.bf16.mxu0 %v1793
        %2189 = vmatpush2.bf16.msra.mxu0 %v1792
        %2190 = vmatprep.subr.bf16.mxu0 %v1777
        %2191 = vmatpush2.bf16.msra.mxu0 %v1776
        %2192 = vmatprep.subr.bf16.mxu0 %v1761
        %2193 = vmatpush2.bf16.msra.mxu0 %v1760
        %2194 = vmatprep.mubr.bf16.mxu0 %v2078
        %2195 = vmatmul.mubr.bf16.gmra.mxu0 %v953
        %v2196 = vpop.f32.mrf.mxu0
        %v2197 = vadd.f32 0.0, %v2196
        %v2198 = vpop.f32.mrf.mxu0
        %v2199 = vadd.f32 0.0, %v2198
        %v2200 = vpop.f32.mrf.mxu0
        %v2201 = vpop.f32.mrf.mxu0
        %2202 = vdwg.mxu0
        %2203 = vmatprep.subr.bf16.mxu0 %v1747
        %2204 = vmatpush1.bf16.msra.mxu0 %v1746
        %2205 = vmatprep.subr.bf16.mxu0 %v1731
        %2206 = vmatpush1.bf16.msra.mxu0 %v1730
        %2207 = vmatprep.subr.bf16.mxu0 %v1715
        %2208 = vmatpush1.bf16.msra.mxu0 %v1714
        %2209 = vmatprep.subr.bf16.mxu0 %v1699
        %2210 = vmatpush1.bf16.msra.mxu0 %v1698
        %2211 = vmatprep.subr.bf16.mxu0 %v1683
        %2212 = vmatpush1.bf16.msra.mxu0 %v1682
        %2213 = vmatprep.subr.bf16.mxu0 %v1667
        %2214 = vmatpush1.bf16.msra.mxu0 %v1666
        %2215 = vmatprep.subr.bf16.mxu0 %v1651
        %2216 = vmatpush1.bf16.msra.mxu0 %v1650
        %2217 = vmatprep.subr.bf16.mxu0 %v1635
        %2218 = vmatpush1.bf16.msra.mxu0 %v1634
        %2219 = vmatprep.subr.bf16.mxu0 0
        %2220 = vmatpush2.bf16.msra.mxu0 0
        %2221 = vmatprep.subr.bf16.mxu0 0
        %2222 = vmatpush2.bf16.msra.mxu0 0
        %2223 = vmatprep.subr.bf16.mxu0 %v1843
        %2224 = vmatpush2.bf16.msra.mxu0 %v1842
        %2225 = vmatprep.subr.bf16.mxu0 %v1827
        %2226 = vmatpush2.bf16.msra.mxu0 %v1826
        %2227 = vmatprep.subr.bf16.mxu0 %v1811
        %2228 = vmatpush2.bf16.msra.mxu0 %v1810
        %2229 = vmatprep.subr.bf16.mxu0 %v1795
        %2230 = vmatpush2.bf16.msra.mxu0 %v1794
        %2231 = vmatprep.subr.bf16.mxu0 %v1779
        %2232 = vmatpush2.bf16.msra.mxu0 %v1778
        %2233 = vmatprep.subr.bf16.mxu0 %v1763
        %2234 = vmatpush2.bf16.msra.mxu0 %v1762
        %2235 = vmatprep.mubr.bf16.mxu0 %v2078
        %2236 = vmatmul.mubr.bf16.gmra.mxu0 %v953
        %v2237 = vpop.f32.mrf.mxu0
        %v2238 = vadd.f32 0.0, %v2237
        %v2239 = vpop.f32.mrf.mxu0
        %v2240 = vadd.f32 0.0, %v2239
        %v2241 = vpop.f32.mrf.mxu0
        %v2242 = vpop.f32.mrf.mxu0
        %2243 = vdwg.mxu0
        %2244 = vmatprep.subr.bf16.mxu0 %v1749
        %2245 = vmatpush1.bf16.msra.mxu0 %v1748
        %2246 = vmatprep.subr.bf16.mxu0 %v1733
        %2247 = vmatpush1.bf16.msra.mxu0 %v1732
        %2248 = vmatprep.subr.bf16.mxu0 %v1717
        %2249 = vmatpush1.bf16.msra.mxu0 %v1716
        %2250 = vmatprep.subr.bf16.mxu0 %v1701
        %2251 = vmatpush1.bf16.msra.mxu0 %v1700
        %2252 = vmatprep.subr.bf16.mxu0 %v1685
        %2253 = vmatpush1.bf16.msra.mxu0 %v1684
        %2254 = vmatprep.subr.bf16.mxu0 %v1669
        %2255 = vmatpush1.bf16.msra.mxu0 %v1668
        %2256 = vmatprep.subr.bf16.mxu0 %v1653
        %2257 = vmatpush1.bf16.msra.mxu0 %v1652
        %2258 = vmatprep.subr.bf16.mxu0 %v1637
        %2259 = vmatpush1.bf16.msra.mxu0 %v1636
        %2260 = vmatprep.subr.bf16.mxu0 0
        %2261 = vmatpush2.bf16.msra.mxu0 0
        %2262 = vmatprep.subr.bf16.mxu0 0
        %2263 = vmatpush2.bf16.msra.mxu0 0
        %2264 = vmatprep.subr.bf16.mxu0 %v1845
        %2265 = vmatpush2.bf16.msra.mxu0 %v1844
        %2266 = vmatprep.subr.bf16.mxu0 %v1829
        %2267 = vmatpush2.bf16.msra.mxu0 %v1828
        %2268 = vmatprep.subr.bf16.mxu0 %v1813
        %2269 = vmatpush2.bf16.msra.mxu0 %v1812
        %2270 = vmatprep.subr.bf16.mxu0 %v1797
        %2271 = vmatpush2.bf16.msra.mxu0 %v1796
        %2272 = vmatprep.subr.bf16.mxu0 %v1781
        %2273 = vmatpush2.bf16.msra.mxu0 %v1780
        %2274 = vmatprep.subr.bf16.mxu0 %v1765
        %2275 = vmatpush2.bf16.msra.mxu0 %v1764
        %2276 = vmatprep.mubr.bf16.mxu0 %v2078
        %2277 = vmatmul.mubr.bf16.gmra.mxu0 %v953
        %v2278 = vpop.f32.mrf.mxu0
        %v2279 = vadd.f32 0.0, %v2278
        %v2280 = vpop.f32.mrf.mxu0
        %v2281 = vadd.f32 0.0, %v2280
        %v2282 = vpop.f32.mrf.mxu0
        %v2283 = vpop.f32.mrf.mxu0
        %2284 = vdwg.mxu0
        %2285 = vmatprep.subr.bf16.mxu0 %v1751
        %2286 = vmatpush1.bf16.msra.mxu0 %v1750
        %2287 = vmatprep.subr.bf16.mxu0 %v1735
        %2288 = vmatpush1.bf16.msra.mxu0 %v1734
        %2289 = vmatprep.subr.bf16.mxu0 %v1719
        %2290 = vmatpush1.bf16.msra.mxu0 %v1718
        %2291 = vmatprep.subr.bf16.mxu0 %v1703
        %2292 = vmatpush1.bf16.msra.mxu0 %v1702
        %2293 = vmatprep.subr.bf16.mxu0 %v1687
        %2294 = vmatpush1.bf16.msra.mxu0 %v1686
        %2295 = vmatprep.subr.bf16.mxu0 %v1671
        %2296 = vmatpush1.bf16.msra.mxu0 %v1670
        %2297 = vmatprep.subr.bf16.mxu0 %v1655
        %2298 = vmatpush1.bf16.msra.mxu0 %v1654
        %2299 = vmatprep.subr.bf16.mxu0 %v1639
        %2300 = vmatpush1.bf16.msra.mxu0 %v1638
        %2301 = vmatprep.subr.bf16.mxu0 0
        %2302 = vmatpush2.bf16.msra.mxu0 0
        %2303 = vmatprep.subr.bf16.mxu0 0
        %2304 = vmatpush2.bf16.msra.mxu0 0
        %2305 = vmatprep.subr.bf16.mxu0 %v1847
        %2306 = vmatpush2.bf16.msra.mxu0 %v1846
        %2307 = vmatprep.subr.bf16.mxu0 %v1831
        %2308 = vmatpush2.bf16.msra.mxu0 %v1830
        %2309 = vmatprep.subr.bf16.mxu0 %v1815
        %2310 = vmatpush2.bf16.msra.mxu0 %v1814
        %2311 = vmatprep.subr.bf16.mxu0 %v1799
        %2312 = vmatpush2.bf16.msra.mxu0 %v1798
        %2313 = vmatprep.subr.bf16.mxu0 %v1783
        %2314 = vmatpush2.bf16.msra.mxu0 %v1782
        %2315 = vmatprep.subr.bf16.mxu0 %v1767
        %2316 = vmatpush2.bf16.msra.mxu0 %v1766
        %2317 = vmatprep.mubr.bf16.mxu0 %v2078
        %2318 = vmatmul.mubr.bf16.gmra.mxu0 %v953
        %v2319 = vpop.f32.mrf.mxu0
        %v2320 = vadd.f32 0.0, %v2319
        %v2321 = vpop.f32.mrf.mxu0
        %v2322 = vadd.f32 0.0, %v2321
        %v2323 = vpop.f32.mrf.mxu0
        %v2324 = vpop.f32.mrf.mxu0
        %2325 = vdwg.mxu0
        %2326 = vmatprep.subr.bf16.mxu0 %v1753
        %2327 = vmatpush1.bf16.msra.mxu0 %v1752
        %2328 = vmatprep.subr.bf16.mxu0 %v1737
        %2329 = vmatpush1.bf16.msra.mxu0 %v1736
        %2330 = vmatprep.subr.bf16.mxu0 %v1721
        %2331 = vmatpush1.bf16.msra.mxu0 %v1720
        %2332 = vmatprep.subr.bf16.mxu0 %v1705
        %2333 = vmatpush1.bf16.msra.mxu0 %v1704
        %2334 = vmatprep.subr.bf16.mxu0 %v1689
        %2335 = vmatpush1.bf16.msra.mxu0 %v1688
        %2336 = vmatprep.subr.bf16.mxu0 %v1673
        %2337 = vmatpush1.bf16.msra.mxu0 %v1672
        %2338 = vmatprep.subr.bf16.mxu0 %v1657
        %2339 = vmatpush1.bf16.msra.mxu0 %v1656
        %2340 = vmatprep.subr.bf16.mxu0 %v1641
        %2341 = vmatpush1.bf16.msra.mxu0 %v1640
        %2342 = vmatprep.subr.bf16.mxu0 0
        %2343 = vmatpush2.bf16.msra.mxu0 0
        %2344 = vmatprep.subr.bf16.mxu0 0
        %2345 = vmatpush2.bf16.msra.mxu0 0
        %2346 = vmatprep.subr.bf16.mxu0 %v1849
        %2347 = vmatpush2.bf16.msra.mxu0 %v1848
        %2348 = vmatprep.subr.bf16.mxu0 %v1833
        %2349 = vmatpush2.bf16.msra.mxu0 %v1832
        %2350 = vmatprep.subr.bf16.mxu0 %v1817
        %2351 = vmatpush2.bf16.msra.mxu0 %v1816
        %2352 = vmatprep.subr.bf16.mxu0 %v1801
        %2353 = vmatpush2.bf16.msra.mxu0 %v1800
        %2354 = vmatprep.subr.bf16.mxu0 %v1785
        %2355 = vmatpush2.bf16.msra.mxu0 %v1784
        %2356 = vmatprep.subr.bf16.mxu0 %v1769
        %2357 = vmatpush2.bf16.msra.mxu0 %v1768
        %2358 = vmatprep.mubr.bf16.mxu0 %v2078
        %2359 = vmatmul.mubr.bf16.gmra.mxu0 %v953
        %v2360 = vpop.f32.mrf.mxu0
        %v2361 = vadd.f32 0.0, %v2360
        %v2362 = vpop.f32.mrf.mxu0
        %v2363 = vadd.f32 0.0, %v2362
        %v2364 = vpop.f32.mrf.mxu0
        %v2365 = vpop.f32.mrf.mxu0
        %2366 = vdwg.mxu0
        %2367 = vmatprep.subr.bf16.mxu0 %v1755
        %2368 = vmatpush1.bf16.msra.mxu0 %v1754
        %2369 = vmatprep.subr.bf16.mxu0 %v1739
        %2370 = vmatpush1.bf16.msra.mxu0 %v1738
        %2371 = vmatprep.subr.bf16.mxu0 %v1723
        %2372 = vmatpush1.bf16.msra.mxu0 %v1722
        %2373 = vmatprep.subr.bf16.mxu0 %v1707
        %2374 = vmatpush1.bf16.msra.mxu0 %v1706
        %2375 = vmatprep.subr.bf16.mxu0 %v1691
        %2376 = vmatpush1.bf16.msra.mxu0 %v1690
        %2377 = vmatprep.subr.bf16.mxu0 %v1675
        %2378 = vmatpush1.bf16.msra.mxu0 %v1674
        %2379 = vmatprep.subr.bf16.mxu0 %v1659
        %2380 = vmatpush1.bf16.msra.mxu0 %v1658
        %2381 = vmatprep.subr.bf16.mxu0 %v1643
        %2382 = vmatpush1.bf16.msra.mxu0 %v1642
        %2383 = vmatprep.subr.bf16.mxu0 0
        %2384 = vmatpush2.bf16.msra.mxu0 0
        %2385 = vmatprep.subr.bf16.mxu0 0
        %2386 = vmatpush2.bf16.msra.mxu0 0
        %2387 = vmatprep.subr.bf16.mxu0 %v1851
        %2388 = vmatpush2.bf16.msra.mxu0 %v1850
        %2389 = vmatprep.subr.bf16.mxu0 %v1835
        %2390 = vmatpush2.bf16.msra.mxu0 %v1834
        %2391 = vmatprep.subr.bf16.mxu0 %v1819
        %2392 = vmatpush2.bf16.msra.mxu0 %v1818
        %2393 = vmatprep.subr.bf16.mxu0 %v1803
        %2394 = vmatpush2.bf16.msra.mxu0 %v1802
        %2395 = vmatprep.subr.bf16.mxu0 %v1787
        %2396 = vmatpush2.bf16.msra.mxu0 %v1786
        %2397 = vmatprep.subr.bf16.mxu0 %v1771
        %2398 = vmatpush2.bf16.msra.mxu0 %v1770
        %2399 = vmatprep.mubr.bf16.mxu0 %v2078
        %2400 = vmatmul.mubr.bf16.gmra.mxu0 %v953
        %v2401 = vpop.f32.mrf.mxu0
        %v2402 = vadd.f32 0.0, %v2401
        %v2403 = vpop.f32.mrf.mxu0
        %v2404 = vadd.f32 0.0, %v2403
        %v2405 = vpop.f32.mrf.mxu0
        %v2406 = vpop.f32.mrf.mxu0
        %2407 = vdwg.mxu0
        %v2424 = vcombine.low %v2115, %v2117
        %v2425 = vcombine.low %v2156, %v2158
        %v2426 = vcombine.low %v2197, %v2199
        %v2427 = vcombine.low %v2238, %v2240
        %v2428 = vcombine.low %v2279, %v2281
        %v2429 = vcombine.low %v2320, %v2322
        %v2430 = vcombine.low %v2361, %v2363
        %v2431 = vcombine.low %v2402, %v2404
        %2440 = vst [vmem:[%s703] sm:$0xff] %v2424
        %2441 = vst [vmem:[%s703 + $0x8] sm:$0xff] %v2425
        %2442 = vst [vmem:[%s703 + $0x10] sm:$0xff] %v2426
        %2443 = vst [vmem:[%s703 + $0x18] sm:$0xff] %v2427
        %2444 = vst [vmem:[%s703 + $0x20] sm:$0xff] %v2428
        %2445 = vst [vmem:[%s703 + $0x28] sm:$0xff] %v2429
        %2446 = vst [vmem:[%s703 + $0x30] sm:$0xff] %v2430
        %2447 = vst [vmem:[%s703 + $0x38] sm:$0xff] %v2431
        %v2448 = vld [vmem:[#allocation2] sm:$0xf]
        %vm2449 = vcmask 1043456
        %v2450 = vsel %vm2449, %v2115, 0.0
        %v2451 = vsel %vm2449, %v2117, 0.0
        %v2452 = vadd.f32 %v2450, %v2451
        %v2453 = vsel %vm2449, %v2156, 0.0
        %v2454 = vadd.f32 %v2452, %v2453
        %v2455 = vsel %vm2449, %v2158, 0.0
        %v2456 = vadd.f32 %v2454, %v2455
        %v2457 = vsel %vm2449, %v2197, 0.0
        %v2458 = vadd.f32 %v2456, %v2457
        %v2459 = vsel %vm2449, %v2199, 0.0
        %v2460 = vadd.f32 %v2458, %v2459
        %v2461 = vsel %vm2449, %v2238, 0.0
        %v2462 = vadd.f32 %v2460, %v2461
        %v2463 = vsel %vm2449, %v2240, 0.0
        %v2464 = vadd.f32 %v2462, %v2463
        %v2465 = vsel %vm2449, %v2279, 0.0
        %v2466 = vadd.f32 %v2464, %v2465
        %v2467 = vsel %vm2449, %v2281, 0.0
        %v2468 = vadd.f32 %v2466, %v2467
        %v2469 = vsel %vm2449, %v2320, 0.0
        %v2470 = vadd.f32 %v2468, %v2469
        %v2471 = vsel %vm2449, %v2322, 0.0
        %v2472 = vadd.f32 %v2470, %v2471
        %v2473 = vsel %vm2449, %v2361, 0.0
        %v2474 = vadd.f32 %v2472, %v2473
        %v2475 = vsel %vm2449, %v2363, 0.0
        %v2476 = vadd.f32 %v2474, %v2475
        %v2477 = vsel %vm2449, %v2402, 0.0
        %v2478 = vadd.f32 %v2476, %v2477
        %v2479 = vsel %vm2449, %v2404, 0.0
        %v2480 = vadd.f32 %v2478, %v2479
        %2481 = vadd.xlane.f32.xlu0 %v2480
        %v2482 = vpop.xlane.xlu0 %2481
        %v2483 = vadd.f32 %v2448, %v2482
        %vm2484 = vcmask 3072
        %2485 = vst.msk [vmem:[#allocation2] sm:$0xf] %vm2484, %v2483
        %v2486 = vld [vmem:[#allocation3] sm:$0xf]
        %v2487 = vmul.f32 %v2115, %v2115
        %v2488 = vmul.f32 %v2117, %v2117
        %v2489 = vmul.f32 %v2156, %v2156
        %v2490 = vmul.f32 %v2158, %v2158
        %v2491 = vmul.f32 %v2197, %v2197
        %v2492 = vmul.f32 %v2199, %v2199
        %v2493 = vmul.f32 %v2238, %v2238
        %v2494 = vmul.f32 %v2240, %v2240
        %v2495 = vmul.f32 %v2279, %v2279
        %v2496 = vmul.f32 %v2281, %v2281
        %v2497 = vmul.f32 %v2320, %v2320
        %v2498 = vmul.f32 %v2322, %v2322
        %v2499 = vmul.f32 %v2361, %v2361
        %v2500 = vmul.f32 %v2363, %v2363
        %v2501 = vmul.f32 %v2402, %v2402
        %v2502 = vmul.f32 %v2404, %v2404
        %v2503 = vsel %vm2449, %v2487, 0.0
        %v2504 = vsel %vm2449, %v2488, 0.0
        %v2505 = vadd.f32 %v2503, %v2504
        %v2506 = vsel %vm2449, %v2489, 0.0
        %v2507 = vadd.f32 %v2505, %v2506
        %v2508 = vsel %vm2449, %v2490, 0.0
        %v2509 = vadd.f32 %v2507, %v2508
        %v2510 = vsel %vm2449, %v2491, 0.0
        %v2511 = vadd.f32 %v2509, %v2510
        %v2512 = vsel %vm2449, %v2492, 0.0
        %v2513 = vadd.f32 %v2511, %v2512
        %v2514 = vsel %vm2449, %v2493, 0.0
        %v2515 = vadd.f32 %v2513, %v2514
        %v2516 = vsel %vm2449, %v2494, 0.0
        %v2517 = vadd.f32 %v2515, %v2516
        %v2518 = vsel %vm2449, %v2495, 0.0
        %v2519 = vadd.f32 %v2517, %v2518
        %v2520 = vsel %vm2449, %v2496, 0.0
        %v2521 = vadd.f32 %v2519, %v2520
        %v2522 = vsel %vm2449, %v2497, 0.0
        %v2523 = vadd.f32 %v2521, %v2522
        %v2524 = vsel %vm2449, %v2498, 0.0
        %v2525 = vadd.f32 %v2523, %v2524
        %v2526 = vsel %vm2449, %v2499, 0.0
        %v2527 = vadd.f32 %v2525, %v2526
        %v2528 = vsel %vm2449, %v2500, 0.0
        %v2529 = vadd.f32 %v2527, %v2528
        %v2530 = vsel %vm2449, %v2501, 0.0
        %v2531 = vadd.f32 %v2529, %v2530
        %v2532 = vsel %vm2449, %v2502, 0.0
        %v2533 = vadd.f32 %v2531, %v2532
        %2534 = vadd.xlane.f32.xlu0 %v2533
        %v2535 = vpop.xlane.xlu0 %2534
        %v2536 = vadd.f32 %v2486, %v2535
        %2537 = vst.msk [vmem:[#allocation3] sm:$0xf] %vm2484, %v2536
        %p2538 = scmp.eq.s32.totalorder %s21, 1
        // Predicated region
        $region56: #{_lambda_.37} parent=46 // pred_check
          %p2539 = pneg %p2538
        $region57: #{_lambda_.37} parent=46 // pred_check_branch
          %2541 = sbr.rel (%p2539) target = $region59
        $region58: #{_lambda_.37} parent=46 // pred_region
          %v2542 = vld [vmem:[#allocation2] sm:$0xf]
          %v2543 = vmul.f32 %v2542, 0.00024414063
          %v2544 = vld [vmem:[#allocation3] sm:$0xf]
          %v2545 = vmul.f32 %v2544, 0.00024414063
          %v2546 = vmul.f32 %v2543, %v2543
          %v2547 = vsub.f32 %v2545, %v2546
          %v2548 = vmax.f32 %v2547, 0.0
          %2549 = vst.msk [vmem:[%s708] sm:$0xf] %vm2484, %v2543
          %v2550 = vadd.f32 %v2548, 1e-05
          %v2551 = vrsqrt.pop %v2550
          %2552 = vst.msk [vmem:[%s712] sm:$0xf] %vm2484, %v2551
        $region59: #{_lambda_.37} parent=46 // pred_fallthru
          _
        %s2553 = smul.u32 16, %s21
        %p2554 = scmp.lt.s32.totalorder %s20, 1
        %s2555 = scalar_select %p2554, %s20, 1
        %p2556 = scmp.lt.s32.totalorder %s2553, 31
        %s2557 = scalar_select %p2556, %s2553, 31
        %s2558 = smul.addr %s2555, 32
        %s2559 = sadd.s32 %s2557, %s2558
        %s2560 = smul.addr %s2559, 4
        %s2561 = scalar_lea.vmem %s2, %s2560
        %p2562 = scmp.lt.s32.totalorder %s20, 1
        %s2563 = scalar_select %p2562, %s20, 1
        %s2564 = smul.addr %s2563, 4
        %s2565 = scalar_lea.vmem %s3, %s2564
        %p2566 = scmp.lt.s32.totalorder %s20, 1
        %s2567 = scalar_select %p2566, %s20, 1
        %s2568 = smul.addr %s2567, 4
        %s2569 = scalar_lea.vmem %s4, %s2568
        // Predicated region
        $region60: #{_lambda_.37} parent=46 // pred_check
          %p2570 = pneg %p97
        $region61: #{_lambda_.37} parent=46 // pred_check_branch
          %2572 = sbr.rel (%p2570) target = $region63
        $region62: #{_lambda_.37} parent=46 // pred_region
          %s2573 = smul.u32 16, %s21
        $region63: #{_lambda_.37} parent=46 // pred_fallthru
          _
        // Predicated region
        $region64: #{_lambda_.37} parent=46 // pred_check
          %p2574 = pneg %p123
        $region65: #{_lambda_.37} parent=46 // pred_check_branch
          %2576 = sbr.rel (%p2574) target = $region67
        $region66: #{_lambda_.37} parent=46 // pred_region
          _
        $region67: #{_lambda_.37} parent=46 // pred_fallthru
          _
        // Predicated region
        $region68: #{_lambda_.37} parent=46 // pred_check
          %p2577 = pneg %p149
        $region69: #{_lambda_.37} parent=46 // pred_check_branch
          %2579 = sbr.rel (%p2577) target = $region71
        $region70: #{_lambda_.37} parent=46 // pred_region
          _
        $region71: #{_lambda_.37} parent=46 // pred_fallthru
          _
      $region47: #{_lambda_.37} parent=5 // pred_fallthru
        _
      %p2580 = scmp.le.s32.totalorder 2, %s11
      // Predicated region
      $region72: #{_lambda_.37} parent=5 // pred_check
        %p2581 = pneg %p2580
      $region73: #{_lambda_.37} parent=5 // pred_check_branch
        %2583 = sbr.rel (%p2581) target = $region75
      $region74: #{_lambda_.37} parent=5 // pred_region
        %s2584 = ssub.s32 %s11, 2
        // Predicated region
        $region76: #{_lambda_.37} parent=74 // pred_check
          %p2585 = pneg %p103
        $region77: #{_lambda_.37} parent=74 // pred_check_branch
          %2587 = sbr.rel (%p2585) target = $region79
        $region78: #{_lambda_.37} parent=74 // pred_region
          %s2588 = smul.u32 16, %s23
          %p2589 = scmp.lt.s32.totalorder %s22, 1
          %s2590 = scalar_select %p2589, %s22, 1
          %p2591 = scmp.lt.s32.totalorder %s2588, 31
          %s2592 = scalar_select %p2591, %s2588, 31
          %s2593 = smul.addr %s2590, 32
          %s2594 = sadd.s32 %s2592, %s2593
          %s2595 = smul.addr %s2594, 4
          %s2596 = scalar_lea.vmem %s2, %s2595
        $region79: #{_lambda_.37} parent=74 // pred_fallthru
          _
        // Predicated region
        $region80: #{_lambda_.37} parent=74 // pred_check
          %p2597 = pneg %p129
        $region81: #{_lambda_.37} parent=74 // pred_check_branch
          %2599 = sbr.rel (%p2597) target = $region83
        $region82: #{_lambda_.37} parent=74 // pred_region
          %p2600 = scmp.lt.s32.totalorder %s22, 1
          %s2601 = scalar_select %p2600, %s22, 1
          %s2602 = smul.addr %s2601, 4
          %s2603 = scalar_lea.vmem %s3, %s2602
        $region83: #{_lambda_.37} parent=74 // pred_fallthru
          _
        // Predicated region
        $region84: #{_lambda_.37} parent=74 // pred_check
          %p2604 = pneg %p155
        $region85: #{_lambda_.37} parent=74 // pred_check_branch
          %2606 = sbr.rel (%p2604) target = $region87
        $region86: #{_lambda_.37} parent=74 // pred_region
          %p2607 = scmp.lt.s32.totalorder %s22, 1
          %s2608 = scalar_select %p2607, %s22, 1
          %s2609 = smul.addr %s2608, 4
          %s2610 = scalar_lea.vmem %s4, %s2609
        $region87: #{_lambda_.37} parent=74 // pred_fallthru
          _
      $region75: #{_lambda_.37} parent=5 // pred_fallthru
        _
    $region6: #{_lambda_.37} parent=1 // loop_footer
      %s15 = sadd.s32 1, %s11
    $region7: #{_lambda_.37} parent=1 // loop_footer_branch
      %10 = sbr.rel target = $region3
    $region8: #{_lambda_.37} parent=1 // loop_exit
      _

// kernel: _lambda_.43
$region0: #{_lambda_.43}
  #allocation0 [shape = 'u32[]', space=smem, size = 0x4, offset = 0x4, fixed_abs, tag = 'smem constant byte address 0x4 - core index']
  #allocation1 [shape = 'u32[144,128]{1,0:T(1,128)}', space=vmem, size = 0x12000, scoped, tag = 'internal scratch']
  %s0 = inlined_call_operand.vmem [shape: bf16[2,112], index: 0, kind: input, shape index: {}]
  %s1 = inlined_call_operand.vmem [shape: bf16[2,112,4096], index: 1, kind: input, shape index: {}]
  %s2 = inlined_call_operand.vmem [shape: f32[2,1], index: 2, kind: input, shape index: {}]
  %s3 = inlined_call_operand.vmem [shape: f32[2,2,4096], index: 3, kind: output, shape index: {}]
  %s4 = sld [smem:[#allocation0]]
  $region68: #{_lambda_.43} parent=0
    _
  %s6 = ssub.s32 1, %s4
  %s7 = scalar_select 0, %s6, %s4
  $region1: #{_lambda_.43} parent=0
    #allocation2 [shape = 'u8[917504]{0}', space=vmem, size = 0xe0000, scoped, tag = 'input window, operand 1']
    loop: start=0, step=1, limit=6
    $region2: #{_lambda_.43} parent=1 // loop_pre_header
      _
    $region3: #{_lambda_.43} parent=1 // loop_header
      %s9 = sphi 0, %s13
      %p10 = scmp.ge.s32.totalorder %s9, 6
      %s16 = sphi 0, %s28
      %s17 = sphi 0, %s24
      %s18 = sphi 0, %s16
      %s19 = sphi 0, %s17
      %s20 = sphi 0, %s18
      %s21 = sphi 0, %s19
      %s29 = sphi 0, %s29
      %s31 = sphi 0, %s29
      %s32 = sphi 0, %s31
      %s46 = sphi 0, %s32
      %s54 = sphi 0, %s56
      %s57 = sphi 0, %s54
      %s58 = sphi 0, %s57
      %s74 = sphi 0, %s58
      %s78 = sphi 0, %s78
      %s80 = sphi 0, %s78
      %s81 = sphi 0, %s80
      %s95 = sphi 0, %s81
      %s103 = sphi 0, %s105
      %s106 = sphi 0, %s103
      %s107 = sphi 0, %s106
      %s123 = sphi 0, %s107
    $region4: #{_lambda_.43} parent=1 // loop_header_branch
      %12 = sbr.rel (%p10) target = $region8
    $region5: #{_lambda_.43} parent=1 // loop_body
      %s14 = ssub.s32 %s9, 1
      %s15 = ssub.s32 %s9, 2
      %s22 = sadd.s32 1, %s17
      %p23 = scmp.ge.s32.totalorder %s22, 2
      %s24 = scalar_select %p23, 0, %s22
      %s25 = sadd.s32 1, %s16
      %s26 = scalar_select %p23, %s25, %s16
      %p27 = scmp.ge.s32.totalorder %s26, 2
      %s28 = scalar_select %p27, 0, %s26
      %s30 = sadd.s32 %s29, 1
      %p33 = scmp.eq.s32.totalorder %s9, 3
      %p34 = scmp.ne.s32.totalorder %s29, %s31
      %p35 = scmp.eq.s32.totalorder %s9, 0
      %p36 = por %p34, %p35
      %p37 = scmp.ne.s32.totalorder %s29, %s31
      %p38 = scmp.eq.s32.totalorder %s14, 3
      %p39 = por %p37, %p38
      %p40 = scmp.ne.s32.totalorder %s31, %s32
      %p41 = scmp.eq.s32.totalorder %s14, 0
      %p42 = por %p40, %p41
      %p43 = scmp.ne.s32.totalorder %s31, %s32
      %p44 = scmp.eq.s32.totalorder %s15, 3
      %p45 = por %p43, %p44
      %p47 = scmp.ne.s32.totalorder %s32, %s46
      %p48 = scmp.eq.s32.totalorder %s15, 0
      %p49 = por %p47, %p48
      %s50 = ssub.s32 %s16, %s28
      %s51 = ssub.s32 %s17, %s24
      %s52 = sor.u32 %s50, %s51
      %p53 = scmp.eq.s32.totalorder %s52, 0
      %s55 = sadd.s32 %s54, 1
      %s56 = scalar_select %p53, %s54, %s55
      %p59 = pneg %p53
      %p60 = scmp.eq.s32.totalorder %s9, 3
      %p61 = por %p59, %p60
      %p62 = scmp.ne.s32.totalorder %s54, %s57
      %p63 = scmp.eq.s32.totalorder %s9, 0
      %p64 = por %p62, %p63
      %p65 = scmp.ne.s32.totalorder %s54, %s57
      %p66 = scmp.eq.s32.totalorder %s14, 3
      %p67 = por %p65, %p66
      %p68 = scmp.ne.s32.totalorder %s57, %s58
      %p69 = scmp.eq.s32.totalorder %s14, 0
      %p70 = por %p68, %p69
      %p71 = scmp.ne.s32.totalorder %s57, %s58
      %p72 = scmp.eq.s32.totalorder %s15, 3
      %p73 = por %p71, %p72
      %p75 = scmp.ne.s32.totalorder %s58, %s74
      %p76 = scmp.eq.s32.totalorder %s15, 0
      %p77 = por %p75, %p76
      %s79 = sadd.s32 %s78, 1
      %p82 = scmp.eq.s32.totalorder %s9, 3
      %p83 = scmp.ne.s32.totalorder %s78, %s80
      %p84 = scmp.eq.s32.totalorder %s9, 0
      %p85 = por %p83, %p84
      %p86 = scmp.ne.s32.totalorder %s78, %s80
      %p87 = scmp.eq.s32.totalorder %s14, 3
      %p88 = por %p86, %p87
      %p89 = scmp.ne.s32.totalorder %s80, %s81
      %p90 = scmp.eq.s32.totalorder %s14, 0
      %p91 = por %p89, %p90
      %p92 = scmp.ne.s32.totalorder %s80, %s81
      %p93 = scmp.eq.s32.totalorder %s15, 3
      %p94 = por %p92, %p93
      %p96 = scmp.ne.s32.totalorder %s81, %s95
      %p97 = scmp.eq.s32.totalorder %s15, 0
      %p98 = por %p96, %p97
      %s99 = ssub.s32 %s16, %s28
      %s100 = ssub.s32 %s17, %s24
      %s101 = sor.u32 %s99, %s100
      %p102 = scmp.eq.s32.totalorder %s101, 0
      %s104 = sadd.s32 %s103, 1
      %s105 = scalar_select %p102, %s103, %s104
      %p108 = pneg %p102
      %p109 = scmp.eq.s32.totalorder %s9, 3
      %p110 = por %p108, %p109
      %p111 = scmp.ne.s32.totalorder %s103, %s106
      %p112 = scmp.eq.s32.totalorder %s9, 0
      %p113 = por %p111, %p112
      %p114 = scmp.ne.s32.totalorder %s103, %s106
      %p115 = scmp.eq.s32.totalorder %s14, 3
      %p116 = por %p114, %p115
      %p117 = scmp.ne.s32.totalorder %s106, %s107
      %p118 = scmp.eq.s32.totalorder %s14, 0
      %p119 = por %p117, %p118
      %p120 = scmp.ne.s32.totalorder %s106, %s107
      %p121 = scmp.eq.s32.totalorder %s15, 3
      %p122 = por %p120, %p121
      %p124 = scmp.ne.s32.totalorder %s107, %s123
      %p125 = scmp.eq.s32.totalorder %s15, 0
      %p126 = por %p124, %p125
      %p127 = scmp.le.s32.totalorder 1, %s9
      %p128 = scmp.lt.s32.totalorder %s9, 5
      %p129 = pnand %p127, %p128
      %p130 = pneg %p129
      // Predicated region
      $region9: #{_lambda_.43} parent=5 // pred_check
        _
      $region10: #{_lambda_.43} parent=5 // pred_check_branch
        %132 = sbr.rel (%p129) target = $region12
      $region11: #{_lambda_.43} parent=5 // pred_region
        %s133 = ssub.s32 %s9, 1
        // Predicated region
        $region13: #{_lambda_.43} parent=11 // pred_check
          %p134 = pneg %p42
        $region14: #{_lambda_.43} parent=11 // pred_check_branch
          %136 = sbr.rel (%p134) target = $region16
        $region15: #{_lambda_.43} parent=11 // pred_region
          _
        $region16: #{_lambda_.43} parent=11 // pred_fallthru
          _
        // Predicated region
        $region17: #{_lambda_.43} parent=11 // pred_check
          %p137 = pneg %p91
        $region18: #{_lambda_.43} parent=11 // pred_check_branch
          %139 = sbr.rel (%p137) target = $region20
        $region19: #{_lambda_.43} parent=11 // pred_region
          _
        $region20: #{_lambda_.43} parent=11 // pred_fallthru
          _
      $region12: #{_lambda_.43} parent=5 // pred_fallthru
        _
      %p140 = scmp.lt.s32.totalorder %s9, 4
      // Predicated region
      $region21: #{_lambda_.43} parent=5 // pred_check
        %p141 = pneg %p140
      $region22: #{_lambda_.43} parent=5 // pred_check_branch
        %143 = sbr.rel (%p141) target = $region24
      $region23: #{_lambda_.43} parent=5 // pred_region
        // Predicated region
        $region25: #{_lambda_.43} parent=23 // pred_check
          %p144 = pneg %p64
        $region26: #{_lambda_.43} parent=23 // pred_check_branch
          %146 = sbr.rel (%p144) target = $region28
        $region27: #{_lambda_.43} parent=23 // pred_region
          %s147 = sand.u32 %s54, 1
          %s148 = sand.u32 %s54, 1
          %s149 = smul.addr %s148, 896
          %s150 = scalar_lea.vmem [#allocation2], %s149
          %s151 = smul.u32 16, %s17
          %s152 = smul.addr %s16, 448
          %s153 = sadd.s32 %s151, %s152
          %s154 = smul.addr %s153, 4
          %s155 = scalar_lea.vmem %s1, %s154
          // Predicated region
          $region29: #{_lambda_.43} parent=27 // pred_check
            _
          $region30: #{_lambda_.43} parent=27 // pred_check_branch
            %157 = sbr.rel (0) target = $region32
          $region31: #{_lambda_.43} parent=27 // pred_region
            // Predicated region
            $region33: #{_lambda_.43} parent=31 // pred_check
              _
            $region34: #{_lambda_.43} parent=31 // pred_check_branch
              %159 = sbr.rel (0) target = $region36
            $region35: #{_lambda_.43} parent=31 // pred_region
              loop: start=0, step=1, limit=1
              $region37: #{_lambda_.43} parent=35 // loop_pre_header
                _
              $region38: #{_lambda_.43} parent=35 // loop_header
                %s161 = sphi 0, %s165
                %p162 = scmp.ge.s32.totalorder %s161, 1
                %s166 = sphi %s155, %s155
                %s167 = sphi %s150, %s150
              $region39: #{_lambda_.43} parent=35 // loop_header_branch
                %164 = sbr.rel (%p162) target = $region43
              $region40: #{_lambda_.43} parent=35 // loop_body
                %v168 = vld [vmem:[%s166] sm:$0xff]
                %169 = vst [vmem:[%s167] sm:$0xff] %v168
                %v170 = vld [vmem:[%s166 + $0x8] sm:$0xff]
                %171 = vst [vmem:[%s167 + $0x8] sm:$0xff] %v170
                %v172 = vld [vmem:[%s166 + $0x10] sm:$0xff]
                %173 = vst [vmem:[%s167 + $0x10] sm:$0xff] %v172
                %v174 = vld [vmem:[%s166 + $0x18] sm:$0xff]
                %175 = vst [vmem:[%s167 + $0x18] sm:$0xff] %v174
                %v176 = vld [vmem:[%s166 + $0x20] sm:$0xff]
                %177 = vst [vmem:[%s167 + $0x20] sm:$0xff] %v176
                %v178 = vld [vmem:[%s166 + $0x28] sm:$0xff]
                %179 = vst [vmem:[%s167 + $0x28] sm:$0xff] %v178
                %v180 = vld [vmem:[%s166 + $0x30] sm:$0xff]
                %181 = vst [vmem:[%s167 + $0x30] sm:$0xff] %v180
                %v182 = vld [vmem:[%s166 + $0x38] sm:$0xff]
                %183 = vst [vmem:[%s167 + $0x38] sm:$0xff] %v182
                %v184 = vld [vmem:[%s166 + $0x80] sm:$0xff]
                %185 = vst [vmem:[%s167 + $0x40] sm:$0xff] %v184
                %v186 = vld [vmem:[%s166 + $0x88] sm:$0xff]
                %187 = vst [vmem:[%s167 + $0x48] sm:$0xff] %v186
                %v188 = vld [vmem:[%s166 + $0x90] sm:$0xff]
                %189 = vst [vmem:[%s167 + $0x50] sm:$0xff] %v188
                %v190 = vld [vmem:[%s166 + $0x98] sm:$0xff]
                %191 = vst [vmem:[%s167 + $0x58] sm:$0xff] %v190
                %v192 = vld [vmem:[%s166 + $0xa0] sm:$0xff]
                %193 = vst [vmem:[%s167 + $0x60] sm:$0xff] %v192
                %v194 = vld [vmem:[%s166 + $0xa8] sm:$0xff]
                %195 = vst [vmem:[%s167 + $0x68] sm:$0xff] %v194
                %v196 = vld [vmem:[%s166 + $0xb0] sm:$0xff]
                %197 = vst [vmem:[%s167 + $0x70] sm:$0xff] %v196
                %v198 = vld [vmem:[%s166 + $0xb8] sm:$0xff]
                %199 = vst [vmem:[%s167 + $0x78] sm:$0xff] %v198
                %v200 = vld [vmem:[%s166 + $0x100] sm:$0xff]
                %201 = vst [vmem:[%s167 + $0x80] sm:$0xff] %v200
                %v202 = vld [vmem:[%s166 + $0x108] sm:$0xff]
                %203 = vst [vmem:[%s167 + $0x88] sm:$0xff] %v202
                %v204 = vld [vmem:[%s166 + $0x110] sm:$0xff]
                %205 = vst [vmem:[%s167 + $0x90] sm:$0xff] %v204
                %v206 = vld [vmem:[%s166 + $0x118] sm:$0xff]
                %207 = vst [vmem:[%s167 + $0x98] sm:$0xff] %v206
                %v208 = vld [vmem:[%s166 + $0x120] sm:$0xff]
                %209 = vst [vmem:[%s167 + $0xa0] sm:$0xff] %v208
                %v210 = vld [vmem:[%s166 + $0x128] sm:$0xff]
                %211 = vst [vmem:[%s167 + $0xa8] sm:$0xff] %v210
                %v212 = vld [vmem:[%s166 + $0x130] sm:$0xff]
                %213 = vst [vmem:[%s167 + $0xb0] sm:$0xff] %v212
                %v214 = vld [vmem:[%s166 + $0x138] sm:$0xff]
                %215 = vst [vmem:[%s167 + $0xb8] sm:$0xff] %v214
                %v216 = vld [vmem:[%s166 + $0x180] sm:$0xff]
                %217 = vst [vmem:[%s167 + $0xc0] sm:$0xff] %v216
                %v218 = vld [vmem:[%s166 + $0x188] sm:$0xff]
                %219 = vst [vmem:[%s167 + $0xc8] sm:$0xff] %v218
                %v220 = vld [vmem:[%s166 + $0x190] sm:$0xff]
                %221 = vst [vmem:[%s167 + $0xd0] sm:$0xff] %v220
                %v222 = vld [vmem:[%s166 + $0x198] sm:$0xff]
                %223 = vst [vmem:[%s167 + $0xd8] sm:$0xff] %v222
                %v224 = vld [vmem:[%s166 + $0x1a0] sm:$0xff]
                %225 = vst [vmem:[%s167 + $0xe0] sm:$0xff] %v224
                %v226 = vld [vmem:[%s166 + $0x1a8] sm:$0xff]
                %227 = vst [vmem:[%s167 + $0xe8] sm:$0xff] %v226
                %v228 = vld [vmem:[%s166 + $0x1b0] sm:$0xff]
                %229 = vst [vmem:[%s167 + $0xf0] sm:$0xff] %v228
                %v230 = vld [vmem:[%s166 + $0x1b8] sm:$0xff]
                %231 = vst [vmem:[%s167 + $0xf8] sm:$0xff] %v230
                %v232 = vld [vmem:[%s166 + $0x200] sm:$0xff]
                %233 = vst [vmem:[%s167 + $0x100] sm:$0xff] %v232
                %v234 = vld [vmem:[%s166 + $0x208] sm:$0xff]
                %235 = vst [vmem:[%s167 + $0x108] sm:$0xff] %v234
                %v236 = vld [vmem:[%s166 + $0x210] sm:$0xff]
                %237 = vst [vmem:[%s167 + $0x110] sm:$0xff] %v236
                %v238 = vld [vmem:[%s166 + $0x218] sm:$0xff]
                %239 = vst [vmem:[%s167 + $0x118] sm:$0xff] %v238
                %v240 = vld [vmem:[%s166 + $0x220] sm:$0xff]
                %241 = vst [vmem:[%s167 + $0x120] sm:$0xff] %v240
                %v242 = vld [vmem:[%s166 + $0x228] sm:$0xff]
                %243 = vst [vmem:[%s167 + $0x128] sm:$0xff] %v242
                %v244 = vld [vmem:[%s166 + $0x230] sm:$0xff]
                %245 = vst [vmem:[%s167 + $0x130] sm:$0xff] %v244
                %v246 = vld [vmem:[%s166 + $0x238] sm:$0xff]
                %247 = vst [vmem:[%s167 + $0x138] sm:$0xff] %v246
                %v248 = vld [vmem:[%s166 + $0x280] sm:$0xff]
                %249 = vst [vmem:[%s167 + $0x140] sm:$0xff] %v248
                %v250 = vld [vmem:[%s166 + $0x288] sm:$0xff]
                %251 = vst [vmem:[%s167 + $0x148] sm:$0xff] %v250
                %v252 = vld [vmem:[%s166 + $0x290] sm:$0xff]
                %253 = vst [vmem:[%s167 + $0x150] sm:$0xff] %v252
                %v254 = vld [vmem:[%s166 + $0x298] sm:$0xff]
                %255 = vst [vmem:[%s167 + $0x158] sm:$0xff] %v254
                %v256 = vld [vmem:[%s166 + $0x2a0] sm:$0xff]
                %257 = vst [vmem:[%s167 + $0x160] sm:$0xff] %v256
                %v258 = vld [vmem:[%s166 + $0x2a8] sm:$0xff]
                %259 = vst [vmem:[%s167 + $0x168] sm:$0xff] %v258
                %v260 = vld [vmem:[%s166 + $0x2b0] sm:$0xff]
                %261 = vst [vmem:[%s167 + $0x170] sm:$0xff] %v260
                %v262 = vld [vmem:[%s166 + $0x2b8] sm:$0xff]
                %263 = vst [vmem:[%s167 + $0x178] sm:$0xff] %v262
                %v264 = vld [vmem:[%s166 + $0x300] sm:$0xff]
                %265 = vst [vmem:[%s167 + $0x180] sm:$0xff] %v264
                %v266 = vld [vmem:[%s166 + $0x308] sm:$0xff]
                %267 = vst [vmem:[%s167 + $0x188] sm:$0xff] %v266
                %v268 = vld [vmem:[%s166 + $0x310] sm:$0xff]
                %269 = vst [vmem:[%s167 + $0x190] sm:$0xff] %v268
                %v270 = vld [vmem:[%s166 + $0x318] sm:$0xff]
                %271 = vst [vmem:[%s167 + $0x198] sm:$0xff] %v270
                %v272 = vld [vmem:[%s166 + $0x320] sm:$0xff]
                %273 = vst [vmem:[%s167 + $0x1a0] sm:$0xff] %v272
                %v274 = vld [vmem:[%s166 + $0x328] sm:$0xff]
                %275 = vst [vmem:[%s167 + $0x1a8] sm:$0xff] %v274
                %v276 = vld [vmem:[%s166 + $0x330] sm:$0xff]
                %277 = vst [vmem:[%s167 + $0x1b0] sm:$0xff] %v276
                %v278 = vld [vmem:[%s166 + $0x338] sm:$0xff]
                %279 = vst [vmem:[%s167 + $0x1b8] sm:$0xff] %v278
                %v280 = vld [vmem:[%s166 + $0x380] sm:$0xff]
                %281 = vst [vmem:[%s167 + $0x1c0] sm:$0xff] %v280
                %v282 = vld [vmem:[%s166 + $0x388] sm:$0xff]
                %283 = vst [vmem:[%s167 + $0x1c8] sm:$0xff] %v282
                %v284 = vld [vmem:[%s166 + $0x390] sm:$0xff]
                %285 = vst [vmem:[%s167 + $0x1d0] sm:$0xff] %v284
                %v286 = vld [vmem:[%s166 + $0x398] sm:$0xff]
                %287 = vst [vmem:[%s167 + $0x1d8] sm:$0xff] %v286
                %v288 = vld [vmem:[%s166 + $0x3a0] sm:$0xff]
                %289 = vst [vmem:[%s167 + $0x1e0] sm:$0xff] %v288
                %v290 = vld [vmem:[%s166 + $0x3a8] sm:$0xff]
                %291 = vst [vmem:[%s167 + $0x1e8] sm:$0xff] %v290
                %v292 = vld [vmem:[%s166 + $0x3b0] sm:$0xff]
                %293 = vst [vmem:[%s167 + $0x1f0] sm:$0xff] %v292
                %v294 = vld [vmem:[%s166 + $0x3b8] sm:$0xff]
                %295 = vst [vmem:[%s167 + $0x1f8] sm:$0xff] %v294
                %v296 = vld [vmem:[%s166 + $0x400] sm:$0xff]
                %297 = vst [vmem:[%s167 + $0x200] sm:$0xff] %v296
                %v298 = vld [vmem:[%s166 + $0x408] sm:$0xff]
                %299 = vst [vmem:[%s167 + $0x208] sm:$0xff] %v298
                %v300 = vld [vmem:[%s166 + $0x410] sm:$0xff]
                %301 = vst [vmem:[%s167 + $0x210] sm:$0xff] %v300
                %v302 = vld [vmem:[%s166 + $0x418] sm:$0xff]
                %303 = vst [vmem:[%s167 + $0x218] sm:$0xff] %v302
                %v304 = vld [vmem:[%s166 + $0x420] sm:$0xff]
                %305 = vst [vmem:[%s167 + $0x220] sm:$0xff] %v304
                %v306 = vld [vmem:[%s166 + $0x428] sm:$0xff]
                %307 = vst [vmem:[%s167 + $0x228] sm:$0xff] %v306
                %v308 = vld [vmem:[%s166 + $0x430] sm:$0xff]
                %309 = vst [vmem:[%s167 + $0x230] sm:$0xff] %v308
                %v310 = vld [vmem:[%s166 + $0x438] sm:$0xff]
                %311 = vst [vmem:[%s167 + $0x238] sm:$0xff] %v310
                %v312 = vld [vmem:[%s166 + $0x480] sm:$0xff]
                %313 = vst [vmem:[%s167 + $0x240] sm:$0xff] %v312
                %v314 = vld [vmem:[%s166 + $0x488] sm:$0xff]
                %315 = vst [vmem:[%s167 + $0x248] sm:$0xff] %v314
                %v316 = vld [vmem:[%s166 + $0x490] sm:$0xff]
                %317 = vst [vmem:[%s167 + $0x250] sm:$0xff] %v316
                %v318 = vld [vmem:[%s166 + $0x498] sm:$0xff]
                %319 = vst [vmem:[%s167 + $0x258] sm:$0xff] %v318
                %v320 = vld [vmem:[%s166 + $0x4a0] sm:$0xff]
                %321 = vst [vmem:[%s167 + $0x260] sm:$0xff] %v320
                %v322 = vld [vmem:[%s166 + $0x4a8] sm:$0xff]
                %323 = vst [vmem:[%s167 + $0x268] sm:$0xff] %v322
                %v324 = vld [vmem:[%s166 + $0x4b0] sm:$0xff]
                %325 = vst [vmem:[%s167 + $0x270] sm:$0xff] %v324
                %v326 = vld [vmem:[%s166 + $0x4b8] sm:$0xff]
                %327 = vst [vmem:[%s167 + $0x278] sm:$0xff] %v326
                %v328 = vld [vmem:[%s166 + $0x500] sm:$0xff]
                %329 = vst [vmem:[%s167 + $0x280] sm:$0xff] %v328
                %v330 = vld [vmem:[%s166 + $0x508] sm:$0xff]
                %331 = vst [vmem:[%s167 + $0x288] sm:$0xff] %v330
                %v332 = vld [vmem:[%s166 + $0x510] sm:$0xff]
                %333 = vst [vmem:[%s167 + $0x290] sm:$0xff] %v332
                %v334 = vld [vmem:[%s166 + $0x518] sm:$0xff]
                %335 = vst [vmem:[%s167 + $0x298] sm:$0xff] %v334
                %v336 = vld [vmem:[%s166 + $0x520] sm:$0xff]
                %337 = vst [vmem:[%s167 + $0x2a0] sm:$0xff] %v336
                %v338 = vld [vmem:[%s166 + $0x528] sm:$0xff]
                %339 = vst [vmem:[%s167 + $0x2a8] sm:$0xff] %v338
                %v340 = vld [vmem:[%s166 + $0x530] sm:$0xff]
                %341 = vst [vmem:[%s167 + $0x2b0] sm:$0xff] %v340
                %v342 = vld [vmem:[%s166 + $0x538] sm:$0xff]
                %343 = vst [vmem:[%s167 + $0x2b8] sm:$0xff] %v342
                %v344 = vld [vmem:[%s166 + $0x580] sm:$0xff]
                %345 = vst [vmem:[%s167 + $0x2c0] sm:$0xff] %v344
                %v346 = vld [vmem:[%s166 + $0x588] sm:$0xff]
                %347 = vst [vmem:[%s167 + $0x2c8] sm:$0xff] %v346
                %v348 = vld [vmem:[%s166 + $0x590] sm:$0xff]
                %349 = vst [vmem:[%s167 + $0x2d0] sm:$0xff] %v348
                %v350 = vld [vmem:[%s166 + $0x598] sm:$0xff]
                %351 = vst [vmem:[%s167 + $0x2d8] sm:$0xff] %v350
                %v352 = vld [vmem:[%s166 + $0x5a0] sm:$0xff]
                %353 = vst [vmem:[%s167 + $0x2e0] sm:$0xff] %v352
                %v354 = vld [vmem:[%s166 + $0x5a8] sm:$0xff]
                %355 = vst [vmem:[%s167 + $0x2e8] sm:$0xff] %v354
                %v356 = vld [vmem:[%s166 + $0x5b0] sm:$0xff]
                %357 = vst [vmem:[%s167 + $0x2f0] sm:$0xff] %v356
                %v358 = vld [vmem:[%s166 + $0x5b8] sm:$0xff]
                %359 = vst [vmem:[%s167 + $0x2f8] sm:$0xff] %v358
                %v360 = vld [vmem:[%s166 + $0x600] sm:$0xff]
                %361 = vst [vmem:[%s167 + $0x300] sm:$0xff] %v360
                %v362 = vld [vmem:[%s166 + $0x608] sm:$0xff]
                %363 = vst [vmem:[%s167 + $0x308] sm:$0xff] %v362
                %v364 = vld [vmem:[%s166 + $0x610] sm:$0xff]
                %365 = vst [vmem:[%s167 + $0x310] sm:$0xff] %v364
                %v366 = vld [vmem:[%s166 + $0x618] sm:$0xff]
                %367 = vst [vmem:[%s167 + $0x318] sm:$0xff] %v366
                %v368 = vld [vmem:[%s166 + $0x620] sm:$0xff]
                %369 = vst [vmem:[%s167 + $0x320] sm:$0xff] %v368
                %v370 = vld [vmem:[%s166 + $0x628] sm:$0xff]
                %371 = vst [vmem:[%s167 + $0x328] sm:$0xff] %v370
                %v372 = vld [vmem:[%s166 + $0x630] sm:$0xff]
                %373 = vst [vmem:[%s167 + $0x330] sm:$0xff] %v372
                %v374 = vld [vmem:[%s166 + $0x638] sm:$0xff]
                %375 = vst [vmem:[%s167 + $0x338] sm:$0xff] %v374
                %v376 = vld [vmem:[%s166 + $0x680] sm:$0xff]
                %377 = vst [vmem:[%s167 + $0x340] sm:$0xff] %v376
                %v378 = vld [vmem:[%s166 + $0x688] sm:$0xff]
                %379 = vst [vmem:[%s167 + $0x348] sm:$0xff] %v378
                %v380 = vld [vmem:[%s166 + $0x690] sm:$0xff]
                %381 = vst [vmem:[%s167 + $0x350] sm:$0xff] %v380
                %v382 = vld [vmem:[%s166 + $0x698] sm:$0xff]
                %383 = vst [vmem:[%s167 + $0x358] sm:$0xff] %v382
                %v384 = vld [vmem:[%s166 + $0x6a0] sm:$0xff]
                %385 = vst [vmem:[%s167 + $0x360] sm:$0xff] %v384
                %v386 = vld [vmem:[%s166 + $0x6a8] sm:$0xff]
                %387 = vst [vmem:[%s167 + $0x368] sm:$0xff] %v386
                %v388 = vld [vmem:[%s166 + $0x6b0] sm:$0xff]
                %389 = vst [vmem:[%s167 + $0x370] sm:$0xff] %v388
                %v390 = vld [vmem:[%s166 + $0x6b8] sm:$0xff]
                %391 = vst [vmem:[%s167 + $0x378] sm:$0xff] %v390
              $region41: #{_lambda_.43} parent=35 // loop_footer
                %s165 = sadd.s32 1, %s161
              $region42: #{_lambda_.43} parent=35 // loop_footer_branch
                %160 = sbr.rel target = $region38
              $region43: #{_lambda_.43} parent=35 // loop_exit
                _
            $region36: #{_lambda_.43} parent=31 // pred_fallthru
              _
            // Predicated region
            $region44: #{_lambda_.43} parent=31 // pred_check
              _
            $region45: #{_lambda_.43} parent=31 // pred_check_branch
              %393 = sbr.rel target = $region47
            $region46: #{_lambda_.43} parent=31 // pred_region
              _
            $region47: #{_lambda_.43} parent=31 // pred_fallthru
              _
          $region32: #{_lambda_.43} parent=27 // pred_fallthru
            _
          %394 = vnop
        $region28: #{_lambda_.43} parent=23 // pred_fallthru
          _
      $region24: #{_lambda_.43} parent=5 // pred_fallthru
        _
      %p395 = scmp.le.s32.totalorder 1, %s9
      %p396 = scmp.lt.s32.totalorder %s9, 5
      %p397 = pnand %p395, %p396
      %p398 = pneg %p397
      // Predicated region
      $region48: #{_lambda_.43} parent=5 // pred_check
        _
      $region49: #{_lambda_.43} parent=5 // pred_check_branch
        %400 = sbr.rel (%p397) target = $region51
      $region50: #{_lambda_.43} parent=5 // pred_region
        %s401 = ssub.s32 %s9, 1
        %s402 = sand.u32 %s57, 1
        %s403 = sand.u32 %s57, 1
        %s404 = smul.addr %s403, 896
        %s405 = scalar_lea.vmem [#allocation2], %s404
        // Predicated region
        $region52: #{_lambda_.43} parent=50 // pred_check
          %p406 = pneg %p70
        $region53: #{_lambda_.43} parent=50 // pred_check_branch
          %408 = sbr.rel (%p406) target = $region55
        $region54: #{_lambda_.43} parent=50 // pred_region
          _
        $region55: #{_lambda_.43} parent=50 // pred_fallthru
          _
        %p409 = pneg %p42
        %p410 = pneg %p39
        %s411 = sand.u32 %s57, 1
        %s412 = sand.u32 %s57, 1
        %s413 = smul.addr %s412, 896
        %s414 = scalar_lea.vmem [#allocation2], %s413
        %p415 = pneg %p70
        %p416 = pneg %p67
        %p417 = pneg %p91
        %p418 = pneg %p88
        %p419 = pneg %p119
        %p420 = pneg %p116
        %s421 = smul.u32 16, %s19
        %p422 = scmp.lt.s32.totalorder %s18, 1
        %s423 = scalar_select %p422, %s18, 1
        %p424 = scmp.lt.s32.totalorder %s421, 31
        %s425 = scalar_select %p424, %s421, 31
        %s426 = smul.addr %s423, 32
        %s427 = sadd.s32 %s425, %s426
        %s428 = smul.addr %s427, 2
        %s429 = scalar_lea.vmem %s3, %s428
        %s430 = smul.u32 16, %s19
        %s431 = smul.u32 16, %s19
        %p432 = scmp.lt.s32.totalorder %s18, 1
        %s433 = scalar_select %p432, %s18, 1
        %p434 = scmp.lt.s32.totalorder %s431, 31
        %s435 = scalar_select %p434, %s431, 31
        %s436 = smul.addr %s433, 32
        %s437 = sadd.s32 %s435, %s436
        %s438 = smul.addr %s437, 2
        %s439 = scalar_lea.vmem %s3, %s438
        %s440 = smul.u32 16, %s19
        %v442 = vld [vmem:[%s0] sm:$0x1]
        %v443 = vld [vmem:[%s405] sm:$0xff]
        %v444 = vld [vmem:[%s405 + $0x8] sm:$0xff]
        %v445 = vld [vmem:[%s405 + $0x10] sm:$0xff]
        %v446 = vld [vmem:[%s405 + $0x18] sm:$0xff]
        %v447 = vld [vmem:[%s405 + $0x20] sm:$0xff]
        %v448 = vld [vmem:[%s405 + $0x28] sm:$0xff]
        %v449 = vld [vmem:[%s405 + $0x30] sm:$0xff]
        %v450 = vld [vmem:[%s405 + $0x38] sm:$0xff]
        %v451 = vld [vmem:[%s405 + $0x40] sm:$0xff]
        %v452 = vld [vmem:[%s405 + $0x48] sm:$0xff]
        %v453 = vld [vmem:[%s405 + $0x50] sm:$0xff]
        %v454 = vld [vmem:[%s405 + $0x58] sm:$0xff]
        %v455 = vld [vmem:[%s405 + $0x60] sm:$0xff]
        %v456 = vld [vmem:[%s405 + $0x68] sm:$0xff]
        %v457 = vld [vmem:[%s405 + $0x70] sm:$0xff]
        %v458 = vld [vmem:[%s405 + $0x78] sm:$0xff]
        %v459 = vld [vmem:[%s405 + $0x80] sm:$0xff]
        %v460 = vld [vmem:[%s405 + $0x88] sm:$0xff]
        %v461 = vld [vmem:[%s405 + $0x90] sm:$0xff]
        %v462 = vld [vmem:[%s405 + $0x98] sm:$0xff]
        %v463 = vld [vmem:[%s405 + $0xa0] sm:$0xff]
        %v464 = vld [vmem:[%s405 + $0xa8] sm:$0xff]
        %v465 = vld [vmem:[%s405 + $0xb0] sm:$0xff]
        %v466 = vld [vmem:[%s405 + $0xb8] sm:$0xff]
        %v467 = vld [vmem:[%s405 + $0xc0] sm:$0xff]
        %v468 = vld [vmem:[%s405 + $0xc8] sm:$0xff]
        %v469 = vld [vmem:[%s405 + $0xd0] sm:$0xff]
        %v470 = vld [vmem:[%s405 + $0xd8] sm:$0xff]
        %v471 = vld [vmem:[%s405 + $0xe0] sm:$0xff]
        %v472 = vld [vmem:[%s405 + $0xe8] sm:$0xff]
        %v473 = vld [vmem:[%s405 + $0xf0] sm:$0xff]
        %v474 = vld [vmem:[%s405 + $0xf8] sm:$0xff]
        %v475 = vld [vmem:[%s405 + $0x100] sm:$0xff]
        %v476 = vld [vmem:[%s405 + $0x108] sm:$0xff]
        %v477 = vld [vmem:[%s405 + $0x110] sm:$0xff]
        %v478 = vld [vmem:[%s405 + $0x118] sm:$0xff]
        %v479 = vld [vmem:[%s405 + $0x120] sm:$0xff]
        %v480 = vld [vmem:[%s405 + $0x128] sm:$0xff]
        %v481 = vld [vmem:[%s405 + $0x130] sm:$0xff]
        %v482 = vld [vmem:[%s405 + $0x138] sm:$0xff]
        %v483 = vld [vmem:[%s405 + $0x140] sm:$0xff]
        %v484 = vld [vmem:[%s405 + $0x148] sm:$0xff]
        %v485 = vld [vmem:[%s405 + $0x150] sm:$0xff]
        %v486 = vld [vmem:[%s405 + $0x158] sm:$0xff]
        %v487 = vld [vmem:[%s405 + $0x160] sm:$0xff]
        %v488 = vld [vmem:[%s405 + $0x168] sm:$0xff]
        %v489 = vld [vmem:[%s405 + $0x170] sm:$0xff]
        %v490 = vld [vmem:[%s405 + $0x178] sm:$0xff]
        %v491 = vld [vmem:[%s405 + $0x180] sm:$0xff]
        %v492 = vld [vmem:[%s405 + $0x188] sm:$0xff]
        %v493 = vld [vmem:[%s405 + $0x190] sm:$0xff]
        %v494 = vld [vmem:[%s405 + $0x198] sm:$0xff]
        %v495 = vld [vmem:[%s405 + $0x1a0] sm:$0xff]
        %v496 = vld [vmem:[%s405 + $0x1a8] sm:$0xff]
        %v497 = vld [vmem:[%s405 + $0x1b0] sm:$0xff]
        %v498 = vld [vmem:[%s405 + $0x1b8] sm:$0xff]
        %v499 = vld [vmem:[%s405 + $0x1c0] sm:$0xff]
        %v500 = vld [vmem:[%s405 + $0x1c8] sm:$0xff]
        %v501 = vld [vmem:[%s405 + $0x1d0] sm:$0xff]
        %v502 = vld [vmem:[%s405 + $0x1d8] sm:$0xff]
        %v503 = vld [vmem:[%s405 + $0x1e0] sm:$0xff]
        %v504 = vld [vmem:[%s405 + $0x1e8] sm:$0xff]
        %v505 = vld [vmem:[%s405 + $0x1f0] sm:$0xff]
        %v506 = vld [vmem:[%s405 + $0x1f8] sm:$0xff]
        %v507 = vld [vmem:[%s405 + $0x200] sm:$0xff]
        %v508 = vld [vmem:[%s405 + $0x208] sm:$0xff]
        %v509 = vld [vmem:[%s405 + $0x210] sm:$0xff]
        %v510 = vld [vmem:[%s405 + $0x218] sm:$0xff]
        %v511 = vld [vmem:[%s405 + $0x220] sm:$0xff]
        %v512 = vld [vmem:[%s405 + $0x228] sm:$0xff]
        %v513 = vld [vmem:[%s405 + $0x230] sm:$0xff]
        %v514 = vld [vmem:[%s405 + $0x238] sm:$0xff]
        %v515 = vld [vmem:[%s405 + $0x240] sm:$0xff]
        %v516 = vld [vmem:[%s405 + $0x248] sm:$0xff]
        %v517 = vld [vmem:[%s405 + $0x250] sm:$0xff]
        %v518 = vld [vmem:[%s405 + $0x258] sm:$0xff]
        %v519 = vld [vmem:[%s405 + $0x260] sm:$0xff]
        %v520 = vld [vmem:[%s405 + $0x268] sm:$0xff]
        %v521 = vld [vmem:[%s405 + $0x270] sm:$0xff]
        %v522 = vld [vmem:[%s405 + $0x278] sm:$0xff]
        %v523 = vld [vmem:[%s405 + $0x280] sm:$0xff]
        %v524 = vld [vmem:[%s405 + $0x288] sm:$0xff]
        %v525 = vld [vmem:[%s405 + $0x290] sm:$0xff]
        %v526 = vld [vmem:[%s405 + $0x298] sm:$0xff]
        %v527 = vld [vmem:[%s405 + $0x2a0] sm:$0xff]
        %v528 = vld [vmem:[%s405 + $0x2a8] sm:$0xff]
        %v529 = vld [vmem:[%s405 + $0x2b0] sm:$0xff]
        %v530 = vld [vmem:[%s405 + $0x2b8] sm:$0xff]
        %v531 = vld [vmem:[%s405 + $0x2c0] sm:$0xff]
        %v532 = vld [vmem:[%s405 + $0x2c8] sm:$0xff]
        %v533 = vld [vmem:[%s405 + $0x2d0] sm:$0xff]
        %v534 = vld [vmem:[%s405 + $0x2d8] sm:$0xff]
        %v535 = vld [vmem:[%s405 + $0x2e0] sm:$0xff]
        %v536 = vld [vmem:[%s405 + $0x2e8] sm:$0xff]
        %v537 = vld [vmem:[%s405 + $0x2f0] sm:$0xff]
        %v538 = vld [vmem:[%s405 + $0x2f8] sm:$0xff]
        %v539 = vld [vmem:[%s405 + $0x300] sm:$0xff]
        %v540 = vld [vmem:[%s405 + $0x308] sm:$0xff]
        %v541 = vld [vmem:[%s405 + $0x310] sm:$0xff]
        %v542 = vld [vmem:[%s405 + $0x318] sm:$0xff]
        %v543 = vld [vmem:[%s405 + $0x320] sm:$0xff]
        %v544 = vld [vmem:[%s405 + $0x328] sm:$0xff]
        %v545 = vld [vmem:[%s405 + $0x330] sm:$0xff]
        %v546 = vld [vmem:[%s405 + $0x338] sm:$0xff]
        %v547 = vld [vmem:[%s405 + $0x340] sm:$0xff]
        %v548 = vld [vmem:[%s405 + $0x348] sm:$0xff]
        %v549 = vld [vmem:[%s405 + $0x350] sm:$0xff]
        %v550 = vld [vmem:[%s405 + $0x358] sm:$0xff]
        %v551 = vld [vmem:[%s405 + $0x360] sm:$0xff]
        %v552 = vld [vmem:[%s405 + $0x368] sm:$0xff]
        %v553 = vld [vmem:[%s405 + $0x370] sm:$0xff]
        %v554 = vld [vmem:[%s405 + $0x378] sm:$0xff]
        %v555 = vld [vmem:[%s2] sm:$0x3]
        %557 = vset.pattern.permute.xlu0 0
        %558 = vperm.xlu0 %557, %v555
        %v559 = vpop.permute.xlu0 %558
        %v673 = vunpack.c.l.b16 %v443
        %v674 = vunpack.c.h.b16 %v443
        %v675 = vunpack.c.l.b16 %v444
        %v676 = vunpack.c.h.b16 %v444
        %v677 = vunpack.c.l.b16 %v445
        %v678 = vunpack.c.h.b16 %v445
        %v679 = vunpack.c.l.b16 %v446
        %v680 = vunpack.c.h.b16 %v446
        %v681 = vunpack.c.l.b16 %v447
        %v682 = vunpack.c.h.b16 %v447
        %v683 = vunpack.c.l.b16 %v448
        %v684 = vunpack.c.h.b16 %v448
        %v685 = vunpack.c.l.b16 %v449
        %v686 = vunpack.c.h.b16 %v449
        %v687 = vunpack.c.l.b16 %v450
        %v688 = vunpack.c.h.b16 %v450
        %v689 = vunpack.c.l.b16 %v451
        %v690 = vunpack.c.h.b16 %v451
        %v691 = vunpack.c.l.b16 %v452
        %v692 = vunpack.c.h.b16 %v452
        %v693 = vunpack.c.l.b16 %v453
        %v694 = vunpack.c.h.b16 %v453
        %v695 = vunpack.c.l.b16 %v454
        %v696 = vunpack.c.h.b16 %v454
        %v697 = vunpack.c.l.b16 %v455
        %v698 = vunpack.c.h.b16 %v455
        %v699 = vunpack.c.l.b16 %v456
        %v700 = vunpack.c.h.b16 %v456
        %v701 = vunpack.c.l.b16 %v457
        %v702 = vunpack.c.h.b16 %v457
        %v703 = vunpack.c.l.b16 %v458
        %v704 = vunpack.c.h.b16 %v458
        %v705 = vunpack.c.l.b16 %v459
        %v706 = vunpack.c.h.b16 %v459
        %v707 = vunpack.c.l.b16 %v460
        %v708 = vunpack.c.h.b16 %v460
        %v709 = vunpack.c.l.b16 %v461
        %v710 = vunpack.c.h.b16 %v461
        %v711 = vunpack.c.l.b16 %v462
        %v712 = vunpack.c.h.b16 %v462
        %v713 = vunpack.c.l.b16 %v463
        %v714 = vunpack.c.h.b16 %v463
        %v715 = vunpack.c.l.b16 %v464
        %v716 = vunpack.c.h.b16 %v464
        %v717 = vunpack.c.l.b16 %v465
        %v718 = vunpack.c.h.b16 %v465
        %v719 = vunpack.c.l.b16 %v466
        %v720 = vunpack.c.h.b16 %v466
        %v721 = vunpack.c.l.b16 %v467
        %v722 = vunpack.c.h.b16 %v467
        %v723 = vunpack.c.l.b16 %v468
        %v724 = vunpack.c.h.b16 %v468
        %v725 = vunpack.c.l.b16 %v469
        %v726 = vunpack.c.h.b16 %v469
        %v727 = vunpack.c.l.b16 %v470
        %v728 = vunpack.c.h.b16 %v470
        %v729 = vunpack.c.l.b16 %v471
        %v730 = vunpack.c.h.b16 %v471
        %v731 = vunpack.c.l.b16 %v472
        %v732 = vunpack.c.h.b16 %v472
        %v733 = vunpack.c.l.b16 %v473
        %v734 = vunpack.c.h.b16 %v473
        %v735 = vunpack.c.l.b16 %v474
        %v736 = vunpack.c.h.b16 %v474
        %v737 = vunpack.c.l.b16 %v475
        %v738 = vunpack.c.h.b16 %v475
        %v739 = vunpack.c.l.b16 %v476
        %v740 = vunpack.c.h.b16 %v476
        %v741 = vunpack.c.l.b16 %v477
        %v742 = vunpack.c.h.b16 %v477
        %v743 = vunpack.c.l.b16 %v478
        %v744 = vunpack.c.h.b16 %v478
        %v745 = vunpack.c.l.b16 %v479
        %v746 = vunpack.c.h.b16 %v479
        %v747 = vunpack.c.l.b16 %v480
        %v748 = vunpack.c.h.b16 %v480
        %v749 = vunpack.c.l.b16 %v481
        %v750 = vunpack.c.h.b16 %v481
        %v751 = vunpack.c.l.b16 %v482
        %v752 = vunpack.c.h.b16 %v482
        %v753 = vunpack.c.l.b16 %v483
        %v754 = vunpack.c.h.b16 %v483
        %v755 = vunpack.c.l.b16 %v484
        %v756 = vunpack.c.h.b16 %v484
        %v757 = vunpack.c.l.b16 %v485
        %v758 = vunpack.c.h.b16 %v485
        %v759 = vunpack.c.l.b16 %v486
        %v760 = vunpack.c.h.b16 %v486
        %v761 = vunpack.c.l.b16 %v487
        %v762 = vunpack.c.h.b16 %v487
        %v763 = vunpack.c.l.b16 %v488
        %v764 = vunpack.c.h.b16 %v488
        %v765 = vunpack.c.l.b16 %v489
        %v766 = vunpack.c.h.b16 %v489
        %v767 = vunpack.c.l.b16 %v490
        %v768 = vunpack.c.h.b16 %v490
        %v769 = vunpack.c.l.b16 %v491
        %v770 = vunpack.c.h.b16 %v491
        %v771 = vunpack.c.l.b16 %v492
        %v772 = vunpack.c.h.b16 %v492
        %v773 = vunpack.c.l.b16 %v493
        %v774 = vunpack.c.h.b16 %v493
        %v775 = vunpack.c.l.b16 %v494
        %v776 = vunpack.c.h.b16 %v494
        %v777 = vunpack.c.l.b16 %v495
        %v778 = vunpack.c.h.b16 %v495
        %v779 = vunpack.c.l.b16 %v496
        %v780 = vunpack.c.h.b16 %v496
        %v781 = vunpack.c.l.b16 %v497
        %v782 = vunpack.c.h.b16 %v497
        %v783 = vunpack.c.l.b16 %v498
        %v784 = vunpack.c.h.b16 %v498
        %v785 = vunpack.c.l.b16 %v499
        %v786 = vunpack.c.h.b16 %v499
        %v787 = vunpack.c.l.b16 %v500
        %v788 = vunpack.c.h.b16 %v500
        %v789 = vunpack.c.l.b16 %v501
        %v790 = vunpack.c.h.b16 %v501
        %v791 = vunpack.c.l.b16 %v502
        %v792 = vunpack.c.h.b16 %v502
        %v793 = vunpack.c.l.b16 %v503
        %v794 = vunpack.c.h.b16 %v503
        %v795 = vunpack.c.l.b16 %v504
        %v796 = vunpack.c.h.b16 %v504
        %v797 = vunpack.c.l.b16 %v505
        %v798 = vunpack.c.h.b16 %v505
        %v799 = vunpack.c.l.b16 %v506
        %v800 = vunpack.c.h.b16 %v506
        %v801 = vunpack.c.l.b16 %v507
        %v802 = vunpack.c.h.b16 %v507
        %v803 = vunpack.c.l.b16 %v508
        %v804 = vunpack.c.h.b16 %v508
        %v805 = vunpack.c.l.b16 %v509
        %v806 = vunpack.c.h.b16 %v509
        %v807 = vunpack.c.l.b16 %v510
        %v808 = vunpack.c.h.b16 %v510
        %v809 = vunpack.c.l.b16 %v511
        %v810 = vunpack.c.h.b16 %v511
        %v811 = vunpack.c.l.b16 %v512
        %v812 = vunpack.c.h.b16 %v512
        %v813 = vunpack.c.l.b16 %v513
        %v814 = vunpack.c.h.b16 %v513
        %v815 = vunpack.c.l.b16 %v514
        %v816 = vunpack.c.h.b16 %v514
        %v817 = vunpack.c.l.b16 %v515
        %v818 = vunpack.c.h.b16 %v515
        %v819 = vunpack.c.l.b16 %v516
        %v820 = vunpack.c.h.b16 %v516
        %v821 = vunpack.c.l.b16 %v517
        %v822 = vunpack.c.h.b16 %v517
        %v823 = vunpack.c.l.b16 %v518
        %v824 = vunpack.c.h.b16 %v518
        %v825 = vunpack.c.l.b16 %v519
        %v826 = vunpack.c.h.b16 %v519
        %v827 = vunpack.c.l.b16 %v520
        %v828 = vunpack.c.h.b16 %v520
        %v829 = vunpack.c.l.b16 %v521
        %v830 = vunpack.c.h.b16 %v521
        %v831 = vunpack.c.l.b16 %v522
        %v832 = vunpack.c.h.b16 %v522
        %v833 = vunpack.c.l.b16 %v523
        %v834 = vunpack.c.h.b16 %v523
        %v835 = vunpack.c.l.b16 %v524
        %v836 = vunpack.c.h.b16 %v524
        %v837 = vunpack.c.l.b16 %v525
        %v838 = vunpack.c.h.b16 %v525
        %v839 = vunpack.c.l.b16 %v526
        %v840 = vunpack.c.h.b16 %v526
        %v841 = vunpack.c.l.b16 %v527
        %v842 = vunpack.c.h.b16 %v527
        %v843 = vunpack.c.l.b16 %v528
        %v844 = vunpack.c.h.b16 %v528
        %v845 = vunpack.c.l.b16 %v529
        %v846 = vunpack.c.h.b16 %v529
        %v847 = vunpack.c.l.b16 %v530
        %v848 = vunpack.c.h.b16 %v530
        %v849 = vunpack.c.l.b16 %v531
        %v850 = vunpack.c.h.b16 %v531
        %v851 = vunpack.c.l.b16 %v532
        %v852 = vunpack.c.h.b16 %v532
        %v853 = vunpack.c.l.b16 %v533
        %v854 = vunpack.c.h.b16 %v533
        %v855 = vunpack.c.l.b16 %v534
        %v856 = vunpack.c.h.b16 %v534
        %v857 = vunpack.c.l.b16 %v535
        %v858 = vunpack.c.h.b16 %v535
        %v859 = vunpack.c.l.b16 %v536
        %v860 = vunpack.c.h.b16 %v536
        %v861 = vunpack.c.l.b16 %v537
        %v862 = vunpack.c.h.b16 %v537
        %v863 = vunpack.c.l.b16 %v538
        %v864 = vunpack.c.h.b16 %v538
        %v865 = vunpack.c.l.b16 %v539
        %v866 = vunpack.c.h.b16 %v539
        %v867 = vunpack.c.l.b16 %v540
        %v868 = vunpack.c.h.b16 %v540
        %v869 = vunpack.c.l.b16 %v541
        %v870 = vunpack.c.h.b16 %v541
        %v871 = vunpack.c.l.b16 %v542
        %v872 = vunpack.c.h.b16 %v542
        %v873 = vunpack.c.l.b16 %v543
        %v874 = vunpack.c.h.b16 %v543
        %v875 = vunpack.c.l.b16 %v544
        %v876 = vunpack.c.h.b16 %v544
        %v877 = vunpack.c.l.b16 %v545
        %v878 = vunpack.c.h.b16 %v545
        %v879 = vunpack.c.l.b16 %v546
        %v880 = vunpack.c.h.b16 %v546
        %v881 = vunpack.c.l.b16 %v547
        %v882 = vunpack.c.h.b16 %v547
        %v883 = vunpack.c.l.b16 %v548
        %v884 = vunpack.c.h.b16 %v548
        %v885 = vunpack.c.l.b16 %v549
        %v886 = vunpack.c.h.b16 %v549
        %v887 = vunpack.c.l.b16 %v550
        %v888 = vunpack.c.h.b16 %v550
        %v889 = vunpack.c.l.b16 %v551
        %v890 = vunpack.c.h.b16 %v551
        %v891 = vunpack.c.l.b16 %v552
        %v892 = vunpack.c.h.b16 %v552
        %v893 = vunpack.c.l.b16 %v553
        %v894 = vunpack.c.h.b16 %v553
        %v895 = vunpack.c.l.b16 %v554
        %v896 = vunpack.c.h.b16 %v554
        %v897 = vpack.c.b16 %v689, %v673
        %v898 = vpack.c.b16 %v690, %v674
        %v899 = vpack.c.b16 %v691, %v675
        %v900 = vpack.c.b16 %v692, %v676
        %v901 = vpack.c.b16 %v693, %v677
        %v902 = vpack.c.b16 %v694, %v678
        %v903 = vpack.c.b16 %v695, %v679
        %v904 = vpack.c.b16 %v696, %v680
        %v905 = vpack.c.b16 %v697, %v681
        %v906 = vpack.c.b16 %v698, %v682
        %v907 = vpack.c.b16 %v699, %v683
        %v908 = vpack.c.b16 %v700, %v684
        %v909 = vpack.c.b16 %v701, %v685
        %v910 = vpack.c.b16 %v702, %v686
        %v911 = vpack.c.b16 %v703, %v687
        %v912 = vpack.c.b16 %v704, %v688
        %v913 = vpack.c.b16 %v721, %v705
        %v914 = vpack.c.b16 %v722, %v706
        %v915 = vpack.c.b16 %v723, %v707
        %v916 = vpack.c.b16 %v724, %v708
        %v917 = vpack.c.b16 %v725, %v709
        %v918 = vpack.c.b16 %v726, %v710
        %v919 = vpack.c.b16 %v727, %v711
        %v920 = vpack.c.b16 %v728, %v712
        %v921 = vpack.c.b16 %v729, %v713
        %v922 = vpack.c.b16 %v730, %v714
        %v923 = vpack.c.b16 %v731, %v715
        %v924 = vpack.c.b16 %v732, %v716
        %v925 = vpack.c.b16 %v733, %v717
        %v926 = vpack.c.b16 %v734, %v718
        %v927 = vpack.c.b16 %v735, %v719
        %v928 = vpack.c.b16 %v736, %v720
        %v929 = vpack.c.b16 %v753, %v737
        %v930 = vpack.c.b16 %v754, %v738
        %v931 = vpack.c.b16 %v755, %v739
        %v932 = vpack.c.b16 %v756, %v740
        %v933 = vpack.c.b16 %v757, %v741
        %v934 = vpack.c.b16 %v758, %v742
        %v935 = vpack.c.b16 %v759, %v743
        %v936 = vpack.c.b16 %v760, %v744
        %v937 = vpack.c.b16 %v761, %v745
        %v938 = vpack.c.b16 %v762, %v746
        %v939 = vpack.c.b16 %v763, %v747
        %v940 = vpack.c.b16 %v764, %v748
        %v941 = vpack.c.b16 %v765, %v749
        %v942 = vpack.c.b16 %v766, %v750
        %v943 = vpack.c.b16 %v767, %v751
        %v944 = vpack.c.b16 %v768, %v752
        %v945 = vpack.c.b16 %v785, %v769
        %v946 = vpack.c.b16 %v786, %v770
        %v947 = vpack.c.b16 %v787, %v771
        %v948 = vpack.c.b16 %v788, %v772
        %v949 = vpack.c.b16 %v789, %v773
        %v950 = vpack.c.b16 %v790, %v774
        %v951 = vpack.c.b16 %v791, %v775
        %v952 = vpack.c.b16 %v792, %v776
        %v953 = vpack.c.b16 %v793, %v777
        %v954 = vpack.c.b16 %v794, %v778
        %v955 = vpack.c.b16 %v795, %v779
        %v956 = vpack.c.b16 %v796, %v780
        %v957 = vpack.c.b16 %v797, %v781
        %v958 = vpack.c.b16 %v798, %v782
        %v959 = vpack.c.b16 %v799, %v783
        %v960 = vpack.c.b16 %v800, %v784
        %v961 = vpack.c.b16 %v817, %v801
        %v962 = vpack.c.b16 %v818, %v802
        %v963 = vpack.c.b16 %v819, %v803
        %v964 = vpack.c.b16 %v820, %v804
        %v965 = vpack.c.b16 %v821, %v805
        %v966 = vpack.c.b16 %v822, %v806
        %v967 = vpack.c.b16 %v823, %v807
        %v968 = vpack.c.b16 %v824, %v808
        %v969 = vpack.c.b16 %v825, %v809
        %v970 = vpack.c.b16 %v826, %v810
        %v971 = vpack.c.b16 %v827, %v811
        %v972 = vpack.c.b16 %v828, %v812
        %v973 = vpack.c.b16 %v829, %v813
        %v974 = vpack.c.b16 %v830, %v814
        %v975 = vpack.c.b16 %v831, %v815
        %v976 = vpack.c.b16 %v832, %v816
        %v977 = vpack.c.b16 %v849, %v833
        %v978 = vpack.c.b16 %v850, %v834
        %v979 = vpack.c.b16 %v851, %v835
        %v980 = vpack.c.b16 %v852, %v836
        %v981 = vpack.c.b16 %v853, %v837
        %v982 = vpack.c.b16 %v854, %v838
        %v983 = vpack.c.b16 %v855, %v839
        %v984 = vpack.c.b16 %v856, %v840
        %v985 = vpack.c.b16 %v857, %v841
        %v986 = vpack.c.b16 %v858, %v842
        %v987 = vpack.c.b16 %v859, %v843
        %v988 = vpack.c.b16 %v860, %v844
        %v989 = vpack.c.b16 %v861, %v845
        %v990 = vpack.c.b16 %v862, %v846
        %v991 = vpack.c.b16 %v863, %v847
        %v992 = vpack.c.b16 %v864, %v848
        %v993 = vpack.c.b16 %v881, %v865
        %v994 = vpack.c.b16 %v882, %v866
        %v995 = vpack.c.b16 %v883, %v867
        %v996 = vpack.c.b16 %v884, %v868
        %v997 = vpack.c.b16 %v885, %v869
        %v998 = vpack.c.b16 %v886, %v870
        %v999 = vpack.c.b16 %v887, %v871
        %v1000 = vpack.c.b16 %v888, %v872
        %v1001 = vpack.c.b16 %v889, %v873
        %v1002 = vpack.c.b16 %v890, %v874
        %v1003 = vpack.c.b16 %v891, %v875
        %v1004 = vpack.c.b16 %v892, %v876
        %v1005 = vpack.c.b16 %v893, %v877
        %v1006 = vpack.c.b16 %v894, %v878
        %v1007 = vpack.c.b16 %v895, %v879
        %v1008 = vpack.c.b16 %v896, %v880
        %vm1121 = vcmask 916480
        %v1123 = vsel %vm1121, %v442, 0
        %1125 = vmatprep.subr.bf16.mxu0 0
        %1126 = vmatpush1.bf16.msra.mxu0 0
        %1127 = vmatprep.subr.bf16.mxu0 %v994
        %1128 = vmatpush1.bf16.msra.mxu0 %v993
        %1129 = vmatprep.subr.bf16.mxu0 %v978
        %1130 = vmatpush1.bf16.msra.mxu0 %v977
        %1131 = vmatprep.subr.bf16.mxu0 %v962
        %1132 = vmatpush1.bf16.msra.mxu0 %v961
        %1133 = vmatprep.subr.bf16.mxu0 %v946
        %1134 = vmatpush1.bf16.msra.mxu0 %v945
        %1135 = vmatprep.subr.bf16.mxu0 %v930
        %1136 = vmatpush1.bf16.msra.mxu0 %v929
        %1137 = vmatprep.subr.bf16.mxu0 %v914
        %1138 = vmatpush1.bf16.msra.mxu0 %v913
        %1139 = vmatprep.subr.bf16.mxu0 %v898
        %1140 = vmatpush1.bf16.msra.mxu0 %v897
        %1141 = vmatprep.subr.bf16.mxu0 0
        %1142 = vmatpush2.bf16.msra.mxu0 0
        %1143 = vmatprep.subr.bf16.mxu0 0
        %1144 = vmatpush2.bf16.msra.mxu0 0
        %1145 = vmatprep.subr.bf16.mxu0 0
        %1146 = vmatpush2.bf16.msra.mxu0 0
        %1147 = vmatprep.subr.bf16.mxu0 0
        %1148 = vmatpush2.bf16.msra.mxu0 0
        %1149 = vmatprep.subr.bf16.mxu0 0
        %1150 = vmatpush2.bf16.msra.mxu0 0
        %1151 = vmatprep.subr.bf16.mxu0 0
        %1152 = vmatpush2.bf16.msra.mxu0 0
        %1153 = vmatprep.subr.bf16.mxu0 0
        %1154 = vmatpush2.bf16.msra.mxu0 0
        %1155 = vmatprep.subr.bf16.mxu0 0
        %1156 = vmatpush2.bf16.msra.mxu0 0
        %1157 = vmatprep.mubr.bf16.mxu0 0
        %1158 = vmatmul.mubr.bf16.gmra.mxu0 %v1123
        %v1159 = vpop.f32.mrf.mxu0
        %v1160 = vadd.f32 %v559, %v1159
        %v1161 = vpop.f32.mrf.mxu0
        %v1162 = vadd.f32 %v559, %v1161
        %v1163 = vpop.f32.mrf.mxu0
        %v1164 = vpop.f32.mrf.mxu0
        %1165 = vdwg.mxu0
        %1166 = vmatprep.subr.bf16.mxu0 0
        %1167 = vmatpush1.bf16.msra.mxu0 0
        %1168 = vmatprep.subr.bf16.mxu0 %v996
        %1169 = vmatpush1.bf16.msra.mxu0 %v995
        %1170 = vmatprep.subr.bf16.mxu0 %v980
        %1171 = vmatpush1.bf16.msra.mxu0 %v979
        %1172 = vmatprep.subr.bf16.mxu0 %v964
        %1173 = vmatpush1.bf16.msra.mxu0 %v963
        %1174 = vmatprep.subr.bf16.mxu0 %v948
        %1175 = vmatpush1.bf16.msra.mxu0 %v947
        %1176 = vmatprep.subr.bf16.mxu0 %v932
        %1177 = vmatpush1.bf16.msra.mxu0 %v931
        %1178 = vmatprep.subr.bf16.mxu0 %v916
        %1179 = vmatpush1.bf16.msra.mxu0 %v915
        %1180 = vmatprep.subr.bf16.mxu0 %v900
        %1181 = vmatpush1.bf16.msra.mxu0 %v899
        %1182 = vmatprep.subr.bf16.mxu0 0
        %1183 = vmatpush2.bf16.msra.mxu0 0
        %1184 = vmatprep.subr.bf16.mxu0 0
        %1185 = vmatpush2.bf16.msra.mxu0 0
        %1186 = vmatprep.subr.bf16.mxu0 0
        %1187 = vmatpush2.bf16.msra.mxu0 0
        %1188 = vmatprep.subr.bf16.mxu0 0
        %1189 = vmatpush2.bf16.msra.mxu0 0
        %1190 = vmatprep.subr.bf16.mxu0 0
        %1191 = vmatpush2.bf16.msra.mxu0 0
        %1192 = vmatprep.subr.bf16.mxu0 0
        %1193 = vmatpush2.bf16.msra.mxu0 0
        %1194 = vmatprep.subr.bf16.mxu0 0
        %1195 = vmatpush2.bf16.msra.mxu0 0
        %1196 = vmatprep.subr.bf16.mxu0 0
        %1197 = vmatpush2.bf16.msra.mxu0 0
        %1198 = vmatprep.mubr.bf16.mxu0 0
        %1199 = vmatmul.mubr.bf16.gmra.mxu0 %v1123
        %v1200 = vpop.f32.mrf.mxu0
        %v1201 = vadd.f32 %v559, %v1200
        %v1202 = vpop.f32.mrf.mxu0
        %v1203 = vadd.f32 %v559, %v1202
        %v1204 = vpop.f32.mrf.mxu0
        %v1205 = vpop.f32.mrf.mxu0
        %1206 = vdwg.mxu0
        %1207 = vmatprep.subr.bf16.mxu0 0
        %1208 = vmatpush1.bf16.msra.mxu0 0
        %1209 = vmatprep.subr.bf16.mxu0 %v998
        %1210 = vmatpush1.bf16.msra.mxu0 %v997
        %1211 = vmatprep.subr.bf16.mxu0 %v982
        %1212 = vmatpush1.bf16.msra.mxu0 %v981
        %1213 = vmatprep.subr.bf16.mxu0 %v966
        %1214 = vmatpush1.bf16.msra.mxu0 %v965
        %1215 = vmatprep.subr.bf16.mxu0 %v950
        %1216 = vmatpush1.bf16.msra.mxu0 %v949
        %1217 = vmatprep.subr.bf16.mxu0 %v934
        %1218 = vmatpush1.bf16.msra.mxu0 %v933
        %1219 = vmatprep.subr.bf16.mxu0 %v918
        %1220 = vmatpush1.bf16.msra.mxu0 %v917
        %1221 = vmatprep.subr.bf16.mxu0 %v902
        %1222 = vmatpush1.bf16.msra.mxu0 %v901
        %1223 = vmatprep.subr.bf16.mxu0 0
        %1224 = vmatpush2.bf16.msra.mxu0 0
        %1225 = vmatprep.subr.bf16.mxu0 0
        %1226 = vmatpush2.bf16.msra.mxu0 0
        %1227 = vmatprep.subr.bf16.mxu0 0
        %1228 = vmatpush2.bf16.msra.mxu0 0
        %1229 = vmatprep.subr.bf16.mxu0 0
        %1230 = vmatpush2.bf16.msra.mxu0 0
        %1231 = vmatprep.subr.bf16.mxu0 0
        %1232 = vmatpush2.bf16.msra.mxu0 0
        %1233 = vmatprep.subr.bf16.mxu0 0
        %1234 = vmatpush2.bf16.msra.mxu0 0
        %1235 = vmatprep.subr.bf16.mxu0 0
        %1236 = vmatpush2.bf16.msra.mxu0 0
        %1237 = vmatprep.subr.bf16.mxu0 0
        %1238 = vmatpush2.bf16.msra.mxu0 0
        %1239 = vmatprep.mubr.bf16.mxu0 0
        %1240 = vmatmul.mubr.bf16.gmra.mxu0 %v1123
        %v1241 = vpop.f32.mrf.mxu0
        %v1242 = vadd.f32 %v559, %v1241
        %v1243 = vpop.f32.mrf.mxu0
        %v1244 = vadd.f32 %v559, %v1243
        %v1245 = vpop.f32.mrf.mxu0
        %v1246 = vpop.f32.mrf.mxu0
        %1247 = vdwg.mxu0
        %1248 = vmatprep.subr.bf16.mxu0 0
        %1249 = vmatpush1.bf16.msra.mxu0 0
        %1250 = vmatprep.subr.bf16.mxu0 %v1000
        %1251 = vmatpush1.bf16.msra.mxu0 %v999
        %1252 = vmatprep.subr.bf16.mxu0 %v984
        %1253 = vmatpush1.bf16.msra.mxu0 %v983
        %1254 = vmatprep.subr.bf16.mxu0 %v968
        %1255 = vmatpush1.bf16.msra.mxu0 %v967
        %1256 = vmatprep.subr.bf16.mxu0 %v952
        %1257 = vmatpush1.bf16.msra.mxu0 %v951
        %1258 = vmatprep.subr.bf16.mxu0 %v936
        %1259 = vmatpush1.bf16.msra.mxu0 %v935
        %1260 = vmatprep.subr.bf16.mxu0 %v920
        %1261 = vmatpush1.bf16.msra.mxu0 %v919
        %1262 = vmatprep.subr.bf16.mxu0 %v904
        %1263 = vmatpush1.bf16.msra.mxu0 %v903
        %1264 = vmatprep.subr.bf16.mxu0 0
        %1265 = vmatpush2.bf16.msra.mxu0 0
        %1266 = vmatprep.subr.bf16.mxu0 0
        %1267 = vmatpush2.bf16.msra.mxu0 0
        %1268 = vmatprep.subr.bf16.mxu0 0
        %1269 = vmatpush2.bf16.msra.mxu0 0
        %1270 = vmatprep.subr.bf16.mxu0 0
        %1271 = vmatpush2.bf16.msra.mxu0 0
        %1272 = vmatprep.subr.bf16.mxu0 0
        %1273 = vmatpush2.bf16.msra.mxu0 0
        %1274 = vmatprep.subr.bf16.mxu0 0
        %1275 = vmatpush2.bf16.msra.mxu0 0
        %1276 = vmatprep.subr.bf16.mxu0 0
        %1277 = vmatpush2.bf16.msra.mxu0 0
        %1278 = vmatprep.subr.bf16.mxu0 0
        %1279 = vmatpush2.bf16.msra.mxu0 0
        %1280 = vmatprep.mubr.bf16.mxu0 0
        %1281 = vmatmul.mubr.bf16.gmra.mxu0 %v1123
        %v1282 = vpop.f32.mrf.mxu0
        %v1283 = vadd.f32 %v559, %v1282
        %v1284 = vpop.f32.mrf.mxu0
        %v1285 = vadd.f32 %v559, %v1284
        %v1286 = vpop.f32.mrf.mxu0
        %v1287 = vpop.f32.mrf.mxu0
        %1288 = vdwg.mxu0
        %1289 = vmatprep.subr.bf16.mxu0 0
        %1290 = vmatpush1.bf16.msra.mxu0 0
        %1291 = vmatprep.subr.bf16.mxu0 %v1002
        %1292 = vmatpush1.bf16.msra.mxu0 %v1001
        %1293 = vmatprep.subr.bf16.mxu0 %v986
        %1294 = vmatpush1.bf16.msra.mxu0 %v985
        %1295 = vmatprep.subr.bf16.mxu0 %v970
        %1296 = vmatpush1.bf16.msra.mxu0 %v969
        %1297 = vmatprep.subr.bf16.mxu0 %v954
        %1298 = vmatpush1.bf16.msra.mxu0 %v953
        %1299 = vmatprep.subr.bf16.mxu0 %v938
        %1300 = vmatpush1.bf16.msra.mxu0 %v937
        %1301 = vmatprep.subr.bf16.mxu0 %v922
        %1302 = vmatpush1.bf16.msra.mxu0 %v921
        %1303 = vmatprep.subr.bf16.mxu0 %v906
        %1304 = vmatpush1.bf16.msra.mxu0 %v905
        %1305 = vmatprep.subr.bf16.mxu0 0
        %1306 = vmatpush2.bf16.msra.mxu0 0
        %1307 = vmatprep.subr.bf16.mxu0 0
        %1308 = vmatpush2.bf16.msra.mxu0 0
        %1309 = vmatprep.subr.bf16.mxu0 0
        %1310 = vmatpush2.bf16.msra.mxu0 0
        %1311 = vmatprep.subr.bf16.mxu0 0
        %1312 = vmatpush2.bf16.msra.mxu0 0
        %1313 = vmatprep.subr.bf16.mxu0 0
        %1314 = vmatpush2.bf16.msra.mxu0 0
        %1315 = vmatprep.subr.bf16.mxu0 0
        %1316 = vmatpush2.bf16.msra.mxu0 0
        %1317 = vmatprep.subr.bf16.mxu0 0
        %1318 = vmatpush2.bf16.msra.mxu0 0
        %1319 = vmatprep.subr.bf16.mxu0 0
        %1320 = vmatpush2.bf16.msra.mxu0 0
        %1321 = vmatprep.mubr.bf16.mxu0 0
        %1322 = vmatmul.mubr.bf16.gmra.mxu0 %v1123
        %v1323 = vpop.f32.mrf.mxu0
        %v1324 = vadd.f32 %v559, %v1323
        %v1325 = vpop.f32.mrf.mxu0
        %v1326 = vadd.f32 %v559, %v1325
        %v1327 = vpop.f32.mrf.mxu0
        %v1328 = vpop.f32.mrf.mxu0
        %1329 = vdwg.mxu0
        %1330 = vmatprep.subr.bf16.mxu0 0
        %1331 = vmatpush1.bf16.msra.mxu0 0
        %1332 = vmatprep.subr.bf16.mxu0 %v1004
        %1333 = vmatpush1.bf16.msra.mxu0 %v1003
        %1334 = vmatprep.subr.bf16.mxu0 %v988
        %1335 = vmatpush1.bf16.msra.mxu0 %v987
        %1336 = vmatprep.subr.bf16.mxu0 %v972
        %1337 = vmatpush1.bf16.msra.mxu0 %v971
        %1338 = vmatprep.subr.bf16.mxu0 %v956
        %1339 = vmatpush1.bf16.msra.mxu0 %v955
        %1340 = vmatprep.subr.bf16.mxu0 %v940
        %1341 = vmatpush1.bf16.msra.mxu0 %v939
        %1342 = vmatprep.subr.bf16.mxu0 %v924
        %1343 = vmatpush1.bf16.msra.mxu0 %v923
        %1344 = vmatprep.subr.bf16.mxu0 %v908
        %1345 = vmatpush1.bf16.msra.mxu0 %v907
        %1346 = vmatprep.subr.bf16.mxu0 0
        %1347 = vmatpush2.bf16.msra.mxu0 0
        %1348 = vmatprep.subr.bf16.mxu0 0
        %1349 = vmatpush2.bf16.msra.mxu0 0
        %1350 = vmatprep.subr.bf16.mxu0 0
        %1351 = vmatpush2.bf16.msra.mxu0 0
        %1352 = vmatprep.subr.bf16.mxu0 0
        %1353 = vmatpush2.bf16.msra.mxu0 0
        %1354 = vmatprep.subr.bf16.mxu0 0
        %1355 = vmatpush2.bf16.msra.mxu0 0
        %1356 = vmatprep.subr.bf16.mxu0 0
        %1357 = vmatpush2.bf16.msra.mxu0 0
        %1358 = vmatprep.subr.bf16.mxu0 0
        %1359 = vmatpush2.bf16.msra.mxu0 0
        %1360 = vmatprep.subr.bf16.mxu0 0
        %1361 = vmatpush2.bf16.msra.mxu0 0
        %1362 = vmatprep.mubr.bf16.mxu0 0
        %1363 = vmatmul.mubr.bf16.gmra.mxu0 %v1123
        %v1364 = vpop.f32.mrf.mxu0
        %v1365 = vadd.f32 %v559, %v1364
        %v1366 = vpop.f32.mrf.mxu0
        %v1367 = vadd.f32 %v559, %v1366
        %v1368 = vpop.f32.mrf.mxu0
        %v1369 = vpop.f32.mrf.mxu0
        %1370 = vdwg.mxu0
        %1371 = vmatprep.subr.bf16.mxu0 0
        %1372 = vmatpush1.bf16.msra.mxu0 0
        %1373 = vmatprep.subr.bf16.mxu0 %v1006
        %1374 = vmatpush1.bf16.msra.mxu0 %v1005
        %1375 = vmatprep.subr.bf16.mxu0 %v990
        %1376 = vmatpush1.bf16.msra.mxu0 %v989
        %1377 = vmatprep.subr.bf16.mxu0 %v974
        %1378 = vmatpush1.bf16.msra.mxu0 %v973
        %1379 = vmatprep.subr.bf16.mxu0 %v958
        %1380 = vmatpush1.bf16.msra.mxu0 %v957
        %1381 = vmatprep.subr.bf16.mxu0 %v942
        %1382 = vmatpush1.bf16.msra.mxu0 %v941
        %1383 = vmatprep.subr.bf16.mxu0 %v926
        %1384 = vmatpush1.bf16.msra.mxu0 %v925
        %1385 = vmatprep.subr.bf16.mxu0 %v910
        %1386 = vmatpush1.bf16.msra.mxu0 %v909
        %1387 = vmatprep.subr.bf16.mxu0 0
        %1388 = vmatpush2.bf16.msra.mxu0 0
        %1389 = vmatprep.subr.bf16.mxu0 0
        %1390 = vmatpush2.bf16.msra.mxu0 0
        %1391 = vmatprep.subr.bf16.mxu0 0
        %1392 = vmatpush2.bf16.msra.mxu0 0
        %1393 = vmatprep.subr.bf16.mxu0 0
        %1394 = vmatpush2.bf16.msra.mxu0 0
        %1395 = vmatprep.subr.bf16.mxu0 0
        %1396 = vmatpush2.bf16.msra.mxu0 0
        %1397 = vmatprep.subr.bf16.mxu0 0
        %1398 = vmatpush2.bf16.msra.mxu0 0
        %1399 = vmatprep.subr.bf16.mxu0 0
        %1400 = vmatpush2.bf16.msra.mxu0 0
        %1401 = vmatprep.subr.bf16.mxu0 0
        %1402 = vmatpush2.bf16.msra.mxu0 0
        %1403 = vmatprep.mubr.bf16.mxu0 0
        %1404 = vmatmul.mubr.bf16.gmra.mxu0 %v1123
        %v1405 = vpop.f32.mrf.mxu0
        %v1406 = vadd.f32 %v559, %v1405
        %v1407 = vpop.f32.mrf.mxu0
        %v1408 = vadd.f32 %v559, %v1407
        %v1409 = vpop.f32.mrf.mxu0
        %v1410 = vpop.f32.mrf.mxu0
        %1411 = vdwg.mxu0
        %1412 = vmatprep.subr.bf16.mxu0 0
        %1413 = vmatpush1.bf16.msra.mxu0 0
        %1414 = vmatprep.subr.bf16.mxu0 %v1008
        %1415 = vmatpush1.bf16.msra.mxu0 %v1007
        %1416 = vmatprep.subr.bf16.mxu0 %v992
        %1417 = vmatpush1.bf16.msra.mxu0 %v991
        %1418 = vmatprep.subr.bf16.mxu0 %v976
        %1419 = vmatpush1.bf16.msra.mxu0 %v975
        %1420 = vmatprep.subr.bf16.mxu0 %v960
        %1421 = vmatpush1.bf16.msra.mxu0 %v959
        %1422 = vmatprep.subr.bf16.mxu0 %v944
        %1423 = vmatpush1.bf16.msra.mxu0 %v943
        %1424 = vmatprep.subr.bf16.mxu0 %v928
        %1425 = vmatpush1.bf16.msra.mxu0 %v927
        %1426 = vmatprep.subr.bf16.mxu0 %v912
        %1427 = vmatpush1.bf16.msra.mxu0 %v911
        %1428 = vmatprep.subr.bf16.mxu0 0
        %1429 = vmatpush2.bf16.msra.mxu0 0
        %1430 = vmatprep.subr.bf16.mxu0 0
        %1431 = vmatpush2.bf16.msra.mxu0 0
        %1432 = vmatprep.subr.bf16.mxu0 0
        %1433 = vmatpush2.bf16.msra.mxu0 0
        %1434 = vmatprep.subr.bf16.mxu0 0
        %1435 = vmatpush2.bf16.msra.mxu0 0
        %1436 = vmatprep.subr.bf16.mxu0 0
        %1437 = vmatpush2.bf16.msra.mxu0 0
        %1438 = vmatprep.subr.bf16.mxu0 0
        %1439 = vmatpush2.bf16.msra.mxu0 0
        %1440 = vmatprep.subr.bf16.mxu0 0
        %1441 = vmatpush2.bf16.msra.mxu0 0
        %1442 = vmatprep.subr.bf16.mxu0 0
        %1443 = vmatpush2.bf16.msra.mxu0 0
        %1444 = vmatprep.mubr.bf16.mxu0 0
        %1445 = vmatmul.mubr.bf16.gmra.mxu0 %v1123
        %v1446 = vpop.f32.mrf.mxu0
        %v1447 = vadd.f32 %v559, %v1446
        %v1448 = vpop.f32.mrf.mxu0
        %v1449 = vadd.f32 %v559, %v1448
        %v1450 = vpop.f32.mrf.mxu0
        %v1451 = vpop.f32.mrf.mxu0
        %1452 = vdwg.mxu0
        %v1453 = vxor.u32 %v1160, 2147483648
        %v1454 = vxor.u32 %v1162, 2147483648
        %v1455 = vxor.u32 %v1201, 2147483648
        %v1456 = vxor.u32 %v1203, 2147483648
        %v1457 = vxor.u32 %v1242, 2147483648
        %v1458 = vxor.u32 %v1244, 2147483648
        %v1459 = vxor.u32 %v1283, 2147483648
        %v1460 = vxor.u32 %v1285, 2147483648
        %v1461 = vxor.u32 %v1324, 2147483648
        %v1462 = vxor.u32 %v1326, 2147483648
        %v1463 = vxor.u32 %v1365, 2147483648
        %v1464 = vxor.u32 %v1367, 2147483648
        %v1465 = vxor.u32 %v1406, 2147483648
        %v1466 = vxor.u32 %v1408, 2147483648
        %v1467 = vxor.u32 %v1447, 2147483648
        %v1468 = vxor.u32 %v1449, 2147483648
        %v1469 = vmul.f32 %v1453, 1.442695
        %v1470 = vpow.pop %v1469
        %v1471 = vmul.f32 %v1454, 1.442695
        %v1472 = vpow.pop %v1471
        %v1473 = vmul.f32 %v1455, 1.442695
        %v1474 = vpow.pop %v1473
        %v1475 = vmul.f32 %v1456, 1.442695
        %v1476 = vpow.pop %v1475
        %v1477 = vmul.f32 %v1457, 1.442695
        %v1478 = vpow.pop %v1477
        %v1479 = vmul.f32 %v1458, 1.442695
        %v1480 = vpow.pop %v1479
        %v1481 = vmul.f32 %v1459, 1.442695
        %v1482 = vpow.pop %v1481
        %v1483 = vmul.f32 %v1460, 1.442695
        %v1484 = vpow.pop %v1483
        %v1485 = vmul.f32 %v1461, 1.442695
        %v1486 = vpow.pop %v1485
        %v1487 = vmul.f32 %v1462, 1.442695
        %v1488 = vpow.pop %v1487
        %v1489 = vmul.f32 %v1463, 1.442695
        %v1490 = vpow.pop %v1489
        %v1491 = vmul.f32 %v1464, 1.442695
        %v1492 = vpow.pop %v1491
        %v1493 = vmul.f32 %v1465, 1.442695
        %v1494 = vpow.pop %v1493
        %v1495 = vmul.f32 %v1466, 1.442695
        %v1496 = vpow.pop %v1495
        %v1497 = vmul.f32 %v1467, 1.442695
        %v1498 = vpow.pop %v1497
        %v1499 = vmul.f32 %v1468, 1.442695
        %v1500 = vpow.pop %v1499
        %v1501 = vadd.f32 %v1470, 1.0
        %v1502 = vadd.f32 %v1472, 1.0
        %v1503 = vadd.f32 %v1474, 1.0
        %v1504 = vadd.f32 %v1476, 1.0
        %v1505 = vadd.f32 %v1478, 1.0
        %v1506 = vadd.f32 %v1480, 1.0
        %v1507 = vadd.f32 %v1482, 1.0
        %v1508 = vadd.f32 %v1484, 1.0
        %v1509 = vadd.f32 %v1486, 1.0
        %v1510 = vadd.f32 %v1488, 1.0
        %v1511 = vadd.f32 %v1490, 1.0
        %v1512 = vadd.f32 %v1492, 1.0
        %v1513 = vadd.f32 %v1494, 1.0
        %v1514 = vadd.f32 %v1496, 1.0
        %v1515 = vadd.f32 %v1498, 1.0
        %v1516 = vadd.f32 %v1500, 1.0
        %v1517 = vrcp.pop %v1501
        %v1518 = vmul.f32 1.0, %v1517
        %v1519 = vrcp.pop %v1502
        %v1520 = vmul.f32 1.0, %v1519
        %v1521 = vrcp.pop %v1503
        %v1522 = vmul.f32 1.0, %v1521
        %v1523 = vrcp.pop %v1504
        %v1524 = vmul.f32 1.0, %v1523
        %v1525 = vrcp.pop %v1505
        %v1526 = vmul.f32 1.0, %v1525
        %v1527 = vrcp.pop %v1506
        %v1528 = vmul.f32 1.0, %v1527
        %v1529 = vrcp.pop %v1507
        %v1530 = vmul.f32 1.0, %v1529
        %v1531 = vrcp.pop %v1508
        %v1532 = vmul.f32 1.0, %v1531
        %v1533 = vrcp.pop %v1509
        %v1534 = vmul.f32 1.0, %v1533
        %v1535 = vrcp.pop %v1510
        %v1536 = vmul.f32 1.0, %v1535
        %v1537 = vrcp.pop %v1511
        %v1538 = vmul.f32 1.0, %v1537
        %v1539 = vrcp.pop %v1512
        %v1540 = vmul.f32 1.0, %v1539
        %v1541 = vrcp.pop %v1513
        %v1542 = vmul.f32 1.0, %v1541
        %v1543 = vrcp.pop %v1514
        %v1544 = vmul.f32 1.0, %v1543
        %v1545 = vrcp.pop %v1515
        %v1546 = vmul.f32 1.0, %v1545
        %v1547 = vrcp.pop %v1516
        %v1548 = vmul.f32 1.0, %v1547
        %v1565 = vcombine.low %v1518, %v1520
        %v1566 = vcombine.low %v1522, %v1524
        %v1568 = vunpack.c.l.s4 1983009808
        %v1569 = vunpack.c.0.s8 %v1568
        %v1570 = vlaneseq
        %v1571 = vshrl.u32 %v1570, 7
        %v1572 = vsub.s32 %v1569, %v1571
        %v1573 = vrot.slane %v1565, %v1572
        %v1575 = vunpack.c.l.s4 1983009808
        %v1576 = vunpack.c.0.s8 %v1575
        %v1577 = vlaneseq
        %v1578 = vshrl.u32 %v1577, 7
        %v1579 = vsub.s32 %v1576, %v1578
        %v1580 = vrot.slane %v1566, %v1579
        %v1581 = vcombine.low %v1573, %v1580
        %v1582 = vcombine.low %v1526, %v1528
        %v1583 = vcombine.low %v1530, %v1532
        %v1585 = vunpack.c.l.s4 1983009808
        %v1586 = vunpack.c.0.s8 %v1585
        %v1587 = vlaneseq
        %v1588 = vshrl.u32 %v1587, 7
        %v1589 = vsub.s32 %v1586, %v1588
        %v1590 = vrot.slane %v1582, %v1589
        %v1592 = vunpack.c.l.s4 1983009808
        %v1593 = vunpack.c.0.s8 %v1592
        %v1594 = vlaneseq
        %v1595 = vshrl.u32 %v1594, 7
        %v1596 = vsub.s32 %v1593, %v1595
        %v1597 = vrot.slane %v1583, %v1596
        %v1598 = vcombine.low %v1590, %v1597
        %v1599 = vcombine.low %v1534, %v1536
        %v1600 = vcombine.low %v1538, %v1540
        %v1602 = vunpack.c.l.s4 1983009808
        %v1603 = vunpack.c.0.s8 %v1602
        %v1604 = vlaneseq
        %v1605 = vshrl.u32 %v1604, 7
        %v1606 = vsub.s32 %v1603, %v1605
        %v1607 = vrot.slane %v1599, %v1606
        %v1609 = vunpack.c.l.s4 1983009808
        %v1610 = vunpack.c.0.s8 %v1609
        %v1611 = vlaneseq
        %v1612 = vshrl.u32 %v1611, 7
        %v1613 = vsub.s32 %v1610, %v1612
        %v1614 = vrot.slane %v1600, %v1613
        %v1615 = vcombine.low %v1607, %v1614
        %v1616 = vcombine.low %v1542, %v1544
        %v1617 = vcombine.low %v1546, %v1548
        %v1619 = vunpack.c.l.s4 1983009808
        %v1620 = vunpack.c.0.s8 %v1619
        %v1621 = vlaneseq
        %v1622 = vshrl.u32 %v1621, 7
        %v1623 = vsub.s32 %v1620, %v1622
        %v1624 = vrot.slane %v1616, %v1623
        %v1626 = vunpack.c.l.s4 1983009808
        %v1627 = vunpack.c.0.s8 %v1626
        %v1628 = vlaneseq
        %v1629 = vshrl.u32 %v1628, 7
        %v1630 = vsub.s32 %v1627, %v1629
        %v1631 = vrot.slane %v1617, %v1630
        %v1632 = vcombine.low %v1624, %v1631
        %1637 = vst [vmem:[%s439] sm:$0xff] %v1581
        %1638 = vst [vmem:[%s439 + $0x8] sm:$0xff] %v1598
        %1639 = vst [vmem:[%s439 + $0x10] sm:$0xff] %v1615
        %1640 = vst [vmem:[%s439 + $0x18] sm:$0xff] %v1632
        %s1641 = smul.u32 16, %s19
        %p1642 = scmp.lt.s32.totalorder %s18, 1
        %s1643 = scalar_select %p1642, %s18, 1
        %p1644 = scmp.lt.s32.totalorder %s1641, 31
        %s1645 = scalar_select %p1644, %s1641, 31
        %s1646 = smul.addr %s1643, 32
        %s1647 = sadd.s32 %s1645, %s1646
        %s1648 = smul.addr %s1647, 2
        %s1649 = scalar_lea.vmem %s3, %s1648
        // Predicated region
        $region56: #{_lambda_.43} parent=50 // pred_check
          %p1650 = pneg %p116
        $region57: #{_lambda_.43} parent=50 // pred_check_branch
          %1652 = sbr.rel (%p1650) target = $region59
        $region58: #{_lambda_.43} parent=50 // pred_region
          %s1653 = smul.u32 16, %s19
        $region59: #{_lambda_.43} parent=50 // pred_fallthru
          _
      $region51: #{_lambda_.43} parent=5 // pred_fallthru
        _
      %p1654 = scmp.le.s32.totalorder 2, %s9
      // Predicated region
      $region60: #{_lambda_.43} parent=5 // pred_check
        %p1655 = pneg %p1654
      $region61: #{_lambda_.43} parent=5 // pred_check_branch
        %1657 = sbr.rel (%p1655) target = $region63
      $region62: #{_lambda_.43} parent=5 // pred_region
        %s1658 = ssub.s32 %s9, 2
        // Predicated region
        $region64: #{_lambda_.43} parent=62 // pred_check
          %p1659 = pneg %p122
        $region65: #{_lambda_.43} parent=62 // pred_check_branch
          %1661 = sbr.rel (%p1659) target = $region67
        $region66: #{_lambda_.43} parent=62 // pred_region
          %s1662 = smul.u32 16, %s21
          %p1663 = scmp.lt.s32.totalorder %s20, 1
          %s1664 = scalar_select %p1663, %s20, 1
          %p1665 = scmp.lt.s32.totalorder %s1662, 31
          %s1666 = scalar_select %p1665, %s1662, 31
          %s1667 = smul.addr %s1664, 32
          %s1668 = sadd.s32 %s1666, %s1667
          %s1669 = smul.addr %s1668, 2
          %s1670 = scalar_lea.vmem %s3, %s1669
        $region67: #{_lambda_.43} parent=62 // pred_fallthru
          _
      $region63: #{_lambda_.43} parent=5 // pred_fallthru
        _
    $region6: #{_lambda_.43} parent=1 // loop_footer
      %s13 = sadd.s32 1, %s9
    $region7: #{_lambda_.43} parent=1 // loop_footer_branch
      %8 = sbr.rel target = $region3
    $region8: #{_lambda_.43} parent=1 // loop_exit
      _

</llo_original>
